<compile_context>
chip_gen: v5e
topology: v5e:2x2
jax: 0.10.0
libtpu: 0.0.40
codegen_flags: <defaults>
</compile_context>

<pallas_src>
import jax
import jax.numpy as jnp
from jax.experimental import pallas as pl
from jax.experimental.pallas import tpu as pltpu

# ---------------- problem sizes (consistent with the module) ----------------
HOPS = 2
HIDDEN = 16                 # hidden_dim
N_HEAD = 2                  # num_heads
D = 2 * HIDDEN              # attention embed dim (hidden_dim * 2) = 32
H = D // N_HEAD             # per-head hidden dim = 16
D_HID = 4 * HIDDEN          # FFN hidden (hidden_dim * 4) = 64
B = 2                       # batch
T = 8                       # sequence length
LN_EPS_SELF = 1e-5          # nn.LayerNorm default (self_att.norm)
LN_EPS_FFN = 1e-6           # FeedForward.layer_norm eps

# attention-module indices in the stacked parameter arrays
N_ATT = 6
ATT_AUDIO_SELF = 0
ATT_VIDEO_SELF = 1
ATT_AUDIO = 2            # attention_audio
ATT_V2A = 3              # attention_video2audio
ATT_VIDEO = 4            # attention_video
ATT_A2V = 5              # attention_audio2video


# ---------------------------------------------------------------------------
# Single fused kernel: self-attentions + hops loop + FFNs, one grid step.
# ---------------------------------------------------------------------------
def _global_branch_kernel(audio_ref, video_ref,
                          a_wk, a_bk, a_wq, a_bq, a_wmk, a_wmq, a_wp, a_bp,
                          sa_g, sa_b,
                          f_wd, f_bd, f_w1, f_b1, f_w2, f_b2, f_g, f_be,
                          out_ref):
    def layer_norm(v, g, b, eps):
        mu = jnp.mean(v, axis=-1, keepdims=True)
        var = jnp.mean(jnp.square(v - mu), axis=-1, keepdims=True)
        return (v - mu) * jax.lax.rsqrt(var + eps) * g + b

    def attention(idx, k, q):
        """MLP-score multi-head attention on flattened (B*T, D) inputs."""
        wk = a_wk[idx]
        wq = a_wq[idx]
        wmk = a_wmk[idx]        # (1, H) — multiplies the key part of the concat
        wmq = a_wmq[idx]        # (1, H) — multiplies the query part
        wp = a_wp[idx]
        kx = jnp.dot(k, wk, preferred_element_type=jnp.float32) + a_bk[idx]
        qx = jnp.dot(q, wq, preferred_element_type=jnp.float32) + a_bq[idx]
        out_rows = []
        for b in range(B):                       # static unroll over batch
            kx_b = kx[b * T:(b + 1) * T]         # (T, D)
            qx_b = qx[b * T:(b + 1) * T]         # (T, D)
            acc = jnp.zeros((T, D), jnp.float32)
            for h in range(N_HEAD):              # static unroll over heads
                kx_bh = kx_b[:, h * H:(h + 1) * H]       # (T, H)
                qx_bh = qx_b[:, h * H:(h + 1) * H]       # (T, H)
                # score[i, j] = tanh(kx[j] . w[:H] + qx[i] . w[H:])
                sq = jax.lax.dot_general(qx_bh, wmq, (((1,), (1,)), ((), ())),
                                         preferred_element_type=jnp.float32)  # (T,1)
                sk = jax.lax.dot_general(wmk, kx_bh, (((1,), (1,)), ((), ())),
                                         preferred_element_type=jnp.float32)  # (1,T)
                score = jnp.tanh(sq + sk)                                       # (Tq,Tk)
                e = jnp.exp(score)               # tanh-bounded; no max-sub needed
                p = e * pl.reciprocal(jnp.sum(e, axis=-1, keepdims=True),
                                      approx=True)
                head = jnp.dot(p, kx_bh, preferred_element_type=jnp.float32)    # (T,H)
                # concat-over-heads then proj == sum of per-head partial projs
                acc = acc + jnp.dot(head, wp[h * H:(h + 1) * H, :],
                                    preferred_element_type=jnp.float32)
            out_rows.append(acc)
        out = jnp.concatenate(out_rows, axis=0)  # (B*T, D)
        return out + a_bp[idx]

    def feed_forward(idx, x1, x2):
        wd = f_wd[idx]                           # (2D, D)
        g = f_g[idx]
        be = f_be[idx]
        t1 = jnp.tanh(x1)
        t2 = jnp.tanh(x2)
        # tanh(cat(x1,x2)) @ W_down == tanh(x1) @ W_down[:D] + tanh(x2) @ W_down[D:]
        x = (jnp.dot(t1, wd[:D, :], preferred_element_type=jnp.float32)
             + jnp.dot(t2, wd[D:, :], preferred_element_type=jnp.float32)
             + f_bd[idx])
        x = jnp.maximum(x, 0.0)
        x = layer_norm(x, g, be, LN_EPS_FFN)
        res = x
        hid = jnp.maximum(jnp.dot(x, f_w1[idx], preferred_element_type=jnp.float32)
                          + f_b1[idx], 0.0)      # (B*T, D_HID)
        x = jnp.dot(hid, f_w2[idx], preferred_element_type=jnp.float32) + f_b2[idx]
        return layer_norm(x + res, g, be, LN_EPS_FFN)

    audio = audio_ref[...]                       # (B*T, D)
    video = video_ref[...]                       # (B*T, D)

    # self-attention blocks:  norm(x + Attention(x, x))
    audio_mem = layer_norm(audio + attention(ATT_AUDIO_SELF, audio, audio),
                           sa_g[0], sa_b[0], LN_EPS_SELF)
    video_mem = layer_norm(video + attention(ATT_VIDEO_SELF, video, video),
                           sa_g[1], sa_b[1], LN_EPS_SELF)

    et_audio = audio_mem
    et_video = video_mem
    for _ in range(HOPS):                        # static unroll over hops
        a2a = attention(ATT_AUDIO, audio_mem, et_audio)
        v2a = attention(ATT_V2A, audio_mem, et_video)
        it_audio = (a2a + v2a) * 0.5
        v2v = attention(ATT_VIDEO, video_mem, et_video)
        a2v = attention(ATT_A2V, video_mem, et_audio)
        it_video = (v2v + a2v) * 0.5
        et_audio = feed_forward(0, it_audio, et_audio)
        et_video = feed_forward(1, it_video, et_video)

    # single lane-denser store: audio | video stacked along the lane axis
    out_ref[...] = jnp.concatenate([et_audio, et_video], axis=-1)


# ---------------------------------------------------------------------------
# Wrapper: one pallas_call for the whole module
# ---------------------------------------------------------------------------
@jax.jit
def global_branch(params, audio_memory, video_memory):
    b, t, d = audio_memory.shape
    a_flat = audio_memory.reshape(b * t, d)
    v_flat = video_memory.reshape(b * t, d)

    args = (
        a_flat, v_flat,
        params["att_wk"], params["att_bk"], params["att_wq"], params["att_bq"],
        params["att_wmk"], params["att_wmq"], params["att_wp"], params["att_bp"],
        params["sa_ln_g"], params["sa_ln_b"],
        params["ffn_wd"], params["ffn_bd"], params["ffn_w1"], params["ffn_b1"],
        params["ffn_w2"], params["ffn_b2"], params["ffn_ln_g"], params["ffn_ln_b"],
    )
    vmem = pl.BlockSpec(memory_space=pltpu.MemorySpace.VMEM)
    out = pl.pallas_call(
        _global_branch_kernel,
        out_shape=jax.ShapeDtypeStruct((b * t, 2 * d), jnp.float32),
        in_specs=[vmem] * len(args),
        out_specs=vmem,
    )(*args)

    out = out.reshape(b, t, 2 * d)
    return out[..., :d], out[..., d:]


# ---------------------------------------------------------------------------
# Deterministic parameter initialization (synthetic — no checkpoint load).
# Parameters are stacked along a leading module-index axis so the fused
# kernel keeps all of them VMEM-resident.
# ---------------------------------------------------------------------------
def init_global_branch_params(key, scale=0.1):
    k_att, k_ffn = jax.random.split(key)
    ka = jax.random.split(k_att, 5)
    kf = jax.random.split(k_ffn, 3)
    return {
        # 6 attention modules: [audio_self, video_self, audio, video2audio,
        #                       video, audio2video]
        "att_wk": scale * jax.random.normal(ka[0], (N_ATT, D, D), jnp.float32),
        "att_bk": jnp.zeros((N_ATT, 1, D), jnp.float32),
        "att_wq": scale * jax.random.normal(ka[1], (N_ATT, D, D), jnp.float32),
        "att_bq": jnp.zeros((N_ATT, 1, D), jnp.float32),
        "att_wmk": scale * jax.random.normal(ka[2], (N_ATT, 1, H), jnp.float32),
        "att_wmq": scale * jax.random.normal(ka[3], (N_ATT, 1, H), jnp.float32),
        "att_wp": scale * jax.random.normal(ka[4], (N_ATT, D, D), jnp.float32),
        "att_bp": jnp.zeros((N_ATT, 1, D), jnp.float32),
        # self-att LayerNorm params: [audio, video]
        "sa_ln_g": jnp.ones((2, 1, D), jnp.float32),
        "sa_ln_b": jnp.zeros((2, 1, D), jnp.float32),
        # 2 FeedForward modules: [audio, video]
        "ffn_wd": scale * jax.random.normal(kf[0], (2, 2 * D, D), jnp.float32),
        "ffn_bd": jnp.zeros((2, 1, D), jnp.float32),
        "ffn_w1": scale * jax.random.normal(kf[1], (2, D, D_HID), jnp.float32),
        "ffn_b1": jnp.zeros((2, 1, D_HID), jnp.float32),
        "ffn_w2": scale * jax.random.normal(kf[2], (2, D_HID, D), jnp.float32),
        "ffn_b2": jnp.zeros((2, 1, D), jnp.float32),
        "ffn_ln_g": jnp.ones((2, 1, D), jnp.float32),
        "ffn_ln_b": jnp.zeros((2, 1, D), jnp.float32),
    }


if __name__ == "__main__":
    key = jax.random.PRNGKey(0)
    ka, kv, kp = jax.random.split(key, 3)
    audio_memory = jax.random.normal(ka, (B, T, D), jnp.float32)
    video_memory = jax.random.normal(kv, (B, T, D), jnp.float32)
    params = init_global_branch_params(kp)

    et_audio, et_video = global_branch(params, audio_memory, video_memory)
    jax.block_until_ready((et_audio, et_video))

    assert et_audio.shape == (B, T, D) and et_video.shape == (B, T, D)
    assert bool(jnp.all(jnp.isfinite(et_audio))) and bool(jnp.all(jnp.isfinite(et_video)))
    print("KERNEL_OK")
</pallas_src>

<mosaic_0001>
module attributes {stable_mosaic.version = 11 : i64} {
  func.func @_global_branch_kernel(%arg0: memref<16x32xf32, #tpu.memory_space<vmem>>, %arg1: memref<16x32xf32, #tpu.memory_space<vmem>>, %arg2: memref<6x32x32xf32, #tpu.memory_space<vmem>>, %arg3: memref<6x1x32xf32, #tpu.memory_space<vmem>>, %arg4: memref<6x32x32xf32, #tpu.memory_space<vmem>>, %arg5: memref<6x1x32xf32, #tpu.memory_space<vmem>>, %arg6: memref<6x1x16xf32, #tpu.memory_space<vmem>>, %arg7: memref<6x1x16xf32, #tpu.memory_space<vmem>>, %arg8: memref<6x32x32xf32, #tpu.memory_space<vmem>>, %arg9: memref<6x1x32xf32, #tpu.memory_space<vmem>>, %arg10: memref<2x1x32xf32, #tpu.memory_space<vmem>>, %arg11: memref<2x1x32xf32, #tpu.memory_space<vmem>>, %arg12: memref<2x64x32xf32, #tpu.memory_space<vmem>>, %arg13: memref<2x1x32xf32, #tpu.memory_space<vmem>>, %arg14: memref<2x32x64xf32, #tpu.memory_space<vmem>>, %arg15: memref<2x1x64xf32, #tpu.memory_space<vmem>>, %arg16: memref<2x64x32xf32, #tpu.memory_space<vmem>>, %arg17: memref<2x1x32xf32, #tpu.memory_space<vmem>>, %arg18: memref<2x1x32xf32, #tpu.memory_space<vmem>>, %arg19: memref<2x1x32xf32, #tpu.memory_space<vmem>>, %arg20: memref<16x64xf32, #tpu.memory_space<vmem>>) attributes {dimension_semantics = [], scalar_prefetch = 0 : i64, scratch_operands = 0 : i64, tpu.core_type = #tpu.core_type<tc>} {
    %c0 = arith.constant 0 : index
    %c0_0 = arith.constant 0 : index
    %0 = vector.load %arg0[%c0, %c0_0] : memref<16x32xf32, #tpu.memory_space<vmem>>, vector<16x32xf32>
    %c0_1 = arith.constant 0 : index
    %c0_2 = arith.constant 0 : index
    %1 = vector.load %arg1[%c0_1, %c0_2] : memref<16x32xf32, #tpu.memory_space<vmem>>, vector<16x32xf32>
    %c0_3 = arith.constant 0 : index
    %c0_4 = arith.constant 0 : index
    %c0_5 = arith.constant 0 : index
    %2 = vector.load %arg2[%c0_3, %c0_4, %c0_5] : memref<6x32x32xf32, #tpu.memory_space<vmem>>, vector<1x32x32xf32>
    %3 = vector.shape_cast %2 : vector<1x32x32xf32> to vector<32x32xf32>
    %c0_6 = arith.constant 0 : index
    %c0_7 = arith.constant 0 : index
    %c0_8 = arith.constant 0 : index
    %4 = vector.load %arg4[%c0_6, %c0_7, %c0_8] : memref<6x32x32xf32, #tpu.memory_space<vmem>>, vector<1x32x32xf32>
    %5 = vector.shape_cast %4 : vector<1x32x32xf32> to vector<32x32xf32>
    %c0_9 = arith.constant 0 : index
    %c0_10 = arith.constant 0 : index
    %c0_11 = arith.constant 0 : index
    %6 = vector.load %arg6[%c0_9, %c0_10, %c0_11] : memref<6x1x16xf32, #tpu.memory_space<vmem>>, vector<1x1x16xf32>
    %7 = vector.shape_cast %6 : vector<1x1x16xf32> to vector<1x16xf32>
    %c0_12 = arith.constant 0 : index
    %c0_13 = arith.constant 0 : index
    %c0_14 = arith.constant 0 : index
    %8 = vector.load %arg7[%c0_12, %c0_13, %c0_14] : memref<6x1x16xf32, #tpu.memory_space<vmem>>, vector<1x1x16xf32>
    %9 = vector.shape_cast %8 : vector<1x1x16xf32> to vector<1x16xf32>
    %c0_15 = arith.constant 0 : index
    %c0_16 = arith.constant 0 : index
    %c0_17 = arith.constant 0 : index
    %10 = vector.load %arg8[%c0_15, %c0_16, %c0_17] : memref<6x32x32xf32, #tpu.memory_space<vmem>>, vector<1x32x32xf32>
    %11 = vector.shape_cast %10 : vector<1x32x32xf32> to vector<32x32xf32>
    %cst = arith.constant dense<0.000000e+00> : vector<16x32xf32>
    %12 = tpu.matmul %0, %3, %cst {dimension_numbers = #tpu.dot_dimension_numbers<[1], [0], [0], [1], [0, 0, 1, 1], [], []>} : vector<16x32xf32>, vector<32x32xf32>, vector<16x32xf32> -> vector<16x32xf32>
    %c0_18 = arith.constant 0 : index
    %c0_19 = arith.constant 0 : index
    %c0_20 = arith.constant 0 : index
    %13 = vector.load %arg3[%c0_18, %c0_19, %c0_20] : memref<6x1x32xf32, #tpu.memory_space<vmem>>, vector<1x1x32xf32>
    %14 = vector.shape_cast %13 : vector<1x1x32xf32> to vector<1x32xf32>
    %15 = vector.broadcast %14 : vector<1x32xf32> to vector<16x32xf32>
    %16 = arith.addf %12, %15 : vector<16x32xf32>
    %cst_21 = arith.constant dense<0.000000e+00> : vector<16x32xf32>
    %17 = tpu.matmul %0, %5, %cst_21 {dimension_numbers = #tpu.dot_dimension_numbers<[1], [0], [0], [1], [0, 0, 1, 1], [], []>} : vector<16x32xf32>, vector<32x32xf32>, vector<16x32xf32> -> vector<16x32xf32>
    %c0_22 = arith.constant 0 : index
    %c0_23 = arith.constant 0 : index
    %c0_24 = arith.constant 0 : index
    %18 = vector.load %arg5[%c0_22, %c0_23, %c0_24] : memref<6x1x32xf32, #tpu.memory_space<vmem>>, vector<1x1x32xf32>
    %19 = vector.shape_cast %18 : vector<1x1x32xf32> to vector<1x32xf32>
    %20 = vector.broadcast %19 : vector<1x32xf32> to vector<16x32xf32>
    %21 = arith.addf %17, %20 : vector<16x32xf32>
    %22 = vector.extract_strided_slice %16 {offsets = [0, 0], sizes = [8, 32], strides = [1, 1]} : vector<16x32xf32> to vector<8x32xf32>
    %23 = vector.extract_strided_slice %21 {offsets = [0, 0], sizes = [8, 32], strides = [1, 1]} : vector<16x32xf32> to vector<8x32xf32>
    %cst_25 = arith.constant 0.000000e+00 : f32
    %24 = vector.broadcast %cst_25 : f32 to vector<8x32xf32>
    %25 = vector.extract_strided_slice %22 {offsets = [0, 0], sizes = [8, 16], strides = [1, 1]} : vector<8x32xf32> to vector<8x16xf32>
    %26 = vector.extract_strided_slice %23 {offsets = [0, 0], sizes = [8, 16], strides = [1, 1]} : vector<8x32xf32> to vector<8x16xf32>
    %cst_26 = arith.constant dense<0.000000e+00> : vector<8x1xf32>
    %27 = tpu.matmul %26, %9, %cst_26 {dimension_numbers = #tpu.dot_dimension_numbers<[1], [1], [0], [0], [0, 0, 1, 0], [], []>} : vector<8x16xf32>, vector<1x16xf32>, vector<8x1xf32> -> vector<8x1xf32>
    %cst_27 = arith.constant dense<0.000000e+00> : vector<1x8xf32>
    %28 = tpu.matmul %7, %25, %cst_27 {dimension_numbers = #tpu.dot_dimension_numbers<[1], [1], [0], [0], [0, 0, 1, 0], [], []>} : vector<1x16xf32>, vector<8x16xf32>, vector<1x8xf32> -> vector<1x8xf32>
    %29 = vector.broadcast %27 : vector<8x1xf32> to vector<8x8xf32>
    %30 = vector.broadcast %28 : vector<1x8xf32> to vector<8x8xf32>
    %31 = arith.addf %29, %30 : vector<8x8xf32>
    %32 = math.tanh %31 : vector<8x8xf32>
    %33 = math.exp %32 : vector<8x8xf32>
    %cst_28 = arith.constant dense<0.000000e+00> : vector<8xf32>
    %34 = vector.multi_reduction <add>, %33, %cst_28 [1] : vector<8x8xf32> to vector<8xf32>
    %35 = vector.shape_cast %34 : vector<8xf32> to vector<8x1xf32>
    %36 = tpu.reciprocal %35 {approx = true} : vector<8x1xf32> -> vector<8x1xf32>
    %37 = vector.broadcast %36 : vector<8x1xf32> to vector<8x8xf32>
    %38 = arith.mulf %33, %37 : vector<8x8xf32>
    %cst_29 = arith.constant dense<0.000000e+00> : vector<8x16xf32>
    %39 = tpu.matmul %38, %25, %cst_29 {dimension_numbers = #tpu.dot_dimension_numbers<[1], [0], [0], [1], [0, 0, 1, 1], [], []>} : vector<8x8xf32>, vector<8x16xf32>, vector<8x16xf32> -> vector<8x16xf32>
    %40 = vector.extract_strided_slice %11 {offsets = [0, 0], sizes = [16, 32], strides = [1, 1]} : vector<32x32xf32> to vector<16x32xf32>
    %cst_30 = arith.constant dense<0.000000e+00> : vector<8x32xf32>
    %41 = tpu.matmul %39, %40, %cst_30 {dimension_numbers = #tpu.dot_dimension_numbers<[1], [0], [0], [1], [0, 0, 1, 1], [], []>} : vector<8x16xf32>, vector<16x32xf32>, vector<8x32xf32> -> vector<8x32xf32>
    %42 = arith.addf %24, %41 : vector<8x32xf32>
    %43 = vector.extract_strided_slice %22 {offsets = [0, 16], sizes = [8, 16], strides = [1, 1]} : vector<8x32xf32> to vector<8x16xf32>
    %44 = vector.extract_strided_slice %23 {offsets = [0, 16], sizes = [8, 16], strides = [1, 1]} : vector<8x32xf32> to vector<8x16xf32>
    %cst_31 = arith.constant dense<0.000000e+00> : vector<8x1xf32>
    %45 = tpu.matmul %44, %9, %cst_31 {dimension_numbers = #tpu.dot_dimension_numbers<[1], [1], [0], [0], [0, 0, 1, 0], [], []>} : vector<8x16xf32>, vector<1x16xf32>, vector<8x1xf32> -> vector<8x1xf32>
    %cst_32 = arith.constant dense<0.000000e+00> : vector<1x8xf32>
    %46 = tpu.matmul %7, %43, %cst_32 {dimension_numbers = #tpu.dot_dimension_numbers<[1], [1], [0], [0], [0, 0, 1, 0], [], []>} : vector<1x16xf32>, vector<8x16xf32>, vector<1x8xf32> -> vector<1x8xf32>
    %47 = vector.broadcast %45 : vector<8x1xf32> to vector<8x8xf32>
    %48 = vector.broadcast %46 : vector<1x8xf32> to vector<8x8xf32>
    %49 = arith.addf %47, %48 : vector<8x8xf32>
    %50 = math.tanh %49 : vector<8x8xf32>
    %51 = math.exp %50 : vector<8x8xf32>
    %cst_33 = arith.constant dense<0.000000e+00> : vector<8xf32>
    %52 = vector.multi_reduction <add>, %51, %cst_33 [1] : vector<8x8xf32> to vector<8xf32>
    %53 = vector.shape_cast %52 : vector<8xf32> to vector<8x1xf32>
    %54 = tpu.reciprocal %53 {approx = true} : vector<8x1xf32> -> vector<8x1xf32>
    %55 = vector.broadcast %54 : vector<8x1xf32> to vector<8x8xf32>
    %56 = arith.mulf %51, %55 : vector<8x8xf32>
    %cst_34 = arith.constant dense<0.000000e+00> : vector<8x16xf32>
    %57 = tpu.matmul %56, %43, %cst_34 {dimension_numbers = #tpu.dot_dimension_numbers<[1], [0], [0], [1], [0, 0, 1, 1], [], []>} : vector<8x8xf32>, vector<8x16xf32>, vector<8x16xf32> -> vector<8x16xf32>
    %58 = vector.extract_strided_slice %11 {offsets = [16, 0], sizes = [16, 32], strides = [1, 1]} : vector<32x32xf32> to vector<16x32xf32>
    %cst_35 = arith.constant dense<0.000000e+00> : vector<8x32xf32>
    %59 = tpu.matmul %57, %58, %cst_35 {dimension_numbers = #tpu.dot_dimension_numbers<[1], [0], [0], [1], [0, 0, 1, 1], [], []>} : vector<8x16xf32>, vector<16x32xf32>, vector<8x32xf32> -> vector<8x32xf32>
    %60 = arith.addf %42, %59 : vector<8x32xf32>
    %61 = vector.extract_strided_slice %16 {offsets = [8, 0], sizes = [8, 32], strides = [1, 1]} : vector<16x32xf32> to vector<8x32xf32>
    %62 = vector.extract_strided_slice %21 {offsets = [8, 0], sizes = [8, 32], strides = [1, 1]} : vector<16x32xf32> to vector<8x32xf32>
    %cst_36 = arith.constant 0.000000e+00 : f32
    %63 = vector.broadcast %cst_36 : f32 to vector<8x32xf32>
    %64 = vector.extract_strided_slice %61 {offsets = [0, 0], sizes = [8, 16], strides = [1, 1]} : vector<8x32xf32> to vector<8x16xf32>
    %65 = vector.extract_strided_slice %62 {offsets = [0, 0], sizes = [8, 16], strides = [1, 1]} : vector<8x32xf32> to vector<8x16xf32>
    %cst_37 = arith.constant dense<0.000000e+00> : vector<8x1xf32>
    %66 = tpu.matmul %65, %9, %cst_37 {dimension_numbers = #tpu.dot_dimension_numbers<[1], [1], [0], [0], [0, 0, 1, 0], [], []>} : vector<8x16xf32>, vector<1x16xf32>, vector<8x1xf32> -> vector<8x1xf32>
    %cst_38 = arith.constant dense<0.000000e+00> : vector<1x8xf32>
    %67 = tpu.matmul %7, %64, %cst_38 {dimension_numbers = #tpu.dot_dimension_numbers<[1], [1], [0], [0], [0, 0, 1, 0], [], []>} : vector<1x16xf32>, vector<8x16xf32>, vector<1x8xf32> -> vector<1x8xf32>
    %68 = vector.broadcast %66 : vector<8x1xf32> to vector<8x8xf32>
    %69 = vector.broadcast %67 : vector<1x8xf32> to vector<8x8xf32>
    %70 = arith.addf %68, %69 : vector<8x8xf32>
    %71 = math.tanh %70 : vector<8x8xf32>
    %72 = math.exp %71 : vector<8x8xf32>
    %cst_39 = arith.constant dense<0.000000e+00> : vector<8xf32>
    %73 = vector.multi_reduction <add>, %72, %cst_39 [1] : vector<8x8xf32> to vector<8xf32>
    %74 = vector.shape_cast %73 : vector<8xf32> to vector<8x1xf32>
    %75 = tpu.reciprocal %74 {approx = true} : vector<8x1xf32> -> vector<8x1xf32>
    %76 = vector.broadcast %75 : vector<8x1xf32> to vector<8x8xf32>
    %77 = arith.mulf %72, %76 : vector<8x8xf32>
    %cst_40 = arith.constant dense<0.000000e+00> : vector<8x16xf32>
    %78 = tpu.matmul %77, %64, %cst_40 {dimension_numbers = #tpu.dot_dimension_numbers<[1], [0], [0], [1], [0, 0, 1, 1], [], []>} : vector<8x8xf32>, vector<8x16xf32>, vector<8x16xf32> -> vector<8x16xf32>
    %79 = vector.extract_strided_slice %11 {offsets = [0, 0], sizes = [16, 32], strides = [1, 1]} : vector<32x32xf32> to vector<16x32xf32>
    %cst_41 = arith.constant dense<0.000000e+00> : vector<8x32xf32>
    %80 = tpu.matmul %78, %79, %cst_41 {dimension_numbers = #tpu.dot_dimension_numbers<[1], [0], [0], [1], [0, 0, 1, 1], [], []>} : vector<8x16xf32>, vector<16x32xf32>, vector<8x32xf32> -> vector<8x32xf32>
    %81 = arith.addf %63, %80 : vector<8x32xf32>
    %82 = vector.extract_strided_slice %61 {offsets = [0, 16], sizes = [8, 16], strides = [1, 1]} : vector<8x32xf32> to vector<8x16xf32>
    %83 = vector.extract_strided_slice %62 {offsets = [0, 16], sizes = [8, 16], strides = [1, 1]} : vector<8x32xf32> to vector<8x16xf32>
    %cst_42 = arith.constant dense<0.000000e+00> : vector<8x1xf32>
    %84 = tpu.matmul %83, %9, %cst_42 {dimension_numbers = #tpu.dot_dimension_numbers<[1], [1], [0], [0], [0, 0, 1, 0], [], []>} : vector<8x16xf32>, vector<1x16xf32>, vector<8x1xf32> -> vector<8x1xf32>
    %cst_43 = arith.constant dense<0.000000e+00> : vector<1x8xf32>
    %85 = tpu.matmul %7, %82, %cst_43 {dimension_numbers = #tpu.dot_dimension_numbers<[1], [1], [0], [0], [0, 0, 1, 0], [], []>} : vector<1x16xf32>, vector<8x16xf32>, vector<1x8xf32> -> vector<1x8xf32>
    %86 = vector.broadcast %84 : vector<8x1xf32> to vector<8x8xf32>
    %87 = vector.broadcast %85 : vector<1x8xf32> to vector<8x8xf32>
    %88 = arith.addf %86, %87 : vector<8x8xf32>
    %89 = math.tanh %88 : vector<8x8xf32>
    %90 = math.exp %89 : vector<8x8xf32>
    %cst_44 = arith.constant dense<0.000000e+00> : vector<8xf32>
    %91 = vector.multi_reduction <add>, %90, %cst_44 [1] : vector<8x8xf32> to vector<8xf32>
    %92 = vector.shape_cast %91 : vector<8xf32> to vector<8x1xf32>
    %93 = tpu.reciprocal %92 {approx = true} : vector<8x1xf32> -> vector<8x1xf32>
    %94 = vector.broadcast %93 : vector<8x1xf32> to vector<8x8xf32>
    %95 = arith.mulf %90, %94 : vector<8x8xf32>
    %cst_45 = arith.constant dense<0.000000e+00> : vector<8x16xf32>
    %96 = tpu.matmul %95, %82, %cst_45 {dimension_numbers = #tpu.dot_dimension_numbers<[1], [0], [0], [1], [0, 0, 1, 1], [], []>} : vector<8x8xf32>, vector<8x16xf32>, vector<8x16xf32> -> vector<8x16xf32>
    %97 = vector.extract_strided_slice %11 {offsets = [16, 0], sizes = [16, 32], strides = [1, 1]} : vector<32x32xf32> to vector<16x32xf32>
    %cst_46 = arith.constant dense<0.000000e+00> : vector<8x32xf32>
    %98 = tpu.matmul %96, %97, %cst_46 {dimension_numbers = #tpu.dot_dimension_numbers<[1], [0], [0], [1], [0, 0, 1, 1], [], []>} : vector<8x16xf32>, vector<16x32xf32>, vector<8x32xf32> -> vector<8x32xf32>
    %99 = arith.addf %81, %98 : vector<8x32xf32>
    %100 = tpu.concatenate %60, %99 in 0 : vector<8x32xf32>, vector<8x32xf32> -> vector<16x32xf32>
    %c0_47 = arith.constant 0 : index
    %c0_48 = arith.constant 0 : index
    %c0_49 = arith.constant 0 : index
    %101 = vector.load %arg9[%c0_47, %c0_48, %c0_49] : memref<6x1x32xf32, #tpu.memory_space<vmem>>, vector<1x1x32xf32>
    %102 = vector.shape_cast %101 : vector<1x1x32xf32> to vector<1x32xf32>
    %103 = vector.broadcast %102 : vector<1x32xf32> to vector<16x32xf32>
    %104 = arith.addf %100, %103 : vector<16x32xf32>
    %105 = arith.addf %0, %104 : vector<16x32xf32>
    %c0_50 = arith.constant 0 : index
    %c0_51 = arith.constant 0 : index
    %c0_52 = arith.constant 0 : index
    %106 = vector.load %arg10[%c0_50, %c0_51, %c0_52] : memref<2x1x32xf32, #tpu.memory_space<vmem>>, vector<1x1x32xf32>
    %107 = vector.shape_cast %106 : vector<1x1x32xf32> to vector<1x32xf32>
    %c0_53 = arith.constant 0 : index
    %c0_54 = arith.constant 0 : index
    %c0_55 = arith.constant 0 : index
    %108 = vector.load %arg11[%c0_53, %c0_54, %c0_55] : memref<2x1x32xf32, #tpu.memory_space<vmem>>, vector<1x1x32xf32>
    %109 = vector.shape_cast %108 : vector<1x1x32xf32> to vector<1x32xf32>
    %cst_56 = arith.constant dense<0.000000e+00> : vector<16xf32>
    %110 = vector.multi_reduction <add>, %105, %cst_56 [1] : vector<16x32xf32> to vector<16xf32>
    %111 = vector.shape_cast %110 : vector<16xf32> to vector<16x1xf32>
    %cst_57 = arith.constant 3.200000e+01 : f32
    %112 = vector.broadcast %cst_57 : f32 to vector<16x1xf32>
    %113 = arith.divf %111, %112 : vector<16x1xf32>
    %114 = vector.broadcast %113 : vector<16x1xf32> to vector<16x32xf32>
    %115 = arith.subf %105, %114 : vector<16x32xf32>
    %116 = arith.mulf %115, %115 : vector<16x32xf32>
    %cst_58 = arith.constant dense<0.000000e+00> : vector<16xf32>
    %117 = vector.multi_reduction <add>, %116, %cst_58 [1] : vector<16x32xf32> to vector<16xf32>
    %118 = vector.shape_cast %117 : vector<16xf32> to vector<16x1xf32>
    %cst_59 = arith.constant 3.200000e+01 : f32
    %119 = vector.broadcast %cst_59 : f32 to vector<16x1xf32>
    %120 = arith.divf %118, %119 : vector<16x1xf32>
    %121 = vector.broadcast %113 : vector<16x1xf32> to vector<16x32xf32>
    %122 = arith.subf %105, %121 : vector<16x32xf32>
    %cst_60 = arith.constant 9.99999974E-6 : f32
    %123 = vector.broadcast %cst_60 : f32 to vector<16x1xf32>
    %124 = arith.addf %120, %123 : vector<16x1xf32>
    %125 = math.rsqrt %124 : vector<16x1xf32>
    %126 = vector.broadcast %125 : vector<16x1xf32> to vector<16x32xf32>
    %127 = arith.mulf %122, %126 : vector<16x32xf32>
    %128 = vector.broadcast %107 : vector<1x32xf32> to vector<16x32xf32>
    %129 = arith.mulf %127, %128 : vector<16x32xf32>
    %130 = vector.broadcast %109 : vector<1x32xf32> to vector<16x32xf32>
    %131 = arith.addf %129, %130 : vector<16x32xf32>
    %c1 = arith.constant 1 : index
    %c0_61 = arith.constant 0 : index
    %c0_62 = arith.constant 0 : index
    %132 = vector.load %arg2[%c1, %c0_61, %c0_62] : memref<6x32x32xf32, #tpu.memory_space<vmem>>, vector<1x32x32xf32>
    %133 = vector.shape_cast %132 : vector<1x32x32xf32> to vector<32x32xf32>
    %c1_63 = arith.constant 1 : index
    %c0_64 = arith.constant 0 : index
    %c0_65 = arith.constant 0 : index
    %134 = vector.load %arg4[%c1_63, %c0_64, %c0_65] : memref<6x32x32xf32, #tpu.memory_space<vmem>>, vector<1x32x32xf32>
    %135 = vector.shape_cast %134 : vector<1x32x32xf32> to vector<32x32xf32>
    %c1_66 = arith.constant 1 : index
    %c0_67 = arith.constant 0 : index
    %c0_68 = arith.constant 0 : index
    %136 = vector.load %arg6[%c1_66, %c0_67, %c0_68] : memref<6x1x16xf32, #tpu.memory_space<vmem>>, vector<1x1x16xf32>
    %137 = vector.shape_cast %136 : vector<1x1x16xf32> to vector<1x16xf32>
    %c1_69 = arith.constant 1 : index
    %c0_70 = arith.constant 0 : index
    %c0_71 = arith.constant 0 : index
    %138 = vector.load %arg7[%c1_69, %c0_70, %c0_71] : memref<6x1x16xf32, #tpu.memory_space<vmem>>, vector<1x1x16xf32>
    %139 = vector.shape_cast %138 : vector<1x1x16xf32> to vector<1x16xf32>
    %c1_72 = arith.constant 1 : index
    %c0_73 = arith.constant 0 : index
    %c0_74 = arith.constant 0 : index
    %140 = vector.load %arg8[%c1_72, %c0_73, %c0_74] : memref<6x32x32xf32, #tpu.memory_space<vmem>>, vector<1x32x32xf32>
    %141 = vector.shape_cast %140 : vector<1x32x32xf32> to vector<32x32xf32>
    %cst_75 = arith.constant dense<0.000000e+00> : vector<16x32xf32>
    %142 = tpu.matmul %1, %133, %cst_75 {dimension_numbers = #tpu.dot_dimension_numbers<[1], [0], [0], [1], [0, 0, 1, 1], [], []>} : vector<16x32xf32>, vector<32x32xf32>, vector<16x32xf32> -> vector<16x32xf32>
    %c1_76 = arith.constant 1 : index
    %c0_77 = arith.constant 0 : index
    %c0_78 = arith.constant 0 : index
    %143 = vector.load %arg3[%c1_76, %c0_77, %c0_78] : memref<6x1x32xf32, #tpu.memory_space<vmem>>, vector<1x1x32xf32>
    %144 = vector.shape_cast %143 : vector<1x1x32xf32> to vector<1x32xf32>
    %145 = vector.broadcast %144 : vector<1x32xf32> to vector<16x32xf32>
    %146 = arith.addf %142, %145 : vector<16x32xf32>
    %cst_79 = arith.constant dense<0.000000e+00> : vector<16x32xf32>
    %147 = tpu.matmul %1, %135, %cst_79 {dimension_numbers = #tpu.dot_dimension_numbers<[1], [0], [0], [1], [0, 0, 1, 1], [], []>} : vector<16x32xf32>, vector<32x32xf32>, vector<16x32xf32> -> vector<16x32xf32>
    %c1_80 = arith.constant 1 : index
    %c0_81 = arith.constant 0 : index
    %c0_82 = arith.constant 0 : index
    %148 = vector.load %arg5[%c1_80, %c0_81, %c0_82] : memref<6x1x32xf32, #tpu.memory_space<vmem>>, vector<1x1x32xf32>
    %149 = vector.shape_cast %148 : vector<1x1x32xf32> to vector<1x32xf32>
    %150 = vector.broadcast %149 : vector<1x32xf32> to vector<16x32xf32>
    %151 = arith.addf %147, %150 : vector<16x32xf32>
    %152 = vector.extract_strided_slice %146 {offsets = [0, 0], sizes = [8, 32], strides = [1, 1]} : vector<16x32xf32> to vector<8x32xf32>
    %153 = vector.extract_strided_slice %151 {offsets = [0, 0], sizes = [8, 32], strides = [1, 1]} : vector<16x32xf32> to vector<8x32xf32>
    %cst_83 = arith.constant 0.000000e+00 : f32
    %154 = vector.broadcast %cst_83 : f32 to vector<8x32xf32>
    %155 = vector.extract_strided_slice %152 {offsets = [0, 0], sizes = [8, 16], strides = [1, 1]} : vector<8x32xf32> to vector<8x16xf32>
    %156 = vector.extract_strided_slice %153 {offsets = [0, 0], sizes = [8, 16], strides = [1, 1]} : vector<8x32xf32> to vector<8x16xf32>
    %cst_84 = arith.constant dense<0.000000e+00> : vector<8x1xf32>
    %157 = tpu.matmul %156, %139, %cst_84 {dimension_numbers = #tpu.dot_dimension_numbers<[1], [1], [0], [0], [0, 0, 1, 0], [], []>} : vector<8x16xf32>, vector<1x16xf32>, vector<8x1xf32> -> vector<8x1xf32>
    %cst_85 = arith.constant dense<0.000000e+00> : vector<1x8xf32>
    %158 = tpu.matmul %137, %155, %cst_85 {dimension_numbers = #tpu.dot_dimension_numbers<[1], [1], [0], [0], [0, 0, 1, 0], [], []>} : vector<1x16xf32>, vector<8x16xf32>, vector<1x8xf32> -> vector<1x8xf32>
    %159 = vector.broadcast %157 : vector<8x1xf32> to vector<8x8xf32>
    %160 = vector.broadcast %158 : vector<1x8xf32> to vector<8x8xf32>
    %161 = arith.addf %159, %160 : vector<8x8xf32>
    %162 = math.tanh %161 : vector<8x8xf32>
    %163 = math.exp %162 : vector<8x8xf32>
    %cst_86 = arith.constant dense<0.000000e+00> : vector<8xf32>
    %164 = vector.multi_reduction <add>, %163, %cst_86 [1] : vector<8x8xf32> to vector<8xf32>
    %165 = vector.shape_cast %164 : vector<8xf32> to vector<8x1xf32>
    %166 = tpu.reciprocal %165 {approx = true} : vector<8x1xf32> -> vector<8x1xf32>
    %167 = vector.broadcast %166 : vector<8x1xf32> to vector<8x8xf32>
    %168 = arith.mulf %163, %167 : vector<8x8xf32>
    %cst_87 = arith.constant dense<0.000000e+00> : vector<8x16xf32>
    %169 = tpu.matmul %168, %155, %cst_87 {dimension_numbers = #tpu.dot_dimension_numbers<[1], [0], [0], [1], [0, 0, 1, 1], [], []>} : vector<8x8xf32>, vector<8x16xf32>, vector<8x16xf32> -> vector<8x16xf32>
    %170 = vector.extract_strided_slice %141 {offsets = [0, 0], sizes = [16, 32], strides = [1, 1]} : vector<32x32xf32> to vector<16x32xf32>
    %cst_88 = arith.constant dense<0.000000e+00> : vector<8x32xf32>
    %171 = tpu.matmul %169, %170, %cst_88 {dimension_numbers = #tpu.dot_dimension_numbers<[1], [0], [0], [1], [0, 0, 1, 1], [], []>} : vector<8x16xf32>, vector<16x32xf32>, vector<8x32xf32> -> vector<8x32xf32>
    %172 = arith.addf %154, %171 : vector<8x32xf32>
    %173 = vector.extract_strided_slice %152 {offsets = [0, 16], sizes = [8, 16], strides = [1, 1]} : vector<8x32xf32> to vector<8x16xf32>
    %174 = vector.extract_strided_slice %153 {offsets = [0, 16], sizes = [8, 16], strides = [1, 1]} : vector<8x32xf32> to vector<8x16xf32>
    %cst_89 = arith.constant dense<0.000000e+00> : vector<8x1xf32>
    %175 = tpu.matmul %174, %139, %cst_89 {dimension_numbers = #tpu.dot_dimension_numbers<[1], [1], [0], [0], [0, 0, 1, 0], [], []>} : vector<8x16xf32>, vector<1x16xf32>, vector<8x1xf32> -> vector<8x1xf32>
    %cst_90 = arith.constant dense<0.000000e+00> : vector<1x8xf32>
    %176 = tpu.matmul %137, %173, %cst_90 {dimension_numbers = #tpu.dot_dimension_numbers<[1], [1], [0], [0], [0, 0, 1, 0], [], []>} : vector<1x16xf32>, vector<8x16xf32>, vector<1x8xf32> -> vector<1x8xf32>
    %177 = vector.broadcast %175 : vector<8x1xf32> to vector<8x8xf32>
    %178 = vector.broadcast %176 : vector<1x8xf32> to vector<8x8xf32>
    %179 = arith.addf %177, %178 : vector<8x8xf32>
    %180 = math.tanh %179 : vector<8x8xf32>
    %181 = math.exp %180 : vector<8x8xf32>
    %cst_91 = arith.constant dense<0.000000e+00> : vector<8xf32>
    %182 = vector.multi_reduction <add>, %181, %cst_91 [1] : vector<8x8xf32> to vector<8xf32>
    %183 = vector.shape_cast %182 : vector<8xf32> to vector<8x1xf32>
    %184 = tpu.reciprocal %183 {approx = true} : vector<8x1xf32> -> vector<8x1xf32>
    %185 = vector.broadcast %184 : vector<8x1xf32> to vector<8x8xf32>
    %186 = arith.mulf %181, %185 : vector<8x8xf32>
    %cst_92 = arith.constant dense<0.000000e+00> : vector<8x16xf32>
    %187 = tpu.matmul %186, %173, %cst_92 {dimension_numbers = #tpu.dot_dimension_numbers<[1], [0], [0], [1], [0, 0, 1, 1], [], []>} : vector<8x8xf32>, vector<8x16xf32>, vector<8x16xf32> -> vector<8x16xf32>
    %188 = vector.extract_strided_slice %141 {offsets = [16, 0], sizes = [16, 32], strides = [1, 1]} : vector<32x32xf32> to vector<16x32xf32>
    %cst_93 = arith.constant dense<0.000000e+00> : vector<8x32xf32>
    %189 = tpu.matmul %187, %188, %cst_93 {dimension_numbers = #tpu.dot_dimension_numbers<[1], [0], [0], [1], [0, 0, 1, 1], [], []>} : vector<8x16xf32>, vector<16x32xf32>, vector<8x32xf32> -> vector<8x32xf32>
    %190 = arith.addf %172, %189 : vector<8x32xf32>
    %191 = vector.extract_strided_slice %146 {offsets = [8, 0], sizes = [8, 32], strides = [1, 1]} : vector<16x32xf32> to vector<8x32xf32>
    %192 = vector.extract_strided_slice %151 {offsets = [8, 0], sizes = [8, 32], strides = [1, 1]} : vector<16x32xf32> to vector<8x32xf32>
    %cst_94 = arith.constant 0.000000e+00 : f32
    %193 = vector.broadcast %cst_94 : f32 to vector<8x32xf32>
    %194 = vector.extract_strided_slice %191 {offsets = [0, 0], sizes = [8, 16], strides = [1, 1]} : vector<8x32xf32> to vector<8x16xf32>
    %195 = vector.extract_strided_slice %192 {offsets = [0, 0], sizes = [8, 16], strides = [1, 1]} : vector<8x32xf32> to vector<8x16xf32>
    %cst_95 = arith.constant dense<0.000000e+00> : vector<8x1xf32>
    %196 = tpu.matmul %195, %139, %cst_95 {dimension_numbers = #tpu.dot_dimension_numbers<[1], [1], [0], [0], [0, 0, 1, 0], [], []>} : vector<8x16xf32>, vector<1x16xf32>, vector<8x1xf32> -> vector<8x1xf32>
    %cst_96 = arith.constant dense<0.000000e+00> : vector<1x8xf32>
    %197 = tpu.matmul %137, %194, %cst_96 {dimension_numbers = #tpu.dot_dimension_numbers<[1], [1], [0], [0], [0, 0, 1, 0], [], []>} : vector<1x16xf32>, vector<8x16xf32>, vector<1x8xf32> -> vector<1x8xf32>
    %198 = vector.broadcast %196 : vector<8x1xf32> to vector<8x8xf32>
    %199 = vector.broadcast %197 : vector<1x8xf32> to vector<8x8xf32>
    %200 = arith.addf %198, %199 : vector<8x8xf32>
    %201 = math.tanh %200 : vector<8x8xf32>
    %202 = math.exp %201 : vector<8x8xf32>
    %cst_97 = arith.constant dense<0.000000e+00> : vector<8xf32>
    %203 = vector.multi_reduction <add>, %202, %cst_97 [1] : vector<8x8xf32> to vector<8xf32>
    %204 = vector.shape_cast %203 : vector<8xf32> to vector<8x1xf32>
    %205 = tpu.reciprocal %204 {approx = true} : vector<8x1xf32> -> vector<8x1xf32>
    %206 = vector.broadcast %205 : vector<8x1xf32> to vector<8x8xf32>
    %207 = arith.mulf %202, %206 : vector<8x8xf32>
    %cst_98 = arith.constant dense<0.000000e+00> : vector<8x16xf32>
    %208 = tpu.matmul %207, %194, %cst_98 {dimension_numbers = #tpu.dot_dimension_numbers<[1], [0], [0], [1], [0, 0, 1, 1], [], []>} : vector<8x8xf32>, vector<8x16xf32>, vector<8x16xf32> -> vector<8x16xf32>
    %209 = vector.extract_strided_slice %141 {offsets = [0, 0], sizes = [16, 32], strides = [1, 1]} : vector<32x32xf32> to vector<16x32xf32>
    %cst_99 = arith.constant dense<0.000000e+00> : vector<8x32xf32>
    %210 = tpu.matmul %208, %209, %cst_99 {dimension_numbers = #tpu.dot_dimension_numbers<[1], [0], [0], [1], [0, 0, 1, 1], [], []>} : vector<8x16xf32>, vector<16x32xf32>, vector<8x32xf32> -> vector<8x32xf32>
    %211 = arith.addf %193, %210 : vector<8x32xf32>
    %212 = vector.extract_strided_slice %191 {offsets = [0, 16], sizes = [8, 16], strides = [1, 1]} : vector<8x32xf32> to vector<8x16xf32>
    %213 = vector.extract_strided_slice %192 {offsets = [0, 16], sizes = [8, 16], strides = [1, 1]} : vector<8x32xf32> to vector<8x16xf32>
    %cst_100 = arith.constant dense<0.000000e+00> : vector<8x1xf32>
    %214 = tpu.matmul %213, %139, %cst_100 {dimension_numbers = #tpu.dot_dimension_numbers<[1], [1], [0], [0], [0, 0, 1, 0], [], []>} : vector<8x16xf32>, vector<1x16xf32>, vector<8x1xf32> -> vector<8x1xf32>
    %cst_101 = arith.constant dense<0.000000e+00> : vector<1x8xf32>
    %215 = tpu.matmul %137, %212, %cst_101 {dimension_numbers = #tpu.dot_dimension_numbers<[1], [1], [0], [0], [0, 0, 1, 0], [], []>} : vector<1x16xf32>, vector<8x16xf32>, vector<1x8xf32> -> vector<1x8xf32>
    %216 = vector.broadcast %214 : vector<8x1xf32> to vector<8x8xf32>
    %217 = vector.broadcast %215 : vector<1x8xf32> to vector<8x8xf32>
    %218 = arith.addf %216, %217 : vector<8x8xf32>
    %219 = math.tanh %218 : vector<8x8xf32>
    %220 = math.exp %219 : vector<8x8xf32>
    %cst_102 = arith.constant dense<0.000000e+00> : vector<8xf32>
    %221 = vector.multi_reduction <add>, %220, %cst_102 [1] : vector<8x8xf32> to vector<8xf32>
    %222 = vector.shape_cast %221 : vector<8xf32> to vector<8x1xf32>
    %223 = tpu.reciprocal %222 {approx = true} : vector<8x1xf32> -> vector<8x1xf32>
    %224 = vector.broadcast %223 : vector<8x1xf32> to vector<8x8xf32>
    %225 = arith.mulf %220, %224 : vector<8x8xf32>
    %cst_103 = arith.constant dense<0.000000e+00> : vector<8x16xf32>
    %226 = tpu.matmul %225, %212, %cst_103 {dimension_numbers = #tpu.dot_dimension_numbers<[1], [0], [0], [1], [0, 0, 1, 1], [], []>} : vector<8x8xf32>, vector<8x16xf32>, vector<8x16xf32> -> vector<8x16xf32>
    %227 = vector.extract_strided_slice %141 {offsets = [16, 0], sizes = [16, 32], strides = [1, 1]} : vector<32x32xf32> to vector<16x32xf32>
    %cst_104 = arith.constant dense<0.000000e+00> : vector<8x32xf32>
    %228 = tpu.matmul %226, %227, %cst_104 {dimension_numbers = #tpu.dot_dimension_numbers<[1], [0], [0], [1], [0, 0, 1, 1], [], []>} : vector<8x16xf32>, vector<16x32xf32>, vector<8x32xf32> -> vector<8x32xf32>
    %229 = arith.addf %211, %228 : vector<8x32xf32>
    %230 = tpu.concatenate %190, %229 in 0 : vector<8x32xf32>, vector<8x32xf32> -> vector<16x32xf32>
    %c1_105 = arith.constant 1 : index
    %c0_106 = arith.constant 0 : index
    %c0_107 = arith.constant 0 : index
    %231 = vector.load %arg9[%c1_105, %c0_106, %c0_107] : memref<6x1x32xf32, #tpu.memory_space<vmem>>, vector<1x1x32xf32>
    %232 = vector.shape_cast %231 : vector<1x1x32xf32> to vector<1x32xf32>
    %233 = vector.broadcast %232 : vector<1x32xf32> to vector<16x32xf32>
    %234 = arith.addf %230, %233 : vector<16x32xf32>
    %235 = arith.addf %1, %234 : vector<16x32xf32>
    %c1_108 = arith.constant 1 : index
    %c0_109 = arith.constant 0 : index
    %c0_110 = arith.constant 0 : index
    %236 = vector.load %arg10[%c1_108, %c0_109, %c0_110] : memref<2x1x32xf32, #tpu.memory_space<vmem>>, vector<1x1x32xf32>
    %237 = vector.shape_cast %236 : vector<1x1x32xf32> to vector<1x32xf32>
    %c1_111 = arith.constant 1 : index
    %c0_112 = arith.constant 0 : index
    %c0_113 = arith.constant 0 : index
    %238 = vector.load %arg11[%c1_111, %c0_112, %c0_113] : memref<2x1x32xf32, #tpu.memory_space<vmem>>, vector<1x1x32xf32>
    %239 = vector.shape_cast %238 : vector<1x1x32xf32> to vector<1x32xf32>
    %cst_114 = arith.constant dense<0.000000e+00> : vector<16xf32>
    %240 = vector.multi_reduction <add>, %235, %cst_114 [1] : vector<16x32xf32> to vector<16xf32>
    %241 = vector.shape_cast %240 : vector<16xf32> to vector<16x1xf32>
    %cst_115 = arith.constant 3.200000e+01 : f32
    %242 = vector.broadcast %cst_115 : f32 to vector<16x1xf32>
    %243 = arith.divf %241, %242 : vector<16x1xf32>
    %244 = vector.broadcast %243 : vector<16x1xf32> to vector<16x32xf32>
    %245 = arith.subf %235, %244 : vector<16x32xf32>
    %246 = arith.mulf %245, %245 : vector<16x32xf32>
    %cst_116 = arith.constant dense<0.000000e+00> : vector<16xf32>
    %247 = vector.multi_reduction <add>, %246, %cst_116 [1] : vector<16x32xf32> to vector<16xf32>
    %248 = vector.shape_cast %247 : vector<16xf32> to vector<16x1xf32>
    %cst_117 = arith.constant 3.200000e+01 : f32
    %249 = vector.broadcast %cst_117 : f32 to vector<16x1xf32>
    %250 = arith.divf %248, %249 : vector<16x1xf32>
    %251 = vector.broadcast %243 : vector<16x1xf32> to vector<16x32xf32>
    %252 = arith.subf %235, %251 : vector<16x32xf32>
    %cst_118 = arith.constant 9.99999974E-6 : f32
    %253 = vector.broadcast %cst_118 : f32 to vector<16x1xf32>
    %254 = arith.addf %250, %253 : vector<16x1xf32>
    %255 = math.rsqrt %254 : vector<16x1xf32>
    %256 = vector.broadcast %255 : vector<16x1xf32> to vector<16x32xf32>
    %257 = arith.mulf %252, %256 : vector<16x32xf32>
    %258 = vector.broadcast %237 : vector<1x32xf32> to vector<16x32xf32>
    %259 = arith.mulf %257, %258 : vector<16x32xf32>
    %260 = vector.broadcast %239 : vector<1x32xf32> to vector<16x32xf32>
    %261 = arith.addf %259, %260 : vector<16x32xf32>
    %c2 = arith.constant 2 : index
    %c0_119 = arith.constant 0 : index
    %c0_120 = arith.constant 0 : index
    %262 = vector.load %arg2[%c2, %c0_119, %c0_120] : memref<6x32x32xf32, #tpu.memory_space<vmem>>, vector<1x32x32xf32>
    %263 = vector.shape_cast %262 : vector<1x32x32xf32> to vector<32x32xf32>
    %c2_121 = arith.constant 2 : index
    %c0_122 = arith.constant 0 : index
    %c0_123 = arith.constant 0 : index
    %264 = vector.load %arg4[%c2_121, %c0_122, %c0_123] : memref<6x32x32xf32, #tpu.memory_space<vmem>>, vector<1x32x32xf32>
    %265 = vector.shape_cast %264 : vector<1x32x32xf32> to vector<32x32xf32>
    %c2_124 = arith.constant 2 : index
    %c0_125 = arith.constant 0 : index
    %c0_126 = arith.constant 0 : index
    %266 = vector.load %arg6[%c2_124, %c0_125, %c0_126] : memref<6x1x16xf32, #tpu.memory_space<vmem>>, vector<1x1x16xf32>
    %267 = vector.shape_cast %266 : vector<1x1x16xf32> to vector<1x16xf32>
    %c2_127 = arith.constant 2 : index
    %c0_128 = arith.constant 0 : index
    %c0_129 = arith.constant 0 : index
    %268 = vector.load %arg7[%c2_127, %c0_128, %c0_129] : memref<6x1x16xf32, #tpu.memory_space<vmem>>, vector<1x1x16xf32>
    %269 = vector.shape_cast %268 : vector<1x1x16xf32> to vector<1x16xf32>
    %c2_130 = arith.constant 2 : index
    %c0_131 = arith.constant 0 : index
    %c0_132 = arith.constant 0 : index
    %270 = vector.load %arg8[%c2_130, %c0_131, %c0_132] : memref<6x32x32xf32, #tpu.memory_space<vmem>>, vector<1x32x32xf32>
    %271 = vector.shape_cast %270 : vector<1x32x32xf32> to vector<32x32xf32>
    %cst_133 = arith.constant dense<0.000000e+00> : vector<16x32xf32>
    %272 = tpu.matmul %131, %263, %cst_133 {dimension_numbers = #tpu.dot_dimension_numbers<[1], [0], [0], [1], [0, 0, 1, 1], [], []>} : vector<16x32xf32>, vector<32x32xf32>, vector<16x32xf32> -> vector<16x32xf32>
    %c2_134 = arith.constant 2 : index
    %c0_135 = arith.constant 0 : index
    %c0_136 = arith.constant 0 : index
    %273 = vector.load %arg3[%c2_134, %c0_135, %c0_136] : memref<6x1x32xf32, #tpu.memory_space<vmem>>, vector<1x1x32xf32>
    %274 = vector.shape_cast %273 : vector<1x1x32xf32> to vector<1x32xf32>
    %275 = vector.broadcast %274 : vector<1x32xf32> to vector<16x32xf32>
    %276 = arith.addf %272, %275 : vector<16x32xf32>
    %cst_137 = arith.constant dense<0.000000e+00> : vector<16x32xf32>
    %277 = tpu.matmul %131, %265, %cst_137 {dimension_numbers = #tpu.dot_dimension_numbers<[1], [0], [0], [1], [0, 0, 1, 1], [], []>} : vector<16x32xf32>, vector<32x32xf32>, vector<16x32xf32> -> vector<16x32xf32>
    %c2_138 = arith.constant 2 : index
    %c0_139 = arith.constant 0 : index
    %c0_140 = arith.constant 0 : index
    %278 = vector.load %arg5[%c2_138, %c0_139, %c0_140] : memref<6x1x32xf32, #tpu.memory_space<vmem>>, vector<1x1x32xf32>
    %279 = vector.shape_cast %278 : vector<1x1x32xf32> to vector<1x32xf32>
    %280 = vector.broadcast %279 : vector<1x32xf32> to vector<16x32xf32>
    %281 = arith.addf %277, %280 : vector<16x32xf32>
    %282 = vector.extract_strided_slice %276 {offsets = [0, 0], sizes = [8, 32], strides = [1, 1]} : vector<16x32xf32> to vector<8x32xf32>
    %283 = vector.extract_strided_slice %281 {offsets = [0, 0], sizes = [8, 32], strides = [1, 1]} : vector<16x32xf32> to vector<8x32xf32>
    %cst_141 = arith.constant 0.000000e+00 : f32
    %284 = vector.broadcast %cst_141 : f32 to vector<8x32xf32>
    %285 = vector.extract_strided_slice %282 {offsets = [0, 0], sizes = [8, 16], strides = [1, 1]} : vector<8x32xf32> to vector<8x16xf32>
    %286 = vector.extract_strided_slice %283 {offsets = [0, 0], sizes = [8, 16], strides = [1, 1]} : vector<8x32xf32> to vector<8x16xf32>
    %cst_142 = arith.constant dense<0.000000e+00> : vector<8x1xf32>
    %287 = tpu.matmul %286, %269, %cst_142 {dimension_numbers = #tpu.dot_dimension_numbers<[1], [1], [0], [0], [0, 0, 1, 0], [], []>} : vector<8x16xf32>, vector<1x16xf32>, vector<8x1xf32> -> vector<8x1xf32>
    %cst_143 = arith.constant dense<0.000000e+00> : vector<1x8xf32>
    %288 = tpu.matmul %267, %285, %cst_143 {dimension_numbers = #tpu.dot_dimension_numbers<[1], [1], [0], [0], [0, 0, 1, 0], [], []>} : vector<1x16xf32>, vector<8x16xf32>, vector<1x8xf32> -> vector<1x8xf32>
    %289 = vector.broadcast %287 : vector<8x1xf32> to vector<8x8xf32>
    %290 = vector.broadcast %288 : vector<1x8xf32> to vector<8x8xf32>
    %291 = arith.addf %289, %290 : vector<8x8xf32>
    %292 = math.tanh %291 : vector<8x8xf32>
    %293 = math.exp %292 : vector<8x8xf32>
    %cst_144 = arith.constant dense<0.000000e+00> : vector<8xf32>
    %294 = vector.multi_reduction <add>, %293, %cst_144 [1] : vector<8x8xf32> to vector<8xf32>
    %295 = vector.shape_cast %294 : vector<8xf32> to vector<8x1xf32>
    %296 = tpu.reciprocal %295 {approx = true} : vector<8x1xf32> -> vector<8x1xf32>
    %297 = vector.broadcast %296 : vector<8x1xf32> to vector<8x8xf32>
    %298 = arith.mulf %293, %297 : vector<8x8xf32>
    %cst_145 = arith.constant dense<0.000000e+00> : vector<8x16xf32>
    %299 = tpu.matmul %298, %285, %cst_145 {dimension_numbers = #tpu.dot_dimension_numbers<[1], [0], [0], [1], [0, 0, 1, 1], [], []>} : vector<8x8xf32>, vector<8x16xf32>, vector<8x16xf32> -> vector<8x16xf32>
    %300 = vector.extract_strided_slice %271 {offsets = [0, 0], sizes = [16, 32], strides = [1, 1]} : vector<32x32xf32> to vector<16x32xf32>
    %cst_146 = arith.constant dense<0.000000e+00> : vector<8x32xf32>
    %301 = tpu.matmul %299, %300, %cst_146 {dimension_numbers = #tpu.dot_dimension_numbers<[1], [0], [0], [1], [0, 0, 1, 1], [], []>} : vector<8x16xf32>, vector<16x32xf32>, vector<8x32xf32> -> vector<8x32xf32>
    %302 = arith.addf %284, %301 : vector<8x32xf32>
    %303 = vector.extract_strided_slice %282 {offsets = [0, 16], sizes = [8, 16], strides = [1, 1]} : vector<8x32xf32> to vector<8x16xf32>
    %304 = vector.extract_strided_slice %283 {offsets = [0, 16], sizes = [8, 16], strides = [1, 1]} : vector<8x32xf32> to vector<8x16xf32>
    %cst_147 = arith.constant dense<0.000000e+00> : vector<8x1xf32>
    %305 = tpu.matmul %304, %269, %cst_147 {dimension_numbers = #tpu.dot_dimension_numbers<[1], [1], [0], [0], [0, 0, 1, 0], [], []>} : vector<8x16xf32>, vector<1x16xf32>, vector<8x1xf32> -> vector<8x1xf32>
    %cst_148 = arith.constant dense<0.000000e+00> : vector<1x8xf32>
    %306 = tpu.matmul %267, %303, %cst_148 {dimension_numbers = #tpu.dot_dimension_numbers<[1], [1], [0], [0], [0, 0, 1, 0], [], []>} : vector<1x16xf32>, vector<8x16xf32>, vector<1x8xf32> -> vector<1x8xf32>
    %307 = vector.broadcast %305 : vector<8x1xf32> to vector<8x8xf32>
    %308 = vector.broadcast %306 : vector<1x8xf32> to vector<8x8xf32>
    %309 = arith.addf %307, %308 : vector<8x8xf32>
    %310 = math.tanh %309 : vector<8x8xf32>
    %311 = math.exp %310 : vector<8x8xf32>
    %cst_149 = arith.constant dense<0.000000e+00> : vector<8xf32>
    %312 = vector.multi_reduction <add>, %311, %cst_149 [1] : vector<8x8xf32> to vector<8xf32>
    %313 = vector.shape_cast %312 : vector<8xf32> to vector<8x1xf32>
    %314 = tpu.reciprocal %313 {approx = true} : vector<8x1xf32> -> vector<8x1xf32>
    %315 = vector.broadcast %314 : vector<8x1xf32> to vector<8x8xf32>
    %316 = arith.mulf %311, %315 : vector<8x8xf32>
    %cst_150 = arith.constant dense<0.000000e+00> : vector<8x16xf32>
    %317 = tpu.matmul %316, %303, %cst_150 {dimension_numbers = #tpu.dot_dimension_numbers<[1], [0], [0], [1], [0, 0, 1, 1], [], []>} : vector<8x8xf32>, vector<8x16xf32>, vector<8x16xf32> -> vector<8x16xf32>
    %318 = vector.extract_strided_slice %271 {offsets = [16, 0], sizes = [16, 32], strides = [1, 1]} : vector<32x32xf32> to vector<16x32xf32>
    %cst_151 = arith.constant dense<0.000000e+00> : vector<8x32xf32>
    %319 = tpu.matmul %317, %318, %cst_151 {dimension_numbers = #tpu.dot_dimension_numbers<[1], [0], [0], [1], [0, 0, 1, 1], [], []>} : vector<8x16xf32>, vector<16x32xf32>, vector<8x32xf32> -> vector<8x32xf32>
    %320 = arith.addf %302, %319 : vector<8x32xf32>
    %321 = vector.extract_strided_slice %276 {offsets = [8, 0], sizes = [8, 32], strides = [1, 1]} : vector<16x32xf32> to vector<8x32xf32>
    %322 = vector.extract_strided_slice %281 {offsets = [8, 0], sizes = [8, 32], strides = [1, 1]} : vector<16x32xf32> to vector<8x32xf32>
    %cst_152 = arith.constant 0.000000e+00 : f32
    %323 = vector.broadcast %cst_152 : f32 to vector<8x32xf32>
    %324 = vector.extract_strided_slice %321 {offsets = [0, 0], sizes = [8, 16], strides = [1, 1]} : vector<8x32xf32> to vector<8x16xf32>
    %325 = vector.extract_strided_slice %322 {offsets = [0, 0], sizes = [8, 16], strides = [1, 1]} : vector<8x32xf32> to vector<8x16xf32>
    %cst_153 = arith.constant dense<0.000000e+00> : vector<8x1xf32>
    %326 = tpu.matmul %325, %269, %cst_153 {dimension_numbers = #tpu.dot_dimension_numbers<[1], [1], [0], [0], [0, 0, 1, 0], [], []>} : vector<8x16xf32>, vector<1x16xf32>, vector<8x1xf32> -> vector<8x1xf32>
    %cst_154 = arith.constant dense<0.000000e+00> : vector<1x8xf32>
    %327 = tpu.matmul %267, %324, %cst_154 {dimension_numbers = #tpu.dot_dimension_numbers<[1], [1], [0], [0], [0, 0, 1, 0], [], []>} : vector<1x16xf32>, vector<8x16xf32>, vector<1x8xf32> -> vector<1x8xf32>
    %328 = vector.broadcast %326 : vector<8x1xf32> to vector<8x8xf32>
    %329 = vector.broadcast %327 : vector<1x8xf32> to vector<8x8xf32>
    %330 = arith.addf %328, %329 : vector<8x8xf32>
    %331 = math.tanh %330 : vector<8x8xf32>
    %332 = math.exp %331 : vector<8x8xf32>
    %cst_155 = arith.constant dense<0.000000e+00> : vector<8xf32>
    %333 = vector.multi_reduction <add>, %332, %cst_155 [1] : vector<8x8xf32> to vector<8xf32>
    %334 = vector.shape_cast %333 : vector<8xf32> to vector<8x1xf32>
    %335 = tpu.reciprocal %334 {approx = true} : vector<8x1xf32> -> vector<8x1xf32>
    %336 = vector.broadcast %335 : vector<8x1xf32> to vector<8x8xf32>
    %337 = arith.mulf %332, %336 : vector<8x8xf32>
    %cst_156 = arith.constant dense<0.000000e+00> : vector<8x16xf32>
    %338 = tpu.matmul %337, %324, %cst_156 {dimension_numbers = #tpu.dot_dimension_numbers<[1], [0], [0], [1], [0, 0, 1, 1], [], []>} : vector<8x8xf32>, vector<8x16xf32>, vector<8x16xf32> -> vector<8x16xf32>
    %339 = vector.extract_strided_slice %271 {offsets = [0, 0], sizes = [16, 32], strides = [1, 1]} : vector<32x32xf32> to vector<16x32xf32>
    %cst_157 = arith.constant dense<0.000000e+00> : vector<8x32xf32>
    %340 = tpu.matmul %338, %339, %cst_157 {dimension_numbers = #tpu.dot_dimension_numbers<[1], [0], [0], [1], [0, 0, 1, 1], [], []>} : vector<8x16xf32>, vector<16x32xf32>, vector<8x32xf32> -> vector<8x32xf32>
    %341 = arith.addf %323, %340 : vector<8x32xf32>
    %342 = vector.extract_strided_slice %321 {offsets = [0, 16], sizes = [8, 16], strides = [1, 1]} : vector<8x32xf32> to vector<8x16xf32>
    %343 = vector.extract_strided_slice %322 {offsets = [0, 16], sizes = [8, 16], strides = [1, 1]} : vector<8x32xf32> to vector<8x16xf32>
    %cst_158 = arith.constant dense<0.000000e+00> : vector<8x1xf32>
    %344 = tpu.matmul %343, %269, %cst_158 {dimension_numbers = #tpu.dot_dimension_numbers<[1], [1], [0], [0], [0, 0, 1, 0], [], []>} : vector<8x16xf32>, vector<1x16xf32>, vector<8x1xf32> -> vector<8x1xf32>
    %cst_159 = arith.constant dense<0.000000e+00> : vector<1x8xf32>
    %345 = tpu.matmul %267, %342, %cst_159 {dimension_numbers = #tpu.dot_dimension_numbers<[1], [1], [0], [0], [0, 0, 1, 0], [], []>} : vector<1x16xf32>, vector<8x16xf32>, vector<1x8xf32> -> vector<1x8xf32>
    %346 = vector.broadcast %344 : vector<8x1xf32> to vector<8x8xf32>
    %347 = vector.broadcast %345 : vector<1x8xf32> to vector<8x8xf32>
    %348 = arith.addf %346, %347 : vector<8x8xf32>
    %349 = math.tanh %348 : vector<8x8xf32>
    %350 = math.exp %349 : vector<8x8xf32>
    %cst_160 = arith.constant dense<0.000000e+00> : vector<8xf32>
    %351 = vector.multi_reduction <add>, %350, %cst_160 [1] : vector<8x8xf32> to vector<8xf32>
    %352 = vector.shape_cast %351 : vector<8xf32> to vector<8x1xf32>
    %353 = tpu.reciprocal %352 {approx = true} : vector<8x1xf32> -> vector<8x1xf32>
    %354 = vector.broadcast %353 : vector<8x1xf32> to vector<8x8xf32>
    %355 = arith.mulf %350, %354 : vector<8x8xf32>
    %cst_161 = arith.constant dense<0.000000e+00> : vector<8x16xf32>
    %356 = tpu.matmul %355, %342, %cst_161 {dimension_numbers = #tpu.dot_dimension_numbers<[1], [0], [0], [1], [0, 0, 1, 1], [], []>} : vector<8x8xf32>, vector<8x16xf32>, vector<8x16xf32> -> vector<8x16xf32>
    %357 = vector.extract_strided_slice %271 {offsets = [16, 0], sizes = [16, 32], strides = [1, 1]} : vector<32x32xf32> to vector<16x32xf32>
    %cst_162 = arith.constant dense<0.000000e+00> : vector<8x32xf32>
    %358 = tpu.matmul %356, %357, %cst_162 {dimension_numbers = #tpu.dot_dimension_numbers<[1], [0], [0], [1], [0, 0, 1, 1], [], []>} : vector<8x16xf32>, vector<16x32xf32>, vector<8x32xf32> -> vector<8x32xf32>
    %359 = arith.addf %341, %358 : vector<8x32xf32>
    %360 = tpu.concatenate %320, %359 in 0 : vector<8x32xf32>, vector<8x32xf32> -> vector<16x32xf32>
    %c2_163 = arith.constant 2 : index
    %c0_164 = arith.constant 0 : index
    %c0_165 = arith.constant 0 : index
    %361 = vector.load %arg9[%c2_163, %c0_164, %c0_165] : memref<6x1x32xf32, #tpu.memory_space<vmem>>, vector<1x1x32xf32>
    %362 = vector.shape_cast %361 : vector<1x1x32xf32> to vector<1x32xf32>
    %363 = vector.broadcast %362 : vector<1x32xf32> to vector<16x32xf32>
    %364 = arith.addf %360, %363 : vector<16x32xf32>
    %c3 = arith.constant 3 : index
    %c0_166 = arith.constant 0 : index
    %c0_167 = arith.constant 0 : index
    %365 = vector.load %arg2[%c3, %c0_166, %c0_167] : memref<6x32x32xf32, #tpu.memory_space<vmem>>, vector<1x32x32xf32>
    %366 = vector.shape_cast %365 : vector<1x32x32xf32> to vector<32x32xf32>
    %c3_168 = arith.constant 3 : index
    %c0_169 = arith.constant 0 : index
    %c0_170 = arith.constant 0 : index
    %367 = vector.load %arg4[%c3_168, %c0_169, %c0_170] : memref<6x32x32xf32, #tpu.memory_space<vmem>>, vector<1x32x32xf32>
    %368 = vector.shape_cast %367 : vector<1x32x32xf32> to vector<32x32xf32>
    %c3_171 = arith.constant 3 : index
    %c0_172 = arith.constant 0 : index
    %c0_173 = arith.constant 0 : index
    %369 = vector.load %arg6[%c3_171, %c0_172, %c0_173] : memref<6x1x16xf32, #tpu.memory_space<vmem>>, vector<1x1x16xf32>
    %370 = vector.shape_cast %369 : vector<1x1x16xf32> to vector<1x16xf32>
    %c3_174 = arith.constant 3 : index
    %c0_175 = arith.constant 0 : index
    %c0_176 = arith.constant 0 : index
    %371 = vector.load %arg7[%c3_174, %c0_175, %c0_176] : memref<6x1x16xf32, #tpu.memory_space<vmem>>, vector<1x1x16xf32>
    %372 = vector.shape_cast %371 : vector<1x1x16xf32> to vector<1x16xf32>
    %c3_177 = arith.constant 3 : index
    %c0_178 = arith.constant 0 : index
    %c0_179 = arith.constant 0 : index
    %373 = vector.load %arg8[%c3_177, %c0_178, %c0_179] : memref<6x32x32xf32, #tpu.memory_space<vmem>>, vector<1x32x32xf32>
    %374 = vector.shape_cast %373 : vector<1x32x32xf32> to vector<32x32xf32>
    %cst_180 = arith.constant dense<0.000000e+00> : vector<16x32xf32>
    %375 = tpu.matmul %131, %366, %cst_180 {dimension_numbers = #tpu.dot_dimension_numbers<[1], [0], [0], [1], [0, 0, 1, 1], [], []>} : vector<16x32xf32>, vector<32x32xf32>, vector<16x32xf32> -> vector<16x32xf32>
    %c3_181 = arith.constant 3 : index
    %c0_182 = arith.constant 0 : index
    %c0_183 = arith.constant 0 : index
    %376 = vector.load %arg3[%c3_181, %c0_182, %c0_183] : memref<6x1x32xf32, #tpu.memory_space<vmem>>, vector<1x1x32xf32>
    %377 = vector.shape_cast %376 : vector<1x1x32xf32> to vector<1x32xf32>
    %378 = vector.broadcast %377 : vector<1x32xf32> to vector<16x32xf32>
    %379 = arith.addf %375, %378 : vector<16x32xf32>
    %cst_184 = arith.constant dense<0.000000e+00> : vector<16x32xf32>
    %380 = tpu.matmul %261, %368, %cst_184 {dimension_numbers = #tpu.dot_dimension_numbers<[1], [0], [0], [1], [0, 0, 1, 1], [], []>} : vector<16x32xf32>, vector<32x32xf32>, vector<16x32xf32> -> vector<16x32xf32>
    %c3_185 = arith.constant 3 : index
    %c0_186 = arith.constant 0 : index
    %c0_187 = arith.constant 0 : index
    %381 = vector.load %arg5[%c3_185, %c0_186, %c0_187] : memref<6x1x32xf32, #tpu.memory_space<vmem>>, vector<1x1x32xf32>
    %382 = vector.shape_cast %381 : vector<1x1x32xf32> to vector<1x32xf32>
    %383 = vector.broadcast %382 : vector<1x32xf32> to vector<16x32xf32>
    %384 = arith.addf %380, %383 : vector<16x32xf32>
    %385 = vector.extract_strided_slice %379 {offsets = [0, 0], sizes = [8, 32], strides = [1, 1]} : vector<16x32xf32> to vector<8x32xf32>
    %386 = vector.extract_strided_slice %384 {offsets = [0, 0], sizes = [8, 32], strides = [1, 1]} : vector<16x32xf32> to vector<8x32xf32>
    %cst_188 = arith.constant 0.000000e+00 : f32
    %387 = vector.broadcast %cst_188 : f32 to vector<8x32xf32>
    %388 = vector.extract_strided_slice %385 {offsets = [0, 0], sizes = [8, 16], strides = [1, 1]} : vector<8x32xf32> to vector<8x16xf32>
    %389 = vector.extract_strided_slice %386 {offsets = [0, 0], sizes = [8, 16], strides = [1, 1]} : vector<8x32xf32> to vector<8x16xf32>
    %cst_189 = arith.constant dense<0.000000e+00> : vector<8x1xf32>
    %390 = tpu.matmul %389, %372, %cst_189 {dimension_numbers = #tpu.dot_dimension_numbers<[1], [1], [0], [0], [0, 0, 1, 0], [], []>} : vector<8x16xf32>, vector<1x16xf32>, vector<8x1xf32> -> vector<8x1xf32>
    %cst_190 = arith.constant dense<0.000000e+00> : vector<1x8xf32>
    %391 = tpu.matmul %370, %388, %cst_190 {dimension_numbers = #tpu.dot_dimension_numbers<[1], [1], [0], [0], [0, 0, 1, 0], [], []>} : vector<1x16xf32>, vector<8x16xf32>, vector<1x8xf32> -> vector<1x8xf32>
    %392 = vector.broadcast %390 : vector<8x1xf32> to vector<8x8xf32>
    %393 = vector.broadcast %391 : vector<1x8xf32> to vector<8x8xf32>
    %394 = arith.addf %392, %393 : vector<8x8xf32>
    %395 = math.tanh %394 : vector<8x8xf32>
    %396 = math.exp %395 : vector<8x8xf32>
    %cst_191 = arith.constant dense<0.000000e+00> : vector<8xf32>
    %397 = vector.multi_reduction <add>, %396, %cst_191 [1] : vector<8x8xf32> to vector<8xf32>
    %398 = vector.shape_cast %397 : vector<8xf32> to vector<8x1xf32>
    %399 = tpu.reciprocal %398 {approx = true} : vector<8x1xf32> -> vector<8x1xf32>
    %400 = vector.broadcast %399 : vector<8x1xf32> to vector<8x8xf32>
    %401 = arith.mulf %396, %400 : vector<8x8xf32>
    %cst_192 = arith.constant dense<0.000000e+00> : vector<8x16xf32>
    %402 = tpu.matmul %401, %388, %cst_192 {dimension_numbers = #tpu.dot_dimension_numbers<[1], [0], [0], [1], [0, 0, 1, 1], [], []>} : vector<8x8xf32>, vector<8x16xf32>, vector<8x16xf32> -> vector<8x16xf32>
    %403 = vector.extract_strided_slice %374 {offsets = [0, 0], sizes = [16, 32], strides = [1, 1]} : vector<32x32xf32> to vector<16x32xf32>
    %cst_193 = arith.constant dense<0.000000e+00> : vector<8x32xf32>
    %404 = tpu.matmul %402, %403, %cst_193 {dimension_numbers = #tpu.dot_dimension_numbers<[1], [0], [0], [1], [0, 0, 1, 1], [], []>} : vector<8x16xf32>, vector<16x32xf32>, vector<8x32xf32> -> vector<8x32xf32>
    %405 = arith.addf %387, %404 : vector<8x32xf32>
    %406 = vector.extract_strided_slice %385 {offsets = [0, 16], sizes = [8, 16], strides = [1, 1]} : vector<8x32xf32> to vector<8x16xf32>
    %407 = vector.extract_strided_slice %386 {offsets = [0, 16], sizes = [8, 16], strides = [1, 1]} : vector<8x32xf32> to vector<8x16xf32>
    %cst_194 = arith.constant dense<0.000000e+00> : vector<8x1xf32>
    %408 = tpu.matmul %407, %372, %cst_194 {dimension_numbers = #tpu.dot_dimension_numbers<[1], [1], [0], [0], [0, 0, 1, 0], [], []>} : vector<8x16xf32>, vector<1x16xf32>, vector<8x1xf32> -> vector<8x1xf32>
    %cst_195 = arith.constant dense<0.000000e+00> : vector<1x8xf32>
    %409 = tpu.matmul %370, %406, %cst_195 {dimension_numbers = #tpu.dot_dimension_numbers<[1], [1], [0], [0], [0, 0, 1, 0], [], []>} : vector<1x16xf32>, vector<8x16xf32>, vector<1x8xf32> -> vector<1x8xf32>
    %410 = vector.broadcast %408 : vector<8x1xf32> to vector<8x8xf32>
    %411 = vector.broadcast %409 : vector<1x8xf32> to vector<8x8xf32>
    %412 = arith.addf %410, %411 : vector<8x8xf32>
    %413 = math.tanh %412 : vector<8x8xf32>
    %414 = math.exp %413 : vector<8x8xf32>
    %cst_196 = arith.constant dense<0.000000e+00> : vector<8xf32>
    %415 = vector.multi_reduction <add>, %414, %cst_196 [1] : vector<8x8xf32> to vector<8xf32>
    %416 = vector.shape_cast %415 : vector<8xf32> to vector<8x1xf32>
    %417 = tpu.reciprocal %416 {approx = true} : vector<8x1xf32> -> vector<8x1xf32>
    %418 = vector.broadcast %417 : vector<8x1xf32> to vector<8x8xf32>
    %419 = arith.mulf %414, %418 : vector<8x8xf32>
    %cst_197 = arith.constant dense<0.000000e+00> : vector<8x16xf32>
    %420 = tpu.matmul %419, %406, %cst_197 {dimension_numbers = #tpu.dot_dimension_numbers<[1], [0], [0], [1], [0, 0, 1, 1], [], []>} : vector<8x8xf32>, vector<8x16xf32>, vector<8x16xf32> -> vector<8x16xf32>
    %421 = vector.extract_strided_slice %374 {offsets = [16, 0], sizes = [16, 32], strides = [1, 1]} : vector<32x32xf32> to vector<16x32xf32>
    %cst_198 = arith.constant dense<0.000000e+00> : vector<8x32xf32>
    %422 = tpu.matmul %420, %421, %cst_198 {dimension_numbers = #tpu.dot_dimension_numbers<[1], [0], [0], [1], [0, 0, 1, 1], [], []>} : vector<8x16xf32>, vector<16x32xf32>, vector<8x32xf32> -> vector<8x32xf32>
    %423 = arith.addf %405, %422 : vector<8x32xf32>
    %424 = vector.extract_strided_slice %379 {offsets = [8, 0], sizes = [8, 32], strides = [1, 1]} : vector<16x32xf32> to vector<8x32xf32>
    %425 = vector.extract_strided_slice %384 {offsets = [8, 0], sizes = [8, 32], strides = [1, 1]} : vector<16x32xf32> to vector<8x32xf32>
    %cst_199 = arith.constant 0.000000e+00 : f32
    %426 = vector.broadcast %cst_199 : f32 to vector<8x32xf32>
    %427 = vector.extract_strided_slice %424 {offsets = [0, 0], sizes = [8, 16], strides = [1, 1]} : vector<8x32xf32> to vector<8x16xf32>
    %428 = vector.extract_strided_slice %425 {offsets = [0, 0], sizes = [8, 16], strides = [1, 1]} : vector<8x32xf32> to vector<8x16xf32>
    %cst_200 = arith.constant dense<0.000000e+00> : vector<8x1xf32>
    %429 = tpu.matmul %428, %372, %cst_200 {dimension_numbers = #tpu.dot_dimension_numbers<[1], [1], [0], [0], [0, 0, 1, 0], [], []>} : vector<8x16xf32>, vector<1x16xf32>, vector<8x1xf32> -> vector<8x1xf32>
    %cst_201 = arith.constant dense<0.000000e+00> : vector<1x8xf32>
    %430 = tpu.matmul %370, %427, %cst_201 {dimension_numbers = #tpu.dot_dimension_numbers<[1], [1], [0], [0], [0, 0, 1, 0], [], []>} : vector<1x16xf32>, vector<8x16xf32>, vector<1x8xf32> -> vector<1x8xf32>
    %431 = vector.broadcast %429 : vector<8x1xf32> to vector<8x8xf32>
    %432 = vector.broadcast %430 : vector<1x8xf32> to vector<8x8xf32>
    %433 = arith.addf %431, %432 : vector<8x8xf32>
    %434 = math.tanh %433 : vector<8x8xf32>
    %435 = math.exp %434 : vector<8x8xf32>
    %cst_202 = arith.constant dense<0.000000e+00> : vector<8xf32>
    %436 = vector.multi_reduction <add>, %435, %cst_202 [1] : vector<8x8xf32> to vector<8xf32>
    %437 = vector.shape_cast %436 : vector<8xf32> to vector<8x1xf32>
    %438 = tpu.reciprocal %437 {approx = true} : vector<8x1xf32> -> vector<8x1xf32>
    %439 = vector.broadcast %438 : vector<8x1xf32> to vector<8x8xf32>
    %440 = arith.mulf %435, %439 : vector<8x8xf32>
    %cst_203 = arith.constant dense<0.000000e+00> : vector<8x16xf32>
    %441 = tpu.matmul %440, %427, %cst_203 {dimension_numbers = #tpu.dot_dimension_numbers<[1], [0], [0], [1], [0, 0, 1, 1], [], []>} : vector<8x8xf32>, vector<8x16xf32>, vector<8x16xf32> -> vector<8x16xf32>
    %442 = vector.extract_strided_slice %374 {offsets = [0, 0], sizes = [16, 32], strides = [1, 1]} : vector<32x32xf32> to vector<16x32xf32>
    %cst_204 = arith.constant dense<0.000000e+00> : vector<8x32xf32>
    %443 = tpu.matmul %441, %442, %cst_204 {dimension_numbers = #tpu.dot_dimension_numbers<[1], [0], [0], [1], [0, 0, 1, 1], [], []>} : vector<8x16xf32>, vector<16x32xf32>, vector<8x32xf32> -> vector<8x32xf32>
    %444 = arith.addf %426, %443 : vector<8x32xf32>
    %445 = vector.extract_strided_slice %424 {offsets = [0, 16], sizes = [8, 16], strides = [1, 1]} : vector<8x32xf32> to vector<8x16xf32>
    %446 = vector.extract_strided_slice %425 {offsets = [0, 16], sizes = [8, 16], strides = [1, 1]} : vector<8x32xf32> to vector<8x16xf32>
    %cst_205 = arith.constant dense<0.000000e+00> : vector<8x1xf32>
    %447 = tpu.matmul %446, %372, %cst_205 {dimension_numbers = #tpu.dot_dimension_numbers<[1], [1], [0], [0], [0, 0, 1, 0], [], []>} : vector<8x16xf32>, vector<1x16xf32>, vector<8x1xf32> -> vector<8x1xf32>
    %cst_206 = arith.constant dense<0.000000e+00> : vector<1x8xf32>
    %448 = tpu.matmul %370, %445, %cst_206 {dimension_numbers = #tpu.dot_dimension_numbers<[1], [1], [0], [0], [0, 0, 1, 0], [], []>} : vector<1x16xf32>, vector<8x16xf32>, vector<1x8xf32> -> vector<1x8xf32>
    %449 = vector.broadcast %447 : vector<8x1xf32> to vector<8x8xf32>
    %450 = vector.broadcast %448 : vector<1x8xf32> to vector<8x8xf32>
    %451 = arith.addf %449, %450 : vector<8x8xf32>
    %452 = math.tanh %451 : vector<8x8xf32>
    %453 = math.exp %452 : vector<8x8xf32>
    %cst_207 = arith.constant dense<0.000000e+00> : vector<8xf32>
    %454 = vector.multi_reduction <add>, %453, %cst_207 [1] : vector<8x8xf32> to vector<8xf32>
    %455 = vector.shape_cast %454 : vector<8xf32> to vector<8x1xf32>
    %456 = tpu.reciprocal %455 {approx = true} : vector<8x1xf32> -> vector<8x1xf32>
    %457 = vector.broadcast %456 : vector<8x1xf32> to vector<8x8xf32>
    %458 = arith.mulf %453, %457 : vector<8x8xf32>
    %cst_208 = arith.constant dense<0.000000e+00> : vector<8x16xf32>
    %459 = tpu.matmul %458, %445, %cst_208 {dimension_numbers = #tpu.dot_dimension_numbers<[1], [0], [0], [1], [0, 0, 1, 1], [], []>} : vector<8x8xf32>, vector<8x16xf32>, vector<8x16xf32> -> vector<8x16xf32>
    %460 = vector.extract_strided_slice %374 {offsets = [16, 0], sizes = [16, 32], strides = [1, 1]} : vector<32x32xf32> to vector<16x32xf32>
    %cst_209 = arith.constant dense<0.000000e+00> : vector<8x32xf32>
    %461 = tpu.matmul %459, %460, %cst_209 {dimension_numbers = #tpu.dot_dimension_numbers<[1], [0], [0], [1], [0, 0, 1, 1], [], []>} : vector<8x16xf32>, vector<16x32xf32>, vector<8x32xf32> -> vector<8x32xf32>
    %462 = arith.addf %444, %461 : vector<8x32xf32>
    %463 = tpu.concatenate %423, %462 in 0 : vector<8x32xf32>, vector<8x32xf32> -> vector<16x32xf32>
    %c3_210 = arith.constant 3 : index
    %c0_211 = arith.constant 0 : index
    %c0_212 = arith.constant 0 : index
    %464 = vector.load %arg9[%c3_210, %c0_211, %c0_212] : memref<6x1x32xf32, #tpu.memory_space<vmem>>, vector<1x1x32xf32>
    %465 = vector.shape_cast %464 : vector<1x1x32xf32> to vector<1x32xf32>
    %466 = vector.broadcast %465 : vector<1x32xf32> to vector<16x32xf32>
    %467 = arith.addf %463, %466 : vector<16x32xf32>
    %468 = arith.addf %364, %467 : vector<16x32xf32>
    %cst_213 = arith.constant 5.000000e-01 : f32
    %469 = vector.broadcast %cst_213 : f32 to vector<16x32xf32>
    %470 = arith.mulf %468, %469 : vector<16x32xf32>
    %c4 = arith.constant 4 : index
    %c0_214 = arith.constant 0 : index
    %c0_215 = arith.constant 0 : index
    %471 = vector.load %arg2[%c4, %c0_214, %c0_215] : memref<6x32x32xf32, #tpu.memory_space<vmem>>, vector<1x32x32xf32>
    %472 = vector.shape_cast %471 : vector<1x32x32xf32> to vector<32x32xf32>
    %c4_216 = arith.constant 4 : index
    %c0_217 = arith.constant 0 : index
    %c0_218 = arith.constant 0 : index
    %473 = vector.load %arg4[%c4_216, %c0_217, %c0_218] : memref<6x32x32xf32, #tpu.memory_space<vmem>>, vector<1x32x32xf32>
    %474 = vector.shape_cast %473 : vector<1x32x32xf32> to vector<32x32xf32>
    %c4_219 = arith.constant 4 : index
    %c0_220 = arith.constant 0 : index
    %c0_221 = arith.constant 0 : index
    %475 = vector.load %arg6[%c4_219, %c0_220, %c0_221] : memref<6x1x16xf32, #tpu.memory_space<vmem>>, vector<1x1x16xf32>
    %476 = vector.shape_cast %475 : vector<1x1x16xf32> to vector<1x16xf32>
    %c4_222 = arith.constant 4 : index
    %c0_223 = arith.constant 0 : index
    %c0_224 = arith.constant 0 : index
    %477 = vector.load %arg7[%c4_222, %c0_223, %c0_224] : memref<6x1x16xf32, #tpu.memory_space<vmem>>, vector<1x1x16xf32>
    %478 = vector.shape_cast %477 : vector<1x1x16xf32> to vector<1x16xf32>
    %c4_225 = arith.constant 4 : index
    %c0_226 = arith.constant 0 : index
    %c0_227 = arith.constant 0 : index
    %479 = vector.load %arg8[%c4_225, %c0_226, %c0_227] : memref<6x32x32xf32, #tpu.memory_space<vmem>>, vector<1x32x32xf32>
    %480 = vector.shape_cast %479 : vector<1x32x32xf32> to vector<32x32xf32>
    %cst_228 = arith.constant dense<0.000000e+00> : vector<16x32xf32>
    %481 = tpu.matmul %261, %472, %cst_228 {dimension_numbers = #tpu.dot_dimension_numbers<[1], [0], [0], [1], [0, 0, 1, 1], [], []>} : vector<16x32xf32>, vector<32x32xf32>, vector<16x32xf32> -> vector<16x32xf32>
    %c4_229 = arith.constant 4 : index
    %c0_230 = arith.constant 0 : index
    %c0_231 = arith.constant 0 : index
    %482 = vector.load %arg3[%c4_229, %c0_230, %c0_231] : memref<6x1x32xf32, #tpu.memory_space<vmem>>, vector<1x1x32xf32>
    %483 = vector.shape_cast %482 : vector<1x1x32xf32> to vector<1x32xf32>
    %484 = vector.broadcast %483 : vector<1x32xf32> to vector<16x32xf32>
    %485 = arith.addf %481, %484 : vector<16x32xf32>
    %cst_232 = arith.constant dense<0.000000e+00> : vector<16x32xf32>
    %486 = tpu.matmul %261, %474, %cst_232 {dimension_numbers = #tpu.dot_dimension_numbers<[1], [0], [0], [1], [0, 0, 1, 1], [], []>} : vector<16x32xf32>, vector<32x32xf32>, vector<16x32xf32> -> vector<16x32xf32>
    %c4_233 = arith.constant 4 : index
    %c0_234 = arith.constant 0 : index
    %c0_235 = arith.constant 0 : index
    %487 = vector.load %arg5[%c4_233, %c0_234, %c0_235] : memref<6x1x32xf32, #tpu.memory_space<vmem>>, vector<1x1x32xf32>
    %488 = vector.shape_cast %487 : vector<1x1x32xf32> to vector<1x32xf32>
    %489 = vector.broadcast %488 : vector<1x32xf32> to vector<16x32xf32>
    %490 = arith.addf %486, %489 : vector<16x32xf32>
    %491 = vector.extract_strided_slice %485 {offsets = [0, 0], sizes = [8, 32], strides = [1, 1]} : vector<16x32xf32> to vector<8x32xf32>
    %492 = vector.extract_strided_slice %490 {offsets = [0, 0], sizes = [8, 32], strides = [1, 1]} : vector<16x32xf32> to vector<8x32xf32>
    %cst_236 = arith.constant 0.000000e+00 : f32
    %493 = vector.broadcast %cst_236 : f32 to vector<8x32xf32>
    %494 = vector.extract_strided_slice %491 {offsets = [0, 0], sizes = [8, 16], strides = [1, 1]} : vector<8x32xf32> to vector<8x16xf32>
    %495 = vector.extract_strided_slice %492 {offsets = [0, 0], sizes = [8, 16], strides = [1, 1]} : vector<8x32xf32> to vector<8x16xf32>
    %cst_237 = arith.constant dense<0.000000e+00> : vector<8x1xf32>
    %496 = tpu.matmul %495, %478, %cst_237 {dimension_numbers = #tpu.dot_dimension_numbers<[1], [1], [0], [0], [0, 0, 1, 0], [], []>} : vector<8x16xf32>, vector<1x16xf32>, vector<8x1xf32> -> vector<8x1xf32>
    %cst_238 = arith.constant dense<0.000000e+00> : vector<1x8xf32>
    %497 = tpu.matmul %476, %494, %cst_238 {dimension_numbers = #tpu.dot_dimension_numbers<[1], [1], [0], [0], [0, 0, 1, 0], [], []>} : vector<1x16xf32>, vector<8x16xf32>, vector<1x8xf32> -> vector<1x8xf32>
    %498 = vector.broadcast %496 : vector<8x1xf32> to vector<8x8xf32>
    %499 = vector.broadcast %497 : vector<1x8xf32> to vector<8x8xf32>
    %500 = arith.addf %498, %499 : vector<8x8xf32>
    %501 = math.tanh %500 : vector<8x8xf32>
    %502 = math.exp %501 : vector<8x8xf32>
    %cst_239 = arith.constant dense<0.000000e+00> : vector<8xf32>
    %503 = vector.multi_reduction <add>, %502, %cst_239 [1] : vector<8x8xf32> to vector<8xf32>
    %504 = vector.shape_cast %503 : vector<8xf32> to vector<8x1xf32>
    %505 = tpu.reciprocal %504 {approx = true} : vector<8x1xf32> -> vector<8x1xf32>
    %506 = vector.broadcast %505 : vector<8x1xf32> to vector<8x8xf32>
    %507 = arith.mulf %502, %506 : vector<8x8xf32>
    %cst_240 = arith.constant dense<0.000000e+00> : vector<8x16xf32>
    %508 = tpu.matmul %507, %494, %cst_240 {dimension_numbers = #tpu.dot_dimension_numbers<[1], [0], [0], [1], [0, 0, 1, 1], [], []>} : vector<8x8xf32>, vector<8x16xf32>, vector<8x16xf32> -> vector<8x16xf32>
    %509 = vector.extract_strided_slice %480 {offsets = [0, 0], sizes = [16, 32], strides = [1, 1]} : vector<32x32xf32> to vector<16x32xf32>
    %cst_241 = arith.constant dense<0.000000e+00> : vector<8x32xf32>
    %510 = tpu.matmul %508, %509, %cst_241 {dimension_numbers = #tpu.dot_dimension_numbers<[1], [0], [0], [1], [0, 0, 1, 1], [], []>} : vector<8x16xf32>, vector<16x32xf32>, vector<8x32xf32> -> vector<8x32xf32>
    %511 = arith.addf %493, %510 : vector<8x32xf32>
    %512 = vector.extract_strided_slice %491 {offsets = [0, 16], sizes = [8, 16], strides = [1, 1]} : vector<8x32xf32> to vector<8x16xf32>
    %513 = vector.extract_strided_slice %492 {offsets = [0, 16], sizes = [8, 16], strides = [1, 1]} : vector<8x32xf32> to vector<8x16xf32>
    %cst_242 = arith.constant dense<0.000000e+00> : vector<8x1xf32>
    %514 = tpu.matmul %513, %478, %cst_242 {dimension_numbers = #tpu.dot_dimension_numbers<[1], [1], [0], [0], [0, 0, 1, 0], [], []>} : vector<8x16xf32>, vector<1x16xf32>, vector<8x1xf32> -> vector<8x1xf32>
    %cst_243 = arith.constant dense<0.000000e+00> : vector<1x8xf32>
    %515 = tpu.matmul %476, %512, %cst_243 {dimension_numbers = #tpu.dot_dimension_numbers<[1], [1], [0], [0], [0, 0, 1, 0], [], []>} : vector<1x16xf32>, vector<8x16xf32>, vector<1x8xf32> -> vector<1x8xf32>
    %516 = vector.broadcast %514 : vector<8x1xf32> to vector<8x8xf32>
    %517 = vector.broadcast %515 : vector<1x8xf32> to vector<8x8xf32>
    %518 = arith.addf %516, %517 : vector<8x8xf32>
    %519 = math.tanh %518 : vector<8x8xf32>
    %520 = math.exp %519 : vector<8x8xf32>
    %cst_244 = arith.constant dense<0.000000e+00> : vector<8xf32>
    %521 = vector.multi_reduction <add>, %520, %cst_244 [1] : vector<8x8xf32> to vector<8xf32>
    %522 = vector.shape_cast %521 : vector<8xf32> to vector<8x1xf32>
    %523 = tpu.reciprocal %522 {approx = true} : vector<8x1xf32> -> vector<8x1xf32>
    %524 = vector.broadcast %523 : vector<8x1xf32> to vector<8x8xf32>
    %525 = arith.mulf %520, %524 : vector<8x8xf32>
    %cst_245 = arith.constant dense<0.000000e+00> : vector<8x16xf32>
    %526 = tpu.matmul %525, %512, %cst_245 {dimension_numbers = #tpu.dot_dimension_numbers<[1], [0], [0], [1], [0, 0, 1, 1], [], []>} : vector<8x8xf32>, vector<8x16xf32>, vector<8x16xf32> -> vector<8x16xf32>
    %527 = vector.extract_strided_slice %480 {offsets = [16, 0], sizes = [16, 32], strides = [1, 1]} : vector<32x32xf32> to vector<16x32xf32>
    %cst_246 = arith.constant dense<0.000000e+00> : vector<8x32xf32>
    %528 = tpu.matmul %526, %527, %cst_246 {dimension_numbers = #tpu.dot_dimension_numbers<[1], [0], [0], [1], [0, 0, 1, 1], [], []>} : vector<8x16xf32>, vector<16x32xf32>, vector<8x32xf32> -> vector<8x32xf32>
    %529 = arith.addf %511, %528 : vector<8x32xf32>
    %530 = vector.extract_strided_slice %485 {offsets = [8, 0], sizes = [8, 32], strides = [1, 1]} : vector<16x32xf32> to vector<8x32xf32>
    %531 = vector.extract_strided_slice %490 {offsets = [8, 0], sizes = [8, 32], strides = [1, 1]} : vector<16x32xf32> to vector<8x32xf32>
    %cst_247 = arith.constant 0.000000e+00 : f32
    %532 = vector.broadcast %cst_247 : f32 to vector<8x32xf32>
    %533 = vector.extract_strided_slice %530 {offsets = [0, 0], sizes = [8, 16], strides = [1, 1]} : vector<8x32xf32> to vector<8x16xf32>
    %534 = vector.extract_strided_slice %531 {offsets = [0, 0], sizes = [8, 16], strides = [1, 1]} : vector<8x32xf32> to vector<8x16xf32>
    %cst_248 = arith.constant dense<0.000000e+00> : vector<8x1xf32>
    %535 = tpu.matmul %534, %478, %cst_248 {dimension_numbers = #tpu.dot_dimension_numbers<[1], [1], [0], [0], [0, 0, 1, 0], [], []>} : vector<8x16xf32>, vector<1x16xf32>, vector<8x1xf32> -> vector<8x1xf32>
    %cst_249 = arith.constant dense<0.000000e+00> : vector<1x8xf32>
    %536 = tpu.matmul %476, %533, %cst_249 {dimension_numbers = #tpu.dot_dimension_numbers<[1], [1], [0], [0], [0, 0, 1, 0], [], []>} : vector<1x16xf32>, vector<8x16xf32>, vector<1x8xf32> -> vector<1x8xf32>
    %537 = vector.broadcast %535 : vector<8x1xf32> to vector<8x8xf32>
    %538 = vector.broadcast %536 : vector<1x8xf32> to vector<8x8xf32>
    %539 = arith.addf %537, %538 : vector<8x8xf32>
    %540 = math.tanh %539 : vector<8x8xf32>
    %541 = math.exp %540 : vector<8x8xf32>
    %cst_250 = arith.constant dense<0.000000e+00> : vector<8xf32>
    %542 = vector.multi_reduction <add>, %541, %cst_250 [1] : vector<8x8xf32> to vector<8xf32>
    %543 = vector.shape_cast %542 : vector<8xf32> to vector<8x1xf32>
    %544 = tpu.reciprocal %543 {approx = true} : vector<8x1xf32> -> vector<8x1xf32>
    %545 = vector.broadcast %544 : vector<8x1xf32> to vector<8x8xf32>
    %546 = arith.mulf %541, %545 : vector<8x8xf32>
    %cst_251 = arith.constant dense<0.000000e+00> : vector<8x16xf32>
    %547 = tpu.matmul %546, %533, %cst_251 {dimension_numbers = #tpu.dot_dimension_numbers<[1], [0], [0], [1], [0, 0, 1, 1], [], []>} : vector<8x8xf32>, vector<8x16xf32>, vector<8x16xf32> -> vector<8x16xf32>
    %548 = vector.extract_strided_slice %480 {offsets = [0, 0], sizes = [16, 32], strides = [1, 1]} : vector<32x32xf32> to vector<16x32xf32>
    %cst_252 = arith.constant dense<0.000000e+00> : vector<8x32xf32>
    %549 = tpu.matmul %547, %548, %cst_252 {dimension_numbers = #tpu.dot_dimension_numbers<[1], [0], [0], [1], [0, 0, 1, 1], [], []>} : vector<8x16xf32>, vector<16x32xf32>, vector<8x32xf32> -> vector<8x32xf32>
    %550 = arith.addf %532, %549 : vector<8x32xf32>
    %551 = vector.extract_strided_slice %530 {offsets = [0, 16], sizes = [8, 16], strides = [1, 1]} : vector<8x32xf32> to vector<8x16xf32>
    %552 = vector.extract_strided_slice %531 {offsets = [0, 16], sizes = [8, 16], strides = [1, 1]} : vector<8x32xf32> to vector<8x16xf32>
    %cst_253 = arith.constant dense<0.000000e+00> : vector<8x1xf32>
    %553 = tpu.matmul %552, %478, %cst_253 {dimension_numbers = #tpu.dot_dimension_numbers<[1], [1], [0], [0], [0, 0, 1, 0], [], []>} : vector<8x16xf32>, vector<1x16xf32>, vector<8x1xf32> -> vector<8x1xf32>
    %cst_254 = arith.constant dense<0.000000e+00> : vector<1x8xf32>
    %554 = tpu.matmul %476, %551, %cst_254 {dimension_numbers = #tpu.dot_dimension_numbers<[1], [1], [0], [0], [0, 0, 1, 0], [], []>} : vector<1x16xf32>, vector<8x16xf32>, vector<1x8xf32> -> vector<1x8xf32>
    %555 = vector.broadcast %553 : vector<8x1xf32> to vector<8x8xf32>
    %556 = vector.broadcast %554 : vector<1x8xf32> to vector<8x8xf32>
    %557 = arith.addf %555, %556 : vector<8x8xf32>
    %558 = math.tanh %557 : vector<8x8xf32>
    %559 = math.exp %558 : vector<8x8xf32>
    %cst_255 = arith.constant dense<0.000000e+00> : vector<8xf32>
    %560 = vector.multi_reduction <add>, %559, %cst_255 [1] : vector<8x8xf32> to vector<8xf32>
    %561 = vector.shape_cast %560 : vector<8xf32> to vector<8x1xf32>
    %562 = tpu.reciprocal %561 {approx = true} : vector<8x1xf32> -> vector<8x1xf32>
    %563 = vector.broadcast %562 : vector<8x1xf32> to vector<8x8xf32>
    %564 = arith.mulf %559, %563 : vector<8x8xf32>
    %cst_256 = arith.constant dense<0.000000e+00> : vector<8x16xf32>
    %565 = tpu.matmul %564, %551, %cst_256 {dimension_numbers = #tpu.dot_dimension_numbers<[1], [0], [0], [1], [0, 0, 1, 1], [], []>} : vector<8x8xf32>, vector<8x16xf32>, vector<8x16xf32> -> vector<8x16xf32>
    %566 = vector.extract_strided_slice %480 {offsets = [16, 0], sizes = [16, 32], strides = [1, 1]} : vector<32x32xf32> to vector<16x32xf32>
    %cst_257 = arith.constant dense<0.000000e+00> : vector<8x32xf32>
    %567 = tpu.matmul %565, %566, %cst_257 {dimension_numbers = #tpu.dot_dimension_numbers<[1], [0], [0], [1], [0, 0, 1, 1], [], []>} : vector<8x16xf32>, vector<16x32xf32>, vector<8x32xf32> -> vector<8x32xf32>
    %568 = arith.addf %550, %567 : vector<8x32xf32>
    %569 = tpu.concatenate %529, %568 in 0 : vector<8x32xf32>, vector<8x32xf32> -> vector<16x32xf32>
    %c4_258 = arith.constant 4 : index
    %c0_259 = arith.constant 0 : index
    %c0_260 = arith.constant 0 : index
    %570 = vector.load %arg9[%c4_258, %c0_259, %c0_260] : memref<6x1x32xf32, #tpu.memory_space<vmem>>, vector<1x1x32xf32>
    %571 = vector.shape_cast %570 : vector<1x1x32xf32> to vector<1x32xf32>
    %572 = vector.broadcast %571 : vector<1x32xf32> to vector<16x32xf32>
    %573 = arith.addf %569, %572 : vector<16x32xf32>
    %c5 = arith.constant 5 : index
    %c0_261 = arith.constant 0 : index
    %c0_262 = arith.constant 0 : index
    %574 = vector.load %arg2[%c5, %c0_261, %c0_262] : memref<6x32x32xf32, #tpu.memory_space<vmem>>, vector<1x32x32xf32>
    %575 = vector.shape_cast %574 : vector<1x32x32xf32> to vector<32x32xf32>
    %c5_263 = arith.constant 5 : index
    %c0_264 = arith.constant 0 : index
    %c0_265 = arith.constant 0 : index
    %576 = vector.load %arg4[%c5_263, %c0_264, %c0_265] : memref<6x32x32xf32, #tpu.memory_space<vmem>>, vector<1x32x32xf32>
    %577 = vector.shape_cast %576 : vector<1x32x32xf32> to vector<32x32xf32>
    %c5_266 = arith.constant 5 : index
    %c0_267 = arith.constant 0 : index
    %c0_268 = arith.constant 0 : index
    %578 = vector.load %arg6[%c5_266, %c0_267, %c0_268] : memref<6x1x16xf32, #tpu.memory_space<vmem>>, vector<1x1x16xf32>
    %579 = vector.shape_cast %578 : vector<1x1x16xf32> to vector<1x16xf32>
    %c5_269 = arith.constant 5 : index
    %c0_270 = arith.constant 0 : index
    %c0_271 = arith.constant 0 : index
    %580 = vector.load %arg7[%c5_269, %c0_270, %c0_271] : memref<6x1x16xf32, #tpu.memory_space<vmem>>, vector<1x1x16xf32>
    %581 = vector.shape_cast %580 : vector<1x1x16xf32> to vector<1x16xf32>
    %c5_272 = arith.constant 5 : index
    %c0_273 = arith.constant 0 : index
    %c0_274 = arith.constant 0 : index
    %582 = vector.load %arg8[%c5_272, %c0_273, %c0_274] : memref<6x32x32xf32, #tpu.memory_space<vmem>>, vector<1x32x32xf32>
    %583 = vector.shape_cast %582 : vector<1x32x32xf32> to vector<32x32xf32>
    %cst_275 = arith.constant dense<0.000000e+00> : vector<16x32xf32>
    %584 = tpu.matmul %261, %575, %cst_275 {dimension_numbers = #tpu.dot_dimension_numbers<[1], [0], [0], [1], [0, 0, 1, 1], [], []>} : vector<16x32xf32>, vector<32x32xf32>, vector<16x32xf32> -> vector<16x32xf32>
    %c5_276 = arith.constant 5 : index
    %c0_277 = arith.constant 0 : index
    %c0_278 = arith.constant 0 : index
    %585 = vector.load %arg3[%c5_276, %c0_277, %c0_278] : memref<6x1x32xf32, #tpu.memory_space<vmem>>, vector<1x1x32xf32>
    %586 = vector.shape_cast %585 : vector<1x1x32xf32> to vector<1x32xf32>
    %587 = vector.broadcast %586 : vector<1x32xf32> to vector<16x32xf32>
    %588 = arith.addf %584, %587 : vector<16x32xf32>
    %cst_279 = arith.constant dense<0.000000e+00> : vector<16x32xf32>
    %589 = tpu.matmul %131, %577, %cst_279 {dimension_numbers = #tpu.dot_dimension_numbers<[1], [0], [0], [1], [0, 0, 1, 1], [], []>} : vector<16x32xf32>, vector<32x32xf32>, vector<16x32xf32> -> vector<16x32xf32>
    %c5_280 = arith.constant 5 : index
    %c0_281 = arith.constant 0 : index
    %c0_282 = arith.constant 0 : index
    %590 = vector.load %arg5[%c5_280, %c0_281, %c0_282] : memref<6x1x32xf32, #tpu.memory_space<vmem>>, vector<1x1x32xf32>
    %591 = vector.shape_cast %590 : vector<1x1x32xf32> to vector<1x32xf32>
    %592 = vector.broadcast %591 : vector<1x32xf32> to vector<16x32xf32>
    %593 = arith.addf %589, %592 : vector<16x32xf32>
    %594 = vector.extract_strided_slice %588 {offsets = [0, 0], sizes = [8, 32], strides = [1, 1]} : vector<16x32xf32> to vector<8x32xf32>
    %595 = vector.extract_strided_slice %593 {offsets = [0, 0], sizes = [8, 32], strides = [1, 1]} : vector<16x32xf32> to vector<8x32xf32>
    %cst_283 = arith.constant 0.000000e+00 : f32
    %596 = vector.broadcast %cst_283 : f32 to vector<8x32xf32>
    %597 = vector.extract_strided_slice %594 {offsets = [0, 0], sizes = [8, 16], strides = [1, 1]} : vector<8x32xf32> to vector<8x16xf32>
    %598 = vector.extract_strided_slice %595 {offsets = [0, 0], sizes = [8, 16], strides = [1, 1]} : vector<8x32xf32> to vector<8x16xf32>
    %cst_284 = arith.constant dense<0.000000e+00> : vector<8x1xf32>
    %599 = tpu.matmul %598, %581, %cst_284 {dimension_numbers = #tpu.dot_dimension_numbers<[1], [1], [0], [0], [0, 0, 1, 0], [], []>} : vector<8x16xf32>, vector<1x16xf32>, vector<8x1xf32> -> vector<8x1xf32>
    %cst_285 = arith.constant dense<0.000000e+00> : vector<1x8xf32>
    %600 = tpu.matmul %579, %597, %cst_285 {dimension_numbers = #tpu.dot_dimension_numbers<[1], [1], [0], [0], [0, 0, 1, 0], [], []>} : vector<1x16xf32>, vector<8x16xf32>, vector<1x8xf32> -> vector<1x8xf32>
    %601 = vector.broadcast %599 : vector<8x1xf32> to vector<8x8xf32>
    %602 = vector.broadcast %600 : vector<1x8xf32> to vector<8x8xf32>
    %603 = arith.addf %601, %602 : vector<8x8xf32>
    %604 = math.tanh %603 : vector<8x8xf32>
    %605 = math.exp %604 : vector<8x8xf32>
    %cst_286 = arith.constant dense<0.000000e+00> : vector<8xf32>
    %606 = vector.multi_reduction <add>, %605, %cst_286 [1] : vector<8x8xf32> to vector<8xf32>
    %607 = vector.shape_cast %606 : vector<8xf32> to vector<8x1xf32>
    %608 = tpu.reciprocal %607 {approx = true} : vector<8x1xf32> -> vector<8x1xf32>
    %609 = vector.broadcast %608 : vector<8x1xf32> to vector<8x8xf32>
    %610 = arith.mulf %605, %609 : vector<8x8xf32>
    %cst_287 = arith.constant dense<0.000000e+00> : vector<8x16xf32>
    %611 = tpu.matmul %610, %597, %cst_287 {dimension_numbers = #tpu.dot_dimension_numbers<[1], [0], [0], [1], [0, 0, 1, 1], [], []>} : vector<8x8xf32>, vector<8x16xf32>, vector<8x16xf32> -> vector<8x16xf32>
    %612 = vector.extract_strided_slice %583 {offsets = [0, 0], sizes = [16, 32], strides = [1, 1]} : vector<32x32xf32> to vector<16x32xf32>
    %cst_288 = arith.constant dense<0.000000e+00> : vector<8x32xf32>
    %613 = tpu.matmul %611, %612, %cst_288 {dimension_numbers = #tpu.dot_dimension_numbers<[1], [0], [0], [1], [0, 0, 1, 1], [], []>} : vector<8x16xf32>, vector<16x32xf32>, vector<8x32xf32> -> vector<8x32xf32>
    %614 = arith.addf %596, %613 : vector<8x32xf32>
    %615 = vector.extract_strided_slice %594 {offsets = [0, 16], sizes = [8, 16], strides = [1, 1]} : vector<8x32xf32> to vector<8x16xf32>
    %616 = vector.extract_strided_slice %595 {offsets = [0, 16], sizes = [8, 16], strides = [1, 1]} : vector<8x32xf32> to vector<8x16xf32>
    %cst_289 = arith.constant dense<0.000000e+00> : vector<8x1xf32>
    %617 = tpu.matmul %616, %581, %cst_289 {dimension_numbers = #tpu.dot_dimension_numbers<[1], [1], [0], [0], [0, 0, 1, 0], [], []>} : vector<8x16xf32>, vector<1x16xf32>, vector<8x1xf32> -> vector<8x1xf32>
    %cst_290 = arith.constant dense<0.000000e+00> : vector<1x8xf32>
    %618 = tpu.matmul %579, %615, %cst_290 {dimension_numbers = #tpu.dot_dimension_numbers<[1], [1], [0], [0], [0, 0, 1, 0], [], []>} : vector<1x16xf32>, vector<8x16xf32>, vector<1x8xf32> -> vector<1x8xf32>
    %619 = vector.broadcast %617 : vector<8x1xf32> to vector<8x8xf32>
    %620 = vector.broadcast %618 : vector<1x8xf32> to vector<8x8xf32>
    %621 = arith.addf %619, %620 : vector<8x8xf32>
    %622 = math.tanh %621 : vector<8x8xf32>
    %623 = math.exp %622 : vector<8x8xf32>
    %cst_291 = arith.constant dense<0.000000e+00> : vector<8xf32>
    %624 = vector.multi_reduction <add>, %623, %cst_291 [1] : vector<8x8xf32> to vector<8xf32>
    %625 = vector.shape_cast %624 : vector<8xf32> to vector<8x1xf32>
    %626 = tpu.reciprocal %625 {approx = true} : vector<8x1xf32> -> vector<8x1xf32>
    %627 = vector.broadcast %626 : vector<8x1xf32> to vector<8x8xf32>
    %628 = arith.mulf %623, %627 : vector<8x8xf32>
    %cst_292 = arith.constant dense<0.000000e+00> : vector<8x16xf32>
    %629 = tpu.matmul %628, %615, %cst_292 {dimension_numbers = #tpu.dot_dimension_numbers<[1], [0], [0], [1], [0, 0, 1, 1], [], []>} : vector<8x8xf32>, vector<8x16xf32>, vector<8x16xf32> -> vector<8x16xf32>
    %630 = vector.extract_strided_slice %583 {offsets = [16, 0], sizes = [16, 32], strides = [1, 1]} : vector<32x32xf32> to vector<16x32xf32>
    %cst_293 = arith.constant dense<0.000000e+00> : vector<8x32xf32>
    %631 = tpu.matmul %629, %630, %cst_293 {dimension_numbers = #tpu.dot_dimension_numbers<[1], [0], [0], [1], [0, 0, 1, 1], [], []>} : vector<8x16xf32>, vector<16x32xf32>, vector<8x32xf32> -> vector<8x32xf32>
    %632 = arith.addf %614, %631 : vector<8x32xf32>
    %633 = vector.extract_strided_slice %588 {offsets = [8, 0], sizes = [8, 32], strides = [1, 1]} : vector<16x32xf32> to vector<8x32xf32>
    %634 = vector.extract_strided_slice %593 {offsets = [8, 0], sizes = [8, 32], strides = [1, 1]} : vector<16x32xf32> to vector<8x32xf32>
    %cst_294 = arith.constant 0.000000e+00 : f32
    %635 = vector.broadcast %cst_294 : f32 to vector<8x32xf32>
    %636 = vector.extract_strided_slice %633 {offsets = [0, 0], sizes = [8, 16], strides = [1, 1]} : vector<8x32xf32> to vector<8x16xf32>
    %637 = vector.extract_strided_slice %634 {offsets = [0, 0], sizes = [8, 16], strides = [1, 1]} : vector<8x32xf32> to vector<8x16xf32>
    %cst_295 = arith.constant dense<0.000000e+00> : vector<8x1xf32>
    %638 = tpu.matmul %637, %581, %cst_295 {dimension_numbers = #tpu.dot_dimension_numbers<[1], [1], [0], [0], [0, 0, 1, 0], [], []>} : vector<8x16xf32>, vector<1x16xf32>, vector<8x1xf32> -> vector<8x1xf32>
    %cst_296 = arith.constant dense<0.000000e+00> : vector<1x8xf32>
    %639 = tpu.matmul %579, %636, %cst_296 {dimension_numbers = #tpu.dot_dimension_numbers<[1], [1], [0], [0], [0, 0, 1, 0], [], []>} : vector<1x16xf32>, vector<8x16xf32>, vector<1x8xf32> -> vector<1x8xf32>
    %640 = vector.broadcast %638 : vector<8x1xf32> to vector<8x8xf32>
    %641 = vector.broadcast %639 : vector<1x8xf32> to vector<8x8xf32>
    %642 = arith.addf %640, %641 : vector<8x8xf32>
    %643 = math.tanh %642 : vector<8x8xf32>
    %644 = math.exp %643 : vector<8x8xf32>
    %cst_297 = arith.constant dense<0.000000e+00> : vector<8xf32>
    %645 = vector.multi_reduction <add>, %644, %cst_297 [1] : vector<8x8xf32> to vector<8xf32>
    %646 = vector.shape_cast %645 : vector<8xf32> to vector<8x1xf32>
    %647 = tpu.reciprocal %646 {approx = true} : vector<8x1xf32> -> vector<8x1xf32>
    %648 = vector.broadcast %647 : vector<8x1xf32> to vector<8x8xf32>
    %649 = arith.mulf %644, %648 : vector<8x8xf32>
    %cst_298 = arith.constant dense<0.000000e+00> : vector<8x16xf32>
    %650 = tpu.matmul %649, %636, %cst_298 {dimension_numbers = #tpu.dot_dimension_numbers<[1], [0], [0], [1], [0, 0, 1, 1], [], []>} : vector<8x8xf32>, vector<8x16xf32>, vector<8x16xf32> -> vector<8x16xf32>
    %651 = vector.extract_strided_slice %583 {offsets = [0, 0], sizes = [16, 32], strides = [1, 1]} : vector<32x32xf32> to vector<16x32xf32>
    %cst_299 = arith.constant dense<0.000000e+00> : vector<8x32xf32>
    %652 = tpu.matmul %650, %651, %cst_299 {dimension_numbers = #tpu.dot_dimension_numbers<[1], [0], [0], [1], [0, 0, 1, 1], [], []>} : vector<8x16xf32>, vector<16x32xf32>, vector<8x32xf32> -> vector<8x32xf32>
    %653 = arith.addf %635, %652 : vector<8x32xf32>
    %654 = vector.extract_strided_slice %633 {offsets = [0, 16], sizes = [8, 16], strides = [1, 1]} : vector<8x32xf32> to vector<8x16xf32>
    %655 = vector.extract_strided_slice %634 {offsets = [0, 16], sizes = [8, 16], strides = [1, 1]} : vector<8x32xf32> to vector<8x16xf32>
    %cst_300 = arith.constant dense<0.000000e+00> : vector<8x1xf32>
    %656 = tpu.matmul %655, %581, %cst_300 {dimension_numbers = #tpu.dot_dimension_numbers<[1], [1], [0], [0], [0, 0, 1, 0], [], []>} : vector<8x16xf32>, vector<1x16xf32>, vector<8x1xf32> -> vector<8x1xf32>
    %cst_301 = arith.constant dense<0.000000e+00> : vector<1x8xf32>
    %657 = tpu.matmul %579, %654, %cst_301 {dimension_numbers = #tpu.dot_dimension_numbers<[1], [1], [0], [0], [0, 0, 1, 0], [], []>} : vector<1x16xf32>, vector<8x16xf32>, vector<1x8xf32> -> vector<1x8xf32>
    %658 = vector.broadcast %656 : vector<8x1xf32> to vector<8x8xf32>
    %659 = vector.broadcast %657 : vector<1x8xf32> to vector<8x8xf32>
    %660 = arith.addf %658, %659 : vector<8x8xf32>
    %661 = math.tanh %660 : vector<8x8xf32>
    %662 = math.exp %661 : vector<8x8xf32>
    %cst_302 = arith.constant dense<0.000000e+00> : vector<8xf32>
    %663 = vector.multi_reduction <add>, %662, %cst_302 [1] : vector<8x8xf32> to vector<8xf32>
    %664 = vector.shape_cast %663 : vector<8xf32> to vector<8x1xf32>
    %665 = tpu.reciprocal %664 {approx = true} : vector<8x1xf32> -> vector<8x1xf32>
    %666 = vector.broadcast %665 : vector<8x1xf32> to vector<8x8xf32>
    %667 = arith.mulf %662, %666 : vector<8x8xf32>
    %cst_303 = arith.constant dense<0.000000e+00> : vector<8x16xf32>
    %668 = tpu.matmul %667, %654, %cst_303 {dimension_numbers = #tpu.dot_dimension_numbers<[1], [0], [0], [1], [0, 0, 1, 1], [], []>} : vector<8x8xf32>, vector<8x16xf32>, vector<8x16xf32> -> vector<8x16xf32>
    %669 = vector.extract_strided_slice %583 {offsets = [16, 0], sizes = [16, 32], strides = [1, 1]} : vector<32x32xf32> to vector<16x32xf32>
    %cst_304 = arith.constant dense<0.000000e+00> : vector<8x32xf32>
    %670 = tpu.matmul %668, %669, %cst_304 {dimension_numbers = #tpu.dot_dimension_numbers<[1], [0], [0], [1], [0, 0, 1, 1], [], []>} : vector<8x16xf32>, vector<16x32xf32>, vector<8x32xf32> -> vector<8x32xf32>
    %671 = arith.addf %653, %670 : vector<8x32xf32>
    %672 = tpu.concatenate %632, %671 in 0 : vector<8x32xf32>, vector<8x32xf32> -> vector<16x32xf32>
    %c5_305 = arith.constant 5 : index
    %c0_306 = arith.constant 0 : index
    %c0_307 = arith.constant 0 : index
    %673 = vector.load %arg9[%c5_305, %c0_306, %c0_307] : memref<6x1x32xf32, #tpu.memory_space<vmem>>, vector<1x1x32xf32>
    %674 = vector.shape_cast %673 : vector<1x1x32xf32> to vector<1x32xf32>
    %675 = vector.broadcast %674 : vector<1x32xf32> to vector<16x32xf32>
    %676 = arith.addf %672, %675 : vector<16x32xf32>
    %677 = arith.addf %573, %676 : vector<16x32xf32>
    %cst_308 = arith.constant 5.000000e-01 : f32
    %678 = vector.broadcast %cst_308 : f32 to vector<16x32xf32>
    %679 = arith.mulf %677, %678 : vector<16x32xf32>
    %c0_309 = arith.constant 0 : index
    %c0_310 = arith.constant 0 : index
    %c0_311 = arith.constant 0 : index
    %680 = vector.load %arg12[%c0_309, %c0_310, %c0_311] : memref<2x64x32xf32, #tpu.memory_space<vmem>>, vector<1x64x32xf32>
    %681 = vector.shape_cast %680 : vector<1x64x32xf32> to vector<64x32xf32>
    %c0_312 = arith.constant 0 : index
    %c0_313 = arith.constant 0 : index
    %c0_314 = arith.constant 0 : index
    %682 = vector.load %arg18[%c0_312, %c0_313, %c0_314] : memref<2x1x32xf32, #tpu.memory_space<vmem>>, vector<1x1x32xf32>
    %683 = vector.shape_cast %682 : vector<1x1x32xf32> to vector<1x32xf32>
    %c0_315 = arith.constant 0 : index
    %c0_316 = arith.constant 0 : index
    %c0_317 = arith.constant 0 : index
    %684 = vector.load %arg19[%c0_315, %c0_316, %c0_317] : memref<2x1x32xf32, #tpu.memory_space<vmem>>, vector<1x1x32xf32>
    %685 = vector.shape_cast %684 : vector<1x1x32xf32> to vector<1x32xf32>
    %686 = math.tanh %470 : vector<16x32xf32>
    %687 = math.tanh %131 : vector<16x32xf32>
    %688 = vector.extract_strided_slice %681 {offsets = [0, 0], sizes = [32, 32], strides = [1, 1]} : vector<64x32xf32> to vector<32x32xf32>
    %cst_318 = arith.constant dense<0.000000e+00> : vector<16x32xf32>
    %689 = tpu.matmul %686, %688, %cst_318 {dimension_numbers = #tpu.dot_dimension_numbers<[1], [0], [0], [1], [0, 0, 1, 1], [], []>} : vector<16x32xf32>, vector<32x32xf32>, vector<16x32xf32> -> vector<16x32xf32>
    %690 = vector.extract_strided_slice %681 {offsets = [32, 0], sizes = [32, 32], strides = [1, 1]} : vector<64x32xf32> to vector<32x32xf32>
    %cst_319 = arith.constant dense<0.000000e+00> : vector<16x32xf32>
    %691 = tpu.matmul %687, %690, %cst_319 {dimension_numbers = #tpu.dot_dimension_numbers<[1], [0], [0], [1], [0, 0, 1, 1], [], []>} : vector<16x32xf32>, vector<32x32xf32>, vector<16x32xf32> -> vector<16x32xf32>
    %692 = arith.addf %689, %691 : vector<16x32xf32>
    %c0_320 = arith.constant 0 : index
    %c0_321 = arith.constant 0 : index
    %c0_322 = arith.constant 0 : index
    %693 = vector.load %arg13[%c0_320, %c0_321, %c0_322] : memref<2x1x32xf32, #tpu.memory_space<vmem>>, vector<1x1x32xf32>
    %694 = vector.shape_cast %693 : vector<1x1x32xf32> to vector<1x32xf32>
    %695 = vector.broadcast %694 : vector<1x32xf32> to vector<16x32xf32>
    %696 = arith.addf %692, %695 : vector<16x32xf32>
    %cst_323 = arith.constant 0.000000e+00 : f32
    %697 = vector.broadcast %cst_323 : f32 to vector<16x32xf32>
    %698 = arith.maximumf %696, %697 : vector<16x32xf32>
    %cst_324 = arith.constant dense<0.000000e+00> : vector<16xf32>
    %699 = vector.multi_reduction <add>, %698, %cst_324 [1] : vector<16x32xf32> to vector<16xf32>
    %700 = vector.shape_cast %699 : vector<16xf32> to vector<16x1xf32>
    %cst_325 = arith.constant 3.200000e+01 : f32
    %701 = vector.broadcast %cst_325 : f32 to vector<16x1xf32>
    %702 = arith.divf %700, %701 : vector<16x1xf32>
    %703 = vector.broadcast %702 : vector<16x1xf32> to vector<16x32xf32>
    %704 = arith.subf %698, %703 : vector<16x32xf32>
    %705 = arith.mulf %704, %704 : vector<16x32xf32>
    %cst_326 = arith.constant dense<0.000000e+00> : vector<16xf32>
    %706 = vector.multi_reduction <add>, %705, %cst_326 [1] : vector<16x32xf32> to vector<16xf32>
    %707 = vector.shape_cast %706 : vector<16xf32> to vector<16x1xf32>
    %cst_327 = arith.constant 3.200000e+01 : f32
    %708 = vector.broadcast %cst_327 : f32 to vector<16x1xf32>
    %709 = arith.divf %707, %708 : vector<16x1xf32>
    %710 = vector.broadcast %702 : vector<16x1xf32> to vector<16x32xf32>
    %711 = arith.subf %698, %710 : vector<16x32xf32>
    %cst_328 = arith.constant 9.99999997E-7 : f32
    %712 = vector.broadcast %cst_328 : f32 to vector<16x1xf32>
    %713 = arith.addf %709, %712 : vector<16x1xf32>
    %714 = math.rsqrt %713 : vector<16x1xf32>
    %715 = vector.broadcast %714 : vector<16x1xf32> to vector<16x32xf32>
    %716 = arith.mulf %711, %715 : vector<16x32xf32>
    %717 = vector.broadcast %683 : vector<1x32xf32> to vector<16x32xf32>
    %718 = arith.mulf %716, %717 : vector<16x32xf32>
    %719 = vector.broadcast %685 : vector<1x32xf32> to vector<16x32xf32>
    %720 = arith.addf %718, %719 : vector<16x32xf32>
    %c0_329 = arith.constant 0 : index
    %c0_330 = arith.constant 0 : index
    %c0_331 = arith.constant 0 : index
    %721 = vector.load %arg14[%c0_329, %c0_330, %c0_331] : memref<2x32x64xf32, #tpu.memory_space<vmem>>, vector<1x32x64xf32>
    %722 = vector.shape_cast %721 : vector<1x32x64xf32> to vector<32x64xf32>
    %cst_332 = arith.constant dense<0.000000e+00> : vector<16x64xf32>
    %723 = tpu.matmul %720, %722, %cst_332 {dimension_numbers = #tpu.dot_dimension_numbers<[1], [0], [0], [1], [0, 0, 1, 1], [], []>} : vector<16x32xf32>, vector<32x64xf32>, vector<16x64xf32> -> vector<16x64xf32>
    %c0_333 = arith.constant 0 : index
    %c0_334 = arith.constant 0 : index
    %c0_335 = arith.constant 0 : index
    %724 = vector.load %arg15[%c0_333, %c0_334, %c0_335] : memref<2x1x64xf32, #tpu.memory_space<vmem>>, vector<1x1x64xf32>
    %725 = vector.shape_cast %724 : vector<1x1x64xf32> to vector<1x64xf32>
    %726 = vector.broadcast %725 : vector<1x64xf32> to vector<16x64xf32>
    %727 = arith.addf %723, %726 : vector<16x64xf32>
    %cst_336 = arith.constant 0.000000e+00 : f32
    %728 = vector.broadcast %cst_336 : f32 to vector<16x64xf32>
    %729 = arith.maximumf %727, %728 : vector<16x64xf32>
    %c0_337 = arith.constant 0 : index
    %c0_338 = arith.constant 0 : index
    %c0_339 = arith.constant 0 : index
    %730 = vector.load %arg16[%c0_337, %c0_338, %c0_339] : memref<2x64x32xf32, #tpu.memory_space<vmem>>, vector<1x64x32xf32>
    %731 = vector.shape_cast %730 : vector<1x64x32xf32> to vector<64x32xf32>
    %cst_340 = arith.constant dense<0.000000e+00> : vector<16x32xf32>
    %732 = tpu.matmul %729, %731, %cst_340 {dimension_numbers = #tpu.dot_dimension_numbers<[1], [0], [0], [1], [0, 0, 1, 1], [], []>} : vector<16x64xf32>, vector<64x32xf32>, vector<16x32xf32> -> vector<16x32xf32>
    %c0_341 = arith.constant 0 : index
    %c0_342 = arith.constant 0 : index
    %c0_343 = arith.constant 0 : index
    %733 = vector.load %arg17[%c0_341, %c0_342, %c0_343] : memref<2x1x32xf32, #tpu.memory_space<vmem>>, vector<1x1x32xf32>
    %734 = vector.shape_cast %733 : vector<1x1x32xf32> to vector<1x32xf32>
    %735 = vector.broadcast %734 : vector<1x32xf32> to vector<16x32xf32>
    %736 = arith.addf %732, %735 : vector<16x32xf32>
    %737 = arith.addf %736, %720 : vector<16x32xf32>
    %cst_344 = arith.constant dense<0.000000e+00> : vector<16xf32>
    %738 = vector.multi_reduction <add>, %737, %cst_344 [1] : vector<16x32xf32> to vector<16xf32>
    %739 = vector.shape_cast %738 : vector<16xf32> to vector<16x1xf32>
    %cst_345 = arith.constant 3.200000e+01 : f32
    %740 = vector.broadcast %cst_345 : f32 to vector<16x1xf32>
    %741 = arith.divf %739, %740 : vector<16x1xf32>
    %742 = vector.broadcast %741 : vector<16x1xf32> to vector<16x32xf32>
    %743 = arith.subf %737, %742 : vector<16x32xf32>
    %744 = arith.mulf %743, %743 : vector<16x32xf32>
    %cst_346 = arith.constant dense<0.000000e+00> : vector<16xf32>
    %745 = vector.multi_reduction <add>, %744, %cst_346 [1] : vector<16x32xf32> to vector<16xf32>
    %746 = vector.shape_cast %745 : vector<16xf32> to vector<16x1xf32>
    %cst_347 = arith.constant 3.200000e+01 : f32
    %747 = vector.broadcast %cst_347 : f32 to vector<16x1xf32>
    %748 = arith.divf %746, %747 : vector<16x1xf32>
    %749 = vector.broadcast %741 : vector<16x1xf32> to vector<16x32xf32>
    %750 = arith.subf %737, %749 : vector<16x32xf32>
    %cst_348 = arith.constant 9.99999997E-7 : f32
    %751 = vector.broadcast %cst_348 : f32 to vector<16x1xf32>
    %752 = arith.addf %748, %751 : vector<16x1xf32>
    %753 = math.rsqrt %752 : vector<16x1xf32>
    %754 = vector.broadcast %753 : vector<16x1xf32> to vector<16x32xf32>
    %755 = arith.mulf %750, %754 : vector<16x32xf32>
    %756 = vector.broadcast %683 : vector<1x32xf32> to vector<16x32xf32>
    %757 = arith.mulf %755, %756 : vector<16x32xf32>
    %758 = vector.broadcast %685 : vector<1x32xf32> to vector<16x32xf32>
    %759 = arith.addf %757, %758 : vector<16x32xf32>
    %c1_349 = arith.constant 1 : index
    %c0_350 = arith.constant 0 : index
    %c0_351 = arith.constant 0 : index
    %760 = vector.load %arg12[%c1_349, %c0_350, %c0_351] : memref<2x64x32xf32, #tpu.memory_space<vmem>>, vector<1x64x32xf32>
    %761 = vector.shape_cast %760 : vector<1x64x32xf32> to vector<64x32xf32>
    %c1_352 = arith.constant 1 : index
    %c0_353 = arith.constant 0 : index
    %c0_354 = arith.constant 0 : index
    %762 = vector.load %arg18[%c1_352, %c0_353, %c0_354] : memref<2x1x32xf32, #tpu.memory_space<vmem>>, vector<1x1x32xf32>
    %763 = vector.shape_cast %762 : vector<1x1x32xf32> to vector<1x32xf32>
    %c1_355 = arith.constant 1 : index
    %c0_356 = arith.constant 0 : index
    %c0_357 = arith.constant 0 : index
    %764 = vector.load %arg19[%c1_355, %c0_356, %c0_357] : memref<2x1x32xf32, #tpu.memory_space<vmem>>, vector<1x1x32xf32>
    %765 = vector.shape_cast %764 : vector<1x1x32xf32> to vector<1x32xf32>
    %766 = math.tanh %679 : vector<16x32xf32>
    %767 = math.tanh %261 : vector<16x32xf32>
    %768 = vector.extract_strided_slice %761 {offsets = [0, 0], sizes = [32, 32], strides = [1, 1]} : vector<64x32xf32> to vector<32x32xf32>
    %cst_358 = arith.constant dense<0.000000e+00> : vector<16x32xf32>
    %769 = tpu.matmul %766, %768, %cst_358 {dimension_numbers = #tpu.dot_dimension_numbers<[1], [0], [0], [1], [0, 0, 1, 1], [], []>} : vector<16x32xf32>, vector<32x32xf32>, vector<16x32xf32> -> vector<16x32xf32>
    %770 = vector.extract_strided_slice %761 {offsets = [32, 0], sizes = [32, 32], strides = [1, 1]} : vector<64x32xf32> to vector<32x32xf32>
    %cst_359 = arith.constant dense<0.000000e+00> : vector<16x32xf32>
    %771 = tpu.matmul %767, %770, %cst_359 {dimension_numbers = #tpu.dot_dimension_numbers<[1], [0], [0], [1], [0, 0, 1, 1], [], []>} : vector<16x32xf32>, vector<32x32xf32>, vector<16x32xf32> -> vector<16x32xf32>
    %772 = arith.addf %769, %771 : vector<16x32xf32>
    %c1_360 = arith.constant 1 : index
    %c0_361 = arith.constant 0 : index
    %c0_362 = arith.constant 0 : index
    %773 = vector.load %arg13[%c1_360, %c0_361, %c0_362] : memref<2x1x32xf32, #tpu.memory_space<vmem>>, vector<1x1x32xf32>
    %774 = vector.shape_cast %773 : vector<1x1x32xf32> to vector<1x32xf32>
    %775 = vector.broadcast %774 : vector<1x32xf32> to vector<16x32xf32>
    %776 = arith.addf %772, %775 : vector<16x32xf32>
    %cst_363 = arith.constant 0.000000e+00 : f32
    %777 = vector.broadcast %cst_363 : f32 to vector<16x32xf32>
    %778 = arith.maximumf %776, %777 : vector<16x32xf32>
    %cst_364 = arith.constant dense<0.000000e+00> : vector<16xf32>
    %779 = vector.multi_reduction <add>, %778, %cst_364 [1] : vector<16x32xf32> to vector<16xf32>
    %780 = vector.shape_cast %779 : vector<16xf32> to vector<16x1xf32>
    %cst_365 = arith.constant 3.200000e+01 : f32
    %781 = vector.broadcast %cst_365 : f32 to vector<16x1xf32>
    %782 = arith.divf %780, %781 : vector<16x1xf32>
    %783 = vector.broadcast %782 : vector<16x1xf32> to vector<16x32xf32>
    %784 = arith.subf %778, %783 : vector<16x32xf32>
    %785 = arith.mulf %784, %784 : vector<16x32xf32>
    %cst_366 = arith.constant dense<0.000000e+00> : vector<16xf32>
    %786 = vector.multi_reduction <add>, %785, %cst_366 [1] : vector<16x32xf32> to vector<16xf32>
    %787 = vector.shape_cast %786 : vector<16xf32> to vector<16x1xf32>
    %cst_367 = arith.constant 3.200000e+01 : f32
    %788 = vector.broadcast %cst_367 : f32 to vector<16x1xf32>
    %789 = arith.divf %787, %788 : vector<16x1xf32>
    %790 = vector.broadcast %782 : vector<16x1xf32> to vector<16x32xf32>
    %791 = arith.subf %778, %790 : vector<16x32xf32>
    %cst_368 = arith.constant 9.99999997E-7 : f32
    %792 = vector.broadcast %cst_368 : f32 to vector<16x1xf32>
    %793 = arith.addf %789, %792 : vector<16x1xf32>
    %794 = math.rsqrt %793 : vector<16x1xf32>
    %795 = vector.broadcast %794 : vector<16x1xf32> to vector<16x32xf32>
    %796 = arith.mulf %791, %795 : vector<16x32xf32>
    %797 = vector.broadcast %763 : vector<1x32xf32> to vector<16x32xf32>
    %798 = arith.mulf %796, %797 : vector<16x32xf32>
    %799 = vector.broadcast %765 : vector<1x32xf32> to vector<16x32xf32>
    %800 = arith.addf %798, %799 : vector<16x32xf32>
    %c1_369 = arith.constant 1 : index
    %c0_370 = arith.constant 0 : index
    %c0_371 = arith.constant 0 : index
    %801 = vector.load %arg14[%c1_369, %c0_370, %c0_371] : memref<2x32x64xf32, #tpu.memory_space<vmem>>, vector<1x32x64xf32>
    %802 = vector.shape_cast %801 : vector<1x32x64xf32> to vector<32x64xf32>
    %cst_372 = arith.constant dense<0.000000e+00> : vector<16x64xf32>
    %803 = tpu.matmul %800, %802, %cst_372 {dimension_numbers = #tpu.dot_dimension_numbers<[1], [0], [0], [1], [0, 0, 1, 1], [], []>} : vector<16x32xf32>, vector<32x64xf32>, vector<16x64xf32> -> vector<16x64xf32>
    %c1_373 = arith.constant 1 : index
    %c0_374 = arith.constant 0 : index
    %c0_375 = arith.constant 0 : index
    %804 = vector.load %arg15[%c1_373, %c0_374, %c0_375] : memref<2x1x64xf32, #tpu.memory_space<vmem>>, vector<1x1x64xf32>
    %805 = vector.shape_cast %804 : vector<1x1x64xf32> to vector<1x64xf32>
    %806 = vector.broadcast %805 : vector<1x64xf32> to vector<16x64xf32>
    %807 = arith.addf %803, %806 : vector<16x64xf32>
    %cst_376 = arith.constant 0.000000e+00 : f32
    %808 = vector.broadcast %cst_376 : f32 to vector<16x64xf32>
    %809 = arith.maximumf %807, %808 : vector<16x64xf32>
    %c1_377 = arith.constant 1 : index
    %c0_378 = arith.constant 0 : index
    %c0_379 = arith.constant 0 : index
    %810 = vector.load %arg16[%c1_377, %c0_378, %c0_379] : memref<2x64x32xf32, #tpu.memory_space<vmem>>, vector<1x64x32xf32>
    %811 = vector.shape_cast %810 : vector<1x64x32xf32> to vector<64x32xf32>
    %cst_380 = arith.constant dense<0.000000e+00> : vector<16x32xf32>
    %812 = tpu.matmul %809, %811, %cst_380 {dimension_numbers = #tpu.dot_dimension_numbers<[1], [0], [0], [1], [0, 0, 1, 1], [], []>} : vector<16x64xf32>, vector<64x32xf32>, vector<16x32xf32> -> vector<16x32xf32>
    %c1_381 = arith.constant 1 : index
    %c0_382 = arith.constant 0 : index
    %c0_383 = arith.constant 0 : index
    %813 = vector.load %arg17[%c1_381, %c0_382, %c0_383] : memref<2x1x32xf32, #tpu.memory_space<vmem>>, vector<1x1x32xf32>
    %814 = vector.shape_cast %813 : vector<1x1x32xf32> to vector<1x32xf32>
    %815 = vector.broadcast %814 : vector<1x32xf32> to vector<16x32xf32>
    %816 = arith.addf %812, %815 : vector<16x32xf32>
    %817 = arith.addf %816, %800 : vector<16x32xf32>
    %cst_384 = arith.constant dense<0.000000e+00> : vector<16xf32>
    %818 = vector.multi_reduction <add>, %817, %cst_384 [1] : vector<16x32xf32> to vector<16xf32>
    %819 = vector.shape_cast %818 : vector<16xf32> to vector<16x1xf32>
    %cst_385 = arith.constant 3.200000e+01 : f32
    %820 = vector.broadcast %cst_385 : f32 to vector<16x1xf32>
    %821 = arith.divf %819, %820 : vector<16x1xf32>
    %822 = vector.broadcast %821 : vector<16x1xf32> to vector<16x32xf32>
    %823 = arith.subf %817, %822 : vector<16x32xf32>
    %824 = arith.mulf %823, %823 : vector<16x32xf32>
    %cst_386 = arith.constant dense<0.000000e+00> : vector<16xf32>
    %825 = vector.multi_reduction <add>, %824, %cst_386 [1] : vector<16x32xf32> to vector<16xf32>
    %826 = vector.shape_cast %825 : vector<16xf32> to vector<16x1xf32>
    %cst_387 = arith.constant 3.200000e+01 : f32
    %827 = vector.broadcast %cst_387 : f32 to vector<16x1xf32>
    %828 = arith.divf %826, %827 : vector<16x1xf32>
    %829 = vector.broadcast %821 : vector<16x1xf32> to vector<16x32xf32>
    %830 = arith.subf %817, %829 : vector<16x32xf32>
    %cst_388 = arith.constant 9.99999997E-7 : f32
    %831 = vector.broadcast %cst_388 : f32 to vector<16x1xf32>
    %832 = arith.addf %828, %831 : vector<16x1xf32>
    %833 = math.rsqrt %832 : vector<16x1xf32>
    %834 = vector.broadcast %833 : vector<16x1xf32> to vector<16x32xf32>
    %835 = arith.mulf %830, %834 : vector<16x32xf32>
    %836 = vector.broadcast %763 : vector<1x32xf32> to vector<16x32xf32>
    %837 = arith.mulf %835, %836 : vector<16x32xf32>
    %838 = vector.broadcast %765 : vector<1x32xf32> to vector<16x32xf32>
    %839 = arith.addf %837, %838 : vector<16x32xf32>
    %c2_389 = arith.constant 2 : index
    %c0_390 = arith.constant 0 : index
    %c0_391 = arith.constant 0 : index
    %840 = vector.load %arg2[%c2_389, %c0_390, %c0_391] : memref<6x32x32xf32, #tpu.memory_space<vmem>>, vector<1x32x32xf32>
    %841 = vector.shape_cast %840 : vector<1x32x32xf32> to vector<32x32xf32>
    %c2_392 = arith.constant 2 : index
    %c0_393 = arith.constant 0 : index
    %c0_394 = arith.constant 0 : index
    %842 = vector.load %arg4[%c2_392, %c0_393, %c0_394] : memref<6x32x32xf32, #tpu.memory_space<vmem>>, vector<1x32x32xf32>
    %843 = vector.shape_cast %842 : vector<1x32x32xf32> to vector<32x32xf32>
    %c2_395 = arith.constant 2 : index
    %c0_396 = arith.constant 0 : index
    %c0_397 = arith.constant 0 : index
    %844 = vector.load %arg6[%c2_395, %c0_396, %c0_397] : memref<6x1x16xf32, #tpu.memory_space<vmem>>, vector<1x1x16xf32>
    %845 = vector.shape_cast %844 : vector<1x1x16xf32> to vector<1x16xf32>
    %c2_398 = arith.constant 2 : index
    %c0_399 = arith.constant 0 : index
    %c0_400 = arith.constant 0 : index
    %846 = vector.load %arg7[%c2_398, %c0_399, %c0_400] : memref<6x1x16xf32, #tpu.memory_space<vmem>>, vector<1x1x16xf32>
    %847 = vector.shape_cast %846 : vector<1x1x16xf32> to vector<1x16xf32>
    %c2_401 = arith.constant 2 : index
    %c0_402 = arith.constant 0 : index
    %c0_403 = arith.constant 0 : index
    %848 = vector.load %arg8[%c2_401, %c0_402, %c0_403] : memref<6x32x32xf32, #tpu.memory_space<vmem>>, vector<1x32x32xf32>
    %849 = vector.shape_cast %848 : vector<1x32x32xf32> to vector<32x32xf32>
    %cst_404 = arith.constant dense<0.000000e+00> : vector<16x32xf32>
    %850 = tpu.matmul %131, %841, %cst_404 {dimension_numbers = #tpu.dot_dimension_numbers<[1], [0], [0], [1], [0, 0, 1, 1], [], []>} : vector<16x32xf32>, vector<32x32xf32>, vector<16x32xf32> -> vector<16x32xf32>
    %c2_405 = arith.constant 2 : index
    %c0_406 = arith.constant 0 : index
    %c0_407 = arith.constant 0 : index
    %851 = vector.load %arg3[%c2_405, %c0_406, %c0_407] : memref<6x1x32xf32, #tpu.memory_space<vmem>>, vector<1x1x32xf32>
    %852 = vector.shape_cast %851 : vector<1x1x32xf32> to vector<1x32xf32>
    %853 = vector.broadcast %852 : vector<1x32xf32> to vector<16x32xf32>
    %854 = arith.addf %850, %853 : vector<16x32xf32>
    %cst_408 = arith.constant dense<0.000000e+00> : vector<16x32xf32>
    %855 = tpu.matmul %759, %843, %cst_408 {dimension_numbers = #tpu.dot_dimension_numbers<[1], [0], [0], [1], [0, 0, 1, 1], [], []>} : vector<16x32xf32>, vector<32x32xf32>, vector<16x32xf32> -> vector<16x32xf32>
    %c2_409 = arith.constant 2 : index
    %c0_410 = arith.constant 0 : index
    %c0_411 = arith.constant 0 : index
    %856 = vector.load %arg5[%c2_409, %c0_410, %c0_411] : memref<6x1x32xf32, #tpu.memory_space<vmem>>, vector<1x1x32xf32>
    %857 = vector.shape_cast %856 : vector<1x1x32xf32> to vector<1x32xf32>
    %858 = vector.broadcast %857 : vector<1x32xf32> to vector<16x32xf32>
    %859 = arith.addf %855, %858 : vector<16x32xf32>
    %860 = vector.extract_strided_slice %854 {offsets = [0, 0], sizes = [8, 32], strides = [1, 1]} : vector<16x32xf32> to vector<8x32xf32>
    %861 = vector.extract_strided_slice %859 {offsets = [0, 0], sizes = [8, 32], strides = [1, 1]} : vector<16x32xf32> to vector<8x32xf32>
    %cst_412 = arith.constant 0.000000e+00 : f32
    %862 = vector.broadcast %cst_412 : f32 to vector<8x32xf32>
    %863 = vector.extract_strided_slice %860 {offsets = [0, 0], sizes = [8, 16], strides = [1, 1]} : vector<8x32xf32> to vector<8x16xf32>
    %864 = vector.extract_strided_slice %861 {offsets = [0, 0], sizes = [8, 16], strides = [1, 1]} : vector<8x32xf32> to vector<8x16xf32>
    %cst_413 = arith.constant dense<0.000000e+00> : vector<8x1xf32>
    %865 = tpu.matmul %864, %847, %cst_413 {dimension_numbers = #tpu.dot_dimension_numbers<[1], [1], [0], [0], [0, 0, 1, 0], [], []>} : vector<8x16xf32>, vector<1x16xf32>, vector<8x1xf32> -> vector<8x1xf32>
    %cst_414 = arith.constant dense<0.000000e+00> : vector<1x8xf32>
    %866 = tpu.matmul %845, %863, %cst_414 {dimension_numbers = #tpu.dot_dimension_numbers<[1], [1], [0], [0], [0, 0, 1, 0], [], []>} : vector<1x16xf32>, vector<8x16xf32>, vector<1x8xf32> -> vector<1x8xf32>
    %867 = vector.broadcast %865 : vector<8x1xf32> to vector<8x8xf32>
    %868 = vector.broadcast %866 : vector<1x8xf32> to vector<8x8xf32>
    %869 = arith.addf %867, %868 : vector<8x8xf32>
    %870 = math.tanh %869 : vector<8x8xf32>
    %871 = math.exp %870 : vector<8x8xf32>
    %cst_415 = arith.constant dense<0.000000e+00> : vector<8xf32>
    %872 = vector.multi_reduction <add>, %871, %cst_415 [1] : vector<8x8xf32> to vector<8xf32>
    %873 = vector.shape_cast %872 : vector<8xf32> to vector<8x1xf32>
    %874 = tpu.reciprocal %873 {approx = true} : vector<8x1xf32> -> vector<8x1xf32>
    %875 = vector.broadcast %874 : vector<8x1xf32> to vector<8x8xf32>
    %876 = arith.mulf %871, %875 : vector<8x8xf32>
    %cst_416 = arith.constant dense<0.000000e+00> : vector<8x16xf32>
    %877 = tpu.matmul %876, %863, %cst_416 {dimension_numbers = #tpu.dot_dimension_numbers<[1], [0], [0], [1], [0, 0, 1, 1], [], []>} : vector<8x8xf32>, vector<8x16xf32>, vector<8x16xf32> -> vector<8x16xf32>
    %878 = vector.extract_strided_slice %849 {offsets = [0, 0], sizes = [16, 32], strides = [1, 1]} : vector<32x32xf32> to vector<16x32xf32>
    %cst_417 = arith.constant dense<0.000000e+00> : vector<8x32xf32>
    %879 = tpu.matmul %877, %878, %cst_417 {dimension_numbers = #tpu.dot_dimension_numbers<[1], [0], [0], [1], [0, 0, 1, 1], [], []>} : vector<8x16xf32>, vector<16x32xf32>, vector<8x32xf32> -> vector<8x32xf32>
    %880 = arith.addf %862, %879 : vector<8x32xf32>
    %881 = vector.extract_strided_slice %860 {offsets = [0, 16], sizes = [8, 16], strides = [1, 1]} : vector<8x32xf32> to vector<8x16xf32>
    %882 = vector.extract_strided_slice %861 {offsets = [0, 16], sizes = [8, 16], strides = [1, 1]} : vector<8x32xf32> to vector<8x16xf32>
    %cst_418 = arith.constant dense<0.000000e+00> : vector<8x1xf32>
    %883 = tpu.matmul %882, %847, %cst_418 {dimension_numbers = #tpu.dot_dimension_numbers<[1], [1], [0], [0], [0, 0, 1, 0], [], []>} : vector<8x16xf32>, vector<1x16xf32>, vector<8x1xf32> -> vector<8x1xf32>
    %cst_419 = arith.constant dense<0.000000e+00> : vector<1x8xf32>
    %884 = tpu.matmul %845, %881, %cst_419 {dimension_numbers = #tpu.dot_dimension_numbers<[1], [1], [0], [0], [0, 0, 1, 0], [], []>} : vector<1x16xf32>, vector<8x16xf32>, vector<1x8xf32> -> vector<1x8xf32>
    %885 = vector.broadcast %883 : vector<8x1xf32> to vector<8x8xf32>
    %886 = vector.broadcast %884 : vector<1x8xf32> to vector<8x8xf32>
    %887 = arith.addf %885, %886 : vector<8x8xf32>
    %888 = math.tanh %887 : vector<8x8xf32>
    %889 = math.exp %888 : vector<8x8xf32>
    %cst_420 = arith.constant dense<0.000000e+00> : vector<8xf32>
    %890 = vector.multi_reduction <add>, %889, %cst_420 [1] : vector<8x8xf32> to vector<8xf32>
    %891 = vector.shape_cast %890 : vector<8xf32> to vector<8x1xf32>
    %892 = tpu.reciprocal %891 {approx = true} : vector<8x1xf32> -> vector<8x1xf32>
    %893 = vector.broadcast %892 : vector<8x1xf32> to vector<8x8xf32>
    %894 = arith.mulf %889, %893 : vector<8x8xf32>
    %cst_421 = arith.constant dense<0.000000e+00> : vector<8x16xf32>
    %895 = tpu.matmul %894, %881, %cst_421 {dimension_numbers = #tpu.dot_dimension_numbers<[1], [0], [0], [1], [0, 0, 1, 1], [], []>} : vector<8x8xf32>, vector<8x16xf32>, vector<8x16xf32> -> vector<8x16xf32>
    %896 = vector.extract_strided_slice %849 {offsets = [16, 0], sizes = [16, 32], strides = [1, 1]} : vector<32x32xf32> to vector<16x32xf32>
    %cst_422 = arith.constant dense<0.000000e+00> : vector<8x32xf32>
    %897 = tpu.matmul %895, %896, %cst_422 {dimension_numbers = #tpu.dot_dimension_numbers<[1], [0], [0], [1], [0, 0, 1, 1], [], []>} : vector<8x16xf32>, vector<16x32xf32>, vector<8x32xf32> -> vector<8x32xf32>
    %898 = arith.addf %880, %897 : vector<8x32xf32>
    %899 = vector.extract_strided_slice %854 {offsets = [8, 0], sizes = [8, 32], strides = [1, 1]} : vector<16x32xf32> to vector<8x32xf32>
    %900 = vector.extract_strided_slice %859 {offsets = [8, 0], sizes = [8, 32], strides = [1, 1]} : vector<16x32xf32> to vector<8x32xf32>
    %cst_423 = arith.constant 0.000000e+00 : f32
    %901 = vector.broadcast %cst_423 : f32 to vector<8x32xf32>
    %902 = vector.extract_strided_slice %899 {offsets = [0, 0], sizes = [8, 16], strides = [1, 1]} : vector<8x32xf32> to vector<8x16xf32>
    %903 = vector.extract_strided_slice %900 {offsets = [0, 0], sizes = [8, 16], strides = [1, 1]} : vector<8x32xf32> to vector<8x16xf32>
    %cst_424 = arith.constant dense<0.000000e+00> : vector<8x1xf32>
    %904 = tpu.matmul %903, %847, %cst_424 {dimension_numbers = #tpu.dot_dimension_numbers<[1], [1], [0], [0], [0, 0, 1, 0], [], []>} : vector<8x16xf32>, vector<1x16xf32>, vector<8x1xf32> -> vector<8x1xf32>
    %cst_425 = arith.constant dense<0.000000e+00> : vector<1x8xf32>
    %905 = tpu.matmul %845, %902, %cst_425 {dimension_numbers = #tpu.dot_dimension_numbers<[1], [1], [0], [0], [0, 0, 1, 0], [], []>} : vector<1x16xf32>, vector<8x16xf32>, vector<1x8xf32> -> vector<1x8xf32>
    %906 = vector.broadcast %904 : vector<8x1xf32> to vector<8x8xf32>
    %907 = vector.broadcast %905 : vector<1x8xf32> to vector<8x8xf32>
    %908 = arith.addf %906, %907 : vector<8x8xf32>
    %909 = math.tanh %908 : vector<8x8xf32>
    %910 = math.exp %909 : vector<8x8xf32>
    %cst_426 = arith.constant dense<0.000000e+00> : vector<8xf32>
    %911 = vector.multi_reduction <add>, %910, %cst_426 [1] : vector<8x8xf32> to vector<8xf32>
    %912 = vector.shape_cast %911 : vector<8xf32> to vector<8x1xf32>
    %913 = tpu.reciprocal %912 {approx = true} : vector<8x1xf32> -> vector<8x1xf32>
    %914 = vector.broadcast %913 : vector<8x1xf32> to vector<8x8xf32>
    %915 = arith.mulf %910, %914 : vector<8x8xf32>
    %cst_427 = arith.constant dense<0.000000e+00> : vector<8x16xf32>
    %916 = tpu.matmul %915, %902, %cst_427 {dimension_numbers = #tpu.dot_dimension_numbers<[1], [0], [0], [1], [0, 0, 1, 1], [], []>} : vector<8x8xf32>, vector<8x16xf32>, vector<8x16xf32> -> vector<8x16xf32>
    %917 = vector.extract_strided_slice %849 {offsets = [0, 0], sizes = [16, 32], strides = [1, 1]} : vector<32x32xf32> to vector<16x32xf32>
    %cst_428 = arith.constant dense<0.000000e+00> : vector<8x32xf32>
    %918 = tpu.matmul %916, %917, %cst_428 {dimension_numbers = #tpu.dot_dimension_numbers<[1], [0], [0], [1], [0, 0, 1, 1], [], []>} : vector<8x16xf32>, vector<16x32xf32>, vector<8x32xf32> -> vector<8x32xf32>
    %919 = arith.addf %901, %918 : vector<8x32xf32>
    %920 = vector.extract_strided_slice %899 {offsets = [0, 16], sizes = [8, 16], strides = [1, 1]} : vector<8x32xf32> to vector<8x16xf32>
    %921 = vector.extract_strided_slice %900 {offsets = [0, 16], sizes = [8, 16], strides = [1, 1]} : vector<8x32xf32> to vector<8x16xf32>
    %cst_429 = arith.constant dense<0.000000e+00> : vector<8x1xf32>
    %922 = tpu.matmul %921, %847, %cst_429 {dimension_numbers = #tpu.dot_dimension_numbers<[1], [1], [0], [0], [0, 0, 1, 0], [], []>} : vector<8x16xf32>, vector<1x16xf32>, vector<8x1xf32> -> vector<8x1xf32>
    %cst_430 = arith.constant dense<0.000000e+00> : vector<1x8xf32>
    %923 = tpu.matmul %845, %920, %cst_430 {dimension_numbers = #tpu.dot_dimension_numbers<[1], [1], [0], [0], [0, 0, 1, 0], [], []>} : vector<1x16xf32>, vector<8x16xf32>, vector<1x8xf32> -> vector<1x8xf32>
    %924 = vector.broadcast %922 : vector<8x1xf32> to vector<8x8xf32>
    %925 = vector.broadcast %923 : vector<1x8xf32> to vector<8x8xf32>
    %926 = arith.addf %924, %925 : vector<8x8xf32>
    %927 = math.tanh %926 : vector<8x8xf32>
    %928 = math.exp %927 : vector<8x8xf32>
    %cst_431 = arith.constant dense<0.000000e+00> : vector<8xf32>
    %929 = vector.multi_reduction <add>, %928, %cst_431 [1] : vector<8x8xf32> to vector<8xf32>
    %930 = vector.shape_cast %929 : vector<8xf32> to vector<8x1xf32>
    %931 = tpu.reciprocal %930 {approx = true} : vector<8x1xf32> -> vector<8x1xf32>
    %932 = vector.broadcast %931 : vector<8x1xf32> to vector<8x8xf32>
    %933 = arith.mulf %928, %932 : vector<8x8xf32>
    %cst_432 = arith.constant dense<0.000000e+00> : vector<8x16xf32>
    %934 = tpu.matmul %933, %920, %cst_432 {dimension_numbers = #tpu.dot_dimension_numbers<[1], [0], [0], [1], [0, 0, 1, 1], [], []>} : vector<8x8xf32>, vector<8x16xf32>, vector<8x16xf32> -> vector<8x16xf32>
    %935 = vector.extract_strided_slice %849 {offsets = [16, 0], sizes = [16, 32], strides = [1, 1]} : vector<32x32xf32> to vector<16x32xf32>
    %cst_433 = arith.constant dense<0.000000e+00> : vector<8x32xf32>
    %936 = tpu.matmul %934, %935, %cst_433 {dimension_numbers = #tpu.dot_dimension_numbers<[1], [0], [0], [1], [0, 0, 1, 1], [], []>} : vector<8x16xf32>, vector<16x32xf32>, vector<8x32xf32> -> vector<8x32xf32>
    %937 = arith.addf %919, %936 : vector<8x32xf32>
    %938 = tpu.concatenate %898, %937 in 0 : vector<8x32xf32>, vector<8x32xf32> -> vector<16x32xf32>
    %c2_434 = arith.constant 2 : index
    %c0_435 = arith.constant 0 : index
    %c0_436 = arith.constant 0 : index
    %939 = vector.load %arg9[%c2_434, %c0_435, %c0_436] : memref<6x1x32xf32, #tpu.memory_space<vmem>>, vector<1x1x32xf32>
    %940 = vector.shape_cast %939 : vector<1x1x32xf32> to vector<1x32xf32>
    %941 = vector.broadcast %940 : vector<1x32xf32> to vector<16x32xf32>
    %942 = arith.addf %938, %941 : vector<16x32xf32>
    %c3_437 = arith.constant 3 : index
    %c0_438 = arith.constant 0 : index
    %c0_439 = arith.constant 0 : index
    %943 = vector.load %arg2[%c3_437, %c0_438, %c0_439] : memref<6x32x32xf32, #tpu.memory_space<vmem>>, vector<1x32x32xf32>
    %944 = vector.shape_cast %943 : vector<1x32x32xf32> to vector<32x32xf32>
    %c3_440 = arith.constant 3 : index
    %c0_441 = arith.constant 0 : index
    %c0_442 = arith.constant 0 : index
    %945 = vector.load %arg4[%c3_440, %c0_441, %c0_442] : memref<6x32x32xf32, #tpu.memory_space<vmem>>, vector<1x32x32xf32>
    %946 = vector.shape_cast %945 : vector<1x32x32xf32> to vector<32x32xf32>
    %c3_443 = arith.constant 3 : index
    %c0_444 = arith.constant 0 : index
    %c0_445 = arith.constant 0 : index
    %947 = vector.load %arg6[%c3_443, %c0_444, %c0_445] : memref<6x1x16xf32, #tpu.memory_space<vmem>>, vector<1x1x16xf32>
    %948 = vector.shape_cast %947 : vector<1x1x16xf32> to vector<1x16xf32>
    %c3_446 = arith.constant 3 : index
    %c0_447 = arith.constant 0 : index
    %c0_448 = arith.constant 0 : index
    %949 = vector.load %arg7[%c3_446, %c0_447, %c0_448] : memref<6x1x16xf32, #tpu.memory_space<vmem>>, vector<1x1x16xf32>
    %950 = vector.shape_cast %949 : vector<1x1x16xf32> to vector<1x16xf32>
    %c3_449 = arith.constant 3 : index
    %c0_450 = arith.constant 0 : index
    %c0_451 = arith.constant 0 : index
    %951 = vector.load %arg8[%c3_449, %c0_450, %c0_451] : memref<6x32x32xf32, #tpu.memory_space<vmem>>, vector<1x32x32xf32>
    %952 = vector.shape_cast %951 : vector<1x32x32xf32> to vector<32x32xf32>
    %cst_452 = arith.constant dense<0.000000e+00> : vector<16x32xf32>
    %953 = tpu.matmul %131, %944, %cst_452 {dimension_numbers = #tpu.dot_dimension_numbers<[1], [0], [0], [1], [0, 0, 1, 1], [], []>} : vector<16x32xf32>, vector<32x32xf32>, vector<16x32xf32> -> vector<16x32xf32>
    %c3_453 = arith.constant 3 : index
    %c0_454 = arith.constant 0 : index
    %c0_455 = arith.constant 0 : index
    %954 = vector.load %arg3[%c3_453, %c0_454, %c0_455] : memref<6x1x32xf32, #tpu.memory_space<vmem>>, vector<1x1x32xf32>
    %955 = vector.shape_cast %954 : vector<1x1x32xf32> to vector<1x32xf32>
    %956 = vector.broadcast %955 : vector<1x32xf32> to vector<16x32xf32>
    %957 = arith.addf %953, %956 : vector<16x32xf32>
    %cst_456 = arith.constant dense<0.000000e+00> : vector<16x32xf32>
    %958 = tpu.matmul %839, %946, %cst_456 {dimension_numbers = #tpu.dot_dimension_numbers<[1], [0], [0], [1], [0, 0, 1, 1], [], []>} : vector<16x32xf32>, vector<32x32xf32>, vector<16x32xf32> -> vector<16x32xf32>
    %c3_457 = arith.constant 3 : index
    %c0_458 = arith.constant 0 : index
    %c0_459 = arith.constant 0 : index
    %959 = vector.load %arg5[%c3_457, %c0_458, %c0_459] : memref<6x1x32xf32, #tpu.memory_space<vmem>>, vector<1x1x32xf32>
    %960 = vector.shape_cast %959 : vector<1x1x32xf32> to vector<1x32xf32>
    %961 = vector.broadcast %960 : vector<1x32xf32> to vector<16x32xf32>
    %962 = arith.addf %958, %961 : vector<16x32xf32>
    %963 = vector.extract_strided_slice %957 {offsets = [0, 0], sizes = [8, 32], strides = [1, 1]} : vector<16x32xf32> to vector<8x32xf32>
    %964 = vector.extract_strided_slice %962 {offsets = [0, 0], sizes = [8, 32], strides = [1, 1]} : vector<16x32xf32> to vector<8x32xf32>
    %cst_460 = arith.constant 0.000000e+00 : f32
    %965 = vector.broadcast %cst_460 : f32 to vector<8x32xf32>
    %966 = vector.extract_strided_slice %963 {offsets = [0, 0], sizes = [8, 16], strides = [1, 1]} : vector<8x32xf32> to vector<8x16xf32>
    %967 = vector.extract_strided_slice %964 {offsets = [0, 0], sizes = [8, 16], strides = [1, 1]} : vector<8x32xf32> to vector<8x16xf32>
    %cst_461 = arith.constant dense<0.000000e+00> : vector<8x1xf32>
    %968 = tpu.matmul %967, %950, %cst_461 {dimension_numbers = #tpu.dot_dimension_numbers<[1], [1], [0], [0], [0, 0, 1, 0], [], []>} : vector<8x16xf32>, vector<1x16xf32>, vector<8x1xf32> -> vector<8x1xf32>
    %cst_462 = arith.constant dense<0.000000e+00> : vector<1x8xf32>
    %969 = tpu.matmul %948, %966, %cst_462 {dimension_numbers = #tpu.dot_dimension_numbers<[1], [1], [0], [0], [0, 0, 1, 0], [], []>} : vector<1x16xf32>, vector<8x16xf32>, vector<1x8xf32> -> vector<1x8xf32>
    %970 = vector.broadcast %968 : vector<8x1xf32> to vector<8x8xf32>
    %971 = vector.broadcast %969 : vector<1x8xf32> to vector<8x8xf32>
    %972 = arith.addf %970, %971 : vector<8x8xf32>
    %973 = math.tanh %972 : vector<8x8xf32>
    %974 = math.exp %973 : vector<8x8xf32>
    %cst_463 = arith.constant dense<0.000000e+00> : vector<8xf32>
    %975 = vector.multi_reduction <add>, %974, %cst_463 [1] : vector<8x8xf32> to vector<8xf32>
    %976 = vector.shape_cast %975 : vector<8xf32> to vector<8x1xf32>
    %977 = tpu.reciprocal %976 {approx = true} : vector<8x1xf32> -> vector<8x1xf32>
    %978 = vector.broadcast %977 : vector<8x1xf32> to vector<8x8xf32>
    %979 = arith.mulf %974, %978 : vector<8x8xf32>
    %cst_464 = arith.constant dense<0.000000e+00> : vector<8x16xf32>
    %980 = tpu.matmul %979, %966, %cst_464 {dimension_numbers = #tpu.dot_dimension_numbers<[1], [0], [0], [1], [0, 0, 1, 1], [], []>} : vector<8x8xf32>, vector<8x16xf32>, vector<8x16xf32> -> vector<8x16xf32>
    %981 = vector.extract_strided_slice %952 {offsets = [0, 0], sizes = [16, 32], strides = [1, 1]} : vector<32x32xf32> to vector<16x32xf32>
    %cst_465 = arith.constant dense<0.000000e+00> : vector<8x32xf32>
    %982 = tpu.matmul %980, %981, %cst_465 {dimension_numbers = #tpu.dot_dimension_numbers<[1], [0], [0], [1], [0, 0, 1, 1], [], []>} : vector<8x16xf32>, vector<16x32xf32>, vector<8x32xf32> -> vector<8x32xf32>
    %983 = arith.addf %965, %982 : vector<8x32xf32>
    %984 = vector.extract_strided_slice %963 {offsets = [0, 16], sizes = [8, 16], strides = [1, 1]} : vector<8x32xf32> to vector<8x16xf32>
    %985 = vector.extract_strided_slice %964 {offsets = [0, 16], sizes = [8, 16], strides = [1, 1]} : vector<8x32xf32> to vector<8x16xf32>
    %cst_466 = arith.constant dense<0.000000e+00> : vector<8x1xf32>
    %986 = tpu.matmul %985, %950, %cst_466 {dimension_numbers = #tpu.dot_dimension_numbers<[1], [1], [0], [0], [0, 0, 1, 0], [], []>} : vector<8x16xf32>, vector<1x16xf32>, vector<8x1xf32> -> vector<8x1xf32>
    %cst_467 = arith.constant dense<0.000000e+00> : vector<1x8xf32>
    %987 = tpu.matmul %948, %984, %cst_467 {dimension_numbers = #tpu.dot_dimension_numbers<[1], [1], [0], [0], [0, 0, 1, 0], [], []>} : vector<1x16xf32>, vector<8x16xf32>, vector<1x8xf32> -> vector<1x8xf32>
    %988 = vector.broadcast %986 : vector<8x1xf32> to vector<8x8xf32>
    %989 = vector.broadcast %987 : vector<1x8xf32> to vector<8x8xf32>
    %990 = arith.addf %988, %989 : vector<8x8xf32>
    %991 = math.tanh %990 : vector<8x8xf32>
    %992 = math.exp %991 : vector<8x8xf32>
    %cst_468 = arith.constant dense<0.000000e+00> : vector<8xf32>
    %993 = vector.multi_reduction <add>, %992, %cst_468 [1] : vector<8x8xf32> to vector<8xf32>
    %994 = vector.shape_cast %993 : vector<8xf32> to vector<8x1xf32>
    %995 = tpu.reciprocal %994 {approx = true} : vector<8x1xf32> -> vector<8x1xf32>
    %996 = vector.broadcast %995 : vector<8x1xf32> to vector<8x8xf32>
    %997 = arith.mulf %992, %996 : vector<8x8xf32>
    %cst_469 = arith.constant dense<0.000000e+00> : vector<8x16xf32>
    %998 = tpu.matmul %997, %984, %cst_469 {dimension_numbers = #tpu.dot_dimension_numbers<[1], [0], [0], [1], [0, 0, 1, 1], [], []>} : vector<8x8xf32>, vector<8x16xf32>, vector<8x16xf32> -> vector<8x16xf32>
    %999 = vector.extract_strided_slice %952 {offsets = [16, 0], sizes = [16, 32], strides = [1, 1]} : vector<32x32xf32> to vector<16x32xf32>
    %cst_470 = arith.constant dense<0.000000e+00> : vector<8x32xf32>
    %1000 = tpu.matmul %998, %999, %cst_470 {dimension_numbers = #tpu.dot_dimension_numbers<[1], [0], [0], [1], [0, 0, 1, 1], [], []>} : vector<8x16xf32>, vector<16x32xf32>, vector<8x32xf32> -> vector<8x32xf32>
    %1001 = arith.addf %983, %1000 : vector<8x32xf32>
    %1002 = vector.extract_strided_slice %957 {offsets = [8, 0], sizes = [8, 32], strides = [1, 1]} : vector<16x32xf32> to vector<8x32xf32>
    %1003 = vector.extract_strided_slice %962 {offsets = [8, 0], sizes = [8, 32], strides = [1, 1]} : vector<16x32xf32> to vector<8x32xf32>
    %cst_471 = arith.constant 0.000000e+00 : f32
    %1004 = vector.broadcast %cst_471 : f32 to vector<8x32xf32>
    %1005 = vector.extract_strided_slice %1002 {offsets = [0, 0], sizes = [8, 16], strides = [1, 1]} : vector<8x32xf32> to vector<8x16xf32>
    %1006 = vector.extract_strided_slice %1003 {offsets = [0, 0], sizes = [8, 16], strides = [1, 1]} : vector<8x32xf32> to vector<8x16xf32>
    %cst_472 = arith.constant dense<0.000000e+00> : vector<8x1xf32>
    %1007 = tpu.matmul %1006, %950, %cst_472 {dimension_numbers = #tpu.dot_dimension_numbers<[1], [1], [0], [0], [0, 0, 1, 0], [], []>} : vector<8x16xf32>, vector<1x16xf32>, vector<8x1xf32> -> vector<8x1xf32>
    %cst_473 = arith.constant dense<0.000000e+00> : vector<1x8xf32>
    %1008 = tpu.matmul %948, %1005, %cst_473 {dimension_numbers = #tpu.dot_dimension_numbers<[1], [1], [0], [0], [0, 0, 1, 0], [], []>} : vector<1x16xf32>, vector<8x16xf32>, vector<1x8xf32> -> vector<1x8xf32>
    %1009 = vector.broadcast %1007 : vector<8x1xf32> to vector<8x8xf32>
    %1010 = vector.broadcast %1008 : vector<1x8xf32> to vector<8x8xf32>
    %1011 = arith.addf %1009, %1010 : vector<8x8xf32>
    %1012 = math.tanh %1011 : vector<8x8xf32>
    %1013 = math.exp %1012 : vector<8x8xf32>
    %cst_474 = arith.constant dense<0.000000e+00> : vector<8xf32>
    %1014 = vector.multi_reduction <add>, %1013, %cst_474 [1] : vector<8x8xf32> to vector<8xf32>
    %1015 = vector.shape_cast %1014 : vector<8xf32> to vector<8x1xf32>
    %1016 = tpu.reciprocal %1015 {approx = true} : vector<8x1xf32> -> vector<8x1xf32>
    %1017 = vector.broadcast %1016 : vector<8x1xf32> to vector<8x8xf32>
    %1018 = arith.mulf %1013, %1017 : vector<8x8xf32>
    %cst_475 = arith.constant dense<0.000000e+00> : vector<8x16xf32>
    %1019 = tpu.matmul %1018, %1005, %cst_475 {dimension_numbers = #tpu.dot_dimension_numbers<[1], [0], [0], [1], [0, 0, 1, 1], [], []>} : vector<8x8xf32>, vector<8x16xf32>, vector<8x16xf32> -> vector<8x16xf32>
    %1020 = vector.extract_strided_slice %952 {offsets = [0, 0], sizes = [16, 32], strides = [1, 1]} : vector<32x32xf32> to vector<16x32xf32>
    %cst_476 = arith.constant dense<0.000000e+00> : vector<8x32xf32>
    %1021 = tpu.matmul %1019, %1020, %cst_476 {dimension_numbers = #tpu.dot_dimension_numbers<[1], [0], [0], [1], [0, 0, 1, 1], [], []>} : vector<8x16xf32>, vector<16x32xf32>, vector<8x32xf32> -> vector<8x32xf32>
    %1022 = arith.addf %1004, %1021 : vector<8x32xf32>
    %1023 = vector.extract_strided_slice %1002 {offsets = [0, 16], sizes = [8, 16], strides = [1, 1]} : vector<8x32xf32> to vector<8x16xf32>
    %1024 = vector.extract_strided_slice %1003 {offsets = [0, 16], sizes = [8, 16], strides = [1, 1]} : vector<8x32xf32> to vector<8x16xf32>
    %cst_477 = arith.constant dense<0.000000e+00> : vector<8x1xf32>
    %1025 = tpu.matmul %1024, %950, %cst_477 {dimension_numbers = #tpu.dot_dimension_numbers<[1], [1], [0], [0], [0, 0, 1, 0], [], []>} : vector<8x16xf32>, vector<1x16xf32>, vector<8x1xf32> -> vector<8x1xf32>
    %cst_478 = arith.constant dense<0.000000e+00> : vector<1x8xf32>
    %1026 = tpu.matmul %948, %1023, %cst_478 {dimension_numbers = #tpu.dot_dimension_numbers<[1], [1], [0], [0], [0, 0, 1, 0], [], []>} : vector<1x16xf32>, vector<8x16xf32>, vector<1x8xf32> -> vector<1x8xf32>
    %1027 = vector.broadcast %1025 : vector<8x1xf32> to vector<8x8xf32>
    %1028 = vector.broadcast %1026 : vector<1x8xf32> to vector<8x8xf32>
    %1029 = arith.addf %1027, %1028 : vector<8x8xf32>
    %1030 = math.tanh %1029 : vector<8x8xf32>
    %1031 = math.exp %1030 : vector<8x8xf32>
    %cst_479 = arith.constant dense<0.000000e+00> : vector<8xf32>
    %1032 = vector.multi_reduction <add>, %1031, %cst_479 [1] : vector<8x8xf32> to vector<8xf32>
    %1033 = vector.shape_cast %1032 : vector<8xf32> to vector<8x1xf32>
    %1034 = tpu.reciprocal %1033 {approx = true} : vector<8x1xf32> -> vector<8x1xf32>
    %1035 = vector.broadcast %1034 : vector<8x1xf32> to vector<8x8xf32>
    %1036 = arith.mulf %1031, %1035 : vector<8x8xf32>
    %cst_480 = arith.constant dense<0.000000e+00> : vector<8x16xf32>
    %1037 = tpu.matmul %1036, %1023, %cst_480 {dimension_numbers = #tpu.dot_dimension_numbers<[1], [0], [0], [1], [0, 0, 1, 1], [], []>} : vector<8x8xf32>, vector<8x16xf32>, vector<8x16xf32> -> vector<8x16xf32>
    %1038 = vector.extract_strided_slice %952 {offsets = [16, 0], sizes = [16, 32], strides = [1, 1]} : vector<32x32xf32> to vector<16x32xf32>
    %cst_481 = arith.constant dense<0.000000e+00> : vector<8x32xf32>
    %1039 = tpu.matmul %1037, %1038, %cst_481 {dimension_numbers = #tpu.dot_dimension_numbers<[1], [0], [0], [1], [0, 0, 1, 1], [], []>} : vector<8x16xf32>, vector<16x32xf32>, vector<8x32xf32> -> vector<8x32xf32>
    %1040 = arith.addf %1022, %1039 : vector<8x32xf32>
    %1041 = tpu.concatenate %1001, %1040 in 0 : vector<8x32xf32>, vector<8x32xf32> -> vector<16x32xf32>
    %c3_482 = arith.constant 3 : index
    %c0_483 = arith.constant 0 : index
    %c0_484 = arith.constant 0 : index
    %1042 = vector.load %arg9[%c3_482, %c0_483, %c0_484] : memref<6x1x32xf32, #tpu.memory_space<vmem>>, vector<1x1x32xf32>
    %1043 = vector.shape_cast %1042 : vector<1x1x32xf32> to vector<1x32xf32>
    %1044 = vector.broadcast %1043 : vector<1x32xf32> to vector<16x32xf32>
    %1045 = arith.addf %1041, %1044 : vector<16x32xf32>
    %1046 = arith.addf %942, %1045 : vector<16x32xf32>
    %cst_485 = arith.constant 5.000000e-01 : f32
    %1047 = vector.broadcast %cst_485 : f32 to vector<16x32xf32>
    %1048 = arith.mulf %1046, %1047 : vector<16x32xf32>
    %c4_486 = arith.constant 4 : index
    %c0_487 = arith.constant 0 : index
    %c0_488 = arith.constant 0 : index
    %1049 = vector.load %arg2[%c4_486, %c0_487, %c0_488] : memref<6x32x32xf32, #tpu.memory_space<vmem>>, vector<1x32x32xf32>
    %1050 = vector.shape_cast %1049 : vector<1x32x32xf32> to vector<32x32xf32>
    %c4_489 = arith.constant 4 : index
    %c0_490 = arith.constant 0 : index
    %c0_491 = arith.constant 0 : index
    %1051 = vector.load %arg4[%c4_489, %c0_490, %c0_491] : memref<6x32x32xf32, #tpu.memory_space<vmem>>, vector<1x32x32xf32>
    %1052 = vector.shape_cast %1051 : vector<1x32x32xf32> to vector<32x32xf32>
    %c4_492 = arith.constant 4 : index
    %c0_493 = arith.constant 0 : index
    %c0_494 = arith.constant 0 : index
    %1053 = vector.load %arg6[%c4_492, %c0_493, %c0_494] : memref<6x1x16xf32, #tpu.memory_space<vmem>>, vector<1x1x16xf32>
    %1054 = vector.shape_cast %1053 : vector<1x1x16xf32> to vector<1x16xf32>
    %c4_495 = arith.constant 4 : index
    %c0_496 = arith.constant 0 : index
    %c0_497 = arith.constant 0 : index
    %1055 = vector.load %arg7[%c4_495, %c0_496, %c0_497] : memref<6x1x16xf32, #tpu.memory_space<vmem>>, vector<1x1x16xf32>
    %1056 = vector.shape_cast %1055 : vector<1x1x16xf32> to vector<1x16xf32>
    %c4_498 = arith.constant 4 : index
    %c0_499 = arith.constant 0 : index
    %c0_500 = arith.constant 0 : index
    %1057 = vector.load %arg8[%c4_498, %c0_499, %c0_500] : memref<6x32x32xf32, #tpu.memory_space<vmem>>, vector<1x32x32xf32>
    %1058 = vector.shape_cast %1057 : vector<1x32x32xf32> to vector<32x32xf32>
    %cst_501 = arith.constant dense<0.000000e+00> : vector<16x32xf32>
    %1059 = tpu.matmul %261, %1050, %cst_501 {dimension_numbers = #tpu.dot_dimension_numbers<[1], [0], [0], [1], [0, 0, 1, 1], [], []>} : vector<16x32xf32>, vector<32x32xf32>, vector<16x32xf32> -> vector<16x32xf32>
    %c4_502 = arith.constant 4 : index
    %c0_503 = arith.constant 0 : index
    %c0_504 = arith.constant 0 : index
    %1060 = vector.load %arg3[%c4_502, %c0_503, %c0_504] : memref<6x1x32xf32, #tpu.memory_space<vmem>>, vector<1x1x32xf32>
    %1061 = vector.shape_cast %1060 : vector<1x1x32xf32> to vector<1x32xf32>
    %1062 = vector.broadcast %1061 : vector<1x32xf32> to vector<16x32xf32>
    %1063 = arith.addf %1059, %1062 : vector<16x32xf32>
    %cst_505 = arith.constant dense<0.000000e+00> : vector<16x32xf32>
    %1064 = tpu.matmul %839, %1052, %cst_505 {dimension_numbers = #tpu.dot_dimension_numbers<[1], [0], [0], [1], [0, 0, 1, 1], [], []>} : vector<16x32xf32>, vector<32x32xf32>, vector<16x32xf32> -> vector<16x32xf32>
    %c4_506 = arith.constant 4 : index
    %c0_507 = arith.constant 0 : index
    %c0_508 = arith.constant 0 : index
    %1065 = vector.load %arg5[%c4_506, %c0_507, %c0_508] : memref<6x1x32xf32, #tpu.memory_space<vmem>>, vector<1x1x32xf32>
    %1066 = vector.shape_cast %1065 : vector<1x1x32xf32> to vector<1x32xf32>
    %1067 = vector.broadcast %1066 : vector<1x32xf32> to vector<16x32xf32>
    %1068 = arith.addf %1064, %1067 : vector<16x32xf32>
    %1069 = vector.extract_strided_slice %1063 {offsets = [0, 0], sizes = [8, 32], strides = [1, 1]} : vector<16x32xf32> to vector<8x32xf32>
    %1070 = vector.extract_strided_slice %1068 {offsets = [0, 0], sizes = [8, 32], strides = [1, 1]} : vector<16x32xf32> to vector<8x32xf32>
    %cst_509 = arith.constant 0.000000e+00 : f32
    %1071 = vector.broadcast %cst_509 : f32 to vector<8x32xf32>
    %1072 = vector.extract_strided_slice %1069 {offsets = [0, 0], sizes = [8, 16], strides = [1, 1]} : vector<8x32xf32> to vector<8x16xf32>
    %1073 = vector.extract_strided_slice %1070 {offsets = [0, 0], sizes = [8, 16], strides = [1, 1]} : vector<8x32xf32> to vector<8x16xf32>
    %cst_510 = arith.constant dense<0.000000e+00> : vector<8x1xf32>
    %1074 = tpu.matmul %1073, %1056, %cst_510 {dimension_numbers = #tpu.dot_dimension_numbers<[1], [1], [0], [0], [0, 0, 1, 0], [], []>} : vector<8x16xf32>, vector<1x16xf32>, vector<8x1xf32> -> vector<8x1xf32>
    %cst_511 = arith.constant dense<0.000000e+00> : vector<1x8xf32>
    %1075 = tpu.matmul %1054, %1072, %cst_511 {dimension_numbers = #tpu.dot_dimension_numbers<[1], [1], [0], [0], [0, 0, 1, 0], [], []>} : vector<1x16xf32>, vector<8x16xf32>, vector<1x8xf32> -> vector<1x8xf32>
    %1076 = vector.broadcast %1074 : vector<8x1xf32> to vector<8x8xf32>
    %1077 = vector.broadcast %1075 : vector<1x8xf32> to vector<8x8xf32>
    %1078 = arith.addf %1076, %1077 : vector<8x8xf32>
    %1079 = math.tanh %1078 : vector<8x8xf32>
    %1080 = math.exp %1079 : vector<8x8xf32>
    %cst_512 = arith.constant dense<0.000000e+00> : vector<8xf32>
    %1081 = vector.multi_reduction <add>, %1080, %cst_512 [1] : vector<8x8xf32> to vector<8xf32>
    %1082 = vector.shape_cast %1081 : vector<8xf32> to vector<8x1xf32>
    %1083 = tpu.reciprocal %1082 {approx = true} : vector<8x1xf32> -> vector<8x1xf32>
    %1084 = vector.broadcast %1083 : vector<8x1xf32> to vector<8x8xf32>
    %1085 = arith.mulf %1080, %1084 : vector<8x8xf32>
    %cst_513 = arith.constant dense<0.000000e+00> : vector<8x16xf32>
    %1086 = tpu.matmul %1085, %1072, %cst_513 {dimension_numbers = #tpu.dot_dimension_numbers<[1], [0], [0], [1], [0, 0, 1, 1], [], []>} : vector<8x8xf32>, vector<8x16xf32>, vector<8x16xf32> -> vector<8x16xf32>
    %1087 = vector.extract_strided_slice %1058 {offsets = [0, 0], sizes = [16, 32], strides = [1, 1]} : vector<32x32xf32> to vector<16x32xf32>
    %cst_514 = arith.constant dense<0.000000e+00> : vector<8x32xf32>
    %1088 = tpu.matmul %1086, %1087, %cst_514 {dimension_numbers = #tpu.dot_dimension_numbers<[1], [0], [0], [1], [0, 0, 1, 1], [], []>} : vector<8x16xf32>, vector<16x32xf32>, vector<8x32xf32> -> vector<8x32xf32>
    %1089 = arith.addf %1071, %1088 : vector<8x32xf32>
    %1090 = vector.extract_strided_slice %1069 {offsets = [0, 16], sizes = [8, 16], strides = [1, 1]} : vector<8x32xf32> to vector<8x16xf32>
    %1091 = vector.extract_strided_slice %1070 {offsets = [0, 16], sizes = [8, 16], strides = [1, 1]} : vector<8x32xf32> to vector<8x16xf32>
    %cst_515 = arith.constant dense<0.000000e+00> : vector<8x1xf32>
    %1092 = tpu.matmul %1091, %1056, %cst_515 {dimension_numbers = #tpu.dot_dimension_numbers<[1], [1], [0], [0], [0, 0, 1, 0], [], []>} : vector<8x16xf32>, vector<1x16xf32>, vector<8x1xf32> -> vector<8x1xf32>
    %cst_516 = arith.constant dense<0.000000e+00> : vector<1x8xf32>
    %1093 = tpu.matmul %1054, %1090, %cst_516 {dimension_numbers = #tpu.dot_dimension_numbers<[1], [1], [0], [0], [0, 0, 1, 0], [], []>} : vector<1x16xf32>, vector<8x16xf32>, vector<1x8xf32> -> vector<1x8xf32>
    %1094 = vector.broadcast %1092 : vector<8x1xf32> to vector<8x8xf32>
    %1095 = vector.broadcast %1093 : vector<1x8xf32> to vector<8x8xf32>
    %1096 = arith.addf %1094, %1095 : vector<8x8xf32>
    %1097 = math.tanh %1096 : vector<8x8xf32>
    %1098 = math.exp %1097 : vector<8x8xf32>
    %cst_517 = arith.constant dense<0.000000e+00> : vector<8xf32>
    %1099 = vector.multi_reduction <add>, %1098, %cst_517 [1] : vector<8x8xf32> to vector<8xf32>
    %1100 = vector.shape_cast %1099 : vector<8xf32> to vector<8x1xf32>
    %1101 = tpu.reciprocal %1100 {approx = true} : vector<8x1xf32> -> vector<8x1xf32>
    %1102 = vector.broadcast %1101 : vector<8x1xf32> to vector<8x8xf32>
    %1103 = arith.mulf %1098, %1102 : vector<8x8xf32>
    %cst_518 = arith.constant dense<0.000000e+00> : vector<8x16xf32>
    %1104 = tpu.matmul %1103, %1090, %cst_518 {dimension_numbers = #tpu.dot_dimension_numbers<[1], [0], [0], [1], [0, 0, 1, 1], [], []>} : vector<8x8xf32>, vector<8x16xf32>, vector<8x16xf32> -> vector<8x16xf32>
    %1105 = vector.extract_strided_slice %1058 {offsets = [16, 0], sizes = [16, 32], strides = [1, 1]} : vector<32x32xf32> to vector<16x32xf32>
    %cst_519 = arith.constant dense<0.000000e+00> : vector<8x32xf32>
    %1106 = tpu.matmul %1104, %1105, %cst_519 {dimension_numbers = #tpu.dot_dimension_numbers<[1], [0], [0], [1], [0, 0, 1, 1], [], []>} : vector<8x16xf32>, vector<16x32xf32>, vector<8x32xf32> -> vector<8x32xf32>
    %1107 = arith.addf %1089, %1106 : vector<8x32xf32>
    %1108 = vector.extract_strided_slice %1063 {offsets = [8, 0], sizes = [8, 32], strides = [1, 1]} : vector<16x32xf32> to vector<8x32xf32>
    %1109 = vector.extract_strided_slice %1068 {offsets = [8, 0], sizes = [8, 32], strides = [1, 1]} : vector<16x32xf32> to vector<8x32xf32>
    %cst_520 = arith.constant 0.000000e+00 : f32
    %1110 = vector.broadcast %cst_520 : f32 to vector<8x32xf32>
    %1111 = vector.extract_strided_slice %1108 {offsets = [0, 0], sizes = [8, 16], strides = [1, 1]} : vector<8x32xf32> to vector<8x16xf32>
    %1112 = vector.extract_strided_slice %1109 {offsets = [0, 0], sizes = [8, 16], strides = [1, 1]} : vector<8x32xf32> to vector<8x16xf32>
    %cst_521 = arith.constant dense<0.000000e+00> : vector<8x1xf32>
    %1113 = tpu.matmul %1112, %1056, %cst_521 {dimension_numbers = #tpu.dot_dimension_numbers<[1], [1], [0], [0], [0, 0, 1, 0], [], []>} : vector<8x16xf32>, vector<1x16xf32>, vector<8x1xf32> -> vector<8x1xf32>
    %cst_522 = arith.constant dense<0.000000e+00> : vector<1x8xf32>
    %1114 = tpu.matmul %1054, %1111, %cst_522 {dimension_numbers = #tpu.dot_dimension_numbers<[1], [1], [0], [0], [0, 0, 1, 0], [], []>} : vector<1x16xf32>, vector<8x16xf32>, vector<1x8xf32> -> vector<1x8xf32>
    %1115 = vector.broadcast %1113 : vector<8x1xf32> to vector<8x8xf32>
    %1116 = vector.broadcast %1114 : vector<1x8xf32> to vector<8x8xf32>
    %1117 = arith.addf %1115, %1116 : vector<8x8xf32>
    %1118 = math.tanh %1117 : vector<8x8xf32>
    %1119 = math.exp %1118 : vector<8x8xf32>
    %cst_523 = arith.constant dense<0.000000e+00> : vector<8xf32>
    %1120 = vector.multi_reduction <add>, %1119, %cst_523 [1] : vector<8x8xf32> to vector<8xf32>
    %1121 = vector.shape_cast %1120 : vector<8xf32> to vector<8x1xf32>
    %1122 = tpu.reciprocal %1121 {approx = true} : vector<8x1xf32> -> vector<8x1xf32>
    %1123 = vector.broadcast %1122 : vector<8x1xf32> to vector<8x8xf32>
    %1124 = arith.mulf %1119, %1123 : vector<8x8xf32>
    %cst_524 = arith.constant dense<0.000000e+00> : vector<8x16xf32>
    %1125 = tpu.matmul %1124, %1111, %cst_524 {dimension_numbers = #tpu.dot_dimension_numbers<[1], [0], [0], [1], [0, 0, 1, 1], [], []>} : vector<8x8xf32>, vector<8x16xf32>, vector<8x16xf32> -> vector<8x16xf32>
    %1126 = vector.extract_strided_slice %1058 {offsets = [0, 0], sizes = [16, 32], strides = [1, 1]} : vector<32x32xf32> to vector<16x32xf32>
    %cst_525 = arith.constant dense<0.000000e+00> : vector<8x32xf32>
    %1127 = tpu.matmul %1125, %1126, %cst_525 {dimension_numbers = #tpu.dot_dimension_numbers<[1], [0], [0], [1], [0, 0, 1, 1], [], []>} : vector<8x16xf32>, vector<16x32xf32>, vector<8x32xf32> -> vector<8x32xf32>
    %1128 = arith.addf %1110, %1127 : vector<8x32xf32>
    %1129 = vector.extract_strided_slice %1108 {offsets = [0, 16], sizes = [8, 16], strides = [1, 1]} : vector<8x32xf32> to vector<8x16xf32>
    %1130 = vector.extract_strided_slice %1109 {offsets = [0, 16], sizes = [8, 16], strides = [1, 1]} : vector<8x32xf32> to vector<8x16xf32>
    %cst_526 = arith.constant dense<0.000000e+00> : vector<8x1xf32>
    %1131 = tpu.matmul %1130, %1056, %cst_526 {dimension_numbers = #tpu.dot_dimension_numbers<[1], [1], [0], [0], [0, 0, 1, 0], [], []>} : vector<8x16xf32>, vector<1x16xf32>, vector<8x1xf32> -> vector<8x1xf32>
    %cst_527 = arith.constant dense<0.000000e+00> : vector<1x8xf32>
    %1132 = tpu.matmul %1054, %1129, %cst_527 {dimension_numbers = #tpu.dot_dimension_numbers<[1], [1], [0], [0], [0, 0, 1, 0], [], []>} : vector<1x16xf32>, vector<8x16xf32>, vector<1x8xf32> -> vector<1x8xf32>
    %1133 = vector.broadcast %1131 : vector<8x1xf32> to vector<8x8xf32>
    %1134 = vector.broadcast %1132 : vector<1x8xf32> to vector<8x8xf32>
    %1135 = arith.addf %1133, %1134 : vector<8x8xf32>
    %1136 = math.tanh %1135 : vector<8x8xf32>
    %1137 = math.exp %1136 : vector<8x8xf32>
    %cst_528 = arith.constant dense<0.000000e+00> : vector<8xf32>
    %1138 = vector.multi_reduction <add>, %1137, %cst_528 [1] : vector<8x8xf32> to vector<8xf32>
    %1139 = vector.shape_cast %1138 : vector<8xf32> to vector<8x1xf32>
    %1140 = tpu.reciprocal %1139 {approx = true} : vector<8x1xf32> -> vector<8x1xf32>
    %1141 = vector.broadcast %1140 : vector<8x1xf32> to vector<8x8xf32>
    %1142 = arith.mulf %1137, %1141 : vector<8x8xf32>
    %cst_529 = arith.constant dense<0.000000e+00> : vector<8x16xf32>
    %1143 = tpu.matmul %1142, %1129, %cst_529 {dimension_numbers = #tpu.dot_dimension_numbers<[1], [0], [0], [1], [0, 0, 1, 1], [], []>} : vector<8x8xf32>, vector<8x16xf32>, vector<8x16xf32> -> vector<8x16xf32>
    %1144 = vector.extract_strided_slice %1058 {offsets = [16, 0], sizes = [16, 32], strides = [1, 1]} : vector<32x32xf32> to vector<16x32xf32>
    %cst_530 = arith.constant dense<0.000000e+00> : vector<8x32xf32>
    %1145 = tpu.matmul %1143, %1144, %cst_530 {dimension_numbers = #tpu.dot_dimension_numbers<[1], [0], [0], [1], [0, 0, 1, 1], [], []>} : vector<8x16xf32>, vector<16x32xf32>, vector<8x32xf32> -> vector<8x32xf32>
    %1146 = arith.addf %1128, %1145 : vector<8x32xf32>
    %1147 = tpu.concatenate %1107, %1146 in 0 : vector<8x32xf32>, vector<8x32xf32> -> vector<16x32xf32>
    %c4_531 = arith.constant 4 : index
    %c0_532 = arith.constant 0 : index
    %c0_533 = arith.constant 0 : index
    %1148 = vector.load %arg9[%c4_531, %c0_532, %c0_533] : memref<6x1x32xf32, #tpu.memory_space<vmem>>, vector<1x1x32xf32>
    %1149 = vector.shape_cast %1148 : vector<1x1x32xf32> to vector<1x32xf32>
    %1150 = vector.broadcast %1149 : vector<1x32xf32> to vector<16x32xf32>
    %1151 = arith.addf %1147, %1150 : vector<16x32xf32>
    %c5_534 = arith.constant 5 : index
    %c0_535 = arith.constant 0 : index
    %c0_536 = arith.constant 0 : index
    %1152 = vector.load %arg2[%c5_534, %c0_535, %c0_536] : memref<6x32x32xf32, #tpu.memory_space<vmem>>, vector<1x32x32xf32>
    %1153 = vector.shape_cast %1152 : vector<1x32x32xf32> to vector<32x32xf32>
    %c5_537 = arith.constant 5 : index
    %c0_538 = arith.constant 0 : index
    %c0_539 = arith.constant 0 : index
    %1154 = vector.load %arg4[%c5_537, %c0_538, %c0_539] : memref<6x32x32xf32, #tpu.memory_space<vmem>>, vector<1x32x32xf32>
    %1155 = vector.shape_cast %1154 : vector<1x32x32xf32> to vector<32x32xf32>
    %c5_540 = arith.constant 5 : index
    %c0_541 = arith.constant 0 : index
    %c0_542 = arith.constant 0 : index
    %1156 = vector.load %arg6[%c5_540, %c0_541, %c0_542] : memref<6x1x16xf32, #tpu.memory_space<vmem>>, vector<1x1x16xf32>
    %1157 = vector.shape_cast %1156 : vector<1x1x16xf32> to vector<1x16xf32>
    %c5_543 = arith.constant 5 : index
    %c0_544 = arith.constant 0 : index
    %c0_545 = arith.constant 0 : index
    %1158 = vector.load %arg7[%c5_543, %c0_544, %c0_545] : memref<6x1x16xf32, #tpu.memory_space<vmem>>, vector<1x1x16xf32>
    %1159 = vector.shape_cast %1158 : vector<1x1x16xf32> to vector<1x16xf32>
    %c5_546 = arith.constant 5 : index
    %c0_547 = arith.constant 0 : index
    %c0_548 = arith.constant 0 : index
    %1160 = vector.load %arg8[%c5_546, %c0_547, %c0_548] : memref<6x32x32xf32, #tpu.memory_space<vmem>>, vector<1x32x32xf32>
    %1161 = vector.shape_cast %1160 : vector<1x32x32xf32> to vector<32x32xf32>
    %cst_549 = arith.constant dense<0.000000e+00> : vector<16x32xf32>
    %1162 = tpu.matmul %261, %1153, %cst_549 {dimension_numbers = #tpu.dot_dimension_numbers<[1], [0], [0], [1], [0, 0, 1, 1], [], []>} : vector<16x32xf32>, vector<32x32xf32>, vector<16x32xf32> -> vector<16x32xf32>
    %c5_550 = arith.constant 5 : index
    %c0_551 = arith.constant 0 : index
    %c0_552 = arith.constant 0 : index
    %1163 = vector.load %arg3[%c5_550, %c0_551, %c0_552] : memref<6x1x32xf32, #tpu.memory_space<vmem>>, vector<1x1x32xf32>
    %1164 = vector.shape_cast %1163 : vector<1x1x32xf32> to vector<1x32xf32>
    %1165 = vector.broadcast %1164 : vector<1x32xf32> to vector<16x32xf32>
    %1166 = arith.addf %1162, %1165 : vector<16x32xf32>
    %cst_553 = arith.constant dense<0.000000e+00> : vector<16x32xf32>
    %1167 = tpu.matmul %759, %1155, %cst_553 {dimension_numbers = #tpu.dot_dimension_numbers<[1], [0], [0], [1], [0, 0, 1, 1], [], []>} : vector<16x32xf32>, vector<32x32xf32>, vector<16x32xf32> -> vector<16x32xf32>
    %c5_554 = arith.constant 5 : index
    %c0_555 = arith.constant 0 : index
    %c0_556 = arith.constant 0 : index
    %1168 = vector.load %arg5[%c5_554, %c0_555, %c0_556] : memref<6x1x32xf32, #tpu.memory_space<vmem>>, vector<1x1x32xf32>
    %1169 = vector.shape_cast %1168 : vector<1x1x32xf32> to vector<1x32xf32>
    %1170 = vector.broadcast %1169 : vector<1x32xf32> to vector<16x32xf32>
    %1171 = arith.addf %1167, %1170 : vector<16x32xf32>
    %1172 = vector.extract_strided_slice %1166 {offsets = [0, 0], sizes = [8, 32], strides = [1, 1]} : vector<16x32xf32> to vector<8x32xf32>
    %1173 = vector.extract_strided_slice %1171 {offsets = [0, 0], sizes = [8, 32], strides = [1, 1]} : vector<16x32xf32> to vector<8x32xf32>
    %cst_557 = arith.constant 0.000000e+00 : f32
    %1174 = vector.broadcast %cst_557 : f32 to vector<8x32xf32>
    %1175 = vector.extract_strided_slice %1172 {offsets = [0, 0], sizes = [8, 16], strides = [1, 1]} : vector<8x32xf32> to vector<8x16xf32>
    %1176 = vector.extract_strided_slice %1173 {offsets = [0, 0], sizes = [8, 16], strides = [1, 1]} : vector<8x32xf32> to vector<8x16xf32>
    %cst_558 = arith.constant dense<0.000000e+00> : vector<8x1xf32>
    %1177 = tpu.matmul %1176, %1159, %cst_558 {dimension_numbers = #tpu.dot_dimension_numbers<[1], [1], [0], [0], [0, 0, 1, 0], [], []>} : vector<8x16xf32>, vector<1x16xf32>, vector<8x1xf32> -> vector<8x1xf32>
    %cst_559 = arith.constant dense<0.000000e+00> : vector<1x8xf32>
    %1178 = tpu.matmul %1157, %1175, %cst_559 {dimension_numbers = #tpu.dot_dimension_numbers<[1], [1], [0], [0], [0, 0, 1, 0], [], []>} : vector<1x16xf32>, vector<8x16xf32>, vector<1x8xf32> -> vector<1x8xf32>
    %1179 = vector.broadcast %1177 : vector<8x1xf32> to vector<8x8xf32>
    %1180 = vector.broadcast %1178 : vector<1x8xf32> to vector<8x8xf32>
    %1181 = arith.addf %1179, %1180 : vector<8x8xf32>
    %1182 = math.tanh %1181 : vector<8x8xf32>
    %1183 = math.exp %1182 : vector<8x8xf32>
    %cst_560 = arith.constant dense<0.000000e+00> : vector<8xf32>
    %1184 = vector.multi_reduction <add>, %1183, %cst_560 [1] : vector<8x8xf32> to vector<8xf32>
    %1185 = vector.shape_cast %1184 : vector<8xf32> to vector<8x1xf32>
    %1186 = tpu.reciprocal %1185 {approx = true} : vector<8x1xf32> -> vector<8x1xf32>
    %1187 = vector.broadcast %1186 : vector<8x1xf32> to vector<8x8xf32>
    %1188 = arith.mulf %1183, %1187 : vector<8x8xf32>
    %cst_561 = arith.constant dense<0.000000e+00> : vector<8x16xf32>
    %1189 = tpu.matmul %1188, %1175, %cst_561 {dimension_numbers = #tpu.dot_dimension_numbers<[1], [0], [0], [1], [0, 0, 1, 1], [], []>} : vector<8x8xf32>, vector<8x16xf32>, vector<8x16xf32> -> vector<8x16xf32>
    %1190 = vector.extract_strided_slice %1161 {offsets = [0, 0], sizes = [16, 32], strides = [1, 1]} : vector<32x32xf32> to vector<16x32xf32>
    %cst_562 = arith.constant dense<0.000000e+00> : vector<8x32xf32>
    %1191 = tpu.matmul %1189, %1190, %cst_562 {dimension_numbers = #tpu.dot_dimension_numbers<[1], [0], [0], [1], [0, 0, 1, 1], [], []>} : vector<8x16xf32>, vector<16x32xf32>, vector<8x32xf32> -> vector<8x32xf32>
    %1192 = arith.addf %1174, %1191 : vector<8x32xf32>
    %1193 = vector.extract_strided_slice %1172 {offsets = [0, 16], sizes = [8, 16], strides = [1, 1]} : vector<8x32xf32> to vector<8x16xf32>
    %1194 = vector.extract_strided_slice %1173 {offsets = [0, 16], sizes = [8, 16], strides = [1, 1]} : vector<8x32xf32> to vector<8x16xf32>
    %cst_563 = arith.constant dense<0.000000e+00> : vector<8x1xf32>
    %1195 = tpu.matmul %1194, %1159, %cst_563 {dimension_numbers = #tpu.dot_dimension_numbers<[1], [1], [0], [0], [0, 0, 1, 0], [], []>} : vector<8x16xf32>, vector<1x16xf32>, vector<8x1xf32> -> vector<8x1xf32>
    %cst_564 = arith.constant dense<0.000000e+00> : vector<1x8xf32>
    %1196 = tpu.matmul %1157, %1193, %cst_564 {dimension_numbers = #tpu.dot_dimension_numbers<[1], [1], [0], [0], [0, 0, 1, 0], [], []>} : vector<1x16xf32>, vector<8x16xf32>, vector<1x8xf32> -> vector<1x8xf32>
    %1197 = vector.broadcast %1195 : vector<8x1xf32> to vector<8x8xf32>
    %1198 = vector.broadcast %1196 : vector<1x8xf32> to vector<8x8xf32>
    %1199 = arith.addf %1197, %1198 : vector<8x8xf32>
    %1200 = math.tanh %1199 : vector<8x8xf32>
    %1201 = math.exp %1200 : vector<8x8xf32>
    %cst_565 = arith.constant dense<0.000000e+00> : vector<8xf32>
    %1202 = vector.multi_reduction <add>, %1201, %cst_565 [1] : vector<8x8xf32> to vector<8xf32>
    %1203 = vector.shape_cast %1202 : vector<8xf32> to vector<8x1xf32>
    %1204 = tpu.reciprocal %1203 {approx = true} : vector<8x1xf32> -> vector<8x1xf32>
    %1205 = vector.broadcast %1204 : vector<8x1xf32> to vector<8x8xf32>
    %1206 = arith.mulf %1201, %1205 : vector<8x8xf32>
    %cst_566 = arith.constant dense<0.000000e+00> : vector<8x16xf32>
    %1207 = tpu.matmul %1206, %1193, %cst_566 {dimension_numbers = #tpu.dot_dimension_numbers<[1], [0], [0], [1], [0, 0, 1, 1], [], []>} : vector<8x8xf32>, vector<8x16xf32>, vector<8x16xf32> -> vector<8x16xf32>
    %1208 = vector.extract_strided_slice %1161 {offsets = [16, 0], sizes = [16, 32], strides = [1, 1]} : vector<32x32xf32> to vector<16x32xf32>
    %cst_567 = arith.constant dense<0.000000e+00> : vector<8x32xf32>
    %1209 = tpu.matmul %1207, %1208, %cst_567 {dimension_numbers = #tpu.dot_dimension_numbers<[1], [0], [0], [1], [0, 0, 1, 1], [], []>} : vector<8x16xf32>, vector<16x32xf32>, vector<8x32xf32> -> vector<8x32xf32>
    %1210 = arith.addf %1192, %1209 : vector<8x32xf32>
    %1211 = vector.extract_strided_slice %1166 {offsets = [8, 0], sizes = [8, 32], strides = [1, 1]} : vector<16x32xf32> to vector<8x32xf32>
    %1212 = vector.extract_strided_slice %1171 {offsets = [8, 0], sizes = [8, 32], strides = [1, 1]} : vector<16x32xf32> to vector<8x32xf32>
    %cst_568 = arith.constant 0.000000e+00 : f32
    %1213 = vector.broadcast %cst_568 : f32 to vector<8x32xf32>
    %1214 = vector.extract_strided_slice %1211 {offsets = [0, 0], sizes = [8, 16], strides = [1, 1]} : vector<8x32xf32> to vector<8x16xf32>
    %1215 = vector.extract_strided_slice %1212 {offsets = [0, 0], sizes = [8, 16], strides = [1, 1]} : vector<8x32xf32> to vector<8x16xf32>
    %cst_569 = arith.constant dense<0.000000e+00> : vector<8x1xf32>
    %1216 = tpu.matmul %1215, %1159, %cst_569 {dimension_numbers = #tpu.dot_dimension_numbers<[1], [1], [0], [0], [0, 0, 1, 0], [], []>} : vector<8x16xf32>, vector<1x16xf32>, vector<8x1xf32> -> vector<8x1xf32>
    %cst_570 = arith.constant dense<0.000000e+00> : vector<1x8xf32>
    %1217 = tpu.matmul %1157, %1214, %cst_570 {dimension_numbers = #tpu.dot_dimension_numbers<[1], [1], [0], [0], [0, 0, 1, 0], [], []>} : vector<1x16xf32>, vector<8x16xf32>, vector<1x8xf32> -> vector<1x8xf32>
    %1218 = vector.broadcast %1216 : vector<8x1xf32> to vector<8x8xf32>
    %1219 = vector.broadcast %1217 : vector<1x8xf32> to vector<8x8xf32>
    %1220 = arith.addf %1218, %1219 : vector<8x8xf32>
    %1221 = math.tanh %1220 : vector<8x8xf32>
    %1222 = math.exp %1221 : vector<8x8xf32>
    %cst_571 = arith.constant dense<0.000000e+00> : vector<8xf32>
    %1223 = vector.multi_reduction <add>, %1222, %cst_571 [1] : vector<8x8xf32> to vector<8xf32>
    %1224 = vector.shape_cast %1223 : vector<8xf32> to vector<8x1xf32>
    %1225 = tpu.reciprocal %1224 {approx = true} : vector<8x1xf32> -> vector<8x1xf32>
    %1226 = vector.broadcast %1225 : vector<8x1xf32> to vector<8x8xf32>
    %1227 = arith.mulf %1222, %1226 : vector<8x8xf32>
    %cst_572 = arith.constant dense<0.000000e+00> : vector<8x16xf32>
    %1228 = tpu.matmul %1227, %1214, %cst_572 {dimension_numbers = #tpu.dot_dimension_numbers<[1], [0], [0], [1], [0, 0, 1, 1], [], []>} : vector<8x8xf32>, vector<8x16xf32>, vector<8x16xf32> -> vector<8x16xf32>
    %1229 = vector.extract_strided_slice %1161 {offsets = [0, 0], sizes = [16, 32], strides = [1, 1]} : vector<32x32xf32> to vector<16x32xf32>
    %cst_573 = arith.constant dense<0.000000e+00> : vector<8x32xf32>
    %1230 = tpu.matmul %1228, %1229, %cst_573 {dimension_numbers = #tpu.dot_dimension_numbers<[1], [0], [0], [1], [0, 0, 1, 1], [], []>} : vector<8x16xf32>, vector<16x32xf32>, vector<8x32xf32> -> vector<8x32xf32>
    %1231 = arith.addf %1213, %1230 : vector<8x32xf32>
    %1232 = vector.extract_strided_slice %1211 {offsets = [0, 16], sizes = [8, 16], strides = [1, 1]} : vector<8x32xf32> to vector<8x16xf32>
    %1233 = vector.extract_strided_slice %1212 {offsets = [0, 16], sizes = [8, 16], strides = [1, 1]} : vector<8x32xf32> to vector<8x16xf32>
    %cst_574 = arith.constant dense<0.000000e+00> : vector<8x1xf32>
    %1234 = tpu.matmul %1233, %1159, %cst_574 {dimension_numbers = #tpu.dot_dimension_numbers<[1], [1], [0], [0], [0, 0, 1, 0], [], []>} : vector<8x16xf32>, vector<1x16xf32>, vector<8x1xf32> -> vector<8x1xf32>
    %cst_575 = arith.constant dense<0.000000e+00> : vector<1x8xf32>
    %1235 = tpu.matmul %1157, %1232, %cst_575 {dimension_numbers = #tpu.dot_dimension_numbers<[1], [1], [0], [0], [0, 0, 1, 0], [], []>} : vector<1x16xf32>, vector<8x16xf32>, vector<1x8xf32> -> vector<1x8xf32>
    %1236 = vector.broadcast %1234 : vector<8x1xf32> to vector<8x8xf32>
    %1237 = vector.broadcast %1235 : vector<1x8xf32> to vector<8x8xf32>
    %1238 = arith.addf %1236, %1237 : vector<8x8xf32>
    %1239 = math.tanh %1238 : vector<8x8xf32>
    %1240 = math.exp %1239 : vector<8x8xf32>
    %cst_576 = arith.constant dense<0.000000e+00> : vector<8xf32>
    %1241 = vector.multi_reduction <add>, %1240, %cst_576 [1] : vector<8x8xf32> to vector<8xf32>
    %1242 = vector.shape_cast %1241 : vector<8xf32> to vector<8x1xf32>
    %1243 = tpu.reciprocal %1242 {approx = true} : vector<8x1xf32> -> vector<8x1xf32>
    %1244 = vector.broadcast %1243 : vector<8x1xf32> to vector<8x8xf32>
    %1245 = arith.mulf %1240, %1244 : vector<8x8xf32>
    %cst_577 = arith.constant dense<0.000000e+00> : vector<8x16xf32>
    %1246 = tpu.matmul %1245, %1232, %cst_577 {dimension_numbers = #tpu.dot_dimension_numbers<[1], [0], [0], [1], [0, 0, 1, 1], [], []>} : vector<8x8xf32>, vector<8x16xf32>, vector<8x16xf32> -> vector<8x16xf32>
    %1247 = vector.extract_strided_slice %1161 {offsets = [16, 0], sizes = [16, 32], strides = [1, 1]} : vector<32x32xf32> to vector<16x32xf32>
    %cst_578 = arith.constant dense<0.000000e+00> : vector<8x32xf32>
    %1248 = tpu.matmul %1246, %1247, %cst_578 {dimension_numbers = #tpu.dot_dimension_numbers<[1], [0], [0], [1], [0, 0, 1, 1], [], []>} : vector<8x16xf32>, vector<16x32xf32>, vector<8x32xf32> -> vector<8x32xf32>
    %1249 = arith.addf %1231, %1248 : vector<8x32xf32>
    %1250 = tpu.concatenate %1210, %1249 in 0 : vector<8x32xf32>, vector<8x32xf32> -> vector<16x32xf32>
    %c5_579 = arith.constant 5 : index
    %c0_580 = arith.constant 0 : index
    %c0_581 = arith.constant 0 : index
    %1251 = vector.load %arg9[%c5_579, %c0_580, %c0_581] : memref<6x1x32xf32, #tpu.memory_space<vmem>>, vector<1x1x32xf32>
    %1252 = vector.shape_cast %1251 : vector<1x1x32xf32> to vector<1x32xf32>
    %1253 = vector.broadcast %1252 : vector<1x32xf32> to vector<16x32xf32>
    %1254 = arith.addf %1250, %1253 : vector<16x32xf32>
    %1255 = arith.addf %1151, %1254 : vector<16x32xf32>
    %cst_582 = arith.constant 5.000000e-01 : f32
    %1256 = vector.broadcast %cst_582 : f32 to vector<16x32xf32>
    %1257 = arith.mulf %1255, %1256 : vector<16x32xf32>
    %c0_583 = arith.constant 0 : index
    %c0_584 = arith.constant 0 : index
    %c0_585 = arith.constant 0 : index
    %1258 = vector.load %arg12[%c0_583, %c0_584, %c0_585] : memref<2x64x32xf32, #tpu.memory_space<vmem>>, vector<1x64x32xf32>
    %1259 = vector.shape_cast %1258 : vector<1x64x32xf32> to vector<64x32xf32>
    %c0_586 = arith.constant 0 : index
    %c0_587 = arith.constant 0 : index
    %c0_588 = arith.constant 0 : index
    %1260 = vector.load %arg18[%c0_586, %c0_587, %c0_588] : memref<2x1x32xf32, #tpu.memory_space<vmem>>, vector<1x1x32xf32>
    %1261 = vector.shape_cast %1260 : vector<1x1x32xf32> to vector<1x32xf32>
    %c0_589 = arith.constant 0 : index
    %c0_590 = arith.constant 0 : index
    %c0_591 = arith.constant 0 : index
    %1262 = vector.load %arg19[%c0_589, %c0_590, %c0_591] : memref<2x1x32xf32, #tpu.memory_space<vmem>>, vector<1x1x32xf32>
    %1263 = vector.shape_cast %1262 : vector<1x1x32xf32> to vector<1x32xf32>
    %1264 = math.tanh %1048 : vector<16x32xf32>
    %1265 = math.tanh %759 : vector<16x32xf32>
    %1266 = vector.extract_strided_slice %1259 {offsets = [0, 0], sizes = [32, 32], strides = [1, 1]} : vector<64x32xf32> to vector<32x32xf32>
    %cst_592 = arith.constant dense<0.000000e+00> : vector<16x32xf32>
    %1267 = tpu.matmul %1264, %1266, %cst_592 {dimension_numbers = #tpu.dot_dimension_numbers<[1], [0], [0], [1], [0, 0, 1, 1], [], []>} : vector<16x32xf32>, vector<32x32xf32>, vector<16x32xf32> -> vector<16x32xf32>
    %1268 = vector.extract_strided_slice %1259 {offsets = [32, 0], sizes = [32, 32], strides = [1, 1]} : vector<64x32xf32> to vector<32x32xf32>
    %cst_593 = arith.constant dense<0.000000e+00> : vector<16x32xf32>
    %1269 = tpu.matmul %1265, %1268, %cst_593 {dimension_numbers = #tpu.dot_dimension_numbers<[1], [0], [0], [1], [0, 0, 1, 1], [], []>} : vector<16x32xf32>, vector<32x32xf32>, vector<16x32xf32> -> vector<16x32xf32>
    %1270 = arith.addf %1267, %1269 : vector<16x32xf32>
    %c0_594 = arith.constant 0 : index
    %c0_595 = arith.constant 0 : index
    %c0_596 = arith.constant 0 : index
    %1271 = vector.load %arg13[%c0_594, %c0_595, %c0_596] : memref<2x1x32xf32, #tpu.memory_space<vmem>>, vector<1x1x32xf32>
    %1272 = vector.shape_cast %1271 : vector<1x1x32xf32> to vector<1x32xf32>
    %1273 = vector.broadcast %1272 : vector<1x32xf32> to vector<16x32xf32>
    %1274 = arith.addf %1270, %1273 : vector<16x32xf32>
    %cst_597 = arith.constant 0.000000e+00 : f32
    %1275 = vector.broadcast %cst_597 : f32 to vector<16x32xf32>
    %1276 = arith.maximumf %1274, %1275 : vector<16x32xf32>
    %cst_598 = arith.constant dense<0.000000e+00> : vector<16xf32>
    %1277 = vector.multi_reduction <add>, %1276, %cst_598 [1] : vector<16x32xf32> to vector<16xf32>
    %1278 = vector.shape_cast %1277 : vector<16xf32> to vector<16x1xf32>
    %cst_599 = arith.constant 3.200000e+01 : f32
    %1279 = vector.broadcast %cst_599 : f32 to vector<16x1xf32>
    %1280 = arith.divf %1278, %1279 : vector<16x1xf32>
    %1281 = vector.broadcast %1280 : vector<16x1xf32> to vector<16x32xf32>
    %1282 = arith.subf %1276, %1281 : vector<16x32xf32>
    %1283 = arith.mulf %1282, %1282 : vector<16x32xf32>
    %cst_600 = arith.constant dense<0.000000e+00> : vector<16xf32>
    %1284 = vector.multi_reduction <add>, %1283, %cst_600 [1] : vector<16x32xf32> to vector<16xf32>
    %1285 = vector.shape_cast %1284 : vector<16xf32> to vector<16x1xf32>
    %cst_601 = arith.constant 3.200000e+01 : f32
    %1286 = vector.broadcast %cst_601 : f32 to vector<16x1xf32>
    %1287 = arith.divf %1285, %1286 : vector<16x1xf32>
    %1288 = vector.broadcast %1280 : vector<16x1xf32> to vector<16x32xf32>
    %1289 = arith.subf %1276, %1288 : vector<16x32xf32>
    %cst_602 = arith.constant 9.99999997E-7 : f32
    %1290 = vector.broadcast %cst_602 : f32 to vector<16x1xf32>
    %1291 = arith.addf %1287, %1290 : vector<16x1xf32>
    %1292 = math.rsqrt %1291 : vector<16x1xf32>
    %1293 = vector.broadcast %1292 : vector<16x1xf32> to vector<16x32xf32>
    %1294 = arith.mulf %1289, %1293 : vector<16x32xf32>
    %1295 = vector.broadcast %1261 : vector<1x32xf32> to vector<16x32xf32>
    %1296 = arith.mulf %1294, %1295 : vector<16x32xf32>
    %1297 = vector.broadcast %1263 : vector<1x32xf32> to vector<16x32xf32>
    %1298 = arith.addf %1296, %1297 : vector<16x32xf32>
    %c0_603 = arith.constant 0 : index
    %c0_604 = arith.constant 0 : index
    %c0_605 = arith.constant 0 : index
    %1299 = vector.load %arg14[%c0_603, %c0_604, %c0_605] : memref<2x32x64xf32, #tpu.memory_space<vmem>>, vector<1x32x64xf32>
    %1300 = vector.shape_cast %1299 : vector<1x32x64xf32> to vector<32x64xf32>
    %cst_606 = arith.constant dense<0.000000e+00> : vector<16x64xf32>
    %1301 = tpu.matmul %1298, %1300, %cst_606 {dimension_numbers = #tpu.dot_dimension_numbers<[1], [0], [0], [1], [0, 0, 1, 1], [], []>} : vector<16x32xf32>, vector<32x64xf32>, vector<16x64xf32> -> vector<16x64xf32>
    %c0_607 = arith.constant 0 : index
    %c0_608 = arith.constant 0 : index
    %c0_609 = arith.constant 0 : index
    %1302 = vector.load %arg15[%c0_607, %c0_608, %c0_609] : memref<2x1x64xf32, #tpu.memory_space<vmem>>, vector<1x1x64xf32>
    %1303 = vector.shape_cast %1302 : vector<1x1x64xf32> to vector<1x64xf32>
    %1304 = vector.broadcast %1303 : vector<1x64xf32> to vector<16x64xf32>
    %1305 = arith.addf %1301, %1304 : vector<16x64xf32>
    %cst_610 = arith.constant 0.000000e+00 : f32
    %1306 = vector.broadcast %cst_610 : f32 to vector<16x64xf32>
    %1307 = arith.maximumf %1305, %1306 : vector<16x64xf32>
    %c0_611 = arith.constant 0 : index
    %c0_612 = arith.constant 0 : index
    %c0_613 = arith.constant 0 : index
    %1308 = vector.load %arg16[%c0_611, %c0_612, %c0_613] : memref<2x64x32xf32, #tpu.memory_space<vmem>>, vector<1x64x32xf32>
    %1309 = vector.shape_cast %1308 : vector<1x64x32xf32> to vector<64x32xf32>
    %cst_614 = arith.constant dense<0.000000e+00> : vector<16x32xf32>
    %1310 = tpu.matmul %1307, %1309, %cst_614 {dimension_numbers = #tpu.dot_dimension_numbers<[1], [0], [0], [1], [0, 0, 1, 1], [], []>} : vector<16x64xf32>, vector<64x32xf32>, vector<16x32xf32> -> vector<16x32xf32>
    %c0_615 = arith.constant 0 : index
    %c0_616 = arith.constant 0 : index
    %c0_617 = arith.constant 0 : index
    %1311 = vector.load %arg17[%c0_615, %c0_616, %c0_617] : memref<2x1x32xf32, #tpu.memory_space<vmem>>, vector<1x1x32xf32>
    %1312 = vector.shape_cast %1311 : vector<1x1x32xf32> to vector<1x32xf32>
    %1313 = vector.broadcast %1312 : vector<1x32xf32> to vector<16x32xf32>
    %1314 = arith.addf %1310, %1313 : vector<16x32xf32>
    %1315 = arith.addf %1314, %1298 : vector<16x32xf32>
    %cst_618 = arith.constant dense<0.000000e+00> : vector<16xf32>
    %1316 = vector.multi_reduction <add>, %1315, %cst_618 [1] : vector<16x32xf32> to vector<16xf32>
    %1317 = vector.shape_cast %1316 : vector<16xf32> to vector<16x1xf32>
    %cst_619 = arith.constant 3.200000e+01 : f32
    %1318 = vector.broadcast %cst_619 : f32 to vector<16x1xf32>
    %1319 = arith.divf %1317, %1318 : vector<16x1xf32>
    %1320 = vector.broadcast %1319 : vector<16x1xf32> to vector<16x32xf32>
    %1321 = arith.subf %1315, %1320 : vector<16x32xf32>
    %1322 = arith.mulf %1321, %1321 : vector<16x32xf32>
    %cst_620 = arith.constant dense<0.000000e+00> : vector<16xf32>
    %1323 = vector.multi_reduction <add>, %1322, %cst_620 [1] : vector<16x32xf32> to vector<16xf32>
    %1324 = vector.shape_cast %1323 : vector<16xf32> to vector<16x1xf32>
    %cst_621 = arith.constant 3.200000e+01 : f32
    %1325 = vector.broadcast %cst_621 : f32 to vector<16x1xf32>
    %1326 = arith.divf %1324, %1325 : vector<16x1xf32>
    %1327 = vector.broadcast %1319 : vector<16x1xf32> to vector<16x32xf32>
    %1328 = arith.subf %1315, %1327 : vector<16x32xf32>
    %cst_622 = arith.constant 9.99999997E-7 : f32
    %1329 = vector.broadcast %cst_622 : f32 to vector<16x1xf32>
    %1330 = arith.addf %1326, %1329 : vector<16x1xf32>
    %1331 = math.rsqrt %1330 : vector<16x1xf32>
    %1332 = vector.broadcast %1331 : vector<16x1xf32> to vector<16x32xf32>
    %1333 = arith.mulf %1328, %1332 : vector<16x32xf32>
    %1334 = vector.broadcast %1261 : vector<1x32xf32> to vector<16x32xf32>
    %1335 = arith.mulf %1333, %1334 : vector<16x32xf32>
    %1336 = vector.broadcast %1263 : vector<1x32xf32> to vector<16x32xf32>
    %1337 = arith.addf %1335, %1336 : vector<16x32xf32>
    %c1_623 = arith.constant 1 : index
    %c0_624 = arith.constant 0 : index
    %c0_625 = arith.constant 0 : index
    %1338 = vector.load %arg12[%c1_623, %c0_624, %c0_625] : memref<2x64x32xf32, #tpu.memory_space<vmem>>, vector<1x64x32xf32>
    %1339 = vector.shape_cast %1338 : vector<1x64x32xf32> to vector<64x32xf32>
    %c1_626 = arith.constant 1 : index
    %c0_627 = arith.constant 0 : index
    %c0_628 = arith.constant 0 : index
    %1340 = vector.load %arg18[%c1_626, %c0_627, %c0_628] : memref<2x1x32xf32, #tpu.memory_space<vmem>>, vector<1x1x32xf32>
    %1341 = vector.shape_cast %1340 : vector<1x1x32xf32> to vector<1x32xf32>
    %c1_629 = arith.constant 1 : index
    %c0_630 = arith.constant 0 : index
    %c0_631 = arith.constant 0 : index
    %1342 = vector.load %arg19[%c1_629, %c0_630, %c0_631] : memref<2x1x32xf32, #tpu.memory_space<vmem>>, vector<1x1x32xf32>
    %1343 = vector.shape_cast %1342 : vector<1x1x32xf32> to vector<1x32xf32>
    %1344 = math.tanh %1257 : vector<16x32xf32>
    %1345 = math.tanh %839 : vector<16x32xf32>
    %1346 = vector.extract_strided_slice %1339 {offsets = [0, 0], sizes = [32, 32], strides = [1, 1]} : vector<64x32xf32> to vector<32x32xf32>
    %cst_632 = arith.constant dense<0.000000e+00> : vector<16x32xf32>
    %1347 = tpu.matmul %1344, %1346, %cst_632 {dimension_numbers = #tpu.dot_dimension_numbers<[1], [0], [0], [1], [0, 0, 1, 1], [], []>} : vector<16x32xf32>, vector<32x32xf32>, vector<16x32xf32> -> vector<16x32xf32>
    %1348 = vector.extract_strided_slice %1339 {offsets = [32, 0], sizes = [32, 32], strides = [1, 1]} : vector<64x32xf32> to vector<32x32xf32>
    %cst_633 = arith.constant dense<0.000000e+00> : vector<16x32xf32>
    %1349 = tpu.matmul %1345, %1348, %cst_633 {dimension_numbers = #tpu.dot_dimension_numbers<[1], [0], [0], [1], [0, 0, 1, 1], [], []>} : vector<16x32xf32>, vector<32x32xf32>, vector<16x32xf32> -> vector<16x32xf32>
    %1350 = arith.addf %1347, %1349 : vector<16x32xf32>
    %c1_634 = arith.constant 1 : index
    %c0_635 = arith.constant 0 : index
    %c0_636 = arith.constant 0 : index
    %1351 = vector.load %arg13[%c1_634, %c0_635, %c0_636] : memref<2x1x32xf32, #tpu.memory_space<vmem>>, vector<1x1x32xf32>
    %1352 = vector.shape_cast %1351 : vector<1x1x32xf32> to vector<1x32xf32>
    %1353 = vector.broadcast %1352 : vector<1x32xf32> to vector<16x32xf32>
    %1354 = arith.addf %1350, %1353 : vector<16x32xf32>
    %cst_637 = arith.constant 0.000000e+00 : f32
    %1355 = vector.broadcast %cst_637 : f32 to vector<16x32xf32>
    %1356 = arith.maximumf %1354, %1355 : vector<16x32xf32>
    %cst_638 = arith.constant dense<0.000000e+00> : vector<16xf32>
    %1357 = vector.multi_reduction <add>, %1356, %cst_638 [1] : vector<16x32xf32> to vector<16xf32>
    %1358 = vector.shape_cast %1357 : vector<16xf32> to vector<16x1xf32>
    %cst_639 = arith.constant 3.200000e+01 : f32
    %1359 = vector.broadcast %cst_639 : f32 to vector<16x1xf32>
    %1360 = arith.divf %1358, %1359 : vector<16x1xf32>
    %1361 = vector.broadcast %1360 : vector<16x1xf32> to vector<16x32xf32>
    %1362 = arith.subf %1356, %1361 : vector<16x32xf32>
    %1363 = arith.mulf %1362, %1362 : vector<16x32xf32>
    %cst_640 = arith.constant dense<0.000000e+00> : vector<16xf32>
    %1364 = vector.multi_reduction <add>, %1363, %cst_640 [1] : vector<16x32xf32> to vector<16xf32>
    %1365 = vector.shape_cast %1364 : vector<16xf32> to vector<16x1xf32>
    %cst_641 = arith.constant 3.200000e+01 : f32
    %1366 = vector.broadcast %cst_641 : f32 to vector<16x1xf32>
    %1367 = arith.divf %1365, %1366 : vector<16x1xf32>
    %1368 = vector.broadcast %1360 : vector<16x1xf32> to vector<16x32xf32>
    %1369 = arith.subf %1356, %1368 : vector<16x32xf32>
    %cst_642 = arith.constant 9.99999997E-7 : f32
    %1370 = vector.broadcast %cst_642 : f32 to vector<16x1xf32>
    %1371 = arith.addf %1367, %1370 : vector<16x1xf32>
    %1372 = math.rsqrt %1371 : vector<16x1xf32>
    %1373 = vector.broadcast %1372 : vector<16x1xf32> to vector<16x32xf32>
    %1374 = arith.mulf %1369, %1373 : vector<16x32xf32>
    %1375 = vector.broadcast %1341 : vector<1x32xf32> to vector<16x32xf32>
    %1376 = arith.mulf %1374, %1375 : vector<16x32xf32>
    %1377 = vector.broadcast %1343 : vector<1x32xf32> to vector<16x32xf32>
    %1378 = arith.addf %1376, %1377 : vector<16x32xf32>
    %c1_643 = arith.constant 1 : index
    %c0_644 = arith.constant 0 : index
    %c0_645 = arith.constant 0 : index
    %1379 = vector.load %arg14[%c1_643, %c0_644, %c0_645] : memref<2x32x64xf32, #tpu.memory_space<vmem>>, vector<1x32x64xf32>
    %1380 = vector.shape_cast %1379 : vector<1x32x64xf32> to vector<32x64xf32>
    %cst_646 = arith.constant dense<0.000000e+00> : vector<16x64xf32>
    %1381 = tpu.matmul %1378, %1380, %cst_646 {dimension_numbers = #tpu.dot_dimension_numbers<[1], [0], [0], [1], [0, 0, 1, 1], [], []>} : vector<16x32xf32>, vector<32x64xf32>, vector<16x64xf32> -> vector<16x64xf32>
    %c1_647 = arith.constant 1 : index
    %c0_648 = arith.constant 0 : index
    %c0_649 = arith.constant 0 : index
    %1382 = vector.load %arg15[%c1_647, %c0_648, %c0_649] : memref<2x1x64xf32, #tpu.memory_space<vmem>>, vector<1x1x64xf32>
    %1383 = vector.shape_cast %1382 : vector<1x1x64xf32> to vector<1x64xf32>
    %1384 = vector.broadcast %1383 : vector<1x64xf32> to vector<16x64xf32>
    %1385 = arith.addf %1381, %1384 : vector<16x64xf32>
    %cst_650 = arith.constant 0.000000e+00 : f32
    %1386 = vector.broadcast %cst_650 : f32 to vector<16x64xf32>
    %1387 = arith.maximumf %1385, %1386 : vector<16x64xf32>
    %c1_651 = arith.constant 1 : index
    %c0_652 = arith.constant 0 : index
    %c0_653 = arith.constant 0 : index
    %1388 = vector.load %arg16[%c1_651, %c0_652, %c0_653] : memref<2x64x32xf32, #tpu.memory_space<vmem>>, vector<1x64x32xf32>
    %1389 = vector.shape_cast %1388 : vector<1x64x32xf32> to vector<64x32xf32>
    %cst_654 = arith.constant dense<0.000000e+00> : vector<16x32xf32>
    %1390 = tpu.matmul %1387, %1389, %cst_654 {dimension_numbers = #tpu.dot_dimension_numbers<[1], [0], [0], [1], [0, 0, 1, 1], [], []>} : vector<16x64xf32>, vector<64x32xf32>, vector<16x32xf32> -> vector<16x32xf32>
    %c1_655 = arith.constant 1 : index
    %c0_656 = arith.constant 0 : index
    %c0_657 = arith.constant 0 : index
    %1391 = vector.load %arg17[%c1_655, %c0_656, %c0_657] : memref<2x1x32xf32, #tpu.memory_space<vmem>>, vector<1x1x32xf32>
    %1392 = vector.shape_cast %1391 : vector<1x1x32xf32> to vector<1x32xf32>
    %1393 = vector.broadcast %1392 : vector<1x32xf32> to vector<16x32xf32>
    %1394 = arith.addf %1390, %1393 : vector<16x32xf32>
    %1395 = arith.addf %1394, %1378 : vector<16x32xf32>
    %cst_658 = arith.constant dense<0.000000e+00> : vector<16xf32>
    %1396 = vector.multi_reduction <add>, %1395, %cst_658 [1] : vector<16x32xf32> to vector<16xf32>
    %1397 = vector.shape_cast %1396 : vector<16xf32> to vector<16x1xf32>
    %cst_659 = arith.constant 3.200000e+01 : f32
    %1398 = vector.broadcast %cst_659 : f32 to vector<16x1xf32>
    %1399 = arith.divf %1397, %1398 : vector<16x1xf32>
    %1400 = vector.broadcast %1399 : vector<16x1xf32> to vector<16x32xf32>
    %1401 = arith.subf %1395, %1400 : vector<16x32xf32>
    %1402 = arith.mulf %1401, %1401 : vector<16x32xf32>
    %cst_660 = arith.constant dense<0.000000e+00> : vector<16xf32>
    %1403 = vector.multi_reduction <add>, %1402, %cst_660 [1] : vector<16x32xf32> to vector<16xf32>
    %1404 = vector.shape_cast %1403 : vector<16xf32> to vector<16x1xf32>
    %cst_661 = arith.constant 3.200000e+01 : f32
    %1405 = vector.broadcast %cst_661 : f32 to vector<16x1xf32>
    %1406 = arith.divf %1404, %1405 : vector<16x1xf32>
    %1407 = vector.broadcast %1399 : vector<16x1xf32> to vector<16x32xf32>
    %1408 = arith.subf %1395, %1407 : vector<16x32xf32>
    %cst_662 = arith.constant 9.99999997E-7 : f32
    %1409 = vector.broadcast %cst_662 : f32 to vector<16x1xf32>
    %1410 = arith.addf %1406, %1409 : vector<16x1xf32>
    %1411 = math.rsqrt %1410 : vector<16x1xf32>
    %1412 = vector.broadcast %1411 : vector<16x1xf32> to vector<16x32xf32>
    %1413 = arith.mulf %1408, %1412 : vector<16x32xf32>
    %1414 = vector.broadcast %1341 : vector<1x32xf32> to vector<16x32xf32>
    %1415 = arith.mulf %1413, %1414 : vector<16x32xf32>
    %1416 = vector.broadcast %1343 : vector<1x32xf32> to vector<16x32xf32>
    %1417 = arith.addf %1415, %1416 : vector<16x32xf32>
    %1418 = tpu.concatenate %1337, %1417 in 1 : vector<16x32xf32>, vector<16x32xf32> -> vector<16x64xf32>
    %c0_663 = arith.constant 0 : index
    %c0_664 = arith.constant 0 : index
    %1419 = vector.load %arg20[%c0_663, %c0_664] : memref<16x64xf32, #tpu.memory_space<vmem>>, vector<16x64xf32>
    tpu.vector_store %arg20[%c0_663, %c0_664], %1418 {strides = array<i32>} : memref<16x64xf32, #tpu.memory_space<vmem>>, vector<16x64xf32>,
    return
  }
}

</mosaic_0001>

<llo_original>
// kernel: global_branch.1
$region0: #{global_branch.1}
  #allocation0 [shape = 'u32[]', space=smem, size = 0x4, offset = 0x4, fixed_abs, tag = 'smem constant byte address 0x4 - core index']
  #allocation1 [shape = 'u32[72,128]{1,0:T(1,128)}', space=vmem, size = 0x9000, scoped, tag = 'internal scratch']
  %s0 = inlined_call_operand.vmem [shape: f32[16,32], index: 0, kind: input, shape index: {}]
  %s1 = inlined_call_operand.vmem [shape: f32[16,32], index: 1, kind: input, shape index: {}]
  %s2 = inlined_call_operand.vmem [shape: f32[6,32,32], index: 2, kind: input, shape index: {}]
  %s3 = inlined_call_operand.vmem [shape: f32[6,1,32], index: 3, kind: input, shape index: {}]
  %s4 = inlined_call_operand.hbm [shape: f32[6,32,32], index: 4, kind: input, shape index: {}]
  %s5 = inlined_call_operand.vmem [shape: f32[6,1,32], index: 5, kind: input, shape index: {}]
  %s6 = inlined_call_operand.vmem [shape: f32[6,1,16], index: 6, kind: input, shape index: {}]
  %s7 = inlined_call_operand.vmem [shape: f32[6,1,16], index: 7, kind: input, shape index: {}]
  %s8 = inlined_call_operand.hbm [shape: f32[6,32,32], index: 8, kind: input, shape index: {}]
  %s9 = inlined_call_operand.vmem [shape: f32[6,1,32], index: 9, kind: input, shape index: {}]
  %s10 = inlined_call_operand.vmem [shape: f32[2,1,32], index: 10, kind: input, shape index: {}]
  %s11 = inlined_call_operand.vmem [shape: f32[2,1,32], index: 11, kind: input, shape index: {}]
  %s12 = inlined_call_operand.vmem [shape: f32[2,64,32], index: 12, kind: input, shape index: {}]
  %s13 = inlined_call_operand.vmem [shape: f32[2,1,32], index: 13, kind: input, shape index: {}]
  %s14 = inlined_call_operand.vmem [shape: f32[2,32,64], index: 14, kind: input, shape index: {}]
  %s15 = inlined_call_operand.vmem [shape: f32[2,1,64], index: 15, kind: input, shape index: {}]
  %s16 = inlined_call_operand.vmem [shape: f32[2,64,32], index: 16, kind: input, shape index: {}]
  %s17 = inlined_call_operand.vmem [shape: f32[2,1,32], index: 17, kind: input, shape index: {}]
  %s18 = inlined_call_operand.hbm [shape: f32[2,1,32], index: 18, kind: input, shape index: {}]
  %s19 = inlined_call_operand.hbm [shape: f32[2,1,32], index: 19, kind: input, shape index: {}]
  %s20 = inlined_call_operand.vmem [shape: f32[16,64], index: 20, kind: output, shape index: {}]
  %s21 = sld [smem:[#allocation0]]
  $region106: #{global_branch.1} parent=0
    _
  %s23 = ssub.s32 1, %s21
  %s24 = scalar_select 0, %s23, %s21
  $region1: #{global_branch.1} parent=0
    #allocation2 [shape = 'u8[98304]{0}', space=vmem, size = 0x18000, scoped, tag = 'input window, operand 4, single buffered']
    #allocation3 [shape = 's32[1]{0}', space=sflag, size = 0x4, scoped, tag = 'scoped memory for global_branch.1']
    #allocation4 [shape = 'u8[98304]{0}', space=vmem, size = 0x18000, scoped, tag = 'input window, operand 8, single buffered']
    #allocation5 [shape = 's32[1]{0}', space=sflag, size = 0x4, scoped, tag = 'scoped memory for global_branch.1']
    #allocation6 [shape = 'u8[1024]{0}', space=vmem, size = 0x400, scoped, tag = 'input window, operand 18, single buffered']
    #allocation7 [shape = 'u8[1024]{0}', space=vmem, size = 0x400, scoped, tag = 'input window, operand 19, single buffered']
    #allocation8 [shape = 's32[1]{0}', space=sflag, size = 0x4, scoped, tag = 'scoped memory for global_branch.1']
    %25 = vsyncpa [#allocation3], 0
    %26 = vsyncpa [#allocation5], 0
    %27 = vsyncpa [#allocation8], 0
    // Predicated region
    $region2: #{global_branch.1} parent=1 // pred_check
      _
    $region3: #{global_branch.1} parent=1 // pred_check_branch
      %29 = sbr.rel (0) target = $region5
    $region4: #{global_branch.1} parent=1 // pred_region
      _
    $region5: #{global_branch.1} parent=1 // pred_fallthru
      _
    // Predicated region
    $region6: #{global_branch.1} parent=1 // pred_check
      _
    $region7: #{global_branch.1} parent=1 // pred_check_branch
      %31 = sbr.rel (0) target = $region9
    $region8: #{global_branch.1} parent=1 // pred_region
      _
    $region9: #{global_branch.1} parent=1 // pred_fallthru
      _
    // Predicated region
    $region10: #{global_branch.1} parent=1 // pred_check
      _
    $region11: #{global_branch.1} parent=1 // pred_check_branch
      %33 = sbr.rel (0) target = $region13
    $region12: #{global_branch.1} parent=1 // pred_region
      _
    $region13: #{global_branch.1} parent=1 // pred_fallthru
      _
    // Predicated region
    $region14: #{global_branch.1} parent=1 // pred_check
      _
    $region15: #{global_branch.1} parent=1 // pred_check_branch
      %35 = sbr.rel (0) target = $region17
    $region16: #{global_branch.1} parent=1 // pred_region
      _
    $region17: #{global_branch.1} parent=1 // pred_fallthru
      _
    // Predicated region
    $region18: #{global_branch.1} parent=1 // pred_check
      _
    $region19: #{global_branch.1} parent=1 // pred_check_branch
      %37 = sbr.rel (0) target = $region21
    $region20: #{global_branch.1} parent=1 // pred_region
      %39 = vsyncadd [#allocation3], 0
      %s40 = sshll.u32 %s4, 4
      %s41 = int_to_ptr.hbm [resolvable:$true] %s40
      %s42 = sshll.u32 [#allocation2], 4
      %s43 = int_to_ptr.vmem [resolvable:$true] %s42
      %48 = dma.hbm_to_vmem [thread:$0]  %s41, 3072, %s43, [#allocation3], 128, 128, 8
    $region21: #{global_branch.1} parent=1 // pred_fallthru
      _
    // Predicated region
    $region22: #{global_branch.1} parent=1 // pred_check
      _
    $region23: #{global_branch.1} parent=1 // pred_check_branch
      %50 = sbr.rel (0) target = $region25
    $region24: #{global_branch.1} parent=1 // pred_region
      _
    $region25: #{global_branch.1} parent=1 // pred_fallthru
      _
    // Predicated region
    $region26: #{global_branch.1} parent=1 // pred_check
      _
    $region27: #{global_branch.1} parent=1 // pred_check_branch
      %52 = sbr.rel (0) target = $region29
    $region28: #{global_branch.1} parent=1 // pred_region
      _
    $region29: #{global_branch.1} parent=1 // pred_fallthru
      _
    // Predicated region
    $region30: #{global_branch.1} parent=1 // pred_check
      _
    $region31: #{global_branch.1} parent=1 // pred_check_branch
      %54 = sbr.rel (0) target = $region33
    $region32: #{global_branch.1} parent=1 // pred_region
      _
    $region33: #{global_branch.1} parent=1 // pred_fallthru
      _
    // Predicated region
    $region34: #{global_branch.1} parent=1 // pred_check
      _
    $region35: #{global_branch.1} parent=1 // pred_check_branch
      %56 = sbr.rel (0) target = $region37
    $region36: #{global_branch.1} parent=1 // pred_region
      %58 = vsyncadd [#allocation5], 0
      %s59 = sshll.u32 %s8, 4
      %s60 = int_to_ptr.hbm [resolvable:$true] %s59
      %s61 = sshll.u32 [#allocation4], 4
      %s62 = int_to_ptr.vmem [resolvable:$true] %s61
      %67 = dma.hbm_to_vmem [thread:$0]  %s60, 3072, %s62, [#allocation5], 128, 128, 8
    $region37: #{global_branch.1} parent=1 // pred_fallthru
      _
    // Predicated region
    $region38: #{global_branch.1} parent=1 // pred_check
      _
    $region39: #{global_branch.1} parent=1 // pred_check_branch
      %69 = sbr.rel (0) target = $region41
    $region40: #{global_branch.1} parent=1 // pred_region
      _
    $region41: #{global_branch.1} parent=1 // pred_fallthru
      _
    // Predicated region
    $region42: #{global_branch.1} parent=1 // pred_check
      _
    $region43: #{global_branch.1} parent=1 // pred_check_branch
      %71 = sbr.rel (0) target = $region45
    $region44: #{global_branch.1} parent=1 // pred_region
      _
    $region45: #{global_branch.1} parent=1 // pred_fallthru
      _
    // Predicated region
    $region46: #{global_branch.1} parent=1 // pred_check
      _
    $region47: #{global_branch.1} parent=1 // pred_check_branch
      %73 = sbr.rel (0) target = $region49
    $region48: #{global_branch.1} parent=1 // pred_region
      _
    $region49: #{global_branch.1} parent=1 // pred_fallthru
      _
    // Predicated region
    $region50: #{global_branch.1} parent=1 // pred_check
      _
    $region51: #{global_branch.1} parent=1 // pred_check_branch
      %75 = sbr.rel (0) target = $region53
    $region52: #{global_branch.1} parent=1 // pred_region
      _
    $region53: #{global_branch.1} parent=1 // pred_fallthru
      _
    // Predicated region
    $region54: #{global_branch.1} parent=1 // pred_check
      _
    $region55: #{global_branch.1} parent=1 // pred_check_branch
      %77 = sbr.rel (0) target = $region57
    $region56: #{global_branch.1} parent=1 // pred_region
      _
    $region57: #{global_branch.1} parent=1 // pred_fallthru
      _
    // Predicated region
    $region58: #{global_branch.1} parent=1 // pred_check
      _
    $region59: #{global_branch.1} parent=1 // pred_check_branch
      %79 = sbr.rel (0) target = $region61
    $region60: #{global_branch.1} parent=1 // pred_region
      _
    $region61: #{global_branch.1} parent=1 // pred_fallthru
      _
    // Predicated region
    $region62: #{global_branch.1} parent=1 // pred_check
      _
    $region63: #{global_branch.1} parent=1 // pred_check_branch
      %81 = sbr.rel (0) target = $region65
    $region64: #{global_branch.1} parent=1 // pred_region
      _
    $region65: #{global_branch.1} parent=1 // pred_fallthru
      _
    // Predicated region
    $region66: #{global_branch.1} parent=1 // pred_check
      _
    $region67: #{global_branch.1} parent=1 // pred_check_branch
      %83 = sbr.rel (0) target = $region69
    $region68: #{global_branch.1} parent=1 // pred_region
      _
    $region69: #{global_branch.1} parent=1 // pred_fallthru
      _
    // Predicated region
    $region70: #{global_branch.1} parent=1 // pred_check
      _
    $region71: #{global_branch.1} parent=1 // pred_check_branch
      %85 = sbr.rel (0) target = $region73
    $region72: #{global_branch.1} parent=1 // pred_region
      _
    $region73: #{global_branch.1} parent=1 // pred_fallthru
      _
    // Predicated region
    $region74: #{global_branch.1} parent=1 // pred_check
      _
    $region75: #{global_branch.1} parent=1 // pred_check_branch
      %87 = sbr.rel (0) target = $region77
    $region76: #{global_branch.1} parent=1 // pred_region
      %89 = vsyncadd [#allocation5], 0
      %s90 = sshll.u32 %s18, 4
      %s91 = int_to_ptr.hbm [resolvable:$true] %s90
      %s92 = sshll.u32 [#allocation6], 4
      %s93 = int_to_ptr.vmem [resolvable:$true] %s92
      %98 = dma.hbm_to_vmem [thread:$0]  %s91, 32, %s93, [#allocation5], 16, 16, 1
    $region77: #{global_branch.1} parent=1 // pred_fallthru
      _
    // Predicated region
    $region78: #{global_branch.1} parent=1 // pred_check
      _
    $region79: #{global_branch.1} parent=1 // pred_check_branch
      %100 = sbr.rel (0) target = $region81
    $region80: #{global_branch.1} parent=1 // pred_region
      %102 = vsyncadd [#allocation8], 0
      %s103 = sshll.u32 %s19, 4
      %s104 = int_to_ptr.hbm [resolvable:$true] %s103
      %s105 = sshll.u32 [#allocation7], 4
      %s106 = int_to_ptr.vmem [resolvable:$true] %s105
      %111 = dma.hbm_to_vmem [thread:$0]  %s104, 32, %s106, [#allocation8], 16, 16, 1
    $region81: #{global_branch.1} parent=1 // pred_fallthru
      _
    // Predicated region
    $region82: #{global_branch.1} parent=1 // pred_check
      _
    $region83: #{global_branch.1} parent=1 // pred_check_branch
      %113 = sbr.rel (0) target = $region85
    $region84: #{global_branch.1} parent=1 // pred_region
      %115 = dma.done [#allocation3], 3072
    $region85: #{global_branch.1} parent=1 // pred_fallthru
      _
    // Predicated region
    $region86: #{global_branch.1} parent=1 // pred_check
      _
    $region87: #{global_branch.1} parent=1 // pred_check_branch
      %117 = sbr.rel (0) target = $region89
    $region88: #{global_branch.1} parent=1 // pred_region
      %119 = dma.done [#allocation5], 3072
    $region89: #{global_branch.1} parent=1 // pred_fallthru
      _
    // Predicated region
    $region90: #{global_branch.1} parent=1 // pred_check
      _
    $region91: #{global_branch.1} parent=1 // pred_check_branch
      %121 = sbr.rel (0) target = $region93
    $region92: #{global_branch.1} parent=1 // pred_region
      %123 = dma.done [#allocation5], 32
    $region93: #{global_branch.1} parent=1 // pred_fallthru
      _
    // Predicated region
    $region94: #{global_branch.1} parent=1 // pred_check
      _
    $region95: #{global_branch.1} parent=1 // pred_check_branch
      %125 = sbr.rel (0) target = $region97
    $region96: #{global_branch.1} parent=1 // pred_region
      %127 = dma.done [#allocation8], 32
    $region97: #{global_branch.1} parent=1 // pred_fallthru
      _
    %v128 = vld [vmem:[%s0] sm:$0xff]
    %v129 = vld [vmem:[%s0 + $0x8] sm:$0xff]
    %v130 = vld [vmem:[%s1] sm:$0xff]
    %v131 = vld [vmem:[%s1 + $0x8] sm:$0xff]
    %v132 = vld [vmem:[%s2] sm:$0xff]
    %v133 = vld [vmem:[%s2 + $0x8] sm:$0xff]
    %v134 = vld [vmem:[%s2 + $0x10] sm:$0xff]
    %v135 = vld [vmem:[%s2 + $0x18] sm:$0xff]
    %v136 = vld [vmem:[#allocation2] sm:$0xff]
    %v137 = vld [vmem:[#allocation2 + $0x8] sm:$0xff]
    %v138 = vld [vmem:[#allocation2 + $0x10] sm:$0xff]
    %v139 = vld [vmem:[#allocation2 + $0x18] sm:$0xff]
    %v140 = vld [vmem:[%s6] sm:$0x1]
    %v141 = vld [vmem:[%s7] sm:$0x1]
    %v142 = vld [vmem:[#allocation4] sm:$0xff]
    %v143 = vld [vmem:[#allocation4 + $0x8] sm:$0xff]
    %v144 = vld [vmem:[#allocation4 + $0x10] sm:$0xff]
    %v145 = vld [vmem:[#allocation4 + $0x18] sm:$0xff]
    %v146 = vld [vmem:[%s3] sm:$0x1]
    %v148 = vperm.slane %v146, 0
    %vm150 = vcmask 261120
    %v152 = vsel %vm150, %v128, 0
    %v155 = vsel %vm150, %v129, 0
    %157 = vmatpush.msra.mxu0 0.0
    %158 = vmatpush.msra.mxu0 0.0
    %159 = vmatpush.msra.mxu0 0.0
    %160 = vmatpush.msra.mxu0 0.0
    %161 = vmatpush.msra.mxu0 0.0
    %162 = vmatpush.msra.mxu0 0.0
    %163 = vmatpush.msra.mxu0 0.0
    %164 = vmatpush.msra.mxu0 0.0
    %165 = vmatpush.msra.mxu0 0.0
    %166 = vmatpush.msra.mxu0 0.0
    %167 = vmatpush.msra.mxu0 0.0
    %168 = vmatpush.msra.mxu0 0.0
    %169 = vmatpush.msra.mxu0 %v135
    %170 = vmatpush.msra.mxu0 %v134
    %171 = vmatpush.msra.mxu0 %v133
    %172 = vmatpush.msra.mxu0 %v132
    %173 = vmatmul.f32.gmra.mxu0 %v152
    %v174 = vpop.f32.mrf.mxu0
    %v175 = vadd.f32 %v148, %v174
    %176 = vmatmul.f32.gmra.mxu0 %v155
    %v177 = vpop.f32.mrf.mxu0
    %v178 = vadd.f32 %v148, %v177
    %179 = vdwg.mxu0
    %v180 = vld [vmem:[%s5] sm:$0x1]
    %v182 = vperm.slane %v180, 0
    %184 = vmatpush.msra.mxu0 0.0
    %185 = vmatpush.msra.mxu0 0.0
    %186 = vmatpush.msra.mxu0 0.0
    %187 = vmatpush.msra.mxu0 0.0
    %188 = vmatpush.msra.mxu0 0.0
    %189 = vmatpush.msra.mxu0 0.0
    %190 = vmatpush.msra.mxu0 0.0
    %191 = vmatpush.msra.mxu0 0.0
    %192 = vmatpush.msra.mxu0 0.0
    %193 = vmatpush.msra.mxu0 0.0
    %194 = vmatpush.msra.mxu0 0.0
    %195 = vmatpush.msra.mxu0 0.0
    %196 = vmatpush.msra.mxu0 %v139
    %197 = vmatpush.msra.mxu0 %v138
    %198 = vmatpush.msra.mxu0 %v137
    %199 = vmatpush.msra.mxu0 %v136
    %200 = vmatmul.f32.gmra.mxu0 %v152
    %v201 = vpop.f32.mrf.mxu0
    %v202 = vadd.f32 %v182, %v201
    %203 = vmatmul.f32.gmra.mxu0 %v155
    %v204 = vpop.f32.mrf.mxu0
    %v205 = vadd.f32 %v182, %v204
    %206 = vdwg.mxu0
    %v208 = vperm.slane %v141, 0
    %v210 = vmul.f32 %v202, %v208
    %vm211 = vcmask 130048
    %v212 = vsel %vm211, %v210, 0.0
    %213 = vadd.xlane.f32.xlu0 %v212
    %v214 = vpop.xlane.xlu0 %213
    %v216 = vsel %vm211, %v140, 0
    %v219 = vsel %vm211, %v175, 0
    %221 = vmatpush.xpose.msra.mxu0 0.0
    %222 = vmatpush.xpose.msra.mxu0 0.0
    %223 = vmatpush.xpose.msra.mxu0 0.0
    %224 = vmatpush.xpose.msra.mxu0 0.0
    %225 = vmatpush.xpose.msra.mxu0 0.0
    %226 = vmatpush.xpose.msra.mxu0 0.0
    %227 = vmatpush.xpose.msra.mxu0 0.0
    %228 = vmatpush.xpose.msra.mxu0 0.0
    %229 = vmatpush.xpose.msra.mxu0 0.0
    %230 = vmatpush.xpose.msra.mxu0 0.0
    %231 = vmatpush.xpose.msra.mxu0 0.0
    %232 = vmatpush.xpose.msra.mxu0 0.0
    %233 = vmatpush.xpose.msra.mxu0 0.0
    %234 = vmatpush.xpose.msra.mxu0 0.0
    %235 = vmatpush.xpose.msra.mxu0 0.0
    %236 = vmatpush.xpose.msra.mxu0 %v219
    %237 = vmatmul.f32.gmra.mxu0 %v216
    %v238 = vpop.f32.mrf.mxu0
    %v239 = vadd.f32 0.0, %v238
    %240 = vdwg.mxu0
    %v241 = vperm.slane %v239, 0
    %v242 = vadd.f32 %v214, %v241
    %v243 = vtanh.pop %v242
    %v244 = vmul.f32 %v243, 1.442695
    %v245 = vpow.pop %v244
    %vm246 = vcmask 64512
    %v247 = vsel %vm246, %v245, 0.0
    %248 = vadd.xlane.f32.xlu0 %v247
    %v249 = vpop.xlane.xlu0 %248
    %v250 = vrcp.pop %v249
    %v251 = vmul.f32 %v245, %v250
    %v253 = vsel %vm246, %v251, 0
    %255 = vmatpush.msra.mxu0 0.0
    %256 = vmatpush.msra.mxu0 0.0
    %257 = vmatpush.msra.mxu0 0.0
    %258 = vmatpush.msra.mxu0 0.0
    %259 = vmatpush.msra.mxu0 0.0
    %260 = vmatpush.msra.mxu0 0.0
    %261 = vmatpush.msra.mxu0 0.0
    %262 = vmatpush.msra.mxu0 0.0
    %263 = vmatpush.msra.mxu0 0.0
    %264 = vmatpush.msra.mxu0 0.0
    %265 = vmatpush.msra.mxu0 0.0
    %266 = vmatpush.msra.mxu0 0.0
    %267 = vmatpush.msra.mxu0 0.0
    %268 = vmatpush.msra.mxu0 0.0
    %269 = vmatpush.msra.mxu0 0.0
    %270 = vmatpush.msra.mxu0 %v175
    %271 = vmatmul.f32.gmra.mxu0 %v253
    %v272 = vpop.f32.mrf.mxu0
    %v273 = vadd.f32 0.0, %v272
    %274 = vdwg.mxu0
    %275 = vrot.lane.b32.xlu0 %v208, 16
    %v276 = vpop.permute.xlu0 %275
    %v278 = vmul.f32 %v202, %v276
    %280 = vrot.lane.b32.xlu0 %v278, 112
    %v281 = vpop.permute.xlu0 %280
    %v283 = vsel %vm211, %v281, 0.0
    %284 = vadd.xlane.f32.xlu0 %v283
    %v285 = vpop.xlane.xlu0 %284
    %286 = vrot.lane.b32.xlu0 %v175, 112
    %v287 = vpop.permute.xlu0 %286
    %v288 = vsel %vm211, %v287, 0
    %290 = vmatpush.xpose.msra.mxu0 0.0
    %291 = vmatpush.xpose.msra.mxu0 0.0
    %292 = vmatpush.xpose.msra.mxu0 0.0
    %293 = vmatpush.xpose.msra.mxu0 0.0
    %294 = vmatpush.xpose.msra.mxu0 0.0
    %295 = vmatpush.xpose.msra.mxu0 0.0
    %296 = vmatpush.xpose.msra.mxu0 0.0
    %297 = vmatpush.xpose.msra.mxu0 0.0
    %298 = vmatpush.xpose.msra.mxu0 0.0
    %299 = vmatpush.xpose.msra.mxu0 0.0
    %300 = vmatpush.xpose.msra.mxu0 0.0
    %301 = vmatpush.xpose.msra.mxu0 0.0
    %302 = vmatpush.xpose.msra.mxu0 0.0
    %303 = vmatpush.xpose.msra.mxu0 0.0
    %304 = vmatpush.xpose.msra.mxu0 0.0
    %305 = vmatpush.xpose.msra.mxu0 %v288
    %306 = vmatmul.f32.gmra.mxu0 %v216
    %v307 = vpop.f32.mrf.mxu0
    %v308 = vadd.f32 0.0, %v307
    %309 = vdwg.mxu0
    %v310 = vperm.slane %v308, 0
    %v311 = vadd.f32 %v285, %v310
    %v312 = vtanh.pop %v311
    %v313 = vmul.f32 %v312, 1.442695
    %v314 = vpow.pop %v313
    %v315 = vsel %vm246, %v314, 0.0
    %316 = vadd.xlane.f32.xlu0 %v315
    %v317 = vpop.xlane.xlu0 %316
    %v318 = vrcp.pop %v317
    %v319 = vmul.f32 %v314, %v318
    %v322 = vsel %vm246, %v319, 0
    %324 = vmatpush.msra.mxu0 0.0
    %325 = vmatpush.msra.mxu0 0.0
    %326 = vmatpush.msra.mxu0 0.0
    %327 = vmatpush.msra.mxu0 0.0
    %328 = vmatpush.msra.mxu0 0.0
    %329 = vmatpush.msra.mxu0 0.0
    %330 = vmatpush.msra.mxu0 0.0
    %331 = vmatpush.msra.mxu0 0.0
    %332 = vmatpush.msra.mxu0 0.0
    %333 = vmatpush.msra.mxu0 0.0
    %334 = vmatpush.msra.mxu0 0.0
    %335 = vmatpush.msra.mxu0 0.0
    %336 = vmatpush.msra.mxu0 0.0
    %337 = vmatpush.msra.mxu0 0.0
    %338 = vmatpush.msra.mxu0 0.0
    %339 = vmatpush.msra.mxu0 %v287
    %340 = vmatmul.f32.gmra.mxu0 %v322
    %v341 = vpop.f32.mrf.mxu0
    %v342 = vadd.f32 0.0, %v341
    %343 = vdwg.mxu0
    %v345 = vsel %vm211, %v342, 0
    %347 = vmatpush.msra.mxu0 0.0
    %348 = vmatpush.msra.mxu0 0.0
    %349 = vmatpush.msra.mxu0 0.0
    %350 = vmatpush.msra.mxu0 0.0
    %351 = vmatpush.msra.mxu0 0.0
    %352 = vmatpush.msra.mxu0 0.0
    %353 = vmatpush.msra.mxu0 0.0
    %354 = vmatpush.msra.mxu0 0.0
    %355 = vmatpush.msra.mxu0 0.0
    %356 = vmatpush.msra.mxu0 0.0
    %357 = vmatpush.msra.mxu0 0.0
    %358 = vmatpush.msra.mxu0 0.0
    %359 = vmatpush.msra.mxu0 0.0
    %360 = vmatpush.msra.mxu0 0.0
    %361 = vmatpush.msra.mxu0 %v145
    %362 = vmatpush.msra.mxu0 %v144
    %363 = vmatmul.f32.gmra.mxu0 %v345
    %v364 = vpop.f32.mrf.mxu0
    %v365 = vadd.f32 0.0, %v364
    %366 = vdwg.mxu0
    %v368 = vsel %vm211, %v273, 0
    %370 = vmatpush.msra.mxu0 0.0
    %371 = vmatpush.msra.mxu0 0.0
    %372 = vmatpush.msra.mxu0 0.0
    %373 = vmatpush.msra.mxu0 0.0
    %374 = vmatpush.msra.mxu0 0.0
    %375 = vmatpush.msra.mxu0 0.0
    %376 = vmatpush.msra.mxu0 0.0
    %377 = vmatpush.msra.mxu0 0.0
    %378 = vmatpush.msra.mxu0 0.0
    %379 = vmatpush.msra.mxu0 0.0
    %380 = vmatpush.msra.mxu0 0.0
    %381 = vmatpush.msra.mxu0 0.0
    %382 = vmatpush.msra.mxu0 0.0
    %383 = vmatpush.msra.mxu0 0.0
    %384 = vmatpush.msra.mxu0 %v143
    %385 = vmatpush.msra.mxu0 %v142
    %386 = vmatmul.f32.gmra.mxu0 %v368
    %v387 = vpop.f32.mrf.mxu0
    %v388 = vadd.f32 %v365, %v387
    %389 = vdwg.mxu0
    %v390 = vmul.f32 %v205, %v208
    %v391 = vsel %vm211, %v390, 0.0
    %392 = vadd.xlane.f32.xlu0 %v391
    %v393 = vpop.xlane.xlu0 %392
    %v395 = vsel %vm211, %v178, 0
    %397 = vmatpush.xpose.msra.mxu0 0.0
    %398 = vmatpush.xpose.msra.mxu0 0.0
    %399 = vmatpush.xpose.msra.mxu0 0.0
    %400 = vmatpush.xpose.msra.mxu0 0.0
    %401 = vmatpush.xpose.msra.mxu0 0.0
    %402 = vmatpush.xpose.msra.mxu0 0.0
    %403 = vmatpush.xpose.msra.mxu0 0.0
    %404 = vmatpush.xpose.msra.mxu0 0.0
    %405 = vmatpush.xpose.msra.mxu0 0.0
    %406 = vmatpush.xpose.msra.mxu0 0.0
    %407 = vmatpush.xpose.msra.mxu0 0.0
    %408 = vmatpush.xpose.msra.mxu0 0.0
    %409 = vmatpush.xpose.msra.mxu0 0.0
    %410 = vmatpush.xpose.msra.mxu0 0.0
    %411 = vmatpush.xpose.msra.mxu0 0.0
    %412 = vmatpush.xpose.msra.mxu0 %v395
    %413 = vmatmul.f32.gmra.mxu0 %v216
    %v414 = vpop.f32.mrf.mxu0
    %v415 = vadd.f32 0.0, %v414
    %416 = vdwg.mxu0
    %v417 = vperm.slane %v415, 0
    %v418 = vadd.f32 %v393, %v417
    %v419 = vtanh.pop %v418
    %v420 = vmul.f32 %v419, 1.442695
    %v421 = vpow.pop %v420
    %v422 = vsel %vm246, %v421, 0.0
    %423 = vadd.xlane.f32.xlu0 %v422
    %v424 = vpop.xlane.xlu0 %423
    %v425 = vrcp.pop %v424
    %v426 = vmul.f32 %v421, %v425
    %v428 = vsel %vm246, %v426, 0
    %430 = vmatpush.msra.mxu0 0.0
    %431 = vmatpush.msra.mxu0 0.0
    %432 = vmatpush.msra.mxu0 0.0
    %433 = vmatpush.msra.mxu0 0.0
    %434 = vmatpush.msra.mxu0 0.0
    %435 = vmatpush.msra.mxu0 0.0
    %436 = vmatpush.msra.mxu0 0.0
    %437 = vmatpush.msra.mxu0 0.0
    %438 = vmatpush.msra.mxu0 0.0
    %439 = vmatpush.msra.mxu0 0.0
    %440 = vmatpush.msra.mxu0 0.0
    %441 = vmatpush.msra.mxu0 0.0
    %442 = vmatpush.msra.mxu0 0.0
    %443 = vmatpush.msra.mxu0 0.0
    %444 = vmatpush.msra.mxu0 0.0
    %445 = vmatpush.msra.mxu0 %v178
    %446 = vmatmul.f32.gmra.mxu0 %v428
    %v447 = vpop.f32.mrf.mxu0
    %v448 = vadd.f32 0.0, %v447
    %449 = vdwg.mxu0
    %v450 = vmul.f32 %v205, %v276
    %452 = vrot.lane.b32.xlu0 %v450, 112
    %v453 = vpop.permute.xlu0 %452
    %v455 = vsel %vm211, %v453, 0.0
    %456 = vadd.xlane.f32.xlu0 %v455
    %v457 = vpop.xlane.xlu0 %456
    %458 = vrot.lane.b32.xlu0 %v178, 112
    %v459 = vpop.permute.xlu0 %458
    %v460 = vsel %vm211, %v459, 0
    %462 = vmatpush.xpose.msra.mxu0 0.0
    %463 = vmatpush.xpose.msra.mxu0 0.0
    %464 = vmatpush.xpose.msra.mxu0 0.0
    %465 = vmatpush.xpose.msra.mxu0 0.0
    %466 = vmatpush.xpose.msra.mxu0 0.0
    %467 = vmatpush.xpose.msra.mxu0 0.0
    %468 = vmatpush.xpose.msra.mxu0 0.0
    %469 = vmatpush.xpose.msra.mxu0 0.0
    %470 = vmatpush.xpose.msra.mxu0 0.0
    %471 = vmatpush.xpose.msra.mxu0 0.0
    %472 = vmatpush.xpose.msra.mxu0 0.0
    %473 = vmatpush.xpose.msra.mxu0 0.0
    %474 = vmatpush.xpose.msra.mxu0 0.0
    %475 = vmatpush.xpose.msra.mxu0 0.0
    %476 = vmatpush.xpose.msra.mxu0 0.0
    %477 = vmatpush.xpose.msra.mxu0 %v460
    %478 = vmatmul.f32.gmra.mxu0 %v216
    %v479 = vpop.f32.mrf.mxu0
    %v480 = vadd.f32 0.0, %v479
    %481 = vdwg.mxu0
    %v482 = vperm.slane %v480, 0
    %v483 = vadd.f32 %v457, %v482
    %v484 = vtanh.pop %v483
    %v485 = vmul.f32 %v484, 1.442695
    %v486 = vpow.pop %v485
    %v487 = vsel %vm246, %v486, 0.0
    %488 = vadd.xlane.f32.xlu0 %v487
    %v489 = vpop.xlane.xlu0 %488
    %v490 = vrcp.pop %v489
    %v491 = vmul.f32 %v486, %v490
    %v494 = vsel %vm246, %v491, 0
    %496 = vmatpush.msra.mxu0 0.0
    %497 = vmatpush.msra.mxu0 0.0
    %498 = vmatpush.msra.mxu0 0.0
    %499 = vmatpush.msra.mxu0 0.0
    %500 = vmatpush.msra.mxu0 0.0
    %501 = vmatpush.msra.mxu0 0.0
    %502 = vmatpush.msra.mxu0 0.0
    %503 = vmatpush.msra.mxu0 0.0
    %504 = vmatpush.msra.mxu0 0.0
    %505 = vmatpush.msra.mxu0 0.0
    %506 = vmatpush.msra.mxu0 0.0
    %507 = vmatpush.msra.mxu0 0.0
    %508 = vmatpush.msra.mxu0 0.0
    %509 = vmatpush.msra.mxu0 0.0
    %510 = vmatpush.msra.mxu0 0.0
    %511 = vmatpush.msra.mxu0 %v459
    %512 = vmatmul.f32.gmra.mxu0 %v494
    %v513 = vpop.f32.mrf.mxu0
    %v514 = vadd.f32 0.0, %v513
    %515 = vdwg.mxu0
    %v517 = vsel %vm211, %v514, 0
    %519 = vmatpush.msra.mxu0 0.0
    %520 = vmatpush.msra.mxu0 0.0
    %521 = vmatpush.msra.mxu0 0.0
    %522 = vmatpush.msra.mxu0 0.0
    %523 = vmatpush.msra.mxu0 0.0
    %524 = vmatpush.msra.mxu0 0.0
    %525 = vmatpush.msra.mxu0 0.0
    %526 = vmatpush.msra.mxu0 0.0
    %527 = vmatpush.msra.mxu0 0.0
    %528 = vmatpush.msra.mxu0 0.0
    %529 = vmatpush.msra.mxu0 0.0
    %530 = vmatpush.msra.mxu0 0.0
    %531 = vmatpush.msra.mxu0 0.0
    %532 = vmatpush.msra.mxu0 0.0
    %533 = vmatpush.msra.mxu0 %v145
    %534 = vmatpush.msra.mxu0 %v144
    %535 = vmatmul.f32.gmra.mxu0 %v517
    %v536 = vpop.f32.mrf.mxu0
    %v537 = vadd.f32 0.0, %v536
    %538 = vdwg.mxu0
    %v540 = vsel %vm211, %v448, 0
    %542 = vmatpush.msra.mxu0 0.0
    %543 = vmatpush.msra.mxu0 0.0
    %544 = vmatpush.msra.mxu0 0.0
    %545 = vmatpush.msra.mxu0 0.0
    %546 = vmatpush.msra.mxu0 0.0
    %547 = vmatpush.msra.mxu0 0.0
    %548 = vmatpush.msra.mxu0 0.0
    %549 = vmatpush.msra.mxu0 0.0
    %550 = vmatpush.msra.mxu0 0.0
    %551 = vmatpush.msra.mxu0 0.0
    %552 = vmatpush.msra.mxu0 0.0
    %553 = vmatpush.msra.mxu0 0.0
    %554 = vmatpush.msra.mxu0 0.0
    %555 = vmatpush.msra.mxu0 0.0
    %556 = vmatpush.msra.mxu0 %v143
    %557 = vmatpush.msra.mxu0 %v142
    %558 = vmatmul.f32.gmra.mxu0 %v540
    %v559 = vpop.f32.mrf.mxu0
    %v560 = vadd.f32 %v537, %v559
    %561 = vdwg.mxu0
    %v562 = vld [vmem:[%s9] sm:$0x1]
    %v564 = vperm.slane %v562, 0
    %v566 = vadd.f32 %v388, %v564
    %v567 = vadd.f32 %v560, %v564
    %v568 = vadd.f32 %v128, %v566
    %v569 = vadd.f32 %v129, %v567
    %v570 = vld [vmem:[%s10] sm:$0x1]
    %v571 = vld [vmem:[%s11] sm:$0x1]
    %v572 = vsel %vm150, %v568, 0.0
    %573 = vadd.xlane.f32.xlu0 %v572
    %v574 = vpop.xlane.xlu0 %573
    %v575 = vsel %vm150, %v569, 0.0
    %576 = vadd.xlane.f32.xlu0 %v575
    %v577 = vpop.xlane.xlu0 %576
    %v578 = vrcp.pop 32.0
    %v579 = vmul.f32 32.0, %v578
    %v580 = vsub.f32 1.0, %v579
    %v581 = vmul.f32 %v578, %v580
    %v582 = vadd.f32 %v578, %v581
    %vm583 = vweird.f32 %v578
    %v584 = vsel %vm583, %v578, %v582
    %v585 = vmul.f32 %v574, %v584
    %v586 = vmul.f32 %v577, %v584
    %v587 = vsub.f32 %v568, %v585
    %v588 = vsub.f32 %v569, %v586
    %v589 = vmul.f32 %v587, %v587
    %v590 = vmul.f32 %v588, %v588
    %v591 = vsel %vm150, %v589, 0.0
    %592 = vadd.xlane.f32.xlu0 %v591
    %v593 = vpop.xlane.xlu0 %592
    %v594 = vsel %vm150, %v590, 0.0
    %595 = vadd.xlane.f32.xlu0 %v594
    %v596 = vpop.xlane.xlu0 %595
    %v597 = vmul.f32 %v593, %v584
    %v598 = vmul.f32 %v596, %v584
    %v599 = vadd.f32 %v597, 1e-05
    %v600 = vadd.f32 %v598, 1e-05
    %v601 = vrsqrt.pop %v599
    %v602 = vmul.f32 %v601, %v599
    %v603 = vmul.f32 %v602, %v601
    %v604 = vmul.f32 0.5, %v603
    %v605 = vsub.f32 1.5, %v604
    %v606 = vmul.f32 %v601, %v605
    %vm607 = vweird.f32 %v599
    %vm608 = vweird.f32 %v601
    %vm609 = vmor %vm607, %vm608
    %v610 = vsel %vm609, %v601, %v606
    %v611 = vrsqrt.pop %v600
    %v612 = vmul.f32 %v611, %v600
    %v613 = vmul.f32 %v612, %v611
    %v614 = vmul.f32 0.5, %v613
    %v615 = vsub.f32 1.5, %v614
    %v616 = vmul.f32 %v611, %v615
    %vm617 = vweird.f32 %v600
    %vm618 = vweird.f32 %v611
    %vm619 = vmor %vm617, %vm618
    %v620 = vsel %vm619, %v611, %v616
    %v621 = vmul.f32 %v587, %v610
    %v622 = vmul.f32 %v588, %v620
    %v624 = vperm.slane %v570, 0
    %v626 = vmul.f32 %v621, %v624
    %v627 = vmul.f32 %v622, %v624
    %v629 = vperm.slane %v571, 0
    %v631 = vadd.f32 %v626, %v629
    %v632 = vadd.f32 %v627, %v629
    %s633 = scalar_lea.vmem %s2, 32
    %v634 = vld [vmem:[%s633] sm:$0xff]
    %v635 = vld [vmem:[%s633 + $0x8] sm:$0xff]
    %v636 = vld [vmem:[%s633 + $0x10] sm:$0xff]
    %v637 = vld [vmem:[%s633 + $0x18] sm:$0xff]
    %s638 = scalar_lea.vmem [#allocation2], 32
    %v639 = vld [vmem:[%s638] sm:$0xff]
    %v640 = vld [vmem:[%s638 + $0x8] sm:$0xff]
    %v641 = vld [vmem:[%s638 + $0x10] sm:$0xff]
    %v642 = vld [vmem:[%s638 + $0x18] sm:$0xff]
    %s643 = scalar_lea.vmem %s6, 1
    %v644 = vld [vmem:[%s643] sm:$0x1]
    %s645 = scalar_lea.vmem %s7, 1
    %v646 = vld [vmem:[%s645] sm:$0x1]
    %s647 = scalar_lea.vmem [#allocation4], 32
    %v648 = vld [vmem:[%s647] sm:$0xff]
    %v649 = vld [vmem:[%s647 + $0x8] sm:$0xff]
    %v650 = vld [vmem:[%s647 + $0x10] sm:$0xff]
    %v651 = vld [vmem:[%s647 + $0x18] sm:$0xff]
    %s652 = scalar_lea.vmem %s3, 1
    %v653 = vld [vmem:[%s652] sm:$0x1]
    %v655 = vperm.slane %v653, 0
    %v658 = vsel %vm150, %v130, 0
    %v661 = vsel %vm150, %v131, 0
    %663 = vmatpush.msra.mxu0 0.0
    %664 = vmatpush.msra.mxu0 0.0
    %665 = vmatpush.msra.mxu0 0.0
    %666 = vmatpush.msra.mxu0 0.0
    %667 = vmatpush.msra.mxu0 0.0
    %668 = vmatpush.msra.mxu0 0.0
    %669 = vmatpush.msra.mxu0 0.0
    %670 = vmatpush.msra.mxu0 0.0
    %671 = vmatpush.msra.mxu0 0.0
    %672 = vmatpush.msra.mxu0 0.0
    %673 = vmatpush.msra.mxu0 0.0
    %674 = vmatpush.msra.mxu0 0.0
    %675 = vmatpush.msra.mxu0 %v637
    %676 = vmatpush.msra.mxu0 %v636
    %677 = vmatpush.msra.mxu0 %v635
    %678 = vmatpush.msra.mxu0 %v634
    %679 = vmatmul.f32.gmra.mxu0 %v658
    %v680 = vpop.f32.mrf.mxu0
    %v681 = vadd.f32 %v655, %v680
    %682 = vmatmul.f32.gmra.mxu0 %v661
    %v683 = vpop.f32.mrf.mxu0
    %v684 = vadd.f32 %v655, %v683
    %685 = vdwg.mxu0
    %s686 = scalar_lea.vmem %s5, 1
    %v687 = vld [vmem:[%s686] sm:$0x1]
    %v689 = vperm.slane %v687, 0
    %691 = vmatpush.msra.mxu0 0.0
    %692 = vmatpush.msra.mxu0 0.0
    %693 = vmatpush.msra.mxu0 0.0
    %694 = vmatpush.msra.mxu0 0.0
    %695 = vmatpush.msra.mxu0 0.0
    %696 = vmatpush.msra.mxu0 0.0
    %697 = vmatpush.msra.mxu0 0.0
    %698 = vmatpush.msra.mxu0 0.0
    %699 = vmatpush.msra.mxu0 0.0
    %700 = vmatpush.msra.mxu0 0.0
    %701 = vmatpush.msra.mxu0 0.0
    %702 = vmatpush.msra.mxu0 0.0
    %703 = vmatpush.msra.mxu0 %v642
    %704 = vmatpush.msra.mxu0 %v641
    %705 = vmatpush.msra.mxu0 %v640
    %706 = vmatpush.msra.mxu0 %v639
    %707 = vmatmul.f32.gmra.mxu0 %v658
    %v708 = vpop.f32.mrf.mxu0
    %v709 = vadd.f32 %v689, %v708
    %710 = vmatmul.f32.gmra.mxu0 %v661
    %v711 = vpop.f32.mrf.mxu0
    %v712 = vadd.f32 %v689, %v711
    %713 = vdwg.mxu0
    %v715 = vperm.slane %v646, 0
    %v717 = vmul.f32 %v709, %v715
    %v718 = vsel %vm211, %v717, 0.0
    %719 = vadd.xlane.f32.xlu0 %v718
    %v720 = vpop.xlane.xlu0 %719
    %v722 = vsel %vm211, %v644, 0
    %v725 = vsel %vm211, %v681, 0
    %727 = vmatpush.xpose.msra.mxu0 0.0
    %728 = vmatpush.xpose.msra.mxu0 0.0
    %729 = vmatpush.xpose.msra.mxu0 0.0
    %730 = vmatpush.xpose.msra.mxu0 0.0
    %731 = vmatpush.xpose.msra.mxu0 0.0
    %732 = vmatpush.xpose.msra.mxu0 0.0
    %733 = vmatpush.xpose.msra.mxu0 0.0
    %734 = vmatpush.xpose.msra.mxu0 0.0
    %735 = vmatpush.xpose.msra.mxu0 0.0
    %736 = vmatpush.xpose.msra.mxu0 0.0
    %737 = vmatpush.xpose.msra.mxu0 0.0
    %738 = vmatpush.xpose.msra.mxu0 0.0
    %739 = vmatpush.xpose.msra.mxu0 0.0
    %740 = vmatpush.xpose.msra.mxu0 0.0
    %741 = vmatpush.xpose.msra.mxu0 0.0
    %742 = vmatpush.xpose.msra.mxu0 %v725
    %743 = vmatmul.f32.gmra.mxu0 %v722
    %v744 = vpop.f32.mrf.mxu0
    %v745 = vadd.f32 0.0, %v744
    %746 = vdwg.mxu0
    %v747 = vperm.slane %v745, 0
    %v748 = vadd.f32 %v720, %v747
    %v749 = vtanh.pop %v748
    %v750 = vmul.f32 %v749, 1.442695
    %v751 = vpow.pop %v750
    %v752 = vsel %vm246, %v751, 0.0
    %753 = vadd.xlane.f32.xlu0 %v752
    %v754 = vpop.xlane.xlu0 %753
    %v755 = vrcp.pop %v754
    %v756 = vmul.f32 %v751, %v755
    %v758 = vsel %vm246, %v756, 0
    %760 = vmatpush.msra.mxu0 0.0
    %761 = vmatpush.msra.mxu0 0.0
    %762 = vmatpush.msra.mxu0 0.0
    %763 = vmatpush.msra.mxu0 0.0
    %764 = vmatpush.msra.mxu0 0.0
    %765 = vmatpush.msra.mxu0 0.0
    %766 = vmatpush.msra.mxu0 0.0
    %767 = vmatpush.msra.mxu0 0.0
    %768 = vmatpush.msra.mxu0 0.0
    %769 = vmatpush.msra.mxu0 0.0
    %770 = vmatpush.msra.mxu0 0.0
    %771 = vmatpush.msra.mxu0 0.0
    %772 = vmatpush.msra.mxu0 0.0
    %773 = vmatpush.msra.mxu0 0.0
    %774 = vmatpush.msra.mxu0 0.0
    %775 = vmatpush.msra.mxu0 %v681
    %776 = vmatmul.f32.gmra.mxu0 %v758
    %v777 = vpop.f32.mrf.mxu0
    %v778 = vadd.f32 0.0, %v777
    %779 = vdwg.mxu0
    %780 = vrot.lane.b32.xlu0 %v715, 16
    %v781 = vpop.permute.xlu0 %780
    %v783 = vmul.f32 %v709, %v781
    %785 = vrot.lane.b32.xlu0 %v783, 112
    %v786 = vpop.permute.xlu0 %785
    %v788 = vsel %vm211, %v786, 0.0
    %789 = vadd.xlane.f32.xlu0 %v788
    %v790 = vpop.xlane.xlu0 %789
    %791 = vrot.lane.b32.xlu0 %v681, 112
    %v792 = vpop.permute.xlu0 %791
    %v793 = vsel %vm211, %v792, 0
    %795 = vmatpush.xpose.msra.mxu0 0.0
    %796 = vmatpush.xpose.msra.mxu0 0.0
    %797 = vmatpush.xpose.msra.mxu0 0.0
    %798 = vmatpush.xpose.msra.mxu0 0.0
    %799 = vmatpush.xpose.msra.mxu0 0.0
    %800 = vmatpush.xpose.msra.mxu0 0.0
    %801 = vmatpush.xpose.msra.mxu0 0.0
    %802 = vmatpush.xpose.msra.mxu0 0.0
    %803 = vmatpush.xpose.msra.mxu0 0.0
    %804 = vmatpush.xpose.msra.mxu0 0.0
    %805 = vmatpush.xpose.msra.mxu0 0.0
    %806 = vmatpush.xpose.msra.mxu0 0.0
    %807 = vmatpush.xpose.msra.mxu0 0.0
    %808 = vmatpush.xpose.msra.mxu0 0.0
    %809 = vmatpush.xpose.msra.mxu0 0.0
    %810 = vmatpush.xpose.msra.mxu0 %v793
    %811 = vmatmul.f32.gmra.mxu0 %v722
    %v812 = vpop.f32.mrf.mxu0
    %v813 = vadd.f32 0.0, %v812
    %814 = vdwg.mxu0
    %v815 = vperm.slane %v813, 0
    %v816 = vadd.f32 %v790, %v815
    %v817 = vtanh.pop %v816
    %v818 = vmul.f32 %v817, 1.442695
    %v819 = vpow.pop %v818
    %v820 = vsel %vm246, %v819, 0.0
    %821 = vadd.xlane.f32.xlu0 %v820
    %v822 = vpop.xlane.xlu0 %821
    %v823 = vrcp.pop %v822
    %v824 = vmul.f32 %v819, %v823
    %v827 = vsel %vm246, %v824, 0
    %829 = vmatpush.msra.mxu0 0.0
    %830 = vmatpush.msra.mxu0 0.0
    %831 = vmatpush.msra.mxu0 0.0
    %832 = vmatpush.msra.mxu0 0.0
    %833 = vmatpush.msra.mxu0 0.0
    %834 = vmatpush.msra.mxu0 0.0
    %835 = vmatpush.msra.mxu0 0.0
    %836 = vmatpush.msra.mxu0 0.0
    %837 = vmatpush.msra.mxu0 0.0
    %838 = vmatpush.msra.mxu0 0.0
    %839 = vmatpush.msra.mxu0 0.0
    %840 = vmatpush.msra.mxu0 0.0
    %841 = vmatpush.msra.mxu0 0.0
    %842 = vmatpush.msra.mxu0 0.0
    %843 = vmatpush.msra.mxu0 0.0
    %844 = vmatpush.msra.mxu0 %v792
    %845 = vmatmul.f32.gmra.mxu0 %v827
    %v846 = vpop.f32.mrf.mxu0
    %v847 = vadd.f32 0.0, %v846
    %848 = vdwg.mxu0
    %v850 = vsel %vm211, %v847, 0
    %852 = vmatpush.msra.mxu0 0.0
    %853 = vmatpush.msra.mxu0 0.0
    %854 = vmatpush.msra.mxu0 0.0
    %855 = vmatpush.msra.mxu0 0.0
    %856 = vmatpush.msra.mxu0 0.0
    %857 = vmatpush.msra.mxu0 0.0
    %858 = vmatpush.msra.mxu0 0.0
    %859 = vmatpush.msra.mxu0 0.0
    %860 = vmatpush.msra.mxu0 0.0
    %861 = vmatpush.msra.mxu0 0.0
    %862 = vmatpush.msra.mxu0 0.0
    %863 = vmatpush.msra.mxu0 0.0
    %864 = vmatpush.msra.mxu0 0.0
    %865 = vmatpush.msra.mxu0 0.0
    %866 = vmatpush.msra.mxu0 %v651
    %867 = vmatpush.msra.mxu0 %v650
    %868 = vmatmul.f32.gmra.mxu0 %v850
    %v869 = vpop.f32.mrf.mxu0
    %v870 = vadd.f32 0.0, %v869
    %871 = vdwg.mxu0
    %v873 = vsel %vm211, %v778, 0
    %875 = vmatpush.msra.mxu0 0.0
    %876 = vmatpush.msra.mxu0 0.0
    %877 = vmatpush.msra.mxu0 0.0
    %878 = vmatpush.msra.mxu0 0.0
    %879 = vmatpush.msra.mxu0 0.0
    %880 = vmatpush.msra.mxu0 0.0
    %881 = vmatpush.msra.mxu0 0.0
    %882 = vmatpush.msra.mxu0 0.0
    %883 = vmatpush.msra.mxu0 0.0
    %884 = vmatpush.msra.mxu0 0.0
    %885 = vmatpush.msra.mxu0 0.0
    %886 = vmatpush.msra.mxu0 0.0
    %887 = vmatpush.msra.mxu0 0.0
    %888 = vmatpush.msra.mxu0 0.0
    %889 = vmatpush.msra.mxu0 %v649
    %890 = vmatpush.msra.mxu0 %v648
    %891 = vmatmul.f32.gmra.mxu0 %v873
    %v892 = vpop.f32.mrf.mxu0
    %v893 = vadd.f32 %v870, %v892
    %894 = vdwg.mxu0
    %v895 = vmul.f32 %v712, %v715
    %v896 = vsel %vm211, %v895, 0.0
    %897 = vadd.xlane.f32.xlu0 %v896
    %v898 = vpop.xlane.xlu0 %897
    %v900 = vsel %vm211, %v684, 0
    %902 = vmatpush.xpose.msra.mxu0 0.0
    %903 = vmatpush.xpose.msra.mxu0 0.0
    %904 = vmatpush.xpose.msra.mxu0 0.0
    %905 = vmatpush.xpose.msra.mxu0 0.0
    %906 = vmatpush.xpose.msra.mxu0 0.0
    %907 = vmatpush.xpose.msra.mxu0 0.0
    %908 = vmatpush.xpose.msra.mxu0 0.0
    %909 = vmatpush.xpose.msra.mxu0 0.0
    %910 = vmatpush.xpose.msra.mxu0 0.0
    %911 = vmatpush.xpose.msra.mxu0 0.0
    %912 = vmatpush.xpose.msra.mxu0 0.0
    %913 = vmatpush.xpose.msra.mxu0 0.0
    %914 = vmatpush.xpose.msra.mxu0 0.0
    %915 = vmatpush.xpose.msra.mxu0 0.0
    %916 = vmatpush.xpose.msra.mxu0 0.0
    %917 = vmatpush.xpose.msra.mxu0 %v900
    %918 = vmatmul.f32.gmra.mxu0 %v722
    %v919 = vpop.f32.mrf.mxu0
    %v920 = vadd.f32 0.0, %v919
    %921 = vdwg.mxu0
    %v922 = vperm.slane %v920, 0
    %v923 = vadd.f32 %v898, %v922
    %v924 = vtanh.pop %v923
    %v925 = vmul.f32 %v924, 1.442695
    %v926 = vpow.pop %v925
    %v927 = vsel %vm246, %v926, 0.0
    %928 = vadd.xlane.f32.xlu0 %v927
    %v929 = vpop.xlane.xlu0 %928
    %v930 = vrcp.pop %v929
    %v931 = vmul.f32 %v926, %v930
    %v933 = vsel %vm246, %v931, 0
    %935 = vmatpush.msra.mxu0 0.0
    %936 = vmatpush.msra.mxu0 0.0
    %937 = vmatpush.msra.mxu0 0.0
    %938 = vmatpush.msra.mxu0 0.0
    %939 = vmatpush.msra.mxu0 0.0
    %940 = vmatpush.msra.mxu0 0.0
    %941 = vmatpush.msra.mxu0 0.0
    %942 = vmatpush.msra.mxu0 0.0
    %943 = vmatpush.msra.mxu0 0.0
    %944 = vmatpush.msra.mxu0 0.0
    %945 = vmatpush.msra.mxu0 0.0
    %946 = vmatpush.msra.mxu0 0.0
    %947 = vmatpush.msra.mxu0 0.0
    %948 = vmatpush.msra.mxu0 0.0
    %949 = vmatpush.msra.mxu0 0.0
    %950 = vmatpush.msra.mxu0 %v684
    %951 = vmatmul.f32.gmra.mxu0 %v933
    %v952 = vpop.f32.mrf.mxu0
    %v953 = vadd.f32 0.0, %v952
    %954 = vdwg.mxu0
    %v955 = vmul.f32 %v712, %v781
    %957 = vrot.lane.b32.xlu0 %v955, 112
    %v958 = vpop.permute.xlu0 %957
    %v960 = vsel %vm211, %v958, 0.0
    %961 = vadd.xlane.f32.xlu0 %v960
    %v962 = vpop.xlane.xlu0 %961
    %963 = vrot.lane.b32.xlu0 %v684, 112
    %v964 = vpop.permute.xlu0 %963
    %v965 = vsel %vm211, %v964, 0
    %967 = vmatpush.xpose.msra.mxu0 0.0
    %968 = vmatpush.xpose.msra.mxu0 0.0
    %969 = vmatpush.xpose.msra.mxu0 0.0
    %970 = vmatpush.xpose.msra.mxu0 0.0
    %971 = vmatpush.xpose.msra.mxu0 0.0
    %972 = vmatpush.xpose.msra.mxu0 0.0
    %973 = vmatpush.xpose.msra.mxu0 0.0
    %974 = vmatpush.xpose.msra.mxu0 0.0
    %975 = vmatpush.xpose.msra.mxu0 0.0
    %976 = vmatpush.xpose.msra.mxu0 0.0
    %977 = vmatpush.xpose.msra.mxu0 0.0
    %978 = vmatpush.xpose.msra.mxu0 0.0
    %979 = vmatpush.xpose.msra.mxu0 0.0
    %980 = vmatpush.xpose.msra.mxu0 0.0
    %981 = vmatpush.xpose.msra.mxu0 0.0
    %982 = vmatpush.xpose.msra.mxu0 %v965
    %983 = vmatmul.f32.gmra.mxu0 %v722
    %v984 = vpop.f32.mrf.mxu0
    %v985 = vadd.f32 0.0, %v984
    %986 = vdwg.mxu0
    %v987 = vperm.slane %v985, 0
    %v988 = vadd.f32 %v962, %v987
    %v989 = vtanh.pop %v988
    %v990 = vmul.f32 %v989, 1.442695
    %v991 = vpow.pop %v990
    %v992 = vsel %vm246, %v991, 0.0
    %993 = vadd.xlane.f32.xlu0 %v992
    %v994 = vpop.xlane.xlu0 %993
    %v995 = vrcp.pop %v994
    %v996 = vmul.f32 %v991, %v995
    %v999 = vsel %vm246, %v996, 0
    %1001 = vmatpush.msra.mxu0 0.0
    %1002 = vmatpush.msra.mxu0 0.0
    %1003 = vmatpush.msra.mxu0 0.0
    %1004 = vmatpush.msra.mxu0 0.0
    %1005 = vmatpush.msra.mxu0 0.0
    %1006 = vmatpush.msra.mxu0 0.0
    %1007 = vmatpush.msra.mxu0 0.0
    %1008 = vmatpush.msra.mxu0 0.0
    %1009 = vmatpush.msra.mxu0 0.0
    %1010 = vmatpush.msra.mxu0 0.0
    %1011 = vmatpush.msra.mxu0 0.0
    %1012 = vmatpush.msra.mxu0 0.0
    %1013 = vmatpush.msra.mxu0 0.0
    %1014 = vmatpush.msra.mxu0 0.0
    %1015 = vmatpush.msra.mxu0 0.0
    %1016 = vmatpush.msra.mxu0 %v964
    %1017 = vmatmul.f32.gmra.mxu0 %v999
    %v1018 = vpop.f32.mrf.mxu0
    %v1019 = vadd.f32 0.0, %v1018
    %1020 = vdwg.mxu0
    %v1022 = vsel %vm211, %v1019, 0
    %1024 = vmatpush.msra.mxu0 0.0
    %1025 = vmatpush.msra.mxu0 0.0
    %1026 = vmatpush.msra.mxu0 0.0
    %1027 = vmatpush.msra.mxu0 0.0
    %1028 = vmatpush.msra.mxu0 0.0
    %1029 = vmatpush.msra.mxu0 0.0
    %1030 = vmatpush.msra.mxu0 0.0
    %1031 = vmatpush.msra.mxu0 0.0
    %1032 = vmatpush.msra.mxu0 0.0
    %1033 = vmatpush.msra.mxu0 0.0
    %1034 = vmatpush.msra.mxu0 0.0
    %1035 = vmatpush.msra.mxu0 0.0
    %1036 = vmatpush.msra.mxu0 0.0
    %1037 = vmatpush.msra.mxu0 0.0
    %1038 = vmatpush.msra.mxu0 %v651
    %1039 = vmatpush.msra.mxu0 %v650
    %1040 = vmatmul.f32.gmra.mxu0 %v1022
    %v1041 = vpop.f32.mrf.mxu0
    %v1042 = vadd.f32 0.0, %v1041
    %1043 = vdwg.mxu0
    %v1045 = vsel %vm211, %v953, 0
    %1047 = vmatpush.msra.mxu0 0.0
    %1048 = vmatpush.msra.mxu0 0.0
    %1049 = vmatpush.msra.mxu0 0.0
    %1050 = vmatpush.msra.mxu0 0.0
    %1051 = vmatpush.msra.mxu0 0.0
    %1052 = vmatpush.msra.mxu0 0.0
    %1053 = vmatpush.msra.mxu0 0.0
    %1054 = vmatpush.msra.mxu0 0.0
    %1055 = vmatpush.msra.mxu0 0.0
    %1056 = vmatpush.msra.mxu0 0.0
    %1057 = vmatpush.msra.mxu0 0.0
    %1058 = vmatpush.msra.mxu0 0.0
    %1059 = vmatpush.msra.mxu0 0.0
    %1060 = vmatpush.msra.mxu0 0.0
    %1061 = vmatpush.msra.mxu0 %v649
    %1062 = vmatpush.msra.mxu0 %v648
    %1063 = vmatmul.f32.gmra.mxu0 %v1045
    %v1064 = vpop.f32.mrf.mxu0
    %v1065 = vadd.f32 %v1042, %v1064
    %1066 = vdwg.mxu0
    %s1067 = scalar_lea.vmem %s9, 1
    %v1068 = vld [vmem:[%s1067] sm:$0x1]
    %v1070 = vperm.slane %v1068, 0
    %v1072 = vadd.f32 %v893, %v1070
    %v1073 = vadd.f32 %v1065, %v1070
    %v1074 = vadd.f32 %v130, %v1072
    %v1075 = vadd.f32 %v131, %v1073
    %s1076 = scalar_lea.vmem %s10, 1
    %v1077 = vld [vmem:[%s1076] sm:$0x1]
    %s1078 = scalar_lea.vmem %s11, 1
    %v1079 = vld [vmem:[%s1078] sm:$0x1]
    %v1080 = vsel %vm150, %v1074, 0.0
    %1081 = vadd.xlane.f32.xlu0 %v1080
    %v1082 = vpop.xlane.xlu0 %1081
    %v1083 = vsel %vm150, %v1075, 0.0
    %1084 = vadd.xlane.f32.xlu0 %v1083
    %v1085 = vpop.xlane.xlu0 %1084
    %v1086 = vmul.f32 %v1082, %v584
    %v1087 = vmul.f32 %v1085, %v584
    %v1088 = vsub.f32 %v1074, %v1086
    %v1089 = vsub.f32 %v1075, %v1087
    %v1090 = vmul.f32 %v1088, %v1088
    %v1091 = vmul.f32 %v1089, %v1089
    %v1092 = vsel %vm150, %v1090, 0.0
    %1093 = vadd.xlane.f32.xlu0 %v1092
    %v1094 = vpop.xlane.xlu0 %1093
    %v1095 = vsel %vm150, %v1091, 0.0
    %1096 = vadd.xlane.f32.xlu0 %v1095
    %v1097 = vpop.xlane.xlu0 %1096
    %v1098 = vmul.f32 %v1094, %v584
    %v1099 = vmul.f32 %v1097, %v584
    %v1100 = vadd.f32 %v1098, 1e-05
    %v1101 = vadd.f32 %v1099, 1e-05
    %v1102 = vrsqrt.pop %v1100
    %v1103 = vmul.f32 %v1102, %v1100
    %v1104 = vmul.f32 %v1103, %v1102
    %v1105 = vmul.f32 0.5, %v1104
    %v1106 = vsub.f32 1.5, %v1105
    %v1107 = vmul.f32 %v1102, %v1106
    %vm1108 = vweird.f32 %v1100
    %vm1109 = vweird.f32 %v1102
    %vm1110 = vmor %vm1108, %vm1109
    %v1111 = vsel %vm1110, %v1102, %v1107
    %v1112 = vrsqrt.pop %v1101
    %v1113 = vmul.f32 %v1112, %v1101
    %v1114 = vmul.f32 %v1113, %v1112
    %v1115 = vmul.f32 0.5, %v1114
    %v1116 = vsub.f32 1.5, %v1115
    %v1117 = vmul.f32 %v1112, %v1116
    %vm1118 = vweird.f32 %v1101
    %vm1119 = vweird.f32 %v1112
    %vm1120 = vmor %vm1118, %vm1119
    %v1121 = vsel %vm1120, %v1112, %v1117
    %v1122 = vmul.f32 %v1088, %v1111
    %v1123 = vmul.f32 %v1089, %v1121
    %v1125 = vperm.slane %v1077, 0
    %v1127 = vmul.f32 %v1122, %v1125
    %v1128 = vmul.f32 %v1123, %v1125
    %v1130 = vperm.slane %v1079, 0
    %v1132 = vadd.f32 %v1127, %v1130
    %v1133 = vadd.f32 %v1128, %v1130
    %s1134 = scalar_lea.vmem %s2, 64
    %v1135 = vld [vmem:[%s1134] sm:$0xff]
    %v1136 = vld [vmem:[%s1134 + $0x8] sm:$0xff]
    %v1137 = vld [vmem:[%s1134 + $0x10] sm:$0xff]
    %v1138 = vld [vmem:[%s1134 + $0x18] sm:$0xff]
    %s1139 = scalar_lea.vmem [#allocation2], 64
    %v1140 = vld [vmem:[%s1139] sm:$0xff]
    %v1141 = vld [vmem:[%s1139 + $0x8] sm:$0xff]
    %v1142 = vld [vmem:[%s1139 + $0x10] sm:$0xff]
    %v1143 = vld [vmem:[%s1139 + $0x18] sm:$0xff]
    %s1144 = scalar_lea.vmem %s6, 2
    %v1145 = vld [vmem:[%s1144] sm:$0x1]
    %s1146 = scalar_lea.vmem %s7, 2
    %v1147 = vld [vmem:[%s1146] sm:$0x1]
    %s1148 = scalar_lea.vmem [#allocation4], 64
    %v1149 = vld [vmem:[%s1148] sm:$0xff]
    %v1150 = vld [vmem:[%s1148 + $0x8] sm:$0xff]
    %v1151 = vld [vmem:[%s1148 + $0x10] sm:$0xff]
    %v1152 = vld [vmem:[%s1148 + $0x18] sm:$0xff]
    %s1153 = scalar_lea.vmem %s3, 2
    %v1154 = vld [vmem:[%s1153] sm:$0x1]
    %v1156 = vperm.slane %v1154, 0
    %v1159 = vsel %vm150, %v631, 0
    %v1162 = vsel %vm150, %v632, 0
    %1164 = vmatpush.msra.mxu0 0.0
    %1165 = vmatpush.msra.mxu0 0.0
    %1166 = vmatpush.msra.mxu0 0.0
    %1167 = vmatpush.msra.mxu0 0.0
    %1168 = vmatpush.msra.mxu0 0.0
    %1169 = vmatpush.msra.mxu0 0.0
    %1170 = vmatpush.msra.mxu0 0.0
    %1171 = vmatpush.msra.mxu0 0.0
    %1172 = vmatpush.msra.mxu0 0.0
    %1173 = vmatpush.msra.mxu0 0.0
    %1174 = vmatpush.msra.mxu0 0.0
    %1175 = vmatpush.msra.mxu0 0.0
    %1176 = vmatpush.msra.mxu0 %v1138
    %1177 = vmatpush.msra.mxu0 %v1137
    %1178 = vmatpush.msra.mxu0 %v1136
    %1179 = vmatpush.msra.mxu0 %v1135
    %1180 = vmatmul.f32.gmra.mxu0 %v1159
    %v1181 = vpop.f32.mrf.mxu0
    %v1182 = vadd.f32 %v1156, %v1181
    %1183 = vmatmul.f32.gmra.mxu0 %v1162
    %v1184 = vpop.f32.mrf.mxu0
    %v1185 = vadd.f32 %v1156, %v1184
    %1186 = vdwg.mxu0
    %s1187 = scalar_lea.vmem %s5, 2
    %v1188 = vld [vmem:[%s1187] sm:$0x1]
    %v1190 = vperm.slane %v1188, 0
    %1192 = vmatpush.msra.mxu0 0.0
    %1193 = vmatpush.msra.mxu0 0.0
    %1194 = vmatpush.msra.mxu0 0.0
    %1195 = vmatpush.msra.mxu0 0.0
    %1196 = vmatpush.msra.mxu0 0.0
    %1197 = vmatpush.msra.mxu0 0.0
    %1198 = vmatpush.msra.mxu0 0.0
    %1199 = vmatpush.msra.mxu0 0.0
    %1200 = vmatpush.msra.mxu0 0.0
    %1201 = vmatpush.msra.mxu0 0.0
    %1202 = vmatpush.msra.mxu0 0.0
    %1203 = vmatpush.msra.mxu0 0.0
    %1204 = vmatpush.msra.mxu0 %v1143
    %1205 = vmatpush.msra.mxu0 %v1142
    %1206 = vmatpush.msra.mxu0 %v1141
    %1207 = vmatpush.msra.mxu0 %v1140
    %1208 = vmatmul.f32.gmra.mxu0 %v1159
    %v1209 = vpop.f32.mrf.mxu0
    %v1210 = vadd.f32 %v1190, %v1209
    %1211 = vmatmul.f32.gmra.mxu0 %v1162
    %v1212 = vpop.f32.mrf.mxu0
    %v1213 = vadd.f32 %v1190, %v1212
    %1214 = vdwg.mxu0
    %v1216 = vperm.slane %v1147, 0
    %v1218 = vmul.f32 %v1210, %v1216
    %v1219 = vsel %vm211, %v1218, 0.0
    %1220 = vadd.xlane.f32.xlu0 %v1219
    %v1221 = vpop.xlane.xlu0 %1220
    %v1223 = vsel %vm211, %v1145, 0
    %v1226 = vsel %vm211, %v1182, 0
    %1228 = vmatpush.xpose.msra.mxu0 0.0
    %1229 = vmatpush.xpose.msra.mxu0 0.0
    %1230 = vmatpush.xpose.msra.mxu0 0.0
    %1231 = vmatpush.xpose.msra.mxu0 0.0
    %1232 = vmatpush.xpose.msra.mxu0 0.0
    %1233 = vmatpush.xpose.msra.mxu0 0.0
    %1234 = vmatpush.xpose.msra.mxu0 0.0
    %1235 = vmatpush.xpose.msra.mxu0 0.0
    %1236 = vmatpush.xpose.msra.mxu0 0.0
    %1237 = vmatpush.xpose.msra.mxu0 0.0
    %1238 = vmatpush.xpose.msra.mxu0 0.0
    %1239 = vmatpush.xpose.msra.mxu0 0.0
    %1240 = vmatpush.xpose.msra.mxu0 0.0
    %1241 = vmatpush.xpose.msra.mxu0 0.0
    %1242 = vmatpush.xpose.msra.mxu0 0.0
    %1243 = vmatpush.xpose.msra.mxu0 %v1226
    %1244 = vmatmul.f32.gmra.mxu0 %v1223
    %v1245 = vpop.f32.mrf.mxu0
    %v1246 = vadd.f32 0.0, %v1245
    %1247 = vdwg.mxu0
    %v1248 = vperm.slane %v1246, 0
    %v1249 = vadd.f32 %v1221, %v1248
    %v1250 = vtanh.pop %v1249
    %v1251 = vmul.f32 %v1250, 1.442695
    %v1252 = vpow.pop %v1251
    %v1253 = vsel %vm246, %v1252, 0.0
    %1254 = vadd.xlane.f32.xlu0 %v1253
    %v1255 = vpop.xlane.xlu0 %1254
    %v1256 = vrcp.pop %v1255
    %v1257 = vmul.f32 %v1252, %v1256
    %v1259 = vsel %vm246, %v1257, 0
    %1261 = vmatpush.msra.mxu0 0.0
    %1262 = vmatpush.msra.mxu0 0.0
    %1263 = vmatpush.msra.mxu0 0.0
    %1264 = vmatpush.msra.mxu0 0.0
    %1265 = vmatpush.msra.mxu0 0.0
    %1266 = vmatpush.msra.mxu0 0.0
    %1267 = vmatpush.msra.mxu0 0.0
    %1268 = vmatpush.msra.mxu0 0.0
    %1269 = vmatpush.msra.mxu0 0.0
    %1270 = vmatpush.msra.mxu0 0.0
    %1271 = vmatpush.msra.mxu0 0.0
    %1272 = vmatpush.msra.mxu0 0.0
    %1273 = vmatpush.msra.mxu0 0.0
    %1274 = vmatpush.msra.mxu0 0.0
    %1275 = vmatpush.msra.mxu0 0.0
    %1276 = vmatpush.msra.mxu0 %v1182
    %1277 = vmatmul.f32.gmra.mxu0 %v1259
    %v1278 = vpop.f32.mrf.mxu0
    %v1279 = vadd.f32 0.0, %v1278
    %1280 = vdwg.mxu0
    %1281 = vrot.lane.b32.xlu0 %v1216, 16
    %v1282 = vpop.permute.xlu0 %1281
    %v1284 = vmul.f32 %v1210, %v1282
    %1286 = vrot.lane.b32.xlu0 %v1284, 112
    %v1287 = vpop.permute.xlu0 %1286
    %v1289 = vsel %vm211, %v1287, 0.0
    %1290 = vadd.xlane.f32.xlu0 %v1289
    %v1291 = vpop.xlane.xlu0 %1290
    %1292 = vrot.lane.b32.xlu0 %v1182, 112
    %v1293 = vpop.permute.xlu0 %1292
    %v1294 = vsel %vm211, %v1293, 0
    %1296 = vmatpush.xpose.msra.mxu0 0.0
    %1297 = vmatpush.xpose.msra.mxu0 0.0
    %1298 = vmatpush.xpose.msra.mxu0 0.0
    %1299 = vmatpush.xpose.msra.mxu0 0.0
    %1300 = vmatpush.xpose.msra.mxu0 0.0
    %1301 = vmatpush.xpose.msra.mxu0 0.0
    %1302 = vmatpush.xpose.msra.mxu0 0.0
    %1303 = vmatpush.xpose.msra.mxu0 0.0
    %1304 = vmatpush.xpose.msra.mxu0 0.0
    %1305 = vmatpush.xpose.msra.mxu0 0.0
    %1306 = vmatpush.xpose.msra.mxu0 0.0
    %1307 = vmatpush.xpose.msra.mxu0 0.0
    %1308 = vmatpush.xpose.msra.mxu0 0.0
    %1309 = vmatpush.xpose.msra.mxu0 0.0
    %1310 = vmatpush.xpose.msra.mxu0 0.0
    %1311 = vmatpush.xpose.msra.mxu0 %v1294
    %1312 = vmatmul.f32.gmra.mxu0 %v1223
    %v1313 = vpop.f32.mrf.mxu0
    %v1314 = vadd.f32 0.0, %v1313
    %1315 = vdwg.mxu0
    %v1316 = vperm.slane %v1314, 0
    %v1317 = vadd.f32 %v1291, %v1316
    %v1318 = vtanh.pop %v1317
    %v1319 = vmul.f32 %v1318, 1.442695
    %v1320 = vpow.pop %v1319
    %v1321 = vsel %vm246, %v1320, 0.0
    %1322 = vadd.xlane.f32.xlu0 %v1321
    %v1323 = vpop.xlane.xlu0 %1322
    %v1324 = vrcp.pop %v1323
    %v1325 = vmul.f32 %v1320, %v1324
    %v1328 = vsel %vm246, %v1325, 0
    %1330 = vmatpush.msra.mxu0 0.0
    %1331 = vmatpush.msra.mxu0 0.0
    %1332 = vmatpush.msra.mxu0 0.0
    %1333 = vmatpush.msra.mxu0 0.0
    %1334 = vmatpush.msra.mxu0 0.0
    %1335 = vmatpush.msra.mxu0 0.0
    %1336 = vmatpush.msra.mxu0 0.0
    %1337 = vmatpush.msra.mxu0 0.0
    %1338 = vmatpush.msra.mxu0 0.0
    %1339 = vmatpush.msra.mxu0 0.0
    %1340 = vmatpush.msra.mxu0 0.0
    %1341 = vmatpush.msra.mxu0 0.0
    %1342 = vmatpush.msra.mxu0 0.0
    %1343 = vmatpush.msra.mxu0 0.0
    %1344 = vmatpush.msra.mxu0 0.0
    %1345 = vmatpush.msra.mxu0 %v1293
    %1346 = vmatmul.f32.gmra.mxu0 %v1328
    %v1347 = vpop.f32.mrf.mxu0
    %v1348 = vadd.f32 0.0, %v1347
    %1349 = vdwg.mxu0
    %v1351 = vsel %vm211, %v1348, 0
    %1353 = vmatpush.msra.mxu0 0.0
    %1354 = vmatpush.msra.mxu0 0.0
    %1355 = vmatpush.msra.mxu0 0.0
    %1356 = vmatpush.msra.mxu0 0.0
    %1357 = vmatpush.msra.mxu0 0.0
    %1358 = vmatpush.msra.mxu0 0.0
    %1359 = vmatpush.msra.mxu0 0.0
    %1360 = vmatpush.msra.mxu0 0.0
    %1361 = vmatpush.msra.mxu0 0.0
    %1362 = vmatpush.msra.mxu0 0.0
    %1363 = vmatpush.msra.mxu0 0.0
    %1364 = vmatpush.msra.mxu0 0.0
    %1365 = vmatpush.msra.mxu0 0.0
    %1366 = vmatpush.msra.mxu0 0.0
    %1367 = vmatpush.msra.mxu0 %v1152
    %1368 = vmatpush.msra.mxu0 %v1151
    %1369 = vmatmul.f32.gmra.mxu0 %v1351
    %v1370 = vpop.f32.mrf.mxu0
    %v1371 = vadd.f32 0.0, %v1370
    %1372 = vdwg.mxu0
    %v1374 = vsel %vm211, %v1279, 0
    %1376 = vmatpush.msra.mxu0 0.0
    %1377 = vmatpush.msra.mxu0 0.0
    %1378 = vmatpush.msra.mxu0 0.0
    %1379 = vmatpush.msra.mxu0 0.0
    %1380 = vmatpush.msra.mxu0 0.0
    %1381 = vmatpush.msra.mxu0 0.0
    %1382 = vmatpush.msra.mxu0 0.0
    %1383 = vmatpush.msra.mxu0 0.0
    %1384 = vmatpush.msra.mxu0 0.0
    %1385 = vmatpush.msra.mxu0 0.0
    %1386 = vmatpush.msra.mxu0 0.0
    %1387 = vmatpush.msra.mxu0 0.0
    %1388 = vmatpush.msra.mxu0 0.0
    %1389 = vmatpush.msra.mxu0 0.0
    %1390 = vmatpush.msra.mxu0 %v1150
    %1391 = vmatpush.msra.mxu0 %v1149
    %1392 = vmatmul.f32.gmra.mxu0 %v1374
    %v1393 = vpop.f32.mrf.mxu0
    %v1394 = vadd.f32 %v1371, %v1393
    %1395 = vdwg.mxu0
    %v1396 = vmul.f32 %v1213, %v1216
    %v1397 = vsel %vm211, %v1396, 0.0
    %1398 = vadd.xlane.f32.xlu0 %v1397
    %v1399 = vpop.xlane.xlu0 %1398
    %v1401 = vsel %vm211, %v1185, 0
    %1403 = vmatpush.xpose.msra.mxu0 0.0
    %1404 = vmatpush.xpose.msra.mxu0 0.0
    %1405 = vmatpush.xpose.msra.mxu0 0.0
    %1406 = vmatpush.xpose.msra.mxu0 0.0
    %1407 = vmatpush.xpose.msra.mxu0 0.0
    %1408 = vmatpush.xpose.msra.mxu0 0.0
    %1409 = vmatpush.xpose.msra.mxu0 0.0
    %1410 = vmatpush.xpose.msra.mxu0 0.0
    %1411 = vmatpush.xpose.msra.mxu0 0.0
    %1412 = vmatpush.xpose.msra.mxu0 0.0
    %1413 = vmatpush.xpose.msra.mxu0 0.0
    %1414 = vmatpush.xpose.msra.mxu0 0.0
    %1415 = vmatpush.xpose.msra.mxu0 0.0
    %1416 = vmatpush.xpose.msra.mxu0 0.0
    %1417 = vmatpush.xpose.msra.mxu0 0.0
    %1418 = vmatpush.xpose.msra.mxu0 %v1401
    %1419 = vmatmul.f32.gmra.mxu0 %v1223
    %v1420 = vpop.f32.mrf.mxu0
    %v1421 = vadd.f32 0.0, %v1420
    %1422 = vdwg.mxu0
    %v1423 = vperm.slane %v1421, 0
    %v1424 = vadd.f32 %v1399, %v1423
    %v1425 = vtanh.pop %v1424
    %v1426 = vmul.f32 %v1425, 1.442695
    %v1427 = vpow.pop %v1426
    %v1428 = vsel %vm246, %v1427, 0.0
    %1429 = vadd.xlane.f32.xlu0 %v1428
    %v1430 = vpop.xlane.xlu0 %1429
    %v1431 = vrcp.pop %v1430
    %v1432 = vmul.f32 %v1427, %v1431
    %v1434 = vsel %vm246, %v1432, 0
    %1436 = vmatpush.msra.mxu0 0.0
    %1437 = vmatpush.msra.mxu0 0.0
    %1438 = vmatpush.msra.mxu0 0.0
    %1439 = vmatpush.msra.mxu0 0.0
    %1440 = vmatpush.msra.mxu0 0.0
    %1441 = vmatpush.msra.mxu0 0.0
    %1442 = vmatpush.msra.mxu0 0.0
    %1443 = vmatpush.msra.mxu0 0.0
    %1444 = vmatpush.msra.mxu0 0.0
    %1445 = vmatpush.msra.mxu0 0.0
    %1446 = vmatpush.msra.mxu0 0.0
    %1447 = vmatpush.msra.mxu0 0.0
    %1448 = vmatpush.msra.mxu0 0.0
    %1449 = vmatpush.msra.mxu0 0.0
    %1450 = vmatpush.msra.mxu0 0.0
    %1451 = vmatpush.msra.mxu0 %v1185
    %1452 = vmatmul.f32.gmra.mxu0 %v1434
    %v1453 = vpop.f32.mrf.mxu0
    %v1454 = vadd.f32 0.0, %v1453
    %1455 = vdwg.mxu0
    %v1456 = vmul.f32 %v1213, %v1282
    %1458 = vrot.lane.b32.xlu0 %v1456, 112
    %v1459 = vpop.permute.xlu0 %1458
    %v1461 = vsel %vm211, %v1459, 0.0
    %1462 = vadd.xlane.f32.xlu0 %v1461
    %v1463 = vpop.xlane.xlu0 %1462
    %1464 = vrot.lane.b32.xlu0 %v1185, 112
    %v1465 = vpop.permute.xlu0 %1464
    %v1466 = vsel %vm211, %v1465, 0
    %1468 = vmatpush.xpose.msra.mxu0 0.0
    %1469 = vmatpush.xpose.msra.mxu0 0.0
    %1470 = vmatpush.xpose.msra.mxu0 0.0
    %1471 = vmatpush.xpose.msra.mxu0 0.0
    %1472 = vmatpush.xpose.msra.mxu0 0.0
    %1473 = vmatpush.xpose.msra.mxu0 0.0
    %1474 = vmatpush.xpose.msra.mxu0 0.0
    %1475 = vmatpush.xpose.msra.mxu0 0.0
    %1476 = vmatpush.xpose.msra.mxu0 0.0
    %1477 = vmatpush.xpose.msra.mxu0 0.0
    %1478 = vmatpush.xpose.msra.mxu0 0.0
    %1479 = vmatpush.xpose.msra.mxu0 0.0
    %1480 = vmatpush.xpose.msra.mxu0 0.0
    %1481 = vmatpush.xpose.msra.mxu0 0.0
    %1482 = vmatpush.xpose.msra.mxu0 0.0
    %1483 = vmatpush.xpose.msra.mxu0 %v1466
    %1484 = vmatmul.f32.gmra.mxu0 %v1223
    %v1485 = vpop.f32.mrf.mxu0
    %v1486 = vadd.f32 0.0, %v1485
    %1487 = vdwg.mxu0
    %v1488 = vperm.slane %v1486, 0
    %v1489 = vadd.f32 %v1463, %v1488
    %v1490 = vtanh.pop %v1489
    %v1491 = vmul.f32 %v1490, 1.442695
    %v1492 = vpow.pop %v1491
    %v1493 = vsel %vm246, %v1492, 0.0
    %1494 = vadd.xlane.f32.xlu0 %v1493
    %v1495 = vpop.xlane.xlu0 %1494
    %v1496 = vrcp.pop %v1495
    %v1497 = vmul.f32 %v1492, %v1496
    %v1500 = vsel %vm246, %v1497, 0
    %1502 = vmatpush.msra.mxu0 0.0
    %1503 = vmatpush.msra.mxu0 0.0
    %1504 = vmatpush.msra.mxu0 0.0
    %1505 = vmatpush.msra.mxu0 0.0
    %1506 = vmatpush.msra.mxu0 0.0
    %1507 = vmatpush.msra.mxu0 0.0
    %1508 = vmatpush.msra.mxu0 0.0
    %1509 = vmatpush.msra.mxu0 0.0
    %1510 = vmatpush.msra.mxu0 0.0
    %1511 = vmatpush.msra.mxu0 0.0
    %1512 = vmatpush.msra.mxu0 0.0
    %1513 = vmatpush.msra.mxu0 0.0
    %1514 = vmatpush.msra.mxu0 0.0
    %1515 = vmatpush.msra.mxu0 0.0
    %1516 = vmatpush.msra.mxu0 0.0
    %1517 = vmatpush.msra.mxu0 %v1465
    %1518 = vmatmul.f32.gmra.mxu0 %v1500
    %v1519 = vpop.f32.mrf.mxu0
    %v1520 = vadd.f32 0.0, %v1519
    %1521 = vdwg.mxu0
    %v1523 = vsel %vm211, %v1520, 0
    %1525 = vmatpush.msra.mxu0 0.0
    %1526 = vmatpush.msra.mxu0 0.0
    %1527 = vmatpush.msra.mxu0 0.0
    %1528 = vmatpush.msra.mxu0 0.0
    %1529 = vmatpush.msra.mxu0 0.0
    %1530 = vmatpush.msra.mxu0 0.0
    %1531 = vmatpush.msra.mxu0 0.0
    %1532 = vmatpush.msra.mxu0 0.0
    %1533 = vmatpush.msra.mxu0 0.0
    %1534 = vmatpush.msra.mxu0 0.0
    %1535 = vmatpush.msra.mxu0 0.0
    %1536 = vmatpush.msra.mxu0 0.0
    %1537 = vmatpush.msra.mxu0 0.0
    %1538 = vmatpush.msra.mxu0 0.0
    %1539 = vmatpush.msra.mxu0 %v1152
    %1540 = vmatpush.msra.mxu0 %v1151
    %1541 = vmatmul.f32.gmra.mxu0 %v1523
    %v1542 = vpop.f32.mrf.mxu0
    %v1543 = vadd.f32 0.0, %v1542
    %1544 = vdwg.mxu0
    %v1546 = vsel %vm211, %v1454, 0
    %1548 = vmatpush.msra.mxu0 0.0
    %1549 = vmatpush.msra.mxu0 0.0
    %1550 = vmatpush.msra.mxu0 0.0
    %1551 = vmatpush.msra.mxu0 0.0
    %1552 = vmatpush.msra.mxu0 0.0
    %1553 = vmatpush.msra.mxu0 0.0
    %1554 = vmatpush.msra.mxu0 0.0
    %1555 = vmatpush.msra.mxu0 0.0
    %1556 = vmatpush.msra.mxu0 0.0
    %1557 = vmatpush.msra.mxu0 0.0
    %1558 = vmatpush.msra.mxu0 0.0
    %1559 = vmatpush.msra.mxu0 0.0
    %1560 = vmatpush.msra.mxu0 0.0
    %1561 = vmatpush.msra.mxu0 0.0
    %1562 = vmatpush.msra.mxu0 %v1150
    %1563 = vmatpush.msra.mxu0 %v1149
    %1564 = vmatmul.f32.gmra.mxu0 %v1546
    %v1565 = vpop.f32.mrf.mxu0
    %v1566 = vadd.f32 %v1543, %v1565
    %1567 = vdwg.mxu0
    %s1568 = scalar_lea.vmem %s9, 2
    %v1569 = vld [vmem:[%s1568] sm:$0x1]
    %v1571 = vperm.slane %v1569, 0
    %v1573 = vadd.f32 %v1394, %v1571
    %v1574 = vadd.f32 %v1566, %v1571
    %s1575 = scalar_lea.vmem %s2, 96
    %v1576 = vld [vmem:[%s1575] sm:$0xff]
    %v1577 = vld [vmem:[%s1575 + $0x8] sm:$0xff]
    %v1578 = vld [vmem:[%s1575 + $0x10] sm:$0xff]
    %v1579 = vld [vmem:[%s1575 + $0x18] sm:$0xff]
    %s1580 = scalar_lea.vmem [#allocation2], 96
    %v1581 = vld [vmem:[%s1580] sm:$0xff]
    %v1582 = vld [vmem:[%s1580 + $0x8] sm:$0xff]
    %v1583 = vld [vmem:[%s1580 + $0x10] sm:$0xff]
    %v1584 = vld [vmem:[%s1580 + $0x18] sm:$0xff]
    %s1585 = scalar_lea.vmem %s6, 3
    %v1586 = vld [vmem:[%s1585] sm:$0x1]
    %s1587 = scalar_lea.vmem %s7, 3
    %v1588 = vld [vmem:[%s1587] sm:$0x1]
    %s1589 = scalar_lea.vmem [#allocation4], 96
    %v1590 = vld [vmem:[%s1589] sm:$0xff]
    %v1591 = vld [vmem:[%s1589 + $0x8] sm:$0xff]
    %v1592 = vld [vmem:[%s1589 + $0x10] sm:$0xff]
    %v1593 = vld [vmem:[%s1589 + $0x18] sm:$0xff]
    %s1594 = scalar_lea.vmem %s3, 3
    %v1595 = vld [vmem:[%s1594] sm:$0x1]
    %v1597 = vperm.slane %v1595, 0
    %1599 = vmatpush.msra.mxu0 0.0
    %1600 = vmatpush.msra.mxu0 0.0
    %1601 = vmatpush.msra.mxu0 0.0
    %1602 = vmatpush.msra.mxu0 0.0
    %1603 = vmatpush.msra.mxu0 0.0
    %1604 = vmatpush.msra.mxu0 0.0
    %1605 = vmatpush.msra.mxu0 0.0
    %1606 = vmatpush.msra.mxu0 0.0
    %1607 = vmatpush.msra.mxu0 0.0
    %1608 = vmatpush.msra.mxu0 0.0
    %1609 = vmatpush.msra.mxu0 0.0
    %1610 = vmatpush.msra.mxu0 0.0
    %1611 = vmatpush.msra.mxu0 %v1579
    %1612 = vmatpush.msra.mxu0 %v1578
    %1613 = vmatpush.msra.mxu0 %v1577
    %1614 = vmatpush.msra.mxu0 %v1576
    %1615 = vmatmul.f32.gmra.mxu0 %v1159
    %v1616 = vpop.f32.mrf.mxu0
    %v1617 = vadd.f32 %v1597, %v1616
    %1618 = vmatmul.f32.gmra.mxu0 %v1162
    %v1619 = vpop.f32.mrf.mxu0
    %v1620 = vadd.f32 %v1597, %v1619
    %1621 = vdwg.mxu0
    %s1622 = scalar_lea.vmem %s5, 3
    %v1623 = vld [vmem:[%s1622] sm:$0x1]
    %v1625 = vperm.slane %v1623, 0
    %v1628 = vsel %vm150, %v1132, 0
    %v1631 = vsel %vm150, %v1133, 0
    %1633 = vmatpush.msra.mxu0 0.0
    %1634 = vmatpush.msra.mxu0 0.0
    %1635 = vmatpush.msra.mxu0 0.0
    %1636 = vmatpush.msra.mxu0 0.0
    %1637 = vmatpush.msra.mxu0 0.0
    %1638 = vmatpush.msra.mxu0 0.0
    %1639 = vmatpush.msra.mxu0 0.0
    %1640 = vmatpush.msra.mxu0 0.0
    %1641 = vmatpush.msra.mxu0 0.0
    %1642 = vmatpush.msra.mxu0 0.0
    %1643 = vmatpush.msra.mxu0 0.0
    %1644 = vmatpush.msra.mxu0 0.0
    %1645 = vmatpush.msra.mxu0 %v1584
    %1646 = vmatpush.msra.mxu0 %v1583
    %1647 = vmatpush.msra.mxu0 %v1582
    %1648 = vmatpush.msra.mxu0 %v1581
    %1649 = vmatmul.f32.gmra.mxu0 %v1628
    %v1650 = vpop.f32.mrf.mxu0
    %v1651 = vadd.f32 %v1625, %v1650
    %1652 = vmatmul.f32.gmra.mxu0 %v1631
    %v1653 = vpop.f32.mrf.mxu0
    %v1654 = vadd.f32 %v1625, %v1653
    %1655 = vdwg.mxu0
    %v1657 = vperm.slane %v1588, 0
    %v1659 = vmul.f32 %v1651, %v1657
    %v1660 = vsel %vm211, %v1659, 0.0
    %1661 = vadd.xlane.f32.xlu0 %v1660
    %v1662 = vpop.xlane.xlu0 %1661
    %v1664 = vsel %vm211, %v1586, 0
    %v1667 = vsel %vm211, %v1617, 0
    %1669 = vmatpush.xpose.msra.mxu0 0.0
    %1670 = vmatpush.xpose.msra.mxu0 0.0
    %1671 = vmatpush.xpose.msra.mxu0 0.0
    %1672 = vmatpush.xpose.msra.mxu0 0.0
    %1673 = vmatpush.xpose.msra.mxu0 0.0
    %1674 = vmatpush.xpose.msra.mxu0 0.0
    %1675 = vmatpush.xpose.msra.mxu0 0.0
    %1676 = vmatpush.xpose.msra.mxu0 0.0
    %1677 = vmatpush.xpose.msra.mxu0 0.0
    %1678 = vmatpush.xpose.msra.mxu0 0.0
    %1679 = vmatpush.xpose.msra.mxu0 0.0
    %1680 = vmatpush.xpose.msra.mxu0 0.0
    %1681 = vmatpush.xpose.msra.mxu0 0.0
    %1682 = vmatpush.xpose.msra.mxu0 0.0
    %1683 = vmatpush.xpose.msra.mxu0 0.0
    %1684 = vmatpush.xpose.msra.mxu0 %v1667
    %1685 = vmatmul.f32.gmra.mxu0 %v1664
    %v1686 = vpop.f32.mrf.mxu0
    %v1687 = vadd.f32 0.0, %v1686
    %1688 = vdwg.mxu0
    %v1689 = vperm.slane %v1687, 0
    %v1690 = vadd.f32 %v1662, %v1689
    %v1691 = vtanh.pop %v1690
    %v1692 = vmul.f32 %v1691, 1.442695
    %v1693 = vpow.pop %v1692
    %v1694 = vsel %vm246, %v1693, 0.0
    %1695 = vadd.xlane.f32.xlu0 %v1694
    %v1696 = vpop.xlane.xlu0 %1695
    %v1697 = vrcp.pop %v1696
    %v1698 = vmul.f32 %v1693, %v1697
    %v1700 = vsel %vm246, %v1698, 0
    %1702 = vmatpush.msra.mxu0 0.0
    %1703 = vmatpush.msra.mxu0 0.0
    %1704 = vmatpush.msra.mxu0 0.0
    %1705 = vmatpush.msra.mxu0 0.0
    %1706 = vmatpush.msra.mxu0 0.0
    %1707 = vmatpush.msra.mxu0 0.0
    %1708 = vmatpush.msra.mxu0 0.0
    %1709 = vmatpush.msra.mxu0 0.0
    %1710 = vmatpush.msra.mxu0 0.0
    %1711 = vmatpush.msra.mxu0 0.0
    %1712 = vmatpush.msra.mxu0 0.0
    %1713 = vmatpush.msra.mxu0 0.0
    %1714 = vmatpush.msra.mxu0 0.0
    %1715 = vmatpush.msra.mxu0 0.0
    %1716 = vmatpush.msra.mxu0 0.0
    %1717 = vmatpush.msra.mxu0 %v1617
    %1718 = vmatmul.f32.gmra.mxu0 %v1700
    %v1719 = vpop.f32.mrf.mxu0
    %v1720 = vadd.f32 0.0, %v1719
    %1721 = vdwg.mxu0
    %1722 = vrot.lane.b32.xlu0 %v1657, 16
    %v1723 = vpop.permute.xlu0 %1722
    %v1725 = vmul.f32 %v1651, %v1723
    %1727 = vrot.lane.b32.xlu0 %v1725, 112
    %v1728 = vpop.permute.xlu0 %1727
    %v1730 = vsel %vm211, %v1728, 0.0
    %1731 = vadd.xlane.f32.xlu0 %v1730
    %v1732 = vpop.xlane.xlu0 %1731
    %1733 = vrot.lane.b32.xlu0 %v1617, 112
    %v1734 = vpop.permute.xlu0 %1733
    %v1735 = vsel %vm211, %v1734, 0
    %1737 = vmatpush.xpose.msra.mxu0 0.0
    %1738 = vmatpush.xpose.msra.mxu0 0.0
    %1739 = vmatpush.xpose.msra.mxu0 0.0
    %1740 = vmatpush.xpose.msra.mxu0 0.0
    %1741 = vmatpush.xpose.msra.mxu0 0.0
    %1742 = vmatpush.xpose.msra.mxu0 0.0
    %1743 = vmatpush.xpose.msra.mxu0 0.0
    %1744 = vmatpush.xpose.msra.mxu0 0.0
    %1745 = vmatpush.xpose.msra.mxu0 0.0
    %1746 = vmatpush.xpose.msra.mxu0 0.0
    %1747 = vmatpush.xpose.msra.mxu0 0.0
    %1748 = vmatpush.xpose.msra.mxu0 0.0
    %1749 = vmatpush.xpose.msra.mxu0 0.0
    %1750 = vmatpush.xpose.msra.mxu0 0.0
    %1751 = vmatpush.xpose.msra.mxu0 0.0
    %1752 = vmatpush.xpose.msra.mxu0 %v1735
    %1753 = vmatmul.f32.gmra.mxu0 %v1664
    %v1754 = vpop.f32.mrf.mxu0
    %v1755 = vadd.f32 0.0, %v1754
    %1756 = vdwg.mxu0
    %v1757 = vperm.slane %v1755, 0
    %v1758 = vadd.f32 %v1732, %v1757
    %v1759 = vtanh.pop %v1758
    %v1760 = vmul.f32 %v1759, 1.442695
    %v1761 = vpow.pop %v1760
    %v1762 = vsel %vm246, %v1761, 0.0
    %1763 = vadd.xlane.f32.xlu0 %v1762
    %v1764 = vpop.xlane.xlu0 %1763
    %v1765 = vrcp.pop %v1764
    %v1766 = vmul.f32 %v1761, %v1765
    %v1769 = vsel %vm246, %v1766, 0
    %1771 = vmatpush.msra.mxu0 0.0
    %1772 = vmatpush.msra.mxu0 0.0
    %1773 = vmatpush.msra.mxu0 0.0
    %1774 = vmatpush.msra.mxu0 0.0
    %1775 = vmatpush.msra.mxu0 0.0
    %1776 = vmatpush.msra.mxu0 0.0
    %1777 = vmatpush.msra.mxu0 0.0
    %1778 = vmatpush.msra.mxu0 0.0
    %1779 = vmatpush.msra.mxu0 0.0
    %1780 = vmatpush.msra.mxu0 0.0
    %1781 = vmatpush.msra.mxu0 0.0
    %1782 = vmatpush.msra.mxu0 0.0
    %1783 = vmatpush.msra.mxu0 0.0
    %1784 = vmatpush.msra.mxu0 0.0
    %1785 = vmatpush.msra.mxu0 0.0
    %1786 = vmatpush.msra.mxu0 %v1734
    %1787 = vmatmul.f32.gmra.mxu0 %v1769
    %v1788 = vpop.f32.mrf.mxu0
    %v1789 = vadd.f32 0.0, %v1788
    %1790 = vdwg.mxu0
    %v1792 = vsel %vm211, %v1789, 0
    %1794 = vmatpush.msra.mxu0 0.0
    %1795 = vmatpush.msra.mxu0 0.0
    %1796 = vmatpush.msra.mxu0 0.0
    %1797 = vmatpush.msra.mxu0 0.0
    %1798 = vmatpush.msra.mxu0 0.0
    %1799 = vmatpush.msra.mxu0 0.0
    %1800 = vmatpush.msra.mxu0 0.0
    %1801 = vmatpush.msra.mxu0 0.0
    %1802 = vmatpush.msra.mxu0 0.0
    %1803 = vmatpush.msra.mxu0 0.0
    %1804 = vmatpush.msra.mxu0 0.0
    %1805 = vmatpush.msra.mxu0 0.0
    %1806 = vmatpush.msra.mxu0 0.0
    %1807 = vmatpush.msra.mxu0 0.0
    %1808 = vmatpush.msra.mxu0 %v1593
    %1809 = vmatpush.msra.mxu0 %v1592
    %1810 = vmatmul.f32.gmra.mxu0 %v1792
    %v1811 = vpop.f32.mrf.mxu0
    %v1812 = vadd.f32 0.0, %v1811
    %1813 = vdwg.mxu0
    %v1815 = vsel %vm211, %v1720, 0
    %1817 = vmatpush.msra.mxu0 0.0
    %1818 = vmatpush.msra.mxu0 0.0
    %1819 = vmatpush.msra.mxu0 0.0
    %1820 = vmatpush.msra.mxu0 0.0
    %1821 = vmatpush.msra.mxu0 0.0
    %1822 = vmatpush.msra.mxu0 0.0
    %1823 = vmatpush.msra.mxu0 0.0
    %1824 = vmatpush.msra.mxu0 0.0
    %1825 = vmatpush.msra.mxu0 0.0
    %1826 = vmatpush.msra.mxu0 0.0
    %1827 = vmatpush.msra.mxu0 0.0
    %1828 = vmatpush.msra.mxu0 0.0
    %1829 = vmatpush.msra.mxu0 0.0
    %1830 = vmatpush.msra.mxu0 0.0
    %1831 = vmatpush.msra.mxu0 %v1591
    %1832 = vmatpush.msra.mxu0 %v1590
    %1833 = vmatmul.f32.gmra.mxu0 %v1815
    %v1834 = vpop.f32.mrf.mxu0
    %v1835 = vadd.f32 %v1812, %v1834
    %1836 = vdwg.mxu0
    %v1837 = vmul.f32 %v1654, %v1657
    %v1838 = vsel %vm211, %v1837, 0.0
    %1839 = vadd.xlane.f32.xlu0 %v1838
    %v1840 = vpop.xlane.xlu0 %1839
    %v1842 = vsel %vm211, %v1620, 0
    %1844 = vmatpush.xpose.msra.mxu0 0.0
    %1845 = vmatpush.xpose.msra.mxu0 0.0
    %1846 = vmatpush.xpose.msra.mxu0 0.0
    %1847 = vmatpush.xpose.msra.mxu0 0.0
    %1848 = vmatpush.xpose.msra.mxu0 0.0
    %1849 = vmatpush.xpose.msra.mxu0 0.0
    %1850 = vmatpush.xpose.msra.mxu0 0.0
    %1851 = vmatpush.xpose.msra.mxu0 0.0
    %1852 = vmatpush.xpose.msra.mxu0 0.0
    %1853 = vmatpush.xpose.msra.mxu0 0.0
    %1854 = vmatpush.xpose.msra.mxu0 0.0
    %1855 = vmatpush.xpose.msra.mxu0 0.0
    %1856 = vmatpush.xpose.msra.mxu0 0.0
    %1857 = vmatpush.xpose.msra.mxu0 0.0
    %1858 = vmatpush.xpose.msra.mxu0 0.0
    %1859 = vmatpush.xpose.msra.mxu0 %v1842
    %1860 = vmatmul.f32.gmra.mxu0 %v1664
    %v1861 = vpop.f32.mrf.mxu0
    %v1862 = vadd.f32 0.0, %v1861
    %1863 = vdwg.mxu0
    %v1864 = vperm.slane %v1862, 0
    %v1865 = vadd.f32 %v1840, %v1864
    %v1866 = vtanh.pop %v1865
    %v1867 = vmul.f32 %v1866, 1.442695
    %v1868 = vpow.pop %v1867
    %v1869 = vsel %vm246, %v1868, 0.0
    %1870 = vadd.xlane.f32.xlu0 %v1869
    %v1871 = vpop.xlane.xlu0 %1870
    %v1872 = vrcp.pop %v1871
    %v1873 = vmul.f32 %v1868, %v1872
    %v1875 = vsel %vm246, %v1873, 0
    %1877 = vmatpush.msra.mxu0 0.0
    %1878 = vmatpush.msra.mxu0 0.0
    %1879 = vmatpush.msra.mxu0 0.0
    %1880 = vmatpush.msra.mxu0 0.0
    %1881 = vmatpush.msra.mxu0 0.0
    %1882 = vmatpush.msra.mxu0 0.0
    %1883 = vmatpush.msra.mxu0 0.0
    %1884 = vmatpush.msra.mxu0 0.0
    %1885 = vmatpush.msra.mxu0 0.0
    %1886 = vmatpush.msra.mxu0 0.0
    %1887 = vmatpush.msra.mxu0 0.0
    %1888 = vmatpush.msra.mxu0 0.0
    %1889 = vmatpush.msra.mxu0 0.0
    %1890 = vmatpush.msra.mxu0 0.0
    %1891 = vmatpush.msra.mxu0 0.0
    %1892 = vmatpush.msra.mxu0 %v1620
    %1893 = vmatmul.f32.gmra.mxu0 %v1875
    %v1894 = vpop.f32.mrf.mxu0
    %v1895 = vadd.f32 0.0, %v1894
    %1896 = vdwg.mxu0
    %v1897 = vmul.f32 %v1654, %v1723
    %1899 = vrot.lane.b32.xlu0 %v1897, 112
    %v1900 = vpop.permute.xlu0 %1899
    %v1902 = vsel %vm211, %v1900, 0.0
    %1903 = vadd.xlane.f32.xlu0 %v1902
    %v1904 = vpop.xlane.xlu0 %1903
    %1905 = vrot.lane.b32.xlu0 %v1620, 112
    %v1906 = vpop.permute.xlu0 %1905
    %v1907 = vsel %vm211, %v1906, 0
    %1909 = vmatpush.xpose.msra.mxu0 0.0
    %1910 = vmatpush.xpose.msra.mxu0 0.0
    %1911 = vmatpush.xpose.msra.mxu0 0.0
    %1912 = vmatpush.xpose.msra.mxu0 0.0
    %1913 = vmatpush.xpose.msra.mxu0 0.0
    %1914 = vmatpush.xpose.msra.mxu0 0.0
    %1915 = vmatpush.xpose.msra.mxu0 0.0
    %1916 = vmatpush.xpose.msra.mxu0 0.0
    %1917 = vmatpush.xpose.msra.mxu0 0.0
    %1918 = vmatpush.xpose.msra.mxu0 0.0
    %1919 = vmatpush.xpose.msra.mxu0 0.0
    %1920 = vmatpush.xpose.msra.mxu0 0.0
    %1921 = vmatpush.xpose.msra.mxu0 0.0
    %1922 = vmatpush.xpose.msra.mxu0 0.0
    %1923 = vmatpush.xpose.msra.mxu0 0.0
    %1924 = vmatpush.xpose.msra.mxu0 %v1907
    %1925 = vmatmul.f32.gmra.mxu0 %v1664
    %v1926 = vpop.f32.mrf.mxu0
    %v1927 = vadd.f32 0.0, %v1926
    %1928 = vdwg.mxu0
    %v1929 = vperm.slane %v1927, 0
    %v1930 = vadd.f32 %v1904, %v1929
    %v1931 = vtanh.pop %v1930
    %v1932 = vmul.f32 %v1931, 1.442695
    %v1933 = vpow.pop %v1932
    %v1934 = vsel %vm246, %v1933, 0.0
    %1935 = vadd.xlane.f32.xlu0 %v1934
    %v1936 = vpop.xlane.xlu0 %1935
    %v1937 = vrcp.pop %v1936
    %v1938 = vmul.f32 %v1933, %v1937
    %v1941 = vsel %vm246, %v1938, 0
    %1943 = vmatpush.msra.mxu0 0.0
    %1944 = vmatpush.msra.mxu0 0.0
    %1945 = vmatpush.msra.mxu0 0.0
    %1946 = vmatpush.msra.mxu0 0.0
    %1947 = vmatpush.msra.mxu0 0.0
    %1948 = vmatpush.msra.mxu0 0.0
    %1949 = vmatpush.msra.mxu0 0.0
    %1950 = vmatpush.msra.mxu0 0.0
    %1951 = vmatpush.msra.mxu0 0.0
    %1952 = vmatpush.msra.mxu0 0.0
    %1953 = vmatpush.msra.mxu0 0.0
    %1954 = vmatpush.msra.mxu0 0.0
    %1955 = vmatpush.msra.mxu0 0.0
    %1956 = vmatpush.msra.mxu0 0.0
    %1957 = vmatpush.msra.mxu0 0.0
    %1958 = vmatpush.msra.mxu0 %v1906
    %1959 = vmatmul.f32.gmra.mxu0 %v1941
    %v1960 = vpop.f32.mrf.mxu0
    %v1961 = vadd.f32 0.0, %v1960
    %1962 = vdwg.mxu0
    %v1964 = vsel %vm211, %v1961, 0
    %1966 = vmatpush.msra.mxu0 0.0
    %1967 = vmatpush.msra.mxu0 0.0
    %1968 = vmatpush.msra.mxu0 0.0
    %1969 = vmatpush.msra.mxu0 0.0
    %1970 = vmatpush.msra.mxu0 0.0
    %1971 = vmatpush.msra.mxu0 0.0
    %1972 = vmatpush.msra.mxu0 0.0
    %1973 = vmatpush.msra.mxu0 0.0
    %1974 = vmatpush.msra.mxu0 0.0
    %1975 = vmatpush.msra.mxu0 0.0
    %1976 = vmatpush.msra.mxu0 0.0
    %1977 = vmatpush.msra.mxu0 0.0
    %1978 = vmatpush.msra.mxu0 0.0
    %1979 = vmatpush.msra.mxu0 0.0
    %1980 = vmatpush.msra.mxu0 %v1593
    %1981 = vmatpush.msra.mxu0 %v1592
    %1982 = vmatmul.f32.gmra.mxu0 %v1964
    %v1983 = vpop.f32.mrf.mxu0
    %v1984 = vadd.f32 0.0, %v1983
    %1985 = vdwg.mxu0
    %v1987 = vsel %vm211, %v1895, 0
    %1989 = vmatpush.msra.mxu0 0.0
    %1990 = vmatpush.msra.mxu0 0.0
    %1991 = vmatpush.msra.mxu0 0.0
    %1992 = vmatpush.msra.mxu0 0.0
    %1993 = vmatpush.msra.mxu0 0.0
    %1994 = vmatpush.msra.mxu0 0.0
    %1995 = vmatpush.msra.mxu0 0.0
    %1996 = vmatpush.msra.mxu0 0.0
    %1997 = vmatpush.msra.mxu0 0.0
    %1998 = vmatpush.msra.mxu0 0.0
    %1999 = vmatpush.msra.mxu0 0.0
    %2000 = vmatpush.msra.mxu0 0.0
    %2001 = vmatpush.msra.mxu0 0.0
    %2002 = vmatpush.msra.mxu0 0.0
    %2003 = vmatpush.msra.mxu0 %v1591
    %2004 = vmatpush.msra.mxu0 %v1590
    %2005 = vmatmul.f32.gmra.mxu0 %v1987
    %v2006 = vpop.f32.mrf.mxu0
    %v2007 = vadd.f32 %v1984, %v2006
    %2008 = vdwg.mxu0
    %s2009 = scalar_lea.vmem %s9, 3
    %v2010 = vld [vmem:[%s2009] sm:$0x1]
    %v2012 = vperm.slane %v2010, 0
    %v2014 = vadd.f32 %v1835, %v2012
    %v2015 = vadd.f32 %v2007, %v2012
    %v2016 = vadd.f32 %v1573, %v2014
    %v2017 = vadd.f32 %v1574, %v2015
    %v2018 = vmul.f32 %v2016, 0.5
    %v2019 = vmul.f32 %v2017, 0.5
    %s2020 = scalar_lea.vmem %s2, 128
    %v2021 = vld [vmem:[%s2020] sm:$0xff]
    %v2022 = vld [vmem:[%s2020 + $0x8] sm:$0xff]
    %v2023 = vld [vmem:[%s2020 + $0x10] sm:$0xff]
    %v2024 = vld [vmem:[%s2020 + $0x18] sm:$0xff]
    %s2025 = scalar_lea.vmem [#allocation2], 128
    %v2026 = vld [vmem:[%s2025] sm:$0xff]
    %v2027 = vld [vmem:[%s2025 + $0x8] sm:$0xff]
    %v2028 = vld [vmem:[%s2025 + $0x10] sm:$0xff]
    %v2029 = vld [vmem:[%s2025 + $0x18] sm:$0xff]
    %s2030 = scalar_lea.vmem %s6, 4
    %v2031 = vld [vmem:[%s2030] sm:$0x1]
    %s2032 = scalar_lea.vmem %s7, 4
    %v2033 = vld [vmem:[%s2032] sm:$0x1]
    %s2034 = scalar_lea.vmem [#allocation4], 128
    %v2035 = vld [vmem:[%s2034] sm:$0xff]
    %v2036 = vld [vmem:[%s2034 + $0x8] sm:$0xff]
    %v2037 = vld [vmem:[%s2034 + $0x10] sm:$0xff]
    %v2038 = vld [vmem:[%s2034 + $0x18] sm:$0xff]
    %s2039 = scalar_lea.vmem %s3, 4
    %v2040 = vld [vmem:[%s2039] sm:$0x1]
    %v2042 = vperm.slane %v2040, 0
    %2044 = vmatpush.msra.mxu0 0.0
    %2045 = vmatpush.msra.mxu0 0.0
    %2046 = vmatpush.msra.mxu0 0.0
    %2047 = vmatpush.msra.mxu0 0.0
    %2048 = vmatpush.msra.mxu0 0.0
    %2049 = vmatpush.msra.mxu0 0.0
    %2050 = vmatpush.msra.mxu0 0.0
    %2051 = vmatpush.msra.mxu0 0.0
    %2052 = vmatpush.msra.mxu0 0.0
    %2053 = vmatpush.msra.mxu0 0.0
    %2054 = vmatpush.msra.mxu0 0.0
    %2055 = vmatpush.msra.mxu0 0.0
    %2056 = vmatpush.msra.mxu0 %v2024
    %2057 = vmatpush.msra.mxu0 %v2023
    %2058 = vmatpush.msra.mxu0 %v2022
    %2059 = vmatpush.msra.mxu0 %v2021
    %2060 = vmatmul.f32.gmra.mxu0 %v1628
    %v2061 = vpop.f32.mrf.mxu0
    %v2062 = vadd.f32 %v2042, %v2061
    %2063 = vmatmul.f32.gmra.mxu0 %v1631
    %v2064 = vpop.f32.mrf.mxu0
    %v2065 = vadd.f32 %v2042, %v2064
    %2066 = vdwg.mxu0
    %s2067 = scalar_lea.vmem %s5, 4
    %v2068 = vld [vmem:[%s2067] sm:$0x1]
    %v2070 = vperm.slane %v2068, 0
    %2072 = vmatpush.msra.mxu0 0.0
    %2073 = vmatpush.msra.mxu0 0.0
    %2074 = vmatpush.msra.mxu0 0.0
    %2075 = vmatpush.msra.mxu0 0.0
    %2076 = vmatpush.msra.mxu0 0.0
    %2077 = vmatpush.msra.mxu0 0.0
    %2078 = vmatpush.msra.mxu0 0.0
    %2079 = vmatpush.msra.mxu0 0.0
    %2080 = vmatpush.msra.mxu0 0.0
    %2081 = vmatpush.msra.mxu0 0.0
    %2082 = vmatpush.msra.mxu0 0.0
    %2083 = vmatpush.msra.mxu0 0.0
    %2084 = vmatpush.msra.mxu0 %v2029
    %2085 = vmatpush.msra.mxu0 %v2028
    %2086 = vmatpush.msra.mxu0 %v2027
    %2087 = vmatpush.msra.mxu0 %v2026
    %2088 = vmatmul.f32.gmra.mxu0 %v1628
    %v2089 = vpop.f32.mrf.mxu0
    %v2090 = vadd.f32 %v2070, %v2089
    %2091 = vmatmul.f32.gmra.mxu0 %v1631
    %v2092 = vpop.f32.mrf.mxu0
    %v2093 = vadd.f32 %v2070, %v2092
    %2094 = vdwg.mxu0
    %v2096 = vperm.slane %v2033, 0
    %v2098 = vmul.f32 %v2090, %v2096
    %v2099 = vsel %vm211, %v2098, 0.0
    %2100 = vadd.xlane.f32.xlu0 %v2099
    %v2101 = vpop.xlane.xlu0 %2100
    %v2103 = vsel %vm211, %v2031, 0
    %v2106 = vsel %vm211, %v2062, 0
    %2108 = vmatpush.xpose.msra.mxu0 0.0
    %2109 = vmatpush.xpose.msra.mxu0 0.0
    %2110 = vmatpush.xpose.msra.mxu0 0.0
    %2111 = vmatpush.xpose.msra.mxu0 0.0
    %2112 = vmatpush.xpose.msra.mxu0 0.0
    %2113 = vmatpush.xpose.msra.mxu0 0.0
    %2114 = vmatpush.xpose.msra.mxu0 0.0
    %2115 = vmatpush.xpose.msra.mxu0 0.0
    %2116 = vmatpush.xpose.msra.mxu0 0.0
    %2117 = vmatpush.xpose.msra.mxu0 0.0
    %2118 = vmatpush.xpose.msra.mxu0 0.0
    %2119 = vmatpush.xpose.msra.mxu0 0.0
    %2120 = vmatpush.xpose.msra.mxu0 0.0
    %2121 = vmatpush.xpose.msra.mxu0 0.0
    %2122 = vmatpush.xpose.msra.mxu0 0.0
    %2123 = vmatpush.xpose.msra.mxu0 %v2106
    %2124 = vmatmul.f32.gmra.mxu0 %v2103
    %v2125 = vpop.f32.mrf.mxu0
    %v2126 = vadd.f32 0.0, %v2125
    %2127 = vdwg.mxu0
    %v2128 = vperm.slane %v2126, 0
    %v2129 = vadd.f32 %v2101, %v2128
    %v2130 = vtanh.pop %v2129
    %v2131 = vmul.f32 %v2130, 1.442695
    %v2132 = vpow.pop %v2131
    %v2133 = vsel %vm246, %v2132, 0.0
    %2134 = vadd.xlane.f32.xlu0 %v2133
    %v2135 = vpop.xlane.xlu0 %2134
    %v2136 = vrcp.pop %v2135
    %v2137 = vmul.f32 %v2132, %v2136
    %v2139 = vsel %vm246, %v2137, 0
    %2141 = vmatpush.msra.mxu0 0.0
    %2142 = vmatpush.msra.mxu0 0.0
    %2143 = vmatpush.msra.mxu0 0.0
    %2144 = vmatpush.msra.mxu0 0.0
    %2145 = vmatpush.msra.mxu0 0.0
    %2146 = vmatpush.msra.mxu0 0.0
    %2147 = vmatpush.msra.mxu0 0.0
    %2148 = vmatpush.msra.mxu0 0.0
    %2149 = vmatpush.msra.mxu0 0.0
    %2150 = vmatpush.msra.mxu0 0.0
    %2151 = vmatpush.msra.mxu0 0.0
    %2152 = vmatpush.msra.mxu0 0.0
    %2153 = vmatpush.msra.mxu0 0.0
    %2154 = vmatpush.msra.mxu0 0.0
    %2155 = vmatpush.msra.mxu0 0.0
    %2156 = vmatpush.msra.mxu0 %v2062
    %2157 = vmatmul.f32.gmra.mxu0 %v2139
    %v2158 = vpop.f32.mrf.mxu0
    %v2159 = vadd.f32 0.0, %v2158
    %2160 = vdwg.mxu0
    %2161 = vrot.lane.b32.xlu0 %v2096, 16
    %v2162 = vpop.permute.xlu0 %2161
    %v2164 = vmul.f32 %v2090, %v2162
    %2166 = vrot.lane.b32.xlu0 %v2164, 112
    %v2167 = vpop.permute.xlu0 %2166
    %v2169 = vsel %vm211, %v2167, 0.0
    %2170 = vadd.xlane.f32.xlu0 %v2169
    %v2171 = vpop.xlane.xlu0 %2170
    %2172 = vrot.lane.b32.xlu0 %v2062, 112
    %v2173 = vpop.permute.xlu0 %2172
    %v2174 = vsel %vm211, %v2173, 0
    %2176 = vmatpush.xpose.msra.mxu0 0.0
    %2177 = vmatpush.xpose.msra.mxu0 0.0
    %2178 = vmatpush.xpose.msra.mxu0 0.0
    %2179 = vmatpush.xpose.msra.mxu0 0.0
    %2180 = vmatpush.xpose.msra.mxu0 0.0
    %2181 = vmatpush.xpose.msra.mxu0 0.0
    %2182 = vmatpush.xpose.msra.mxu0 0.0
    %2183 = vmatpush.xpose.msra.mxu0 0.0
    %2184 = vmatpush.xpose.msra.mxu0 0.0
    %2185 = vmatpush.xpose.msra.mxu0 0.0
    %2186 = vmatpush.xpose.msra.mxu0 0.0
    %2187 = vmatpush.xpose.msra.mxu0 0.0
    %2188 = vmatpush.xpose.msra.mxu0 0.0
    %2189 = vmatpush.xpose.msra.mxu0 0.0
    %2190 = vmatpush.xpose.msra.mxu0 0.0
    %2191 = vmatpush.xpose.msra.mxu0 %v2174
    %2192 = vmatmul.f32.gmra.mxu0 %v2103
    %v2193 = vpop.f32.mrf.mxu0
    %v2194 = vadd.f32 0.0, %v2193
    %2195 = vdwg.mxu0
    %v2196 = vperm.slane %v2194, 0
    %v2197 = vadd.f32 %v2171, %v2196
    %v2198 = vtanh.pop %v2197
    %v2199 = vmul.f32 %v2198, 1.442695
    %v2200 = vpow.pop %v2199
    %v2201 = vsel %vm246, %v2200, 0.0
    %2202 = vadd.xlane.f32.xlu0 %v2201
    %v2203 = vpop.xlane.xlu0 %2202
    %v2204 = vrcp.pop %v2203
    %v2205 = vmul.f32 %v2200, %v2204
    %v2208 = vsel %vm246, %v2205, 0
    %2210 = vmatpush.msra.mxu0 0.0
    %2211 = vmatpush.msra.mxu0 0.0
    %2212 = vmatpush.msra.mxu0 0.0
    %2213 = vmatpush.msra.mxu0 0.0
    %2214 = vmatpush.msra.mxu0 0.0
    %2215 = vmatpush.msra.mxu0 0.0
    %2216 = vmatpush.msra.mxu0 0.0
    %2217 = vmatpush.msra.mxu0 0.0
    %2218 = vmatpush.msra.mxu0 0.0
    %2219 = vmatpush.msra.mxu0 0.0
    %2220 = vmatpush.msra.mxu0 0.0
    %2221 = vmatpush.msra.mxu0 0.0
    %2222 = vmatpush.msra.mxu0 0.0
    %2223 = vmatpush.msra.mxu0 0.0
    %2224 = vmatpush.msra.mxu0 0.0
    %2225 = vmatpush.msra.mxu0 %v2173
    %2226 = vmatmul.f32.gmra.mxu0 %v2208
    %v2227 = vpop.f32.mrf.mxu0
    %v2228 = vadd.f32 0.0, %v2227
    %2229 = vdwg.mxu0
    %v2231 = vsel %vm211, %v2228, 0
    %2233 = vmatpush.msra.mxu0 0.0
    %2234 = vmatpush.msra.mxu0 0.0
    %2235 = vmatpush.msra.mxu0 0.0
    %2236 = vmatpush.msra.mxu0 0.0
    %2237 = vmatpush.msra.mxu0 0.0
    %2238 = vmatpush.msra.mxu0 0.0
    %2239 = vmatpush.msra.mxu0 0.0
    %2240 = vmatpush.msra.mxu0 0.0
    %2241 = vmatpush.msra.mxu0 0.0
    %2242 = vmatpush.msra.mxu0 0.0
    %2243 = vmatpush.msra.mxu0 0.0
    %2244 = vmatpush.msra.mxu0 0.0
    %2245 = vmatpush.msra.mxu0 0.0
    %2246 = vmatpush.msra.mxu0 0.0
    %2247 = vmatpush.msra.mxu0 %v2038
    %2248 = vmatpush.msra.mxu0 %v2037
    %2249 = vmatmul.f32.gmra.mxu0 %v2231
    %v2250 = vpop.f32.mrf.mxu0
    %v2251 = vadd.f32 0.0, %v2250
    %2252 = vdwg.mxu0
    %v2254 = vsel %vm211, %v2159, 0
    %2256 = vmatpush.msra.mxu0 0.0
    %2257 = vmatpush.msra.mxu0 0.0
    %2258 = vmatpush.msra.mxu0 0.0
    %2259 = vmatpush.msra.mxu0 0.0
    %2260 = vmatpush.msra.mxu0 0.0
    %2261 = vmatpush.msra.mxu0 0.0
    %2262 = vmatpush.msra.mxu0 0.0
    %2263 = vmatpush.msra.mxu0 0.0
    %2264 = vmatpush.msra.mxu0 0.0
    %2265 = vmatpush.msra.mxu0 0.0
    %2266 = vmatpush.msra.mxu0 0.0
    %2267 = vmatpush.msra.mxu0 0.0
    %2268 = vmatpush.msra.mxu0 0.0
    %2269 = vmatpush.msra.mxu0 0.0
    %2270 = vmatpush.msra.mxu0 %v2036
    %2271 = vmatpush.msra.mxu0 %v2035
    %2272 = vmatmul.f32.gmra.mxu0 %v2254
    %v2273 = vpop.f32.mrf.mxu0
    %v2274 = vadd.f32 %v2251, %v2273
    %2275 = vdwg.mxu0
    %v2276 = vmul.f32 %v2093, %v2096
    %v2277 = vsel %vm211, %v2276, 0.0
    %2278 = vadd.xlane.f32.xlu0 %v2277
    %v2279 = vpop.xlane.xlu0 %2278
    %v2281 = vsel %vm211, %v2065, 0
    %2283 = vmatpush.xpose.msra.mxu0 0.0
    %2284 = vmatpush.xpose.msra.mxu0 0.0
    %2285 = vmatpush.xpose.msra.mxu0 0.0
    %2286 = vmatpush.xpose.msra.mxu0 0.0
    %2287 = vmatpush.xpose.msra.mxu0 0.0
    %2288 = vmatpush.xpose.msra.mxu0 0.0
    %2289 = vmatpush.xpose.msra.mxu0 0.0
    %2290 = vmatpush.xpose.msra.mxu0 0.0
    %2291 = vmatpush.xpose.msra.mxu0 0.0
    %2292 = vmatpush.xpose.msra.mxu0 0.0
    %2293 = vmatpush.xpose.msra.mxu0 0.0
    %2294 = vmatpush.xpose.msra.mxu0 0.0
    %2295 = vmatpush.xpose.msra.mxu0 0.0
    %2296 = vmatpush.xpose.msra.mxu0 0.0
    %2297 = vmatpush.xpose.msra.mxu0 0.0
    %2298 = vmatpush.xpose.msra.mxu0 %v2281
    %2299 = vmatmul.f32.gmra.mxu0 %v2103
    %v2300 = vpop.f32.mrf.mxu0
    %v2301 = vadd.f32 0.0, %v2300
    %2302 = vdwg.mxu0
    %v2303 = vperm.slane %v2301, 0
    %v2304 = vadd.f32 %v2279, %v2303
    %v2305 = vtanh.pop %v2304
    %v2306 = vmul.f32 %v2305, 1.442695
    %v2307 = vpow.pop %v2306
    %v2308 = vsel %vm246, %v2307, 0.0
    %2309 = vadd.xlane.f32.xlu0 %v2308
    %v2310 = vpop.xlane.xlu0 %2309
    %v2311 = vrcp.pop %v2310
    %v2312 = vmul.f32 %v2307, %v2311
    %v2314 = vsel %vm246, %v2312, 0
    %2316 = vmatpush.msra.mxu0 0.0
    %2317 = vmatpush.msra.mxu0 0.0
    %2318 = vmatpush.msra.mxu0 0.0
    %2319 = vmatpush.msra.mxu0 0.0
    %2320 = vmatpush.msra.mxu0 0.0
    %2321 = vmatpush.msra.mxu0 0.0
    %2322 = vmatpush.msra.mxu0 0.0
    %2323 = vmatpush.msra.mxu0 0.0
    %2324 = vmatpush.msra.mxu0 0.0
    %2325 = vmatpush.msra.mxu0 0.0
    %2326 = vmatpush.msra.mxu0 0.0
    %2327 = vmatpush.msra.mxu0 0.0
    %2328 = vmatpush.msra.mxu0 0.0
    %2329 = vmatpush.msra.mxu0 0.0
    %2330 = vmatpush.msra.mxu0 0.0
    %2331 = vmatpush.msra.mxu0 %v2065
    %2332 = vmatmul.f32.gmra.mxu0 %v2314
    %v2333 = vpop.f32.mrf.mxu0
    %v2334 = vadd.f32 0.0, %v2333
    %2335 = vdwg.mxu0
    %v2336 = vmul.f32 %v2093, %v2162
    %2338 = vrot.lane.b32.xlu0 %v2336, 112
    %v2339 = vpop.permute.xlu0 %2338
    %v2341 = vsel %vm211, %v2339, 0.0
    %2342 = vadd.xlane.f32.xlu0 %v2341
    %v2343 = vpop.xlane.xlu0 %2342
    %2344 = vrot.lane.b32.xlu0 %v2065, 112
    %v2345 = vpop.permute.xlu0 %2344
    %v2346 = vsel %vm211, %v2345, 0
    %2348 = vmatpush.xpose.msra.mxu0 0.0
    %2349 = vmatpush.xpose.msra.mxu0 0.0
    %2350 = vmatpush.xpose.msra.mxu0 0.0
    %2351 = vmatpush.xpose.msra.mxu0 0.0
    %2352 = vmatpush.xpose.msra.mxu0 0.0
    %2353 = vmatpush.xpose.msra.mxu0 0.0
    %2354 = vmatpush.xpose.msra.mxu0 0.0
    %2355 = vmatpush.xpose.msra.mxu0 0.0
    %2356 = vmatpush.xpose.msra.mxu0 0.0
    %2357 = vmatpush.xpose.msra.mxu0 0.0
    %2358 = vmatpush.xpose.msra.mxu0 0.0
    %2359 = vmatpush.xpose.msra.mxu0 0.0
    %2360 = vmatpush.xpose.msra.mxu0 0.0
    %2361 = vmatpush.xpose.msra.mxu0 0.0
    %2362 = vmatpush.xpose.msra.mxu0 0.0
    %2363 = vmatpush.xpose.msra.mxu0 %v2346
    %2364 = vmatmul.f32.gmra.mxu0 %v2103
    %v2365 = vpop.f32.mrf.mxu0
    %v2366 = vadd.f32 0.0, %v2365
    %2367 = vdwg.mxu0
    %v2368 = vperm.slane %v2366, 0
    %v2369 = vadd.f32 %v2343, %v2368
    %v2370 = vtanh.pop %v2369
    %v2371 = vmul.f32 %v2370, 1.442695
    %v2372 = vpow.pop %v2371
    %v2373 = vsel %vm246, %v2372, 0.0
    %2374 = vadd.xlane.f32.xlu0 %v2373
    %v2375 = vpop.xlane.xlu0 %2374
    %v2376 = vrcp.pop %v2375
    %v2377 = vmul.f32 %v2372, %v2376
    %v2380 = vsel %vm246, %v2377, 0
    %2382 = vmatpush.msra.mxu0 0.0
    %2383 = vmatpush.msra.mxu0 0.0
    %2384 = vmatpush.msra.mxu0 0.0
    %2385 = vmatpush.msra.mxu0 0.0
    %2386 = vmatpush.msra.mxu0 0.0
    %2387 = vmatpush.msra.mxu0 0.0
    %2388 = vmatpush.msra.mxu0 0.0
    %2389 = vmatpush.msra.mxu0 0.0
    %2390 = vmatpush.msra.mxu0 0.0
    %2391 = vmatpush.msra.mxu0 0.0
    %2392 = vmatpush.msra.mxu0 0.0
    %2393 = vmatpush.msra.mxu0 0.0
    %2394 = vmatpush.msra.mxu0 0.0
    %2395 = vmatpush.msra.mxu0 0.0
    %2396 = vmatpush.msra.mxu0 0.0
    %2397 = vmatpush.msra.mxu0 %v2345
    %2398 = vmatmul.f32.gmra.mxu0 %v2380
    %v2399 = vpop.f32.mrf.mxu0
    %v2400 = vadd.f32 0.0, %v2399
    %2401 = vdwg.mxu0
    %v2403 = vsel %vm211, %v2400, 0
    %2405 = vmatpush.msra.mxu0 0.0
    %2406 = vmatpush.msra.mxu0 0.0
    %2407 = vmatpush.msra.mxu0 0.0
    %2408 = vmatpush.msra.mxu0 0.0
    %2409 = vmatpush.msra.mxu0 0.0
    %2410 = vmatpush.msra.mxu0 0.0
    %2411 = vmatpush.msra.mxu0 0.0
    %2412 = vmatpush.msra.mxu0 0.0
    %2413 = vmatpush.msra.mxu0 0.0
    %2414 = vmatpush.msra.mxu0 0.0
    %2415 = vmatpush.msra.mxu0 0.0
    %2416 = vmatpush.msra.mxu0 0.0
    %2417 = vmatpush.msra.mxu0 0.0
    %2418 = vmatpush.msra.mxu0 0.0
    %2419 = vmatpush.msra.mxu0 %v2038
    %2420 = vmatpush.msra.mxu0 %v2037
    %2421 = vmatmul.f32.gmra.mxu0 %v2403
    %v2422 = vpop.f32.mrf.mxu0
    %v2423 = vadd.f32 0.0, %v2422
    %2424 = vdwg.mxu0
    %v2426 = vsel %vm211, %v2334, 0
    %2428 = vmatpush.msra.mxu0 0.0
    %2429 = vmatpush.msra.mxu0 0.0
    %2430 = vmatpush.msra.mxu0 0.0
    %2431 = vmatpush.msra.mxu0 0.0
    %2432 = vmatpush.msra.mxu0 0.0
    %2433 = vmatpush.msra.mxu0 0.0
    %2434 = vmatpush.msra.mxu0 0.0
    %2435 = vmatpush.msra.mxu0 0.0
    %2436 = vmatpush.msra.mxu0 0.0
    %2437 = vmatpush.msra.mxu0 0.0
    %2438 = vmatpush.msra.mxu0 0.0
    %2439 = vmatpush.msra.mxu0 0.0
    %2440 = vmatpush.msra.mxu0 0.0
    %2441 = vmatpush.msra.mxu0 0.0
    %2442 = vmatpush.msra.mxu0 %v2036
    %2443 = vmatpush.msra.mxu0 %v2035
    %2444 = vmatmul.f32.gmra.mxu0 %v2426
    %v2445 = vpop.f32.mrf.mxu0
    %v2446 = vadd.f32 %v2423, %v2445
    %2447 = vdwg.mxu0
    %s2448 = scalar_lea.vmem %s9, 4
    %v2449 = vld [vmem:[%s2448] sm:$0x1]
    %v2451 = vperm.slane %v2449, 0
    %v2453 = vadd.f32 %v2274, %v2451
    %v2454 = vadd.f32 %v2446, %v2451
    %s2455 = scalar_lea.vmem %s2, 160
    %v2456 = vld [vmem:[%s2455] sm:$0xff]
    %v2457 = vld [vmem:[%s2455 + $0x8] sm:$0xff]
    %v2458 = vld [vmem:[%s2455 + $0x10] sm:$0xff]
    %v2459 = vld [vmem:[%s2455 + $0x18] sm:$0xff]
    %s2460 = scalar_lea.vmem [#allocation2], 160
    %v2461 = vld [vmem:[%s2460] sm:$0xff]
    %v2462 = vld [vmem:[%s2460 + $0x8] sm:$0xff]
    %v2463 = vld [vmem:[%s2460 + $0x10] sm:$0xff]
    %v2464 = vld [vmem:[%s2460 + $0x18] sm:$0xff]
    %s2465 = scalar_lea.vmem %s6, 5
    %v2466 = vld [vmem:[%s2465] sm:$0x1]
    %s2467 = scalar_lea.vmem %s7, 5
    %v2468 = vld [vmem:[%s2467] sm:$0x1]
    %s2469 = scalar_lea.vmem [#allocation4], 160
    %v2470 = vld [vmem:[%s2469] sm:$0xff]
    %v2471 = vld [vmem:[%s2469 + $0x8] sm:$0xff]
    %v2472 = vld [vmem:[%s2469 + $0x10] sm:$0xff]
    %v2473 = vld [vmem:[%s2469 + $0x18] sm:$0xff]
    %s2474 = scalar_lea.vmem %s3, 5
    %v2475 = vld [vmem:[%s2474] sm:$0x1]
    %v2477 = vperm.slane %v2475, 0
    %2479 = vmatpush.msra.mxu0 0.0
    %2480 = vmatpush.msra.mxu0 0.0
    %2481 = vmatpush.msra.mxu0 0.0
    %2482 = vmatpush.msra.mxu0 0.0
    %2483 = vmatpush.msra.mxu0 0.0
    %2484 = vmatpush.msra.mxu0 0.0
    %2485 = vmatpush.msra.mxu0 0.0
    %2486 = vmatpush.msra.mxu0 0.0
    %2487 = vmatpush.msra.mxu0 0.0
    %2488 = vmatpush.msra.mxu0 0.0
    %2489 = vmatpush.msra.mxu0 0.0
    %2490 = vmatpush.msra.mxu0 0.0
    %2491 = vmatpush.msra.mxu0 %v2459
    %2492 = vmatpush.msra.mxu0 %v2458
    %2493 = vmatpush.msra.mxu0 %v2457
    %2494 = vmatpush.msra.mxu0 %v2456
    %2495 = vmatmul.f32.gmra.mxu0 %v1628
    %v2496 = vpop.f32.mrf.mxu0
    %v2497 = vadd.f32 %v2477, %v2496
    %2498 = vmatmul.f32.gmra.mxu0 %v1631
    %v2499 = vpop.f32.mrf.mxu0
    %v2500 = vadd.f32 %v2477, %v2499
    %2501 = vdwg.mxu0
    %s2502 = scalar_lea.vmem %s5, 5
    %v2503 = vld [vmem:[%s2502] sm:$0x1]
    %v2505 = vperm.slane %v2503, 0
    %2507 = vmatpush.msra.mxu0 0.0
    %2508 = vmatpush.msra.mxu0 0.0
    %2509 = vmatpush.msra.mxu0 0.0
    %2510 = vmatpush.msra.mxu0 0.0
    %2511 = vmatpush.msra.mxu0 0.0
    %2512 = vmatpush.msra.mxu0 0.0
    %2513 = vmatpush.msra.mxu0 0.0
    %2514 = vmatpush.msra.mxu0 0.0
    %2515 = vmatpush.msra.mxu0 0.0
    %2516 = vmatpush.msra.mxu0 0.0
    %2517 = vmatpush.msra.mxu0 0.0
    %2518 = vmatpush.msra.mxu0 0.0
    %2519 = vmatpush.msra.mxu0 %v2464
    %2520 = vmatpush.msra.mxu0 %v2463
    %2521 = vmatpush.msra.mxu0 %v2462
    %2522 = vmatpush.msra.mxu0 %v2461
    %2523 = vmatmul.f32.gmra.mxu0 %v1159
    %v2524 = vpop.f32.mrf.mxu0
    %v2525 = vadd.f32 %v2505, %v2524
    %2526 = vmatmul.f32.gmra.mxu0 %v1162
    %v2527 = vpop.f32.mrf.mxu0
    %v2528 = vadd.f32 %v2505, %v2527
    %2529 = vdwg.mxu0
    %v2531 = vperm.slane %v2468, 0
    %v2533 = vmul.f32 %v2525, %v2531
    %v2534 = vsel %vm211, %v2533, 0.0
    %2535 = vadd.xlane.f32.xlu0 %v2534
    %v2536 = vpop.xlane.xlu0 %2535
    %v2538 = vsel %vm211, %v2466, 0
    %v2541 = vsel %vm211, %v2497, 0
    %2543 = vmatpush.xpose.msra.mxu0 0.0
    %2544 = vmatpush.xpose.msra.mxu0 0.0
    %2545 = vmatpush.xpose.msra.mxu0 0.0
    %2546 = vmatpush.xpose.msra.mxu0 0.0
    %2547 = vmatpush.xpose.msra.mxu0 0.0
    %2548 = vmatpush.xpose.msra.mxu0 0.0
    %2549 = vmatpush.xpose.msra.mxu0 0.0
    %2550 = vmatpush.xpose.msra.mxu0 0.0
    %2551 = vmatpush.xpose.msra.mxu0 0.0
    %2552 = vmatpush.xpose.msra.mxu0 0.0
    %2553 = vmatpush.xpose.msra.mxu0 0.0
    %2554 = vmatpush.xpose.msra.mxu0 0.0
    %2555 = vmatpush.xpose.msra.mxu0 0.0
    %2556 = vmatpush.xpose.msra.mxu0 0.0
    %2557 = vmatpush.xpose.msra.mxu0 0.0
    %2558 = vmatpush.xpose.msra.mxu0 %v2541
    %2559 = vmatmul.f32.gmra.mxu0 %v2538
    %v2560 = vpop.f32.mrf.mxu0
    %v2561 = vadd.f32 0.0, %v2560
    %2562 = vdwg.mxu0
    %v2563 = vperm.slane %v2561, 0
    %v2564 = vadd.f32 %v2536, %v2563
    %v2565 = vtanh.pop %v2564
    %v2566 = vmul.f32 %v2565, 1.442695
    %v2567 = vpow.pop %v2566
    %v2568 = vsel %vm246, %v2567, 0.0
    %2569 = vadd.xlane.f32.xlu0 %v2568
    %v2570 = vpop.xlane.xlu0 %2569
    %v2571 = vrcp.pop %v2570
    %v2572 = vmul.f32 %v2567, %v2571
    %v2574 = vsel %vm246, %v2572, 0
    %2576 = vmatpush.msra.mxu0 0.0
    %2577 = vmatpush.msra.mxu0 0.0
    %2578 = vmatpush.msra.mxu0 0.0
    %2579 = vmatpush.msra.mxu0 0.0
    %2580 = vmatpush.msra.mxu0 0.0
    %2581 = vmatpush.msra.mxu0 0.0
    %2582 = vmatpush.msra.mxu0 0.0
    %2583 = vmatpush.msra.mxu0 0.0
    %2584 = vmatpush.msra.mxu0 0.0
    %2585 = vmatpush.msra.mxu0 0.0
    %2586 = vmatpush.msra.mxu0 0.0
    %2587 = vmatpush.msra.mxu0 0.0
    %2588 = vmatpush.msra.mxu0 0.0
    %2589 = vmatpush.msra.mxu0 0.0
    %2590 = vmatpush.msra.mxu0 0.0
    %2591 = vmatpush.msra.mxu0 %v2497
    %2592 = vmatmul.f32.gmra.mxu0 %v2574
    %v2593 = vpop.f32.mrf.mxu0
    %v2594 = vadd.f32 0.0, %v2593
    %2595 = vdwg.mxu0
    %2596 = vrot.lane.b32.xlu0 %v2531, 16
    %v2597 = vpop.permute.xlu0 %2596
    %v2599 = vmul.f32 %v2525, %v2597
    %2601 = vrot.lane.b32.xlu0 %v2599, 112
    %v2602 = vpop.permute.xlu0 %2601
    %v2604 = vsel %vm211, %v2602, 0.0
    %2605 = vadd.xlane.f32.xlu0 %v2604
    %v2606 = vpop.xlane.xlu0 %2605
    %2607 = vrot.lane.b32.xlu0 %v2497, 112
    %v2608 = vpop.permute.xlu0 %2607
    %v2609 = vsel %vm211, %v2608, 0
    %2611 = vmatpush.xpose.msra.mxu0 0.0
    %2612 = vmatpush.xpose.msra.mxu0 0.0
    %2613 = vmatpush.xpose.msra.mxu0 0.0
    %2614 = vmatpush.xpose.msra.mxu0 0.0
    %2615 = vmatpush.xpose.msra.mxu0 0.0
    %2616 = vmatpush.xpose.msra.mxu0 0.0
    %2617 = vmatpush.xpose.msra.mxu0 0.0
    %2618 = vmatpush.xpose.msra.mxu0 0.0
    %2619 = vmatpush.xpose.msra.mxu0 0.0
    %2620 = vmatpush.xpose.msra.mxu0 0.0
    %2621 = vmatpush.xpose.msra.mxu0 0.0
    %2622 = vmatpush.xpose.msra.mxu0 0.0
    %2623 = vmatpush.xpose.msra.mxu0 0.0
    %2624 = vmatpush.xpose.msra.mxu0 0.0
    %2625 = vmatpush.xpose.msra.mxu0 0.0
    %2626 = vmatpush.xpose.msra.mxu0 %v2609
    %2627 = vmatmul.f32.gmra.mxu0 %v2538
    %v2628 = vpop.f32.mrf.mxu0
    %v2629 = vadd.f32 0.0, %v2628
    %2630 = vdwg.mxu0
    %v2631 = vperm.slane %v2629, 0
    %v2632 = vadd.f32 %v2606, %v2631
    %v2633 = vtanh.pop %v2632
    %v2634 = vmul.f32 %v2633, 1.442695
    %v2635 = vpow.pop %v2634
    %v2636 = vsel %vm246, %v2635, 0.0
    %2637 = vadd.xlane.f32.xlu0 %v2636
    %v2638 = vpop.xlane.xlu0 %2637
    %v2639 = vrcp.pop %v2638
    %v2640 = vmul.f32 %v2635, %v2639
    %v2643 = vsel %vm246, %v2640, 0
    %2645 = vmatpush.msra.mxu0 0.0
    %2646 = vmatpush.msra.mxu0 0.0
    %2647 = vmatpush.msra.mxu0 0.0
    %2648 = vmatpush.msra.mxu0 0.0
    %2649 = vmatpush.msra.mxu0 0.0
    %2650 = vmatpush.msra.mxu0 0.0
    %2651 = vmatpush.msra.mxu0 0.0
    %2652 = vmatpush.msra.mxu0 0.0
    %2653 = vmatpush.msra.mxu0 0.0
    %2654 = vmatpush.msra.mxu0 0.0
    %2655 = vmatpush.msra.mxu0 0.0
    %2656 = vmatpush.msra.mxu0 0.0
    %2657 = vmatpush.msra.mxu0 0.0
    %2658 = vmatpush.msra.mxu0 0.0
    %2659 = vmatpush.msra.mxu0 0.0
    %2660 = vmatpush.msra.mxu0 %v2608
    %2661 = vmatmul.f32.gmra.mxu0 %v2643
    %v2662 = vpop.f32.mrf.mxu0
    %v2663 = vadd.f32 0.0, %v2662
    %2664 = vdwg.mxu0
    %v2666 = vsel %vm211, %v2663, 0
    %2668 = vmatpush.msra.mxu0 0.0
    %2669 = vmatpush.msra.mxu0 0.0
    %2670 = vmatpush.msra.mxu0 0.0
    %2671 = vmatpush.msra.mxu0 0.0
    %2672 = vmatpush.msra.mxu0 0.0
    %2673 = vmatpush.msra.mxu0 0.0
    %2674 = vmatpush.msra.mxu0 0.0
    %2675 = vmatpush.msra.mxu0 0.0
    %2676 = vmatpush.msra.mxu0 0.0
    %2677 = vmatpush.msra.mxu0 0.0
    %2678 = vmatpush.msra.mxu0 0.0
    %2679 = vmatpush.msra.mxu0 0.0
    %2680 = vmatpush.msra.mxu0 0.0
    %2681 = vmatpush.msra.mxu0 0.0
    %2682 = vmatpush.msra.mxu0 %v2473
    %2683 = vmatpush.msra.mxu0 %v2472
    %2684 = vmatmul.f32.gmra.mxu0 %v2666
    %v2685 = vpop.f32.mrf.mxu0
    %v2686 = vadd.f32 0.0, %v2685
    %2687 = vdwg.mxu0
    %v2689 = vsel %vm211, %v2594, 0
    %2691 = vmatpush.msra.mxu0 0.0
    %2692 = vmatpush.msra.mxu0 0.0
    %2693 = vmatpush.msra.mxu0 0.0
    %2694 = vmatpush.msra.mxu0 0.0
    %2695 = vmatpush.msra.mxu0 0.0
    %2696 = vmatpush.msra.mxu0 0.0
    %2697 = vmatpush.msra.mxu0 0.0
    %2698 = vmatpush.msra.mxu0 0.0
    %2699 = vmatpush.msra.mxu0 0.0
    %2700 = vmatpush.msra.mxu0 0.0
    %2701 = vmatpush.msra.mxu0 0.0
    %2702 = vmatpush.msra.mxu0 0.0
    %2703 = vmatpush.msra.mxu0 0.0
    %2704 = vmatpush.msra.mxu0 0.0
    %2705 = vmatpush.msra.mxu0 %v2471
    %2706 = vmatpush.msra.mxu0 %v2470
    %2707 = vmatmul.f32.gmra.mxu0 %v2689
    %v2708 = vpop.f32.mrf.mxu0
    %v2709 = vadd.f32 %v2686, %v2708
    %2710 = vdwg.mxu0
    %v2711 = vmul.f32 %v2528, %v2531
    %v2712 = vsel %vm211, %v2711, 0.0
    %2713 = vadd.xlane.f32.xlu0 %v2712
    %v2714 = vpop.xlane.xlu0 %2713
    %v2716 = vsel %vm211, %v2500, 0
    %2718 = vmatpush.xpose.msra.mxu0 0.0
    %2719 = vmatpush.xpose.msra.mxu0 0.0
    %2720 = vmatpush.xpose.msra.mxu0 0.0
    %2721 = vmatpush.xpose.msra.mxu0 0.0
    %2722 = vmatpush.xpose.msra.mxu0 0.0
    %2723 = vmatpush.xpose.msra.mxu0 0.0
    %2724 = vmatpush.xpose.msra.mxu0 0.0
    %2725 = vmatpush.xpose.msra.mxu0 0.0
    %2726 = vmatpush.xpose.msra.mxu0 0.0
    %2727 = vmatpush.xpose.msra.mxu0 0.0
    %2728 = vmatpush.xpose.msra.mxu0 0.0
    %2729 = vmatpush.xpose.msra.mxu0 0.0
    %2730 = vmatpush.xpose.msra.mxu0 0.0
    %2731 = vmatpush.xpose.msra.mxu0 0.0
    %2732 = vmatpush.xpose.msra.mxu0 0.0
    %2733 = vmatpush.xpose.msra.mxu0 %v2716
    %2734 = vmatmul.f32.gmra.mxu0 %v2538
    %v2735 = vpop.f32.mrf.mxu0
    %v2736 = vadd.f32 0.0, %v2735
    %2737 = vdwg.mxu0
    %v2738 = vperm.slane %v2736, 0
    %v2739 = vadd.f32 %v2714, %v2738
    %v2740 = vtanh.pop %v2739
    %v2741 = vmul.f32 %v2740, 1.442695
    %v2742 = vpow.pop %v2741
    %v2743 = vsel %vm246, %v2742, 0.0
    %2744 = vadd.xlane.f32.xlu0 %v2743
    %v2745 = vpop.xlane.xlu0 %2744
    %v2746 = vrcp.pop %v2745
    %v2747 = vmul.f32 %v2742, %v2746
    %v2749 = vsel %vm246, %v2747, 0
    %2751 = vmatpush.msra.mxu0 0.0
    %2752 = vmatpush.msra.mxu0 0.0
    %2753 = vmatpush.msra.mxu0 0.0
    %2754 = vmatpush.msra.mxu0 0.0
    %2755 = vmatpush.msra.mxu0 0.0
    %2756 = vmatpush.msra.mxu0 0.0
    %2757 = vmatpush.msra.mxu0 0.0
    %2758 = vmatpush.msra.mxu0 0.0
    %2759 = vmatpush.msra.mxu0 0.0
    %2760 = vmatpush.msra.mxu0 0.0
    %2761 = vmatpush.msra.mxu0 0.0
    %2762 = vmatpush.msra.mxu0 0.0
    %2763 = vmatpush.msra.mxu0 0.0
    %2764 = vmatpush.msra.mxu0 0.0
    %2765 = vmatpush.msra.mxu0 0.0
    %2766 = vmatpush.msra.mxu0 %v2500
    %2767 = vmatmul.f32.gmra.mxu0 %v2749
    %v2768 = vpop.f32.mrf.mxu0
    %v2769 = vadd.f32 0.0, %v2768
    %2770 = vdwg.mxu0
    %v2771 = vmul.f32 %v2528, %v2597
    %2773 = vrot.lane.b32.xlu0 %v2771, 112
    %v2774 = vpop.permute.xlu0 %2773
    %v2776 = vsel %vm211, %v2774, 0.0
    %2777 = vadd.xlane.f32.xlu0 %v2776
    %v2778 = vpop.xlane.xlu0 %2777
    %2779 = vrot.lane.b32.xlu0 %v2500, 112
    %v2780 = vpop.permute.xlu0 %2779
    %v2781 = vsel %vm211, %v2780, 0
    %2783 = vmatpush.xpose.msra.mxu0 0.0
    %2784 = vmatpush.xpose.msra.mxu0 0.0
    %2785 = vmatpush.xpose.msra.mxu0 0.0
    %2786 = vmatpush.xpose.msra.mxu0 0.0
    %2787 = vmatpush.xpose.msra.mxu0 0.0
    %2788 = vmatpush.xpose.msra.mxu0 0.0
    %2789 = vmatpush.xpose.msra.mxu0 0.0
    %2790 = vmatpush.xpose.msra.mxu0 0.0
    %2791 = vmatpush.xpose.msra.mxu0 0.0
    %2792 = vmatpush.xpose.msra.mxu0 0.0
    %2793 = vmatpush.xpose.msra.mxu0 0.0
    %2794 = vmatpush.xpose.msra.mxu0 0.0
    %2795 = vmatpush.xpose.msra.mxu0 0.0
    %2796 = vmatpush.xpose.msra.mxu0 0.0
    %2797 = vmatpush.xpose.msra.mxu0 0.0
    %2798 = vmatpush.xpose.msra.mxu0 %v2781
    %2799 = vmatmul.f32.gmra.mxu0 %v2538
    %v2800 = vpop.f32.mrf.mxu0
    %v2801 = vadd.f32 0.0, %v2800
    %2802 = vdwg.mxu0
    %v2803 = vperm.slane %v2801, 0
    %v2804 = vadd.f32 %v2778, %v2803
    %v2805 = vtanh.pop %v2804
    %v2806 = vmul.f32 %v2805, 1.442695
    %v2807 = vpow.pop %v2806
    %v2808 = vsel %vm246, %v2807, 0.0
    %2809 = vadd.xlane.f32.xlu0 %v2808
    %v2810 = vpop.xlane.xlu0 %2809
    %v2811 = vrcp.pop %v2810
    %v2812 = vmul.f32 %v2807, %v2811
    %v2815 = vsel %vm246, %v2812, 0
    %2817 = vmatpush.msra.mxu0 0.0
    %2818 = vmatpush.msra.mxu0 0.0
    %2819 = vmatpush.msra.mxu0 0.0
    %2820 = vmatpush.msra.mxu0 0.0
    %2821 = vmatpush.msra.mxu0 0.0
    %2822 = vmatpush.msra.mxu0 0.0
    %2823 = vmatpush.msra.mxu0 0.0
    %2824 = vmatpush.msra.mxu0 0.0
    %2825 = vmatpush.msra.mxu0 0.0
    %2826 = vmatpush.msra.mxu0 0.0
    %2827 = vmatpush.msra.mxu0 0.0
    %2828 = vmatpush.msra.mxu0 0.0
    %2829 = vmatpush.msra.mxu0 0.0
    %2830 = vmatpush.msra.mxu0 0.0
    %2831 = vmatpush.msra.mxu0 0.0
    %2832 = vmatpush.msra.mxu0 %v2780
    %2833 = vmatmul.f32.gmra.mxu0 %v2815
    %v2834 = vpop.f32.mrf.mxu0
    %v2835 = vadd.f32 0.0, %v2834
    %2836 = vdwg.mxu0
    %v2838 = vsel %vm211, %v2835, 0
    %2840 = vmatpush.msra.mxu0 0.0
    %2841 = vmatpush.msra.mxu0 0.0
    %2842 = vmatpush.msra.mxu0 0.0
    %2843 = vmatpush.msra.mxu0 0.0
    %2844 = vmatpush.msra.mxu0 0.0
    %2845 = vmatpush.msra.mxu0 0.0
    %2846 = vmatpush.msra.mxu0 0.0
    %2847 = vmatpush.msra.mxu0 0.0
    %2848 = vmatpush.msra.mxu0 0.0
    %2849 = vmatpush.msra.mxu0 0.0
    %2850 = vmatpush.msra.mxu0 0.0
    %2851 = vmatpush.msra.mxu0 0.0
    %2852 = vmatpush.msra.mxu0 0.0
    %2853 = vmatpush.msra.mxu0 0.0
    %2854 = vmatpush.msra.mxu0 %v2473
    %2855 = vmatpush.msra.mxu0 %v2472
    %2856 = vmatmul.f32.gmra.mxu0 %v2838
    %v2857 = vpop.f32.mrf.mxu0
    %v2858 = vadd.f32 0.0, %v2857
    %2859 = vdwg.mxu0
    %v2861 = vsel %vm211, %v2769, 0
    %2863 = vmatpush.msra.mxu0 0.0
    %2864 = vmatpush.msra.mxu0 0.0
    %2865 = vmatpush.msra.mxu0 0.0
    %2866 = vmatpush.msra.mxu0 0.0
    %2867 = vmatpush.msra.mxu0 0.0
    %2868 = vmatpush.msra.mxu0 0.0
    %2869 = vmatpush.msra.mxu0 0.0
    %2870 = vmatpush.msra.mxu0 0.0
    %2871 = vmatpush.msra.mxu0 0.0
    %2872 = vmatpush.msra.mxu0 0.0
    %2873 = vmatpush.msra.mxu0 0.0
    %2874 = vmatpush.msra.mxu0 0.0
    %2875 = vmatpush.msra.mxu0 0.0
    %2876 = vmatpush.msra.mxu0 0.0
    %2877 = vmatpush.msra.mxu0 %v2471
    %2878 = vmatpush.msra.mxu0 %v2470
    %2879 = vmatmul.f32.gmra.mxu0 %v2861
    %v2880 = vpop.f32.mrf.mxu0
    %v2881 = vadd.f32 %v2858, %v2880
    %2882 = vdwg.mxu0
    %s2883 = scalar_lea.vmem %s9, 5
    %v2884 = vld [vmem:[%s2883] sm:$0x1]
    %v2886 = vperm.slane %v2884, 0
    %v2888 = vadd.f32 %v2709, %v2886
    %v2889 = vadd.f32 %v2881, %v2886
    %v2890 = vadd.f32 %v2453, %v2888
    %v2891 = vadd.f32 %v2454, %v2889
    %v2892 = vmul.f32 %v2890, 0.5
    %v2893 = vmul.f32 %v2891, 0.5
    %v2894 = vld [vmem:[%s12] sm:$0xff]
    %v2895 = vld [vmem:[%s12 + $0x8] sm:$0xff]
    %v2896 = vld [vmem:[%s12 + $0x10] sm:$0xff]
    %v2897 = vld [vmem:[%s12 + $0x18] sm:$0xff]
    %v2898 = vld [vmem:[%s12 + $0x20] sm:$0xff]
    %v2899 = vld [vmem:[%s12 + $0x28] sm:$0xff]
    %v2900 = vld [vmem:[%s12 + $0x30] sm:$0xff]
    %v2901 = vld [vmem:[%s12 + $0x38] sm:$0xff]
    %v2902 = vld [vmem:[#allocation6] sm:$0x1]
    %v2903 = vld [vmem:[#allocation7] sm:$0x1]
    %v2904 = vtanh.pop %v2018
    %v2905 = vtanh.pop %v2019
    %v2906 = vtanh.pop %v631
    %v2907 = vtanh.pop %v632
    %v2909 = vsel %vm150, %v2906, 0
    %v2912 = vsel %vm150, %v2907, 0
    %2914 = vmatpush.msra.mxu0 0.0
    %2915 = vmatpush.msra.mxu0 0.0
    %2916 = vmatpush.msra.mxu0 0.0
    %2917 = vmatpush.msra.mxu0 0.0
    %2918 = vmatpush.msra.mxu0 0.0
    %2919 = vmatpush.msra.mxu0 0.0
    %2920 = vmatpush.msra.mxu0 0.0
    %2921 = vmatpush.msra.mxu0 0.0
    %2922 = vmatpush.msra.mxu0 0.0
    %2923 = vmatpush.msra.mxu0 0.0
    %2924 = vmatpush.msra.mxu0 0.0
    %2925 = vmatpush.msra.mxu0 0.0
    %2926 = vmatpush.msra.mxu0 %v2901
    %2927 = vmatpush.msra.mxu0 %v2900
    %2928 = vmatpush.msra.mxu0 %v2899
    %2929 = vmatpush.msra.mxu0 %v2898
    %2930 = vmatmul.f32.gmra.mxu0 %v2909
    %v2931 = vpop.f32.mrf.mxu0
    %v2932 = vadd.f32 0.0, %v2931
    %2933 = vmatmul.f32.gmra.mxu0 %v2912
    %v2934 = vpop.f32.mrf.mxu0
    %v2935 = vadd.f32 0.0, %v2934
    %2936 = vdwg.mxu0
    %v2938 = vsel %vm150, %v2904, 0
    %v2941 = vsel %vm150, %v2905, 0
    %2943 = vmatpush.msra.mxu0 0.0
    %2944 = vmatpush.msra.mxu0 0.0
    %2945 = vmatpush.msra.mxu0 0.0
    %2946 = vmatpush.msra.mxu0 0.0
    %2947 = vmatpush.msra.mxu0 0.0
    %2948 = vmatpush.msra.mxu0 0.0
    %2949 = vmatpush.msra.mxu0 0.0
    %2950 = vmatpush.msra.mxu0 0.0
    %2951 = vmatpush.msra.mxu0 0.0
    %2952 = vmatpush.msra.mxu0 0.0
    %2953 = vmatpush.msra.mxu0 0.0
    %2954 = vmatpush.msra.mxu0 0.0
    %2955 = vmatpush.msra.mxu0 %v2897
    %2956 = vmatpush.msra.mxu0 %v2896
    %2957 = vmatpush.msra.mxu0 %v2895
    %2958 = vmatpush.msra.mxu0 %v2894
    %2959 = vmatmul.f32.gmra.mxu0 %v2938
    %v2960 = vpop.f32.mrf.mxu0
    %v2961 = vadd.f32 %v2932, %v2960
    %2962 = vmatmul.f32.gmra.mxu0 %v2941
    %v2963 = vpop.f32.mrf.mxu0
    %v2964 = vadd.f32 %v2935, %v2963
    %2965 = vdwg.mxu0
    %v2966 = vld [vmem:[%s13] sm:$0x1]
    %v2968 = vperm.slane %v2966, 0
    %v2970 = vadd.f32 %v2961, %v2968
    %v2971 = vadd.f32 %v2964, %v2968
    %v2972 = vmax.f32 %v2970, 0.0
    %v2973 = vmax.f32 %v2971, 0.0
    %v2974 = vsel %vm150, %v2972, 0.0
    %2975 = vadd.xlane.f32.xlu0 %v2974
    %v2976 = vpop.xlane.xlu0 %2975
    %v2977 = vsel %vm150, %v2973, 0.0
    %2978 = vadd.xlane.f32.xlu0 %v2977
    %v2979 = vpop.xlane.xlu0 %2978
    %v2980 = vmul.f32 %v2976, %v584
    %v2981 = vmul.f32 %v2979, %v584
    %v2982 = vsub.f32 %v2972, %v2980
    %v2983 = vsub.f32 %v2973, %v2981
    %v2984 = vmul.f32 %v2982, %v2982
    %v2985 = vmul.f32 %v2983, %v2983
    %v2986 = vsel %vm150, %v2984, 0.0
    %2987 = vadd.xlane.f32.xlu0 %v2986
    %v2988 = vpop.xlane.xlu0 %2987
    %v2989 = vsel %vm150, %v2985, 0.0
    %2990 = vadd.xlane.f32.xlu0 %v2989
    %v2991 = vpop.xlane.xlu0 %2990
    %v2992 = vmul.f32 %v2988, %v584
    %v2993 = vmul.f32 %v2991, %v584
    %v2994 = vadd.f32 %v2992, 1e-06
    %v2995 = vadd.f32 %v2993, 1e-06
    %v2996 = vrsqrt.pop %v2994
    %v2997 = vmul.f32 %v2996, %v2994
    %v2998 = vmul.f32 %v2997, %v2996
    %v2999 = vmul.f32 0.5, %v2998
    %v3000 = vsub.f32 1.5, %v2999
    %v3001 = vmul.f32 %v2996, %v3000
    %vm3002 = vweird.f32 %v2994
    %vm3003 = vweird.f32 %v2996
    %vm3004 = vmor %vm3002, %vm3003
    %v3005 = vsel %vm3004, %v2996, %v3001
    %v3006 = vrsqrt.pop %v2995
    %v3007 = vmul.f32 %v3006, %v2995
    %v3008 = vmul.f32 %v3007, %v3006
    %v3009 = vmul.f32 0.5, %v3008
    %v3010 = vsub.f32 1.5, %v3009
    %v3011 = vmul.f32 %v3006, %v3010
    %vm3012 = vweird.f32 %v2995
    %vm3013 = vweird.f32 %v3006
    %vm3014 = vmor %vm3012, %vm3013
    %v3015 = vsel %vm3014, %v3006, %v3011
    %v3016 = vmul.f32 %v2982, %v3005
    %v3017 = vmul.f32 %v2983, %v3015
    %v3019 = vperm.slane %v2902, 0
    %v3021 = vmul.f32 %v3016, %v3019
    %v3022 = vmul.f32 %v3017, %v3019
    %v3024 = vperm.slane %v2903, 0
    %v3026 = vadd.f32 %v3021, %v3024
    %v3027 = vadd.f32 %v3022, %v3024
    %v3028 = vld [vmem:[%s14] sm:$0xff]
    %v3029 = vld [vmem:[%s14 + $0x8] sm:$0xff]
    %v3030 = vld [vmem:[%s14 + $0x10] sm:$0xff]
    %v3031 = vld [vmem:[%s14 + $0x18] sm:$0xff]
    %v3032 = vld [vmem:[%s15] sm:$0x1]
    %v3034 = vperm.slane %v3032, 0
    %v3037 = vsel %vm150, %v3026, 0
    %v3040 = vsel %vm150, %v3027, 0
    %3042 = vmatpush.msra.mxu0 0.0
    %3043 = vmatpush.msra.mxu0 0.0
    %3044 = vmatpush.msra.mxu0 0.0
    %3045 = vmatpush.msra.mxu0 0.0
    %3046 = vmatpush.msra.mxu0 0.0
    %3047 = vmatpush.msra.mxu0 0.0
    %3048 = vmatpush.msra.mxu0 0.0
    %3049 = vmatpush.msra.mxu0 0.0
    %3050 = vmatpush.msra.mxu0 0.0
    %3051 = vmatpush.msra.mxu0 0.0
    %3052 = vmatpush.msra.mxu0 0.0
    %3053 = vmatpush.msra.mxu0 0.0
    %3054 = vmatpush.msra.mxu0 %v3031
    %3055 = vmatpush.msra.mxu0 %v3030
    %3056 = vmatpush.msra.mxu0 %v3029
    %3057 = vmatpush.msra.mxu0 %v3028
    %3058 = vmatmul.f32.gmra.mxu0 %v3037
    %v3059 = vpop.f32.mrf.mxu0
    %v3060 = vadd.f32 %v3034, %v3059
    %3061 = vmatmul.f32.gmra.mxu0 %v3040
    %v3062 = vpop.f32.mrf.mxu0
    %v3063 = vadd.f32 %v3034, %v3062
    %3064 = vdwg.mxu0
    %v3065 = vmax.f32 %v3060, 0.0
    %v3066 = vmax.f32 %v3063, 0.0
    %v3067 = vld [vmem:[%s16] sm:$0xff]
    %v3068 = vld [vmem:[%s16 + $0x8] sm:$0xff]
    %v3069 = vld [vmem:[%s16 + $0x10] sm:$0xff]
    %v3070 = vld [vmem:[%s16 + $0x18] sm:$0xff]
    %v3071 = vld [vmem:[%s16 + $0x20] sm:$0xff]
    %v3072 = vld [vmem:[%s16 + $0x28] sm:$0xff]
    %v3073 = vld [vmem:[%s16 + $0x30] sm:$0xff]
    %v3074 = vld [vmem:[%s16 + $0x38] sm:$0xff]
    %v3075 = vld [vmem:[%s17] sm:$0x1]
    %v3077 = vperm.slane %v3075, 0
    %vm3079 = vcmask 523264
    %v3081 = vsel %vm3079, %v3065, 0
    %v3084 = vsel %vm3079, %v3066, 0
    %3086 = vmatpush.msra.mxu0 0.0
    %3087 = vmatpush.msra.mxu0 0.0
    %3088 = vmatpush.msra.mxu0 0.0
    %3089 = vmatpush.msra.mxu0 0.0
    %3090 = vmatpush.msra.mxu0 0.0
    %3091 = vmatpush.msra.mxu0 0.0
    %3092 = vmatpush.msra.mxu0 0.0
    %3093 = vmatpush.msra.mxu0 0.0
    %3094 = vmatpush.msra.mxu0 %v3074
    %3095 = vmatpush.msra.mxu0 %v3073
    %3096 = vmatpush.msra.mxu0 %v3072
    %3097 = vmatpush.msra.mxu0 %v3071
    %3098 = vmatpush.msra.mxu0 %v3070
    %3099 = vmatpush.msra.mxu0 %v3069
    %3100 = vmatpush.msra.mxu0 %v3068
    %3101 = vmatpush.msra.mxu0 %v3067
    %3102 = vmatmul.f32.gmra.mxu0 %v3081
    %v3103 = vpop.f32.mrf.mxu0
    %v3104 = vadd.f32 %v3077, %v3103
    %3105 = vmatmul.f32.gmra.mxu0 %v3084
    %v3106 = vpop.f32.mrf.mxu0
    %v3107 = vadd.f32 %v3077, %v3106
    %3108 = vdwg.mxu0
    %v3109 = vadd.f32 %v3104, %v3026
    %v3110 = vadd.f32 %v3107, %v3027
    %v3111 = vsel %vm150, %v3109, 0.0
    %3112 = vadd.xlane.f32.xlu0 %v3111
    %v3113 = vpop.xlane.xlu0 %3112
    %v3114 = vsel %vm150, %v3110, 0.0
    %3115 = vadd.xlane.f32.xlu0 %v3114
    %v3116 = vpop.xlane.xlu0 %3115
    %v3117 = vmul.f32 %v3113, %v584
    %v3118 = vmul.f32 %v3116, %v584
    %v3119 = vsub.f32 %v3109, %v3117
    %v3120 = vsub.f32 %v3110, %v3118
    %v3121 = vmul.f32 %v3119, %v3119
    %v3122 = vmul.f32 %v3120, %v3120
    %v3123 = vsel %vm150, %v3121, 0.0
    %3124 = vadd.xlane.f32.xlu0 %v3123
    %v3125 = vpop.xlane.xlu0 %3124
    %v3126 = vsel %vm150, %v3122, 0.0
    %3127 = vadd.xlane.f32.xlu0 %v3126
    %v3128 = vpop.xlane.xlu0 %3127
    %v3129 = vmul.f32 %v3125, %v584
    %v3130 = vmul.f32 %v3128, %v584
    %v3131 = vadd.f32 %v3129, 1e-06
    %v3132 = vadd.f32 %v3130, 1e-06
    %v3133 = vrsqrt.pop %v3131
    %v3134 = vmul.f32 %v3133, %v3131
    %v3135 = vmul.f32 %v3134, %v3133
    %v3136 = vmul.f32 0.5, %v3135
    %v3137 = vsub.f32 1.5, %v3136
    %v3138 = vmul.f32 %v3133, %v3137
    %vm3139 = vweird.f32 %v3131
    %vm3140 = vweird.f32 %v3133
    %vm3141 = vmor %vm3139, %vm3140
    %v3142 = vsel %vm3141, %v3133, %v3138
    %v3143 = vrsqrt.pop %v3132
    %v3144 = vmul.f32 %v3143, %v3132
    %v3145 = vmul.f32 %v3144, %v3143
    %v3146 = vmul.f32 0.5, %v3145
    %v3147 = vsub.f32 1.5, %v3146
    %v3148 = vmul.f32 %v3143, %v3147
    %vm3149 = vweird.f32 %v3132
    %vm3150 = vweird.f32 %v3143
    %vm3151 = vmor %vm3149, %vm3150
    %v3152 = vsel %vm3151, %v3143, %v3148
    %v3153 = vmul.f32 %v3119, %v3142
    %v3154 = vmul.f32 %v3120, %v3152
    %v3155 = vmul.f32 %v3153, %v3019
    %v3156 = vmul.f32 %v3154, %v3019
    %v3157 = vadd.f32 %v3155, %v3024
    %v3158 = vadd.f32 %v3156, %v3024
    %s3159 = scalar_lea.vmem %s12, 64
    %v3160 = vld [vmem:[%s3159] sm:$0xff]
    %v3161 = vld [vmem:[%s3159 + $0x8] sm:$0xff]
    %v3162 = vld [vmem:[%s3159 + $0x10] sm:$0xff]
    %v3163 = vld [vmem:[%s3159 + $0x18] sm:$0xff]
    %v3164 = vld [vmem:[%s3159 + $0x20] sm:$0xff]
    %v3165 = vld [vmem:[%s3159 + $0x28] sm:$0xff]
    %v3166 = vld [vmem:[%s3159 + $0x30] sm:$0xff]
    %v3167 = vld [vmem:[%s3159 + $0x38] sm:$0xff]
    %s3168 = scalar_lea.vmem [#allocation6], 1
    %v3169 = vld [vmem:[%s3168] sm:$0x1]
    %s3170 = scalar_lea.vmem [#allocation7], 1
    %v3171 = vld [vmem:[%s3170] sm:$0x1]
    %v3172 = vtanh.pop %v2892
    %v3173 = vtanh.pop %v2893
    %v3174 = vtanh.pop %v1132
    %v3175 = vtanh.pop %v1133
    %v3177 = vsel %vm150, %v3174, 0
    %v3180 = vsel %vm150, %v3175, 0
    %3182 = vmatpush.msra.mxu0 0.0
    %3183 = vmatpush.msra.mxu0 0.0
    %3184 = vmatpush.msra.mxu0 0.0
    %3185 = vmatpush.msra.mxu0 0.0
    %3186 = vmatpush.msra.mxu0 0.0
    %3187 = vmatpush.msra.mxu0 0.0
    %3188 = vmatpush.msra.mxu0 0.0
    %3189 = vmatpush.msra.mxu0 0.0
    %3190 = vmatpush.msra.mxu0 0.0
    %3191 = vmatpush.msra.mxu0 0.0
    %3192 = vmatpush.msra.mxu0 0.0
    %3193 = vmatpush.msra.mxu0 0.0
    %3194 = vmatpush.msra.mxu0 %v3167
    %3195 = vmatpush.msra.mxu0 %v3166
    %3196 = vmatpush.msra.mxu0 %v3165
    %3197 = vmatpush.msra.mxu0 %v3164
    %3198 = vmatmul.f32.gmra.mxu0 %v3177
    %v3199 = vpop.f32.mrf.mxu0
    %v3200 = vadd.f32 0.0, %v3199
    %3201 = vmatmul.f32.gmra.mxu0 %v3180
    %v3202 = vpop.f32.mrf.mxu0
    %v3203 = vadd.f32 0.0, %v3202
    %3204 = vdwg.mxu0
    %v3206 = vsel %vm150, %v3172, 0
    %v3209 = vsel %vm150, %v3173, 0
    %3211 = vmatpush.msra.mxu0 0.0
    %3212 = vmatpush.msra.mxu0 0.0
    %3213 = vmatpush.msra.mxu0 0.0
    %3214 = vmatpush.msra.mxu0 0.0
    %3215 = vmatpush.msra.mxu0 0.0
    %3216 = vmatpush.msra.mxu0 0.0
    %3217 = vmatpush.msra.mxu0 0.0
    %3218 = vmatpush.msra.mxu0 0.0
    %3219 = vmatpush.msra.mxu0 0.0
    %3220 = vmatpush.msra.mxu0 0.0
    %3221 = vmatpush.msra.mxu0 0.0
    %3222 = vmatpush.msra.mxu0 0.0
    %3223 = vmatpush.msra.mxu0 %v3163
    %3224 = vmatpush.msra.mxu0 %v3162
    %3225 = vmatpush.msra.mxu0 %v3161
    %3226 = vmatpush.msra.mxu0 %v3160
    %3227 = vmatmul.f32.gmra.mxu0 %v3206
    %v3228 = vpop.f32.mrf.mxu0
    %v3229 = vadd.f32 %v3200, %v3228
    %3230 = vmatmul.f32.gmra.mxu0 %v3209
    %v3231 = vpop.f32.mrf.mxu0
    %v3232 = vadd.f32 %v3203, %v3231
    %3233 = vdwg.mxu0
    %s3234 = scalar_lea.vmem %s13, 1
    %v3235 = vld [vmem:[%s3234] sm:$0x1]
    %v3237 = vperm.slane %v3235, 0
    %v3239 = vadd.f32 %v3229, %v3237
    %v3240 = vadd.f32 %v3232, %v3237
    %v3241 = vmax.f32 %v3239, 0.0
    %v3242 = vmax.f32 %v3240, 0.0
    %v3243 = vsel %vm150, %v3241, 0.0
    %3244 = vadd.xlane.f32.xlu0 %v3243
    %v3245 = vpop.xlane.xlu0 %3244
    %v3246 = vsel %vm150, %v3242, 0.0
    %3247 = vadd.xlane.f32.xlu0 %v3246
    %v3248 = vpop.xlane.xlu0 %3247
    %v3249 = vmul.f32 %v3245, %v584
    %v3250 = vmul.f32 %v3248, %v584
    %v3251 = vsub.f32 %v3241, %v3249
    %v3252 = vsub.f32 %v3242, %v3250
    %v3253 = vmul.f32 %v3251, %v3251
    %v3254 = vmul.f32 %v3252, %v3252
    %v3255 = vsel %vm150, %v3253, 0.0
    %3256 = vadd.xlane.f32.xlu0 %v3255
    %v3257 = vpop.xlane.xlu0 %3256
    %v3258 = vsel %vm150, %v3254, 0.0
    %3259 = vadd.xlane.f32.xlu0 %v3258
    %v3260 = vpop.xlane.xlu0 %3259
    %v3261 = vmul.f32 %v3257, %v584
    %v3262 = vmul.f32 %v3260, %v584
    %v3263 = vadd.f32 %v3261, 1e-06
    %v3264 = vadd.f32 %v3262, 1e-06
    %v3265 = vrsqrt.pop %v3263
    %v3266 = vmul.f32 %v3265, %v3263
    %v3267 = vmul.f32 %v3266, %v3265
    %v3268 = vmul.f32 0.5, %v3267
    %v3269 = vsub.f32 1.5, %v3268
    %v3270 = vmul.f32 %v3265, %v3269
    %vm3271 = vweird.f32 %v3263
    %vm3272 = vweird.f32 %v3265
    %vm3273 = vmor %vm3271, %vm3272
    %v3274 = vsel %vm3273, %v3265, %v3270
    %v3275 = vrsqrt.pop %v3264
    %v3276 = vmul.f32 %v3275, %v3264
    %v3277 = vmul.f32 %v3276, %v3275
    %v3278 = vmul.f32 0.5, %v3277
    %v3279 = vsub.f32 1.5, %v3278
    %v3280 = vmul.f32 %v3275, %v3279
    %vm3281 = vweird.f32 %v3264
    %vm3282 = vweird.f32 %v3275
    %vm3283 = vmor %vm3281, %vm3282
    %v3284 = vsel %vm3283, %v3275, %v3280
    %v3285 = vmul.f32 %v3251, %v3274
    %v3286 = vmul.f32 %v3252, %v3284
    %v3288 = vperm.slane %v3169, 0
    %v3290 = vmul.f32 %v3285, %v3288
    %v3291 = vmul.f32 %v3286, %v3288
    %v3293 = vperm.slane %v3171, 0
    %v3295 = vadd.f32 %v3290, %v3293
    %v3296 = vadd.f32 %v3291, %v3293
    %s3297 = scalar_lea.vmem %s14, 32
    %v3298 = vld [vmem:[%s3297] sm:$0xff]
    %v3299 = vld [vmem:[%s3297 + $0x8] sm:$0xff]
    %v3300 = vld [vmem:[%s3297 + $0x10] sm:$0xff]
    %v3301 = vld [vmem:[%s3297 + $0x18] sm:$0xff]
    %s3302 = scalar_lea.vmem %s15, 1
    %v3303 = vld [vmem:[%s3302] sm:$0x1]
    %v3305 = vperm.slane %v3303, 0
    %v3308 = vsel %vm150, %v3295, 0
    %v3311 = vsel %vm150, %v3296, 0
    %3313 = vmatpush.msra.mxu0 0.0
    %3314 = vmatpush.msra.mxu0 0.0
    %3315 = vmatpush.msra.mxu0 0.0
    %3316 = vmatpush.msra.mxu0 0.0
    %3317 = vmatpush.msra.mxu0 0.0
    %3318 = vmatpush.msra.mxu0 0.0
    %3319 = vmatpush.msra.mxu0 0.0
    %3320 = vmatpush.msra.mxu0 0.0
    %3321 = vmatpush.msra.mxu0 0.0
    %3322 = vmatpush.msra.mxu0 0.0
    %3323 = vmatpush.msra.mxu0 0.0
    %3324 = vmatpush.msra.mxu0 0.0
    %3325 = vmatpush.msra.mxu0 %v3301
    %3326 = vmatpush.msra.mxu0 %v3300
    %3327 = vmatpush.msra.mxu0 %v3299
    %3328 = vmatpush.msra.mxu0 %v3298
    %3329 = vmatmul.f32.gmra.mxu0 %v3308
    %v3330 = vpop.f32.mrf.mxu0
    %v3331 = vadd.f32 %v3305, %v3330
    %3332 = vmatmul.f32.gmra.mxu0 %v3311
    %v3333 = vpop.f32.mrf.mxu0
    %v3334 = vadd.f32 %v3305, %v3333
    %3335 = vdwg.mxu0
    %v3336 = vmax.f32 %v3331, 0.0
    %v3337 = vmax.f32 %v3334, 0.0
    %s3338 = scalar_lea.vmem %s16, 64
    %v3339 = vld [vmem:[%s3338] sm:$0xff]
    %v3340 = vld [vmem:[%s3338 + $0x8] sm:$0xff]
    %v3341 = vld [vmem:[%s3338 + $0x10] sm:$0xff]
    %v3342 = vld [vmem:[%s3338 + $0x18] sm:$0xff]
    %v3343 = vld [vmem:[%s3338 + $0x20] sm:$0xff]
    %v3344 = vld [vmem:[%s3338 + $0x28] sm:$0xff]
    %v3345 = vld [vmem:[%s3338 + $0x30] sm:$0xff]
    %v3346 = vld [vmem:[%s3338 + $0x38] sm:$0xff]
    %s3347 = scalar_lea.vmem %s17, 1
    %v3348 = vld [vmem:[%s3347] sm:$0x1]
    %v3350 = vperm.slane %v3348, 0
    %v3353 = vsel %vm3079, %v3336, 0
    %v3356 = vsel %vm3079, %v3337, 0
    %3358 = vmatpush.msra.mxu0 0.0
    %3359 = vmatpush.msra.mxu0 0.0
    %3360 = vmatpush.msra.mxu0 0.0
    %3361 = vmatpush.msra.mxu0 0.0
    %3362 = vmatpush.msra.mxu0 0.0
    %3363 = vmatpush.msra.mxu0 0.0
    %3364 = vmatpush.msra.mxu0 0.0
    %3365 = vmatpush.msra.mxu0 0.0
    %3366 = vmatpush.msra.mxu0 %v3346
    %3367 = vmatpush.msra.mxu0 %v3345
    %3368 = vmatpush.msra.mxu0 %v3344
    %3369 = vmatpush.msra.mxu0 %v3343
    %3370 = vmatpush.msra.mxu0 %v3342
    %3371 = vmatpush.msra.mxu0 %v3341
    %3372 = vmatpush.msra.mxu0 %v3340
    %3373 = vmatpush.msra.mxu0 %v3339
    %3374 = vmatmul.f32.gmra.mxu0 %v3353
    %v3375 = vpop.f32.mrf.mxu0
    %v3376 = vadd.f32 %v3350, %v3375
    %3377 = vmatmul.f32.gmra.mxu0 %v3356
    %v3378 = vpop.f32.mrf.mxu0
    %v3379 = vadd.f32 %v3350, %v3378
    %3380 = vdwg.mxu0
    %v3381 = vadd.f32 %v3376, %v3295
    %v3382 = vadd.f32 %v3379, %v3296
    %v3383 = vsel %vm150, %v3381, 0.0
    %3384 = vadd.xlane.f32.xlu0 %v3383
    %v3385 = vpop.xlane.xlu0 %3384
    %v3386 = vsel %vm150, %v3382, 0.0
    %3387 = vadd.xlane.f32.xlu0 %v3386
    %v3388 = vpop.xlane.xlu0 %3387
    %v3389 = vmul.f32 %v3385, %v584
    %v3390 = vmul.f32 %v3388, %v584
    %v3391 = vsub.f32 %v3381, %v3389
    %v3392 = vsub.f32 %v3382, %v3390
    %v3393 = vmul.f32 %v3391, %v3391
    %v3394 = vmul.f32 %v3392, %v3392
    %v3395 = vsel %vm150, %v3393, 0.0
    %3396 = vadd.xlane.f32.xlu0 %v3395
    %v3397 = vpop.xlane.xlu0 %3396
    %v3398 = vsel %vm150, %v3394, 0.0
    %3399 = vadd.xlane.f32.xlu0 %v3398
    %v3400 = vpop.xlane.xlu0 %3399
    %v3401 = vmul.f32 %v3397, %v584
    %v3402 = vmul.f32 %v3400, %v584
    %v3403 = vadd.f32 %v3401, 1e-06
    %v3404 = vadd.f32 %v3402, 1e-06
    %v3405 = vrsqrt.pop %v3403
    %v3406 = vmul.f32 %v3405, %v3403
    %v3407 = vmul.f32 %v3406, %v3405
    %v3408 = vmul.f32 0.5, %v3407
    %v3409 = vsub.f32 1.5, %v3408
    %v3410 = vmul.f32 %v3405, %v3409
    %vm3411 = vweird.f32 %v3403
    %vm3412 = vweird.f32 %v3405
    %vm3413 = vmor %vm3411, %vm3412
    %v3414 = vsel %vm3413, %v3405, %v3410
    %v3415 = vrsqrt.pop %v3404
    %v3416 = vmul.f32 %v3415, %v3404
    %v3417 = vmul.f32 %v3416, %v3415
    %v3418 = vmul.f32 0.5, %v3417
    %v3419 = vsub.f32 1.5, %v3418
    %v3420 = vmul.f32 %v3415, %v3419
    %vm3421 = vweird.f32 %v3404
    %vm3422 = vweird.f32 %v3415
    %vm3423 = vmor %vm3421, %vm3422
    %v3424 = vsel %vm3423, %v3415, %v3420
    %v3425 = vmul.f32 %v3391, %v3414
    %v3426 = vmul.f32 %v3392, %v3424
    %v3427 = vmul.f32 %v3425, %v3288
    %v3428 = vmul.f32 %v3426, %v3288
    %v3429 = vadd.f32 %v3427, %v3293
    %v3430 = vadd.f32 %v3428, %v3293
    %v3432 = vsel %vm150, %v3157, 0
    %v3435 = vsel %vm150, %v3158, 0
    %3437 = vmatpush.msra.mxu0 0.0
    %3438 = vmatpush.msra.mxu0 0.0
    %3439 = vmatpush.msra.mxu0 0.0
    %3440 = vmatpush.msra.mxu0 0.0
    %3441 = vmatpush.msra.mxu0 0.0
    %3442 = vmatpush.msra.mxu0 0.0
    %3443 = vmatpush.msra.mxu0 0.0
    %3444 = vmatpush.msra.mxu0 0.0
    %3445 = vmatpush.msra.mxu0 0.0
    %3446 = vmatpush.msra.mxu0 0.0
    %3447 = vmatpush.msra.mxu0 0.0
    %3448 = vmatpush.msra.mxu0 0.0
    %3449 = vmatpush.msra.mxu0 %v1143
    %3450 = vmatpush.msra.mxu0 %v1142
    %3451 = vmatpush.msra.mxu0 %v1141
    %3452 = vmatpush.msra.mxu0 %v1140
    %3453 = vmatmul.f32.gmra.mxu0 %v3432
    %v3454 = vpop.f32.mrf.mxu0
    %v3455 = vadd.f32 %v1190, %v3454
    %3456 = vmatmul.f32.gmra.mxu0 %v3435
    %v3457 = vpop.f32.mrf.mxu0
    %v3458 = vadd.f32 %v1190, %v3457
    %3459 = vdwg.mxu0
    %v3460 = vmul.f32 %v3455, %v1216
    %v3461 = vsel %vm211, %v3460, 0.0
    %3462 = vadd.xlane.f32.xlu0 %v3461
    %v3463 = vpop.xlane.xlu0 %3462
    %v3464 = vadd.f32 %v3463, %v1248
    %v3465 = vtanh.pop %v3464
    %v3466 = vmul.f32 %v3465, 1.442695
    %v3467 = vpow.pop %v3466
    %v3468 = vsel %vm246, %v3467, 0.0
    %3469 = vadd.xlane.f32.xlu0 %v3468
    %v3470 = vpop.xlane.xlu0 %3469
    %v3471 = vrcp.pop %v3470
    %v3472 = vmul.f32 %v3467, %v3471
    %v3474 = vsel %vm246, %v3472, 0
    %3476 = vmatpush.msra.mxu0 0.0
    %3477 = vmatpush.msra.mxu0 0.0
    %3478 = vmatpush.msra.mxu0 0.0
    %3479 = vmatpush.msra.mxu0 0.0
    %3480 = vmatpush.msra.mxu0 0.0
    %3481 = vmatpush.msra.mxu0 0.0
    %3482 = vmatpush.msra.mxu0 0.0
    %3483 = vmatpush.msra.mxu0 0.0
    %3484 = vmatpush.msra.mxu0 0.0
    %3485 = vmatpush.msra.mxu0 0.0
    %3486 = vmatpush.msra.mxu0 0.0
    %3487 = vmatpush.msra.mxu0 0.0
    %3488 = vmatpush.msra.mxu0 0.0
    %3489 = vmatpush.msra.mxu0 0.0
    %3490 = vmatpush.msra.mxu0 0.0
    %3491 = vmatpush.msra.mxu0 %v1182
    %3492 = vmatmul.f32.gmra.mxu0 %v3474
    %v3493 = vpop.f32.mrf.mxu0
    %v3494 = vadd.f32 0.0, %v3493
    %3495 = vdwg.mxu0
    %v3496 = vmul.f32 %v3455, %v1282
    %3498 = vrot.lane.b32.xlu0 %v3496, 112
    %v3499 = vpop.permute.xlu0 %3498
    %v3501 = vsel %vm211, %v3499, 0.0
    %3502 = vadd.xlane.f32.xlu0 %v3501
    %v3503 = vpop.xlane.xlu0 %3502
    %v3504 = vadd.f32 %v3503, %v1316
    %v3505 = vtanh.pop %v3504
    %v3506 = vmul.f32 %v3505, 1.442695
    %v3507 = vpow.pop %v3506
    %v3508 = vsel %vm246, %v3507, 0.0
    %3509 = vadd.xlane.f32.xlu0 %v3508
    %v3510 = vpop.xlane.xlu0 %3509
    %v3511 = vrcp.pop %v3510
    %v3512 = vmul.f32 %v3507, %v3511
    %v3514 = vsel %vm246, %v3512, 0
    %3516 = vmatpush.msra.mxu0 0.0
    %3517 = vmatpush.msra.mxu0 0.0
    %3518 = vmatpush.msra.mxu0 0.0
    %3519 = vmatpush.msra.mxu0 0.0
    %3520 = vmatpush.msra.mxu0 0.0
    %3521 = vmatpush.msra.mxu0 0.0
    %3522 = vmatpush.msra.mxu0 0.0
    %3523 = vmatpush.msra.mxu0 0.0
    %3524 = vmatpush.msra.mxu0 0.0
    %3525 = vmatpush.msra.mxu0 0.0
    %3526 = vmatpush.msra.mxu0 0.0
    %3527 = vmatpush.msra.mxu0 0.0
    %3528 = vmatpush.msra.mxu0 0.0
    %3529 = vmatpush.msra.mxu0 0.0
    %3530 = vmatpush.msra.mxu0 0.0
    %3531 = vmatpush.msra.mxu0 %v1293
    %3532 = vmatmul.f32.gmra.mxu0 %v3514
    %v3533 = vpop.f32.mrf.mxu0
    %v3534 = vadd.f32 0.0, %v3533
    %3535 = vdwg.mxu0
    %v3537 = vsel %vm211, %v3534, 0
    %3539 = vmatpush.msra.mxu0 0.0
    %3540 = vmatpush.msra.mxu0 0.0
    %3541 = vmatpush.msra.mxu0 0.0
    %3542 = vmatpush.msra.mxu0 0.0
    %3543 = vmatpush.msra.mxu0 0.0
    %3544 = vmatpush.msra.mxu0 0.0
    %3545 = vmatpush.msra.mxu0 0.0
    %3546 = vmatpush.msra.mxu0 0.0
    %3547 = vmatpush.msra.mxu0 0.0
    %3548 = vmatpush.msra.mxu0 0.0
    %3549 = vmatpush.msra.mxu0 0.0
    %3550 = vmatpush.msra.mxu0 0.0
    %3551 = vmatpush.msra.mxu0 0.0
    %3552 = vmatpush.msra.mxu0 0.0
    %3553 = vmatpush.msra.mxu0 %v1152
    %3554 = vmatpush.msra.mxu0 %v1151
    %3555 = vmatmul.f32.gmra.mxu0 %v3537
    %v3556 = vpop.f32.mrf.mxu0
    %v3557 = vadd.f32 0.0, %v3556
    %3558 = vdwg.mxu0
    %v3560 = vsel %vm211, %v3494, 0
    %3562 = vmatpush.msra.mxu0 0.0
    %3563 = vmatpush.msra.mxu0 0.0
    %3564 = vmatpush.msra.mxu0 0.0
    %3565 = vmatpush.msra.mxu0 0.0
    %3566 = vmatpush.msra.mxu0 0.0
    %3567 = vmatpush.msra.mxu0 0.0
    %3568 = vmatpush.msra.mxu0 0.0
    %3569 = vmatpush.msra.mxu0 0.0
    %3570 = vmatpush.msra.mxu0 0.0
    %3571 = vmatpush.msra.mxu0 0.0
    %3572 = vmatpush.msra.mxu0 0.0
    %3573 = vmatpush.msra.mxu0 0.0
    %3574 = vmatpush.msra.mxu0 0.0
    %3575 = vmatpush.msra.mxu0 0.0
    %3576 = vmatpush.msra.mxu0 %v1150
    %3577 = vmatpush.msra.mxu0 %v1149
    %3578 = vmatmul.f32.gmra.mxu0 %v3560
    %v3579 = vpop.f32.mrf.mxu0
    %v3580 = vadd.f32 %v3557, %v3579
    %3581 = vdwg.mxu0
    %v3582 = vmul.f32 %v3458, %v1216
    %v3583 = vsel %vm211, %v3582, 0.0
    %3584 = vadd.xlane.f32.xlu0 %v3583
    %v3585 = vpop.xlane.xlu0 %3584
    %v3586 = vadd.f32 %v3585, %v1423
    %v3587 = vtanh.pop %v3586
    %v3588 = vmul.f32 %v3587, 1.442695
    %v3589 = vpow.pop %v3588
    %v3590 = vsel %vm246, %v3589, 0.0
    %3591 = vadd.xlane.f32.xlu0 %v3590
    %v3592 = vpop.xlane.xlu0 %3591
    %v3593 = vrcp.pop %v3592
    %v3594 = vmul.f32 %v3589, %v3593
    %v3596 = vsel %vm246, %v3594, 0
    %3598 = vmatpush.msra.mxu0 0.0
    %3599 = vmatpush.msra.mxu0 0.0
    %3600 = vmatpush.msra.mxu0 0.0
    %3601 = vmatpush.msra.mxu0 0.0
    %3602 = vmatpush.msra.mxu0 0.0
    %3603 = vmatpush.msra.mxu0 0.0
    %3604 = vmatpush.msra.mxu0 0.0
    %3605 = vmatpush.msra.mxu0 0.0
    %3606 = vmatpush.msra.mxu0 0.0
    %3607 = vmatpush.msra.mxu0 0.0
    %3608 = vmatpush.msra.mxu0 0.0
    %3609 = vmatpush.msra.mxu0 0.0
    %3610 = vmatpush.msra.mxu0 0.0
    %3611 = vmatpush.msra.mxu0 0.0
    %3612 = vmatpush.msra.mxu0 0.0
    %3613 = vmatpush.msra.mxu0 %v1185
    %3614 = vmatmul.f32.gmra.mxu0 %v3596
    %v3615 = vpop.f32.mrf.mxu0
    %v3616 = vadd.f32 0.0, %v3615
    %3617 = vdwg.mxu0
    %v3618 = vmul.f32 %v3458, %v1282
    %3620 = vrot.lane.b32.xlu0 %v3618, 112
    %v3621 = vpop.permute.xlu0 %3620
    %v3623 = vsel %vm211, %v3621, 0.0
    %3624 = vadd.xlane.f32.xlu0 %v3623
    %v3625 = vpop.xlane.xlu0 %3624
    %v3626 = vadd.f32 %v3625, %v1488
    %v3627 = vtanh.pop %v3626
    %v3628 = vmul.f32 %v3627, 1.442695
    %v3629 = vpow.pop %v3628
    %v3630 = vsel %vm246, %v3629, 0.0
    %3631 = vadd.xlane.f32.xlu0 %v3630
    %v3632 = vpop.xlane.xlu0 %3631
    %v3633 = vrcp.pop %v3632
    %v3634 = vmul.f32 %v3629, %v3633
    %v3636 = vsel %vm246, %v3634, 0
    %3638 = vmatpush.msra.mxu0 0.0
    %3639 = vmatpush.msra.mxu0 0.0
    %3640 = vmatpush.msra.mxu0 0.0
    %3641 = vmatpush.msra.mxu0 0.0
    %3642 = vmatpush.msra.mxu0 0.0
    %3643 = vmatpush.msra.mxu0 0.0
    %3644 = vmatpush.msra.mxu0 0.0
    %3645 = vmatpush.msra.mxu0 0.0
    %3646 = vmatpush.msra.mxu0 0.0
    %3647 = vmatpush.msra.mxu0 0.0
    %3648 = vmatpush.msra.mxu0 0.0
    %3649 = vmatpush.msra.mxu0 0.0
    %3650 = vmatpush.msra.mxu0 0.0
    %3651 = vmatpush.msra.mxu0 0.0
    %3652 = vmatpush.msra.mxu0 0.0
    %3653 = vmatpush.msra.mxu0 %v1465
    %3654 = vmatmul.f32.gmra.mxu0 %v3636
    %v3655 = vpop.f32.mrf.mxu0
    %v3656 = vadd.f32 0.0, %v3655
    %3657 = vdwg.mxu0
    %v3659 = vsel %vm211, %v3656, 0
    %3661 = vmatpush.msra.mxu0 0.0
    %3662 = vmatpush.msra.mxu0 0.0
    %3663 = vmatpush.msra.mxu0 0.0
    %3664 = vmatpush.msra.mxu0 0.0
    %3665 = vmatpush.msra.mxu0 0.0
    %3666 = vmatpush.msra.mxu0 0.0
    %3667 = vmatpush.msra.mxu0 0.0
    %3668 = vmatpush.msra.mxu0 0.0
    %3669 = vmatpush.msra.mxu0 0.0
    %3670 = vmatpush.msra.mxu0 0.0
    %3671 = vmatpush.msra.mxu0 0.0
    %3672 = vmatpush.msra.mxu0 0.0
    %3673 = vmatpush.msra.mxu0 0.0
    %3674 = vmatpush.msra.mxu0 0.0
    %3675 = vmatpush.msra.mxu0 %v1152
    %3676 = vmatpush.msra.mxu0 %v1151
    %3677 = vmatmul.f32.gmra.mxu0 %v3659
    %v3678 = vpop.f32.mrf.mxu0
    %v3679 = vadd.f32 0.0, %v3678
    %3680 = vdwg.mxu0
    %v3682 = vsel %vm211, %v3616, 0
    %3684 = vmatpush.msra.mxu0 0.0
    %3685 = vmatpush.msra.mxu0 0.0
    %3686 = vmatpush.msra.mxu0 0.0
    %3687 = vmatpush.msra.mxu0 0.0
    %3688 = vmatpush.msra.mxu0 0.0
    %3689 = vmatpush.msra.mxu0 0.0
    %3690 = vmatpush.msra.mxu0 0.0
    %3691 = vmatpush.msra.mxu0 0.0
    %3692 = vmatpush.msra.mxu0 0.0
    %3693 = vmatpush.msra.mxu0 0.0
    %3694 = vmatpush.msra.mxu0 0.0
    %3695 = vmatpush.msra.mxu0 0.0
    %3696 = vmatpush.msra.mxu0 0.0
    %3697 = vmatpush.msra.mxu0 0.0
    %3698 = vmatpush.msra.mxu0 %v1150
    %3699 = vmatpush.msra.mxu0 %v1149
    %3700 = vmatmul.f32.gmra.mxu0 %v3682
    %v3701 = vpop.f32.mrf.mxu0
    %v3702 = vadd.f32 %v3679, %v3701
    %3703 = vdwg.mxu0
    %v3704 = vadd.f32 %v3580, %v1571
    %v3705 = vadd.f32 %v3702, %v1571
    %v3707 = vsel %vm150, %v3429, 0
    %v3710 = vsel %vm150, %v3430, 0
    %3712 = vmatpush.msra.mxu0 0.0
    %3713 = vmatpush.msra.mxu0 0.0
    %3714 = vmatpush.msra.mxu0 0.0
    %3715 = vmatpush.msra.mxu0 0.0
    %3716 = vmatpush.msra.mxu0 0.0
    %3717 = vmatpush.msra.mxu0 0.0
    %3718 = vmatpush.msra.mxu0 0.0
    %3719 = vmatpush.msra.mxu0 0.0
    %3720 = vmatpush.msra.mxu0 0.0
    %3721 = vmatpush.msra.mxu0 0.0
    %3722 = vmatpush.msra.mxu0 0.0
    %3723 = vmatpush.msra.mxu0 0.0
    %3724 = vmatpush.msra.mxu0 %v1584
    %3725 = vmatpush.msra.mxu0 %v1583
    %3726 = vmatpush.msra.mxu0 %v1582
    %3727 = vmatpush.msra.mxu0 %v1581
    %3728 = vmatmul.f32.gmra.mxu0 %v3707
    %v3729 = vpop.f32.mrf.mxu0
    %v3730 = vadd.f32 %v1625, %v3729
    %3731 = vmatmul.f32.gmra.mxu0 %v3710
    %v3732 = vpop.f32.mrf.mxu0
    %v3733 = vadd.f32 %v1625, %v3732
    %3734 = vdwg.mxu0
    %v3735 = vmul.f32 %v3730, %v1657
    %v3736 = vsel %vm211, %v3735, 0.0
    %3737 = vadd.xlane.f32.xlu0 %v3736
    %v3738 = vpop.xlane.xlu0 %3737
    %v3739 = vadd.f32 %v3738, %v1689
    %v3740 = vtanh.pop %v3739
    %v3741 = vmul.f32 %v3740, 1.442695
    %v3742 = vpow.pop %v3741
    %v3743 = vsel %vm246, %v3742, 0.0
    %3744 = vadd.xlane.f32.xlu0 %v3743
    %v3745 = vpop.xlane.xlu0 %3744
    %v3746 = vrcp.pop %v3745
    %v3747 = vmul.f32 %v3742, %v3746
    %v3749 = vsel %vm246, %v3747, 0
    %3751 = vmatpush.msra.mxu0 0.0
    %3752 = vmatpush.msra.mxu0 0.0
    %3753 = vmatpush.msra.mxu0 0.0
    %3754 = vmatpush.msra.mxu0 0.0
    %3755 = vmatpush.msra.mxu0 0.0
    %3756 = vmatpush.msra.mxu0 0.0
    %3757 = vmatpush.msra.mxu0 0.0
    %3758 = vmatpush.msra.mxu0 0.0
    %3759 = vmatpush.msra.mxu0 0.0
    %3760 = vmatpush.msra.mxu0 0.0
    %3761 = vmatpush.msra.mxu0 0.0
    %3762 = vmatpush.msra.mxu0 0.0
    %3763 = vmatpush.msra.mxu0 0.0
    %3764 = vmatpush.msra.mxu0 0.0
    %3765 = vmatpush.msra.mxu0 0.0
    %3766 = vmatpush.msra.mxu0 %v1617
    %3767 = vmatmul.f32.gmra.mxu0 %v3749
    %v3768 = vpop.f32.mrf.mxu0
    %v3769 = vadd.f32 0.0, %v3768
    %3770 = vdwg.mxu0
    %v3771 = vmul.f32 %v3730, %v1723
    %3773 = vrot.lane.b32.xlu0 %v3771, 112
    %v3774 = vpop.permute.xlu0 %3773
    %v3776 = vsel %vm211, %v3774, 0.0
    %3777 = vadd.xlane.f32.xlu0 %v3776
    %v3778 = vpop.xlane.xlu0 %3777
    %v3779 = vadd.f32 %v3778, %v1757
    %v3780 = vtanh.pop %v3779
    %v3781 = vmul.f32 %v3780, 1.442695
    %v3782 = vpow.pop %v3781
    %v3783 = vsel %vm246, %v3782, 0.0
    %3784 = vadd.xlane.f32.xlu0 %v3783
    %v3785 = vpop.xlane.xlu0 %3784
    %v3786 = vrcp.pop %v3785
    %v3787 = vmul.f32 %v3782, %v3786
    %v3789 = vsel %vm246, %v3787, 0
    %3791 = vmatpush.msra.mxu0 0.0
    %3792 = vmatpush.msra.mxu0 0.0
    %3793 = vmatpush.msra.mxu0 0.0
    %3794 = vmatpush.msra.mxu0 0.0
    %3795 = vmatpush.msra.mxu0 0.0
    %3796 = vmatpush.msra.mxu0 0.0
    %3797 = vmatpush.msra.mxu0 0.0
    %3798 = vmatpush.msra.mxu0 0.0
    %3799 = vmatpush.msra.mxu0 0.0
    %3800 = vmatpush.msra.mxu0 0.0
    %3801 = vmatpush.msra.mxu0 0.0
    %3802 = vmatpush.msra.mxu0 0.0
    %3803 = vmatpush.msra.mxu0 0.0
    %3804 = vmatpush.msra.mxu0 0.0
    %3805 = vmatpush.msra.mxu0 0.0
    %3806 = vmatpush.msra.mxu0 %v1734
    %3807 = vmatmul.f32.gmra.mxu0 %v3789
    %v3808 = vpop.f32.mrf.mxu0
    %v3809 = vadd.f32 0.0, %v3808
    %3810 = vdwg.mxu0
    %v3812 = vsel %vm211, %v3809, 0
    %3814 = vmatpush.msra.mxu0 0.0
    %3815 = vmatpush.msra.mxu0 0.0
    %3816 = vmatpush.msra.mxu0 0.0
    %3817 = vmatpush.msra.mxu0 0.0
    %3818 = vmatpush.msra.mxu0 0.0
    %3819 = vmatpush.msra.mxu0 0.0
    %3820 = vmatpush.msra.mxu0 0.0
    %3821 = vmatpush.msra.mxu0 0.0
    %3822 = vmatpush.msra.mxu0 0.0
    %3823 = vmatpush.msra.mxu0 0.0
    %3824 = vmatpush.msra.mxu0 0.0
    %3825 = vmatpush.msra.mxu0 0.0
    %3826 = vmatpush.msra.mxu0 0.0
    %3827 = vmatpush.msra.mxu0 0.0
    %3828 = vmatpush.msra.mxu0 %v1593
    %3829 = vmatpush.msra.mxu0 %v1592
    %3830 = vmatmul.f32.gmra.mxu0 %v3812
    %v3831 = vpop.f32.mrf.mxu0
    %v3832 = vadd.f32 0.0, %v3831
    %3833 = vdwg.mxu0
    %v3835 = vsel %vm211, %v3769, 0
    %3837 = vmatpush.msra.mxu0 0.0
    %3838 = vmatpush.msra.mxu0 0.0
    %3839 = vmatpush.msra.mxu0 0.0
    %3840 = vmatpush.msra.mxu0 0.0
    %3841 = vmatpush.msra.mxu0 0.0
    %3842 = vmatpush.msra.mxu0 0.0
    %3843 = vmatpush.msra.mxu0 0.0
    %3844 = vmatpush.msra.mxu0 0.0
    %3845 = vmatpush.msra.mxu0 0.0
    %3846 = vmatpush.msra.mxu0 0.0
    %3847 = vmatpush.msra.mxu0 0.0
    %3848 = vmatpush.msra.mxu0 0.0
    %3849 = vmatpush.msra.mxu0 0.0
    %3850 = vmatpush.msra.mxu0 0.0
    %3851 = vmatpush.msra.mxu0 %v1591
    %3852 = vmatpush.msra.mxu0 %v1590
    %3853 = vmatmul.f32.gmra.mxu0 %v3835
    %v3854 = vpop.f32.mrf.mxu0
    %v3855 = vadd.f32 %v3832, %v3854
    %3856 = vdwg.mxu0
    %v3857 = vmul.f32 %v3733, %v1657
    %v3858 = vsel %vm211, %v3857, 0.0
    %3859 = vadd.xlane.f32.xlu0 %v3858
    %v3860 = vpop.xlane.xlu0 %3859
    %v3861 = vadd.f32 %v3860, %v1864
    %v3862 = vtanh.pop %v3861
    %v3863 = vmul.f32 %v3862, 1.442695
    %v3864 = vpow.pop %v3863
    %v3865 = vsel %vm246, %v3864, 0.0
    %3866 = vadd.xlane.f32.xlu0 %v3865
    %v3867 = vpop.xlane.xlu0 %3866
    %v3868 = vrcp.pop %v3867
    %v3869 = vmul.f32 %v3864, %v3868
    %v3871 = vsel %vm246, %v3869, 0
    %3873 = vmatpush.msra.mxu0 0.0
    %3874 = vmatpush.msra.mxu0 0.0
    %3875 = vmatpush.msra.mxu0 0.0
    %3876 = vmatpush.msra.mxu0 0.0
    %3877 = vmatpush.msra.mxu0 0.0
    %3878 = vmatpush.msra.mxu0 0.0
    %3879 = vmatpush.msra.mxu0 0.0
    %3880 = vmatpush.msra.mxu0 0.0
    %3881 = vmatpush.msra.mxu0 0.0
    %3882 = vmatpush.msra.mxu0 0.0
    %3883 = vmatpush.msra.mxu0 0.0
    %3884 = vmatpush.msra.mxu0 0.0
    %3885 = vmatpush.msra.mxu0 0.0
    %3886 = vmatpush.msra.mxu0 0.0
    %3887 = vmatpush.msra.mxu0 0.0
    %3888 = vmatpush.msra.mxu0 %v1620
    %3889 = vmatmul.f32.gmra.mxu0 %v3871
    %v3890 = vpop.f32.mrf.mxu0
    %v3891 = vadd.f32 0.0, %v3890
    %3892 = vdwg.mxu0
    %v3893 = vmul.f32 %v3733, %v1723
    %3895 = vrot.lane.b32.xlu0 %v3893, 112
    %v3896 = vpop.permute.xlu0 %3895
    %v3898 = vsel %vm211, %v3896, 0.0
    %3899 = vadd.xlane.f32.xlu0 %v3898
    %v3900 = vpop.xlane.xlu0 %3899
    %v3901 = vadd.f32 %v3900, %v1929
    %v3902 = vtanh.pop %v3901
    %v3903 = vmul.f32 %v3902, 1.442695
    %v3904 = vpow.pop %v3903
    %v3905 = vsel %vm246, %v3904, 0.0
    %3906 = vadd.xlane.f32.xlu0 %v3905
    %v3907 = vpop.xlane.xlu0 %3906
    %v3908 = vrcp.pop %v3907
    %v3909 = vmul.f32 %v3904, %v3908
    %v3911 = vsel %vm246, %v3909, 0
    %3913 = vmatpush.msra.mxu0 0.0
    %3914 = vmatpush.msra.mxu0 0.0
    %3915 = vmatpush.msra.mxu0 0.0
    %3916 = vmatpush.msra.mxu0 0.0
    %3917 = vmatpush.msra.mxu0 0.0
    %3918 = vmatpush.msra.mxu0 0.0
    %3919 = vmatpush.msra.mxu0 0.0
    %3920 = vmatpush.msra.mxu0 0.0
    %3921 = vmatpush.msra.mxu0 0.0
    %3922 = vmatpush.msra.mxu0 0.0
    %3923 = vmatpush.msra.mxu0 0.0
    %3924 = vmatpush.msra.mxu0 0.0
    %3925 = vmatpush.msra.mxu0 0.0
    %3926 = vmatpush.msra.mxu0 0.0
    %3927 = vmatpush.msra.mxu0 0.0
    %3928 = vmatpush.msra.mxu0 %v1906
    %3929 = vmatmul.f32.gmra.mxu0 %v3911
    %v3930 = vpop.f32.mrf.mxu0
    %v3931 = vadd.f32 0.0, %v3930
    %3932 = vdwg.mxu0
    %v3934 = vsel %vm211, %v3931, 0
    %3936 = vmatpush.msra.mxu0 0.0
    %3937 = vmatpush.msra.mxu0 0.0
    %3938 = vmatpush.msra.mxu0 0.0
    %3939 = vmatpush.msra.mxu0 0.0
    %3940 = vmatpush.msra.mxu0 0.0
    %3941 = vmatpush.msra.mxu0 0.0
    %3942 = vmatpush.msra.mxu0 0.0
    %3943 = vmatpush.msra.mxu0 0.0
    %3944 = vmatpush.msra.mxu0 0.0
    %3945 = vmatpush.msra.mxu0 0.0
    %3946 = vmatpush.msra.mxu0 0.0
    %3947 = vmatpush.msra.mxu0 0.0
    %3948 = vmatpush.msra.mxu0 0.0
    %3949 = vmatpush.msra.mxu0 0.0
    %3950 = vmatpush.msra.mxu0 %v1593
    %3951 = vmatpush.msra.mxu0 %v1592
    %3952 = vmatmul.f32.gmra.mxu0 %v3934
    %v3953 = vpop.f32.mrf.mxu0
    %v3954 = vadd.f32 0.0, %v3953
    %3955 = vdwg.mxu0
    %v3957 = vsel %vm211, %v3891, 0
    %3959 = vmatpush.msra.mxu0 0.0
    %3960 = vmatpush.msra.mxu0 0.0
    %3961 = vmatpush.msra.mxu0 0.0
    %3962 = vmatpush.msra.mxu0 0.0
    %3963 = vmatpush.msra.mxu0 0.0
    %3964 = vmatpush.msra.mxu0 0.0
    %3965 = vmatpush.msra.mxu0 0.0
    %3966 = vmatpush.msra.mxu0 0.0
    %3967 = vmatpush.msra.mxu0 0.0
    %3968 = vmatpush.msra.mxu0 0.0
    %3969 = vmatpush.msra.mxu0 0.0
    %3970 = vmatpush.msra.mxu0 0.0
    %3971 = vmatpush.msra.mxu0 0.0
    %3972 = vmatpush.msra.mxu0 0.0
    %3973 = vmatpush.msra.mxu0 %v1591
    %3974 = vmatpush.msra.mxu0 %v1590
    %3975 = vmatmul.f32.gmra.mxu0 %v3957
    %v3976 = vpop.f32.mrf.mxu0
    %v3977 = vadd.f32 %v3954, %v3976
    %3978 = vdwg.mxu0
    %v3979 = vadd.f32 %v3855, %v2012
    %v3980 = vadd.f32 %v3977, %v2012
    %v3981 = vadd.f32 %v3704, %v3979
    %v3982 = vadd.f32 %v3705, %v3980
    %v3983 = vmul.f32 %v3981, 0.5
    %v3984 = vmul.f32 %v3982, 0.5
    %3985 = vmatpush.msra.mxu0 0.0
    %3986 = vmatpush.msra.mxu0 0.0
    %3987 = vmatpush.msra.mxu0 0.0
    %3988 = vmatpush.msra.mxu0 0.0
    %3989 = vmatpush.msra.mxu0 0.0
    %3990 = vmatpush.msra.mxu0 0.0
    %3991 = vmatpush.msra.mxu0 0.0
    %3992 = vmatpush.msra.mxu0 0.0
    %3993 = vmatpush.msra.mxu0 0.0
    %3994 = vmatpush.msra.mxu0 0.0
    %3995 = vmatpush.msra.mxu0 0.0
    %3996 = vmatpush.msra.mxu0 0.0
    %3997 = vmatpush.msra.mxu0 %v2029
    %3998 = vmatpush.msra.mxu0 %v2028
    %3999 = vmatpush.msra.mxu0 %v2027
    %4000 = vmatpush.msra.mxu0 %v2026
    %4001 = vmatmul.f32.gmra.mxu0 %v3707
    %v4002 = vpop.f32.mrf.mxu0
    %v4003 = vadd.f32 %v2070, %v4002
    %4004 = vmatmul.f32.gmra.mxu0 %v3710
    %v4005 = vpop.f32.mrf.mxu0
    %v4006 = vadd.f32 %v2070, %v4005
    %4007 = vdwg.mxu0
    %v4008 = vmul.f32 %v4003, %v2096
    %v4009 = vsel %vm211, %v4008, 0.0
    %4010 = vadd.xlane.f32.xlu0 %v4009
    %v4011 = vpop.xlane.xlu0 %4010
    %v4012 = vadd.f32 %v4011, %v2128
    %v4013 = vtanh.pop %v4012
    %v4014 = vmul.f32 %v4013, 1.442695
    %v4015 = vpow.pop %v4014
    %v4016 = vsel %vm246, %v4015, 0.0
    %4017 = vadd.xlane.f32.xlu0 %v4016
    %v4018 = vpop.xlane.xlu0 %4017
    %v4019 = vrcp.pop %v4018
    %v4020 = vmul.f32 %v4015, %v4019
    %v4022 = vsel %vm246, %v4020, 0
    %4024 = vmatpush.msra.mxu0 0.0
    %4025 = vmatpush.msra.mxu0 0.0
    %4026 = vmatpush.msra.mxu0 0.0
    %4027 = vmatpush.msra.mxu0 0.0
    %4028 = vmatpush.msra.mxu0 0.0
    %4029 = vmatpush.msra.mxu0 0.0
    %4030 = vmatpush.msra.mxu0 0.0
    %4031 = vmatpush.msra.mxu0 0.0
    %4032 = vmatpush.msra.mxu0 0.0
    %4033 = vmatpush.msra.mxu0 0.0
    %4034 = vmatpush.msra.mxu0 0.0
    %4035 = vmatpush.msra.mxu0 0.0
    %4036 = vmatpush.msra.mxu0 0.0
    %4037 = vmatpush.msra.mxu0 0.0
    %4038 = vmatpush.msra.mxu0 0.0
    %4039 = vmatpush.msra.mxu0 %v2062
    %4040 = vmatmul.f32.gmra.mxu0 %v4022
    %v4041 = vpop.f32.mrf.mxu0
    %v4042 = vadd.f32 0.0, %v4041
    %4043 = vdwg.mxu0
    %v4044 = vmul.f32 %v4003, %v2162
    %4046 = vrot.lane.b32.xlu0 %v4044, 112
    %v4047 = vpop.permute.xlu0 %4046
    %v4049 = vsel %vm211, %v4047, 0.0
    %4050 = vadd.xlane.f32.xlu0 %v4049
    %v4051 = vpop.xlane.xlu0 %4050
    %v4052 = vadd.f32 %v4051, %v2196
    %v4053 = vtanh.pop %v4052
    %v4054 = vmul.f32 %v4053, 1.442695
    %v4055 = vpow.pop %v4054
    %v4056 = vsel %vm246, %v4055, 0.0
    %4057 = vadd.xlane.f32.xlu0 %v4056
    %v4058 = vpop.xlane.xlu0 %4057
    %v4059 = vrcp.pop %v4058
    %v4060 = vmul.f32 %v4055, %v4059
    %v4062 = vsel %vm246, %v4060, 0
    %4064 = vmatpush.msra.mxu0 0.0
    %4065 = vmatpush.msra.mxu0 0.0
    %4066 = vmatpush.msra.mxu0 0.0
    %4067 = vmatpush.msra.mxu0 0.0
    %4068 = vmatpush.msra.mxu0 0.0
    %4069 = vmatpush.msra.mxu0 0.0
    %4070 = vmatpush.msra.mxu0 0.0
    %4071 = vmatpush.msra.mxu0 0.0
    %4072 = vmatpush.msra.mxu0 0.0
    %4073 = vmatpush.msra.mxu0 0.0
    %4074 = vmatpush.msra.mxu0 0.0
    %4075 = vmatpush.msra.mxu0 0.0
    %4076 = vmatpush.msra.mxu0 0.0
    %4077 = vmatpush.msra.mxu0 0.0
    %4078 = vmatpush.msra.mxu0 0.0
    %4079 = vmatpush.msra.mxu0 %v2173
    %4080 = vmatmul.f32.gmra.mxu0 %v4062
    %v4081 = vpop.f32.mrf.mxu0
    %v4082 = vadd.f32 0.0, %v4081
    %4083 = vdwg.mxu0
    %v4085 = vsel %vm211, %v4082, 0
    %4087 = vmatpush.msra.mxu0 0.0
    %4088 = vmatpush.msra.mxu0 0.0
    %4089 = vmatpush.msra.mxu0 0.0
    %4090 = vmatpush.msra.mxu0 0.0
    %4091 = vmatpush.msra.mxu0 0.0
    %4092 = vmatpush.msra.mxu0 0.0
    %4093 = vmatpush.msra.mxu0 0.0
    %4094 = vmatpush.msra.mxu0 0.0
    %4095 = vmatpush.msra.mxu0 0.0
    %4096 = vmatpush.msra.mxu0 0.0
    %4097 = vmatpush.msra.mxu0 0.0
    %4098 = vmatpush.msra.mxu0 0.0
    %4099 = vmatpush.msra.mxu0 0.0
    %4100 = vmatpush.msra.mxu0 0.0
    %4101 = vmatpush.msra.mxu0 %v2038
    %4102 = vmatpush.msra.mxu0 %v2037
    %4103 = vmatmul.f32.gmra.mxu0 %v4085
    %v4104 = vpop.f32.mrf.mxu0
    %v4105 = vadd.f32 0.0, %v4104
    %4106 = vdwg.mxu0
    %v4108 = vsel %vm211, %v4042, 0
    %4110 = vmatpush.msra.mxu0 0.0
    %4111 = vmatpush.msra.mxu0 0.0
    %4112 = vmatpush.msra.mxu0 0.0
    %4113 = vmatpush.msra.mxu0 0.0
    %4114 = vmatpush.msra.mxu0 0.0
    %4115 = vmatpush.msra.mxu0 0.0
    %4116 = vmatpush.msra.mxu0 0.0
    %4117 = vmatpush.msra.mxu0 0.0
    %4118 = vmatpush.msra.mxu0 0.0
    %4119 = vmatpush.msra.mxu0 0.0
    %4120 = vmatpush.msra.mxu0 0.0
    %4121 = vmatpush.msra.mxu0 0.0
    %4122 = vmatpush.msra.mxu0 0.0
    %4123 = vmatpush.msra.mxu0 0.0
    %4124 = vmatpush.msra.mxu0 %v2036
    %4125 = vmatpush.msra.mxu0 %v2035
    %4126 = vmatmul.f32.gmra.mxu0 %v4108
    %v4127 = vpop.f32.mrf.mxu0
    %v4128 = vadd.f32 %v4105, %v4127
    %4129 = vdwg.mxu0
    %v4130 = vmul.f32 %v4006, %v2096
    %v4131 = vsel %vm211, %v4130, 0.0
    %4132 = vadd.xlane.f32.xlu0 %v4131
    %v4133 = vpop.xlane.xlu0 %4132
    %v4134 = vadd.f32 %v4133, %v2303
    %v4135 = vtanh.pop %v4134
    %v4136 = vmul.f32 %v4135, 1.442695
    %v4137 = vpow.pop %v4136
    %v4138 = vsel %vm246, %v4137, 0.0
    %4139 = vadd.xlane.f32.xlu0 %v4138
    %v4140 = vpop.xlane.xlu0 %4139
    %v4141 = vrcp.pop %v4140
    %v4142 = vmul.f32 %v4137, %v4141
    %v4144 = vsel %vm246, %v4142, 0
    %4146 = vmatpush.msra.mxu0 0.0
    %4147 = vmatpush.msra.mxu0 0.0
    %4148 = vmatpush.msra.mxu0 0.0
    %4149 = vmatpush.msra.mxu0 0.0
    %4150 = vmatpush.msra.mxu0 0.0
    %4151 = vmatpush.msra.mxu0 0.0
    %4152 = vmatpush.msra.mxu0 0.0
    %4153 = vmatpush.msra.mxu0 0.0
    %4154 = vmatpush.msra.mxu0 0.0
    %4155 = vmatpush.msra.mxu0 0.0
    %4156 = vmatpush.msra.mxu0 0.0
    %4157 = vmatpush.msra.mxu0 0.0
    %4158 = vmatpush.msra.mxu0 0.0
    %4159 = vmatpush.msra.mxu0 0.0
    %4160 = vmatpush.msra.mxu0 0.0
    %4161 = vmatpush.msra.mxu0 %v2065
    %4162 = vmatmul.f32.gmra.mxu0 %v4144
    %v4163 = vpop.f32.mrf.mxu0
    %v4164 = vadd.f32 0.0, %v4163
    %4165 = vdwg.mxu0
    %v4166 = vmul.f32 %v4006, %v2162
    %4168 = vrot.lane.b32.xlu0 %v4166, 112
    %v4169 = vpop.permute.xlu0 %4168
    %v4171 = vsel %vm211, %v4169, 0.0
    %4172 = vadd.xlane.f32.xlu0 %v4171
    %v4173 = vpop.xlane.xlu0 %4172
    %v4174 = vadd.f32 %v4173, %v2368
    %v4175 = vtanh.pop %v4174
    %v4176 = vmul.f32 %v4175, 1.442695
    %v4177 = vpow.pop %v4176
    %v4178 = vsel %vm246, %v4177, 0.0
    %4179 = vadd.xlane.f32.xlu0 %v4178
    %v4180 = vpop.xlane.xlu0 %4179
    %v4181 = vrcp.pop %v4180
    %v4182 = vmul.f32 %v4177, %v4181
    %v4184 = vsel %vm246, %v4182, 0
    %4186 = vmatpush.msra.mxu0 0.0
    %4187 = vmatpush.msra.mxu0 0.0
    %4188 = vmatpush.msra.mxu0 0.0
    %4189 = vmatpush.msra.mxu0 0.0
    %4190 = vmatpush.msra.mxu0 0.0
    %4191 = vmatpush.msra.mxu0 0.0
    %4192 = vmatpush.msra.mxu0 0.0
    %4193 = vmatpush.msra.mxu0 0.0
    %4194 = vmatpush.msra.mxu0 0.0
    %4195 = vmatpush.msra.mxu0 0.0
    %4196 = vmatpush.msra.mxu0 0.0
    %4197 = vmatpush.msra.mxu0 0.0
    %4198 = vmatpush.msra.mxu0 0.0
    %4199 = vmatpush.msra.mxu0 0.0
    %4200 = vmatpush.msra.mxu0 0.0
    %4201 = vmatpush.msra.mxu0 %v2345
    %4202 = vmatmul.f32.gmra.mxu0 %v4184
    %v4203 = vpop.f32.mrf.mxu0
    %v4204 = vadd.f32 0.0, %v4203
    %4205 = vdwg.mxu0
    %v4207 = vsel %vm211, %v4204, 0
    %4209 = vmatpush.msra.mxu0 0.0
    %4210 = vmatpush.msra.mxu0 0.0
    %4211 = vmatpush.msra.mxu0 0.0
    %4212 = vmatpush.msra.mxu0 0.0
    %4213 = vmatpush.msra.mxu0 0.0
    %4214 = vmatpush.msra.mxu0 0.0
    %4215 = vmatpush.msra.mxu0 0.0
    %4216 = vmatpush.msra.mxu0 0.0
    %4217 = vmatpush.msra.mxu0 0.0
    %4218 = vmatpush.msra.mxu0 0.0
    %4219 = vmatpush.msra.mxu0 0.0
    %4220 = vmatpush.msra.mxu0 0.0
    %4221 = vmatpush.msra.mxu0 0.0
    %4222 = vmatpush.msra.mxu0 0.0
    %4223 = vmatpush.msra.mxu0 %v2038
    %4224 = vmatpush.msra.mxu0 %v2037
    %4225 = vmatmul.f32.gmra.mxu0 %v4207
    %v4226 = vpop.f32.mrf.mxu0
    %v4227 = vadd.f32 0.0, %v4226
    %4228 = vdwg.mxu0
    %v4230 = vsel %vm211, %v4164, 0
    %4232 = vmatpush.msra.mxu0 0.0
    %4233 = vmatpush.msra.mxu0 0.0
    %4234 = vmatpush.msra.mxu0 0.0
    %4235 = vmatpush.msra.mxu0 0.0
    %4236 = vmatpush.msra.mxu0 0.0
    %4237 = vmatpush.msra.mxu0 0.0
    %4238 = vmatpush.msra.mxu0 0.0
    %4239 = vmatpush.msra.mxu0 0.0
    %4240 = vmatpush.msra.mxu0 0.0
    %4241 = vmatpush.msra.mxu0 0.0
    %4242 = vmatpush.msra.mxu0 0.0
    %4243 = vmatpush.msra.mxu0 0.0
    %4244 = vmatpush.msra.mxu0 0.0
    %4245 = vmatpush.msra.mxu0 0.0
    %4246 = vmatpush.msra.mxu0 %v2036
    %4247 = vmatpush.msra.mxu0 %v2035
    %4248 = vmatmul.f32.gmra.mxu0 %v4230
    %v4249 = vpop.f32.mrf.mxu0
    %v4250 = vadd.f32 %v4227, %v4249
    %4251 = vdwg.mxu0
    %v4252 = vadd.f32 %v4128, %v2451
    %v4253 = vadd.f32 %v4250, %v2451
    %4254 = vmatpush.msra.mxu0 0.0
    %4255 = vmatpush.msra.mxu0 0.0
    %4256 = vmatpush.msra.mxu0 0.0
    %4257 = vmatpush.msra.mxu0 0.0
    %4258 = vmatpush.msra.mxu0 0.0
    %4259 = vmatpush.msra.mxu0 0.0
    %4260 = vmatpush.msra.mxu0 0.0
    %4261 = vmatpush.msra.mxu0 0.0
    %4262 = vmatpush.msra.mxu0 0.0
    %4263 = vmatpush.msra.mxu0 0.0
    %4264 = vmatpush.msra.mxu0 0.0
    %4265 = vmatpush.msra.mxu0 0.0
    %4266 = vmatpush.msra.mxu0 %v2464
    %4267 = vmatpush.msra.mxu0 %v2463
    %4268 = vmatpush.msra.mxu0 %v2462
    %4269 = vmatpush.msra.mxu0 %v2461
    %4270 = vmatmul.f32.gmra.mxu0 %v3432
    %v4271 = vpop.f32.mrf.mxu0
    %v4272 = vadd.f32 %v2505, %v4271
    %4273 = vmatmul.f32.gmra.mxu0 %v3435
    %v4274 = vpop.f32.mrf.mxu0
    %v4275 = vadd.f32 %v2505, %v4274
    %4276 = vdwg.mxu0
    %v4277 = vmul.f32 %v4272, %v2531
    %v4278 = vsel %vm211, %v4277, 0.0
    %4279 = vadd.xlane.f32.xlu0 %v4278
    %v4280 = vpop.xlane.xlu0 %4279
    %v4281 = vadd.f32 %v4280, %v2563
    %v4282 = vtanh.pop %v4281
    %v4283 = vmul.f32 %v4282, 1.442695
    %v4284 = vpow.pop %v4283
    %v4285 = vsel %vm246, %v4284, 0.0
    %4286 = vadd.xlane.f32.xlu0 %v4285
    %v4287 = vpop.xlane.xlu0 %4286
    %v4288 = vrcp.pop %v4287
    %v4289 = vmul.f32 %v4284, %v4288
    %v4291 = vsel %vm246, %v4289, 0
    %4293 = vmatpush.msra.mxu0 0.0
    %4294 = vmatpush.msra.mxu0 0.0
    %4295 = vmatpush.msra.mxu0 0.0
    %4296 = vmatpush.msra.mxu0 0.0
    %4297 = vmatpush.msra.mxu0 0.0
    %4298 = vmatpush.msra.mxu0 0.0
    %4299 = vmatpush.msra.mxu0 0.0
    %4300 = vmatpush.msra.mxu0 0.0
    %4301 = vmatpush.msra.mxu0 0.0
    %4302 = vmatpush.msra.mxu0 0.0
    %4303 = vmatpush.msra.mxu0 0.0
    %4304 = vmatpush.msra.mxu0 0.0
    %4305 = vmatpush.msra.mxu0 0.0
    %4306 = vmatpush.msra.mxu0 0.0
    %4307 = vmatpush.msra.mxu0 0.0
    %4308 = vmatpush.msra.mxu0 %v2497
    %4309 = vmatmul.f32.gmra.mxu0 %v4291
    %v4310 = vpop.f32.mrf.mxu0
    %v4311 = vadd.f32 0.0, %v4310
    %4312 = vdwg.mxu0
    %v4313 = vmul.f32 %v4272, %v2597
    %4315 = vrot.lane.b32.xlu0 %v4313, 112
    %v4316 = vpop.permute.xlu0 %4315
    %v4318 = vsel %vm211, %v4316, 0.0
    %4319 = vadd.xlane.f32.xlu0 %v4318
    %v4320 = vpop.xlane.xlu0 %4319
    %v4321 = vadd.f32 %v4320, %v2631
    %v4322 = vtanh.pop %v4321
    %v4323 = vmul.f32 %v4322, 1.442695
    %v4324 = vpow.pop %v4323
    %v4325 = vsel %vm246, %v4324, 0.0
    %4326 = vadd.xlane.f32.xlu0 %v4325
    %v4327 = vpop.xlane.xlu0 %4326
    %v4328 = vrcp.pop %v4327
    %v4329 = vmul.f32 %v4324, %v4328
    %v4331 = vsel %vm246, %v4329, 0
    %4333 = vmatpush.msra.mxu0 0.0
    %4334 = vmatpush.msra.mxu0 0.0
    %4335 = vmatpush.msra.mxu0 0.0
    %4336 = vmatpush.msra.mxu0 0.0
    %4337 = vmatpush.msra.mxu0 0.0
    %4338 = vmatpush.msra.mxu0 0.0
    %4339 = vmatpush.msra.mxu0 0.0
    %4340 = vmatpush.msra.mxu0 0.0
    %4341 = vmatpush.msra.mxu0 0.0
    %4342 = vmatpush.msra.mxu0 0.0
    %4343 = vmatpush.msra.mxu0 0.0
    %4344 = vmatpush.msra.mxu0 0.0
    %4345 = vmatpush.msra.mxu0 0.0
    %4346 = vmatpush.msra.mxu0 0.0
    %4347 = vmatpush.msra.mxu0 0.0
    %4348 = vmatpush.msra.mxu0 %v2608
    %4349 = vmatmul.f32.gmra.mxu0 %v4331
    %v4350 = vpop.f32.mrf.mxu0
    %v4351 = vadd.f32 0.0, %v4350
    %4352 = vdwg.mxu0
    %v4354 = vsel %vm211, %v4351, 0
    %4356 = vmatpush.msra.mxu0 0.0
    %4357 = vmatpush.msra.mxu0 0.0
    %4358 = vmatpush.msra.mxu0 0.0
    %4359 = vmatpush.msra.mxu0 0.0
    %4360 = vmatpush.msra.mxu0 0.0
    %4361 = vmatpush.msra.mxu0 0.0
    %4362 = vmatpush.msra.mxu0 0.0
    %4363 = vmatpush.msra.mxu0 0.0
    %4364 = vmatpush.msra.mxu0 0.0
    %4365 = vmatpush.msra.mxu0 0.0
    %4366 = vmatpush.msra.mxu0 0.0
    %4367 = vmatpush.msra.mxu0 0.0
    %4368 = vmatpush.msra.mxu0 0.0
    %4369 = vmatpush.msra.mxu0 0.0
    %4370 = vmatpush.msra.mxu0 %v2473
    %4371 = vmatpush.msra.mxu0 %v2472
    %4372 = vmatmul.f32.gmra.mxu0 %v4354
    %v4373 = vpop.f32.mrf.mxu0
    %v4374 = vadd.f32 0.0, %v4373
    %4375 = vdwg.mxu0
    %v4377 = vsel %vm211, %v4311, 0
    %4379 = vmatpush.msra.mxu0 0.0
    %4380 = vmatpush.msra.mxu0 0.0
    %4381 = vmatpush.msra.mxu0 0.0
    %4382 = vmatpush.msra.mxu0 0.0
    %4383 = vmatpush.msra.mxu0 0.0
    %4384 = vmatpush.msra.mxu0 0.0
    %4385 = vmatpush.msra.mxu0 0.0
    %4386 = vmatpush.msra.mxu0 0.0
    %4387 = vmatpush.msra.mxu0 0.0
    %4388 = vmatpush.msra.mxu0 0.0
    %4389 = vmatpush.msra.mxu0 0.0
    %4390 = vmatpush.msra.mxu0 0.0
    %4391 = vmatpush.msra.mxu0 0.0
    %4392 = vmatpush.msra.mxu0 0.0
    %4393 = vmatpush.msra.mxu0 %v2471
    %4394 = vmatpush.msra.mxu0 %v2470
    %4395 = vmatmul.f32.gmra.mxu0 %v4377
    %v4396 = vpop.f32.mrf.mxu0
    %v4397 = vadd.f32 %v4374, %v4396
    %4398 = vdwg.mxu0
    %v4399 = vmul.f32 %v4275, %v2531
    %v4400 = vsel %vm211, %v4399, 0.0
    %4401 = vadd.xlane.f32.xlu0 %v4400
    %v4402 = vpop.xlane.xlu0 %4401
    %v4403 = vadd.f32 %v4402, %v2738
    %v4404 = vtanh.pop %v4403
    %v4405 = vmul.f32 %v4404, 1.442695
    %v4406 = vpow.pop %v4405
    %v4407 = vsel %vm246, %v4406, 0.0
    %4408 = vadd.xlane.f32.xlu0 %v4407
    %v4409 = vpop.xlane.xlu0 %4408
    %v4410 = vrcp.pop %v4409
    %v4411 = vmul.f32 %v4406, %v4410
    %v4413 = vsel %vm246, %v4411, 0
    %4415 = vmatpush.msra.mxu0 0.0
    %4416 = vmatpush.msra.mxu0 0.0
    %4417 = vmatpush.msra.mxu0 0.0
    %4418 = vmatpush.msra.mxu0 0.0
    %4419 = vmatpush.msra.mxu0 0.0
    %4420 = vmatpush.msra.mxu0 0.0
    %4421 = vmatpush.msra.mxu0 0.0
    %4422 = vmatpush.msra.mxu0 0.0
    %4423 = vmatpush.msra.mxu0 0.0
    %4424 = vmatpush.msra.mxu0 0.0
    %4425 = vmatpush.msra.mxu0 0.0
    %4426 = vmatpush.msra.mxu0 0.0
    %4427 = vmatpush.msra.mxu0 0.0
    %4428 = vmatpush.msra.mxu0 0.0
    %4429 = vmatpush.msra.mxu0 0.0
    %4430 = vmatpush.msra.mxu0 %v2500
    %4431 = vmatmul.f32.gmra.mxu0 %v4413
    %v4432 = vpop.f32.mrf.mxu0
    %v4433 = vadd.f32 0.0, %v4432
    %4434 = vdwg.mxu0
    %v4435 = vmul.f32 %v4275, %v2597
    %4437 = vrot.lane.b32.xlu0 %v4435, 112
    %v4438 = vpop.permute.xlu0 %4437
    %v4440 = vsel %vm211, %v4438, 0.0
    %4441 = vadd.xlane.f32.xlu0 %v4440
    %v4442 = vpop.xlane.xlu0 %4441
    %v4443 = vadd.f32 %v4442, %v2803
    %v4444 = vtanh.pop %v4443
    %v4445 = vmul.f32 %v4444, 1.442695
    %v4446 = vpow.pop %v4445
    %v4447 = vsel %vm246, %v4446, 0.0
    %4448 = vadd.xlane.f32.xlu0 %v4447
    %v4449 = vpop.xlane.xlu0 %4448
    %v4450 = vrcp.pop %v4449
    %v4451 = vmul.f32 %v4446, %v4450
    %v4453 = vsel %vm246, %v4451, 0
    %4455 = vmatpush.msra.mxu0 0.0
    %4456 = vmatpush.msra.mxu0 0.0
    %4457 = vmatpush.msra.mxu0 0.0
    %4458 = vmatpush.msra.mxu0 0.0
    %4459 = vmatpush.msra.mxu0 0.0
    %4460 = vmatpush.msra.mxu0 0.0
    %4461 = vmatpush.msra.mxu0 0.0
    %4462 = vmatpush.msra.mxu0 0.0
    %4463 = vmatpush.msra.mxu0 0.0
    %4464 = vmatpush.msra.mxu0 0.0
    %4465 = vmatpush.msra.mxu0 0.0
    %4466 = vmatpush.msra.mxu0 0.0
    %4467 = vmatpush.msra.mxu0 0.0
    %4468 = vmatpush.msra.mxu0 0.0
    %4469 = vmatpush.msra.mxu0 0.0
    %4470 = vmatpush.msra.mxu0 %v2780
    %4471 = vmatmul.f32.gmra.mxu0 %v4453
    %v4472 = vpop.f32.mrf.mxu0
    %v4473 = vadd.f32 0.0, %v4472
    %4474 = vdwg.mxu0
    %v4476 = vsel %vm211, %v4473, 0
    %4478 = vmatpush.msra.mxu0 0.0
    %4479 = vmatpush.msra.mxu0 0.0
    %4480 = vmatpush.msra.mxu0 0.0
    %4481 = vmatpush.msra.mxu0 0.0
    %4482 = vmatpush.msra.mxu0 0.0
    %4483 = vmatpush.msra.mxu0 0.0
    %4484 = vmatpush.msra.mxu0 0.0
    %4485 = vmatpush.msra.mxu0 0.0
    %4486 = vmatpush.msra.mxu0 0.0
    %4487 = vmatpush.msra.mxu0 0.0
    %4488 = vmatpush.msra.mxu0 0.0
    %4489 = vmatpush.msra.mxu0 0.0
    %4490 = vmatpush.msra.mxu0 0.0
    %4491 = vmatpush.msra.mxu0 0.0
    %4492 = vmatpush.msra.mxu0 %v2473
    %4493 = vmatpush.msra.mxu0 %v2472
    %4494 = vmatmul.f32.gmra.mxu0 %v4476
    %v4495 = vpop.f32.mrf.mxu0
    %v4496 = vadd.f32 0.0, %v4495
    %4497 = vdwg.mxu0
    %v4499 = vsel %vm211, %v4433, 0
    %4501 = vmatpush.msra.mxu0 0.0
    %4502 = vmatpush.msra.mxu0 0.0
    %4503 = vmatpush.msra.mxu0 0.0
    %4504 = vmatpush.msra.mxu0 0.0
    %4505 = vmatpush.msra.mxu0 0.0
    %4506 = vmatpush.msra.mxu0 0.0
    %4507 = vmatpush.msra.mxu0 0.0
    %4508 = vmatpush.msra.mxu0 0.0
    %4509 = vmatpush.msra.mxu0 0.0
    %4510 = vmatpush.msra.mxu0 0.0
    %4511 = vmatpush.msra.mxu0 0.0
    %4512 = vmatpush.msra.mxu0 0.0
    %4513 = vmatpush.msra.mxu0 0.0
    %4514 = vmatpush.msra.mxu0 0.0
    %4515 = vmatpush.msra.mxu0 %v2471
    %4516 = vmatpush.msra.mxu0 %v2470
    %4517 = vmatmul.f32.gmra.mxu0 %v4499
    %v4518 = vpop.f32.mrf.mxu0
    %v4519 = vadd.f32 %v4496, %v4518
    %4520 = vdwg.mxu0
    %v4521 = vadd.f32 %v4397, %v2886
    %v4522 = vadd.f32 %v4519, %v2886
    %v4523 = vadd.f32 %v4252, %v4521
    %v4524 = vadd.f32 %v4253, %v4522
    %v4525 = vmul.f32 %v4523, 0.5
    %v4526 = vmul.f32 %v4524, 0.5
    %v4527 = vtanh.pop %v3983
    %v4528 = vtanh.pop %v3984
    %v4529 = vtanh.pop %v3157
    %v4530 = vtanh.pop %v3158
    %v4532 = vsel %vm150, %v4529, 0
    %v4535 = vsel %vm150, %v4530, 0
    %4537 = vmatpush.msra.mxu0 0.0
    %4538 = vmatpush.msra.mxu0 0.0
    %4539 = vmatpush.msra.mxu0 0.0
    %4540 = vmatpush.msra.mxu0 0.0
    %4541 = vmatpush.msra.mxu0 0.0
    %4542 = vmatpush.msra.mxu0 0.0
    %4543 = vmatpush.msra.mxu0 0.0
    %4544 = vmatpush.msra.mxu0 0.0
    %4545 = vmatpush.msra.mxu0 0.0
    %4546 = vmatpush.msra.mxu0 0.0
    %4547 = vmatpush.msra.mxu0 0.0
    %4548 = vmatpush.msra.mxu0 0.0
    %4549 = vmatpush.msra.mxu0 %v2901
    %4550 = vmatpush.msra.mxu0 %v2900
    %4551 = vmatpush.msra.mxu0 %v2899
    %4552 = vmatpush.msra.mxu0 %v2898
    %4553 = vmatmul.f32.gmra.mxu0 %v4532
    %v4554 = vpop.f32.mrf.mxu0
    %v4555 = vadd.f32 0.0, %v4554
    %4556 = vmatmul.f32.gmra.mxu0 %v4535
    %v4557 = vpop.f32.mrf.mxu0
    %v4558 = vadd.f32 0.0, %v4557
    %4559 = vdwg.mxu0
    %v4561 = vsel %vm150, %v4527, 0
    %v4564 = vsel %vm150, %v4528, 0
    %4566 = vmatpush.msra.mxu0 0.0
    %4567 = vmatpush.msra.mxu0 0.0
    %4568 = vmatpush.msra.mxu0 0.0
    %4569 = vmatpush.msra.mxu0 0.0
    %4570 = vmatpush.msra.mxu0 0.0
    %4571 = vmatpush.msra.mxu0 0.0
    %4572 = vmatpush.msra.mxu0 0.0
    %4573 = vmatpush.msra.mxu0 0.0
    %4574 = vmatpush.msra.mxu0 0.0
    %4575 = vmatpush.msra.mxu0 0.0
    %4576 = vmatpush.msra.mxu0 0.0
    %4577 = vmatpush.msra.mxu0 0.0
    %4578 = vmatpush.msra.mxu0 %v2897
    %4579 = vmatpush.msra.mxu0 %v2896
    %4580 = vmatpush.msra.mxu0 %v2895
    %4581 = vmatpush.msra.mxu0 %v2894
    %4582 = vmatmul.f32.gmra.mxu0 %v4561
    %v4583 = vpop.f32.mrf.mxu0
    %v4584 = vadd.f32 %v4555, %v4583
    %4585 = vmatmul.f32.gmra.mxu0 %v4564
    %v4586 = vpop.f32.mrf.mxu0
    %v4587 = vadd.f32 %v4558, %v4586
    %4588 = vdwg.mxu0
    %v4589 = vadd.f32 %v4584, %v2968
    %v4590 = vadd.f32 %v4587, %v2968
    %v4591 = vmax.f32 %v4589, 0.0
    %v4592 = vmax.f32 %v4590, 0.0
    %v4593 = vsel %vm150, %v4591, 0.0
    %4594 = vadd.xlane.f32.xlu0 %v4593
    %v4595 = vpop.xlane.xlu0 %4594
    %v4596 = vsel %vm150, %v4592, 0.0
    %4597 = vadd.xlane.f32.xlu0 %v4596
    %v4598 = vpop.xlane.xlu0 %4597
    %v4599 = vmul.f32 %v4595, %v584
    %v4600 = vmul.f32 %v4598, %v584
    %v4601 = vsub.f32 %v4591, %v4599
    %v4602 = vsub.f32 %v4592, %v4600
    %v4603 = vmul.f32 %v4601, %v4601
    %v4604 = vmul.f32 %v4602, %v4602
    %v4605 = vsel %vm150, %v4603, 0.0
    %4606 = vadd.xlane.f32.xlu0 %v4605
    %v4607 = vpop.xlane.xlu0 %4606
    %v4608 = vsel %vm150, %v4604, 0.0
    %4609 = vadd.xlane.f32.xlu0 %v4608
    %v4610 = vpop.xlane.xlu0 %4609
    %v4611 = vmul.f32 %v4607, %v584
    %v4612 = vmul.f32 %v4610, %v584
    %v4613 = vadd.f32 %v4611, 1e-06
    %v4614 = vadd.f32 %v4612, 1e-06
    %v4615 = vrsqrt.pop %v4613
    %v4616 = vmul.f32 %v4615, %v4613
    %v4617 = vmul.f32 %v4616, %v4615
    %v4618 = vmul.f32 0.5, %v4617
    %v4619 = vsub.f32 1.5, %v4618
    %v4620 = vmul.f32 %v4615, %v4619
    %vm4621 = vweird.f32 %v4613
    %vm4622 = vweird.f32 %v4615
    %vm4623 = vmor %vm4621, %vm4622
    %v4624 = vsel %vm4623, %v4615, %v4620
    %v4625 = vrsqrt.pop %v4614
    %v4626 = vmul.f32 %v4625, %v4614
    %v4627 = vmul.f32 %v4626, %v4625
    %v4628 = vmul.f32 0.5, %v4627
    %v4629 = vsub.f32 1.5, %v4628
    %v4630 = vmul.f32 %v4625, %v4629
    %vm4631 = vweird.f32 %v4614
    %vm4632 = vweird.f32 %v4625
    %vm4633 = vmor %vm4631, %vm4632
    %v4634 = vsel %vm4633, %v4625, %v4630
    %v4635 = vmul.f32 %v4601, %v4624
    %v4636 = vmul.f32 %v4602, %v4634
    %v4637 = vmul.f32 %v4635, %v3019
    %v4638 = vmul.f32 %v4636, %v3019
    %v4639 = vadd.f32 %v4637, %v3024
    %v4640 = vadd.f32 %v4638, %v3024
    %v4642 = vsel %vm150, %v4639, 0
    %v4645 = vsel %vm150, %v4640, 0
    %4647 = vmatpush.msra.mxu0 0.0
    %4648 = vmatpush.msra.mxu0 0.0
    %4649 = vmatpush.msra.mxu0 0.0
    %4650 = vmatpush.msra.mxu0 0.0
    %4651 = vmatpush.msra.mxu0 0.0
    %4652 = vmatpush.msra.mxu0 0.0
    %4653 = vmatpush.msra.mxu0 0.0
    %4654 = vmatpush.msra.mxu0 0.0
    %4655 = vmatpush.msra.mxu0 0.0
    %4656 = vmatpush.msra.mxu0 0.0
    %4657 = vmatpush.msra.mxu0 0.0
    %4658 = vmatpush.msra.mxu0 0.0
    %4659 = vmatpush.msra.mxu0 %v3031
    %4660 = vmatpush.msra.mxu0 %v3030
    %4661 = vmatpush.msra.mxu0 %v3029
    %4662 = vmatpush.msra.mxu0 %v3028
    %4663 = vmatmul.f32.gmra.mxu0 %v4642
    %v4664 = vpop.f32.mrf.mxu0
    %v4665 = vadd.f32 %v3034, %v4664
    %4666 = vmatmul.f32.gmra.mxu0 %v4645
    %v4667 = vpop.f32.mrf.mxu0
    %v4668 = vadd.f32 %v3034, %v4667
    %4669 = vdwg.mxu0
    %v4670 = vmax.f32 %v4665, 0.0
    %v4671 = vmax.f32 %v4668, 0.0
    %v4673 = vsel %vm3079, %v4670, 0
    %v4676 = vsel %vm3079, %v4671, 0
    %4678 = vmatpush.msra.mxu0 0.0
    %4679 = vmatpush.msra.mxu0 0.0
    %4680 = vmatpush.msra.mxu0 0.0
    %4681 = vmatpush.msra.mxu0 0.0
    %4682 = vmatpush.msra.mxu0 0.0
    %4683 = vmatpush.msra.mxu0 0.0
    %4684 = vmatpush.msra.mxu0 0.0
    %4685 = vmatpush.msra.mxu0 0.0
    %4686 = vmatpush.msra.mxu0 %v3074
    %4687 = vmatpush.msra.mxu0 %v3073
    %4688 = vmatpush.msra.mxu0 %v3072
    %4689 = vmatpush.msra.mxu0 %v3071
    %4690 = vmatpush.msra.mxu0 %v3070
    %4691 = vmatpush.msra.mxu0 %v3069
    %4692 = vmatpush.msra.mxu0 %v3068
    %4693 = vmatpush.msra.mxu0 %v3067
    %4694 = vmatmul.f32.gmra.mxu0 %v4673
    %v4695 = vpop.f32.mrf.mxu0
    %v4696 = vadd.f32 %v3077, %v4695
    %4697 = vmatmul.f32.gmra.mxu0 %v4676
    %v4698 = vpop.f32.mrf.mxu0
    %v4699 = vadd.f32 %v3077, %v4698
    %4700 = vdwg.mxu0
    %v4701 = vadd.f32 %v4696, %v4639
    %v4702 = vadd.f32 %v4699, %v4640
    %v4703 = vsel %vm150, %v4701, 0.0
    %4704 = vadd.xlane.f32.xlu0 %v4703
    %v4705 = vpop.xlane.xlu0 %4704
    %v4706 = vsel %vm150, %v4702, 0.0
    %4707 = vadd.xlane.f32.xlu0 %v4706
    %v4708 = vpop.xlane.xlu0 %4707
    %v4709 = vmul.f32 %v4705, %v584
    %v4710 = vmul.f32 %v4708, %v584
    %v4711 = vsub.f32 %v4701, %v4709
    %v4712 = vsub.f32 %v4702, %v4710
    %v4713 = vmul.f32 %v4711, %v4711
    %v4714 = vmul.f32 %v4712, %v4712
    %v4715 = vsel %vm150, %v4713, 0.0
    %4716 = vadd.xlane.f32.xlu0 %v4715
    %v4717 = vpop.xlane.xlu0 %4716
    %v4718 = vsel %vm150, %v4714, 0.0
    %4719 = vadd.xlane.f32.xlu0 %v4718
    %v4720 = vpop.xlane.xlu0 %4719
    %v4721 = vmul.f32 %v4717, %v584
    %v4722 = vmul.f32 %v4720, %v584
    %v4723 = vadd.f32 %v4721, 1e-06
    %v4724 = vadd.f32 %v4722, 1e-06
    %v4725 = vrsqrt.pop %v4723
    %v4726 = vmul.f32 %v4725, %v4723
    %v4727 = vmul.f32 %v4726, %v4725
    %v4728 = vmul.f32 0.5, %v4727
    %v4729 = vsub.f32 1.5, %v4728
    %v4730 = vmul.f32 %v4725, %v4729
    %vm4731 = vweird.f32 %v4723
    %vm4732 = vweird.f32 %v4725
    %vm4733 = vmor %vm4731, %vm4732
    %v4734 = vsel %vm4733, %v4725, %v4730
    %v4735 = vrsqrt.pop %v4724
    %v4736 = vmul.f32 %v4735, %v4724
    %v4737 = vmul.f32 %v4736, %v4735
    %v4738 = vmul.f32 0.5, %v4737
    %v4739 = vsub.f32 1.5, %v4738
    %v4740 = vmul.f32 %v4735, %v4739
    %vm4741 = vweird.f32 %v4724
    %vm4742 = vweird.f32 %v4735
    %vm4743 = vmor %vm4741, %vm4742
    %v4744 = vsel %vm4743, %v4735, %v4740
    %v4745 = vmul.f32 %v4711, %v4734
    %v4746 = vmul.f32 %v4712, %v4744
    %v4747 = vmul.f32 %v4745, %v3019
    %v4748 = vmul.f32 %v4746, %v3019
    %v4749 = vadd.f32 %v4747, %v3024
    %v4750 = vadd.f32 %v4748, %v3024
    %v4751 = vtanh.pop %v4525
    %v4752 = vtanh.pop %v4526
    %v4753 = vtanh.pop %v3429
    %v4754 = vtanh.pop %v3430
    %v4756 = vsel %vm150, %v4753, 0
    %v4759 = vsel %vm150, %v4754, 0
    %4761 = vmatpush.msra.mxu0 0.0
    %4762 = vmatpush.msra.mxu0 0.0
    %4763 = vmatpush.msra.mxu0 0.0
    %4764 = vmatpush.msra.mxu0 0.0
    %4765 = vmatpush.msra.mxu0 0.0
    %4766 = vmatpush.msra.mxu0 0.0
    %4767 = vmatpush.msra.mxu0 0.0
    %4768 = vmatpush.msra.mxu0 0.0
    %4769 = vmatpush.msra.mxu0 0.0
    %4770 = vmatpush.msra.mxu0 0.0
    %4771 = vmatpush.msra.mxu0 0.0
    %4772 = vmatpush.msra.mxu0 0.0
    %4773 = vmatpush.msra.mxu0 %v3167
    %4774 = vmatpush.msra.mxu0 %v3166
    %4775 = vmatpush.msra.mxu0 %v3165
    %4776 = vmatpush.msra.mxu0 %v3164
    %4777 = vmatmul.f32.gmra.mxu0 %v4756
    %v4778 = vpop.f32.mrf.mxu0
    %v4779 = vadd.f32 0.0, %v4778
    %4780 = vmatmul.f32.gmra.mxu0 %v4759
    %v4781 = vpop.f32.mrf.mxu0
    %v4782 = vadd.f32 0.0, %v4781
    %4783 = vdwg.mxu0
    %v4785 = vsel %vm150, %v4751, 0
    %v4788 = vsel %vm150, %v4752, 0
    %4790 = vmatpush.msra.mxu0 0.0
    %4791 = vmatpush.msra.mxu0 0.0
    %4792 = vmatpush.msra.mxu0 0.0
    %4793 = vmatpush.msra.mxu0 0.0
    %4794 = vmatpush.msra.mxu0 0.0
    %4795 = vmatpush.msra.mxu0 0.0
    %4796 = vmatpush.msra.mxu0 0.0
    %4797 = vmatpush.msra.mxu0 0.0
    %4798 = vmatpush.msra.mxu0 0.0
    %4799 = vmatpush.msra.mxu0 0.0
    %4800 = vmatpush.msra.mxu0 0.0
    %4801 = vmatpush.msra.mxu0 0.0
    %4802 = vmatpush.msra.mxu0 %v3163
    %4803 = vmatpush.msra.mxu0 %v3162
    %4804 = vmatpush.msra.mxu0 %v3161
    %4805 = vmatpush.msra.mxu0 %v3160
    %4806 = vmatmul.f32.gmra.mxu0 %v4785
    %v4807 = vpop.f32.mrf.mxu0
    %v4808 = vadd.f32 %v4779, %v4807
    %4809 = vmatmul.f32.gmra.mxu0 %v4788
    %v4810 = vpop.f32.mrf.mxu0
    %v4811 = vadd.f32 %v4782, %v4810
    %4812 = vdwg.mxu0
    %v4813 = vadd.f32 %v4808, %v3237
    %v4814 = vadd.f32 %v4811, %v3237
    %v4815 = vmax.f32 %v4813, 0.0
    %v4816 = vmax.f32 %v4814, 0.0
    %v4817 = vsel %vm150, %v4815, 0.0
    %4818 = vadd.xlane.f32.xlu0 %v4817
    %v4819 = vpop.xlane.xlu0 %4818
    %v4820 = vsel %vm150, %v4816, 0.0
    %4821 = vadd.xlane.f32.xlu0 %v4820
    %v4822 = vpop.xlane.xlu0 %4821
    %v4823 = vmul.f32 %v4819, %v584
    %v4824 = vmul.f32 %v4822, %v584
    %v4825 = vsub.f32 %v4815, %v4823
    %v4826 = vsub.f32 %v4816, %v4824
    %v4827 = vmul.f32 %v4825, %v4825
    %v4828 = vmul.f32 %v4826, %v4826
    %v4829 = vsel %vm150, %v4827, 0.0
    %4830 = vadd.xlane.f32.xlu0 %v4829
    %v4831 = vpop.xlane.xlu0 %4830
    %v4832 = vsel %vm150, %v4828, 0.0
    %4833 = vadd.xlane.f32.xlu0 %v4832
    %v4834 = vpop.xlane.xlu0 %4833
    %v4835 = vmul.f32 %v4831, %v584
    %v4836 = vmul.f32 %v4834, %v584
    %v4837 = vadd.f32 %v4835, 1e-06
    %v4838 = vadd.f32 %v4836, 1e-06
    %v4839 = vrsqrt.pop %v4837
    %v4840 = vmul.f32 %v4839, %v4837
    %v4841 = vmul.f32 %v4840, %v4839
    %v4842 = vmul.f32 0.5, %v4841
    %v4843 = vsub.f32 1.5, %v4842
    %v4844 = vmul.f32 %v4839, %v4843
    %vm4845 = vweird.f32 %v4837
    %vm4846 = vweird.f32 %v4839
    %vm4847 = vmor %vm4845, %vm4846
    %v4848 = vsel %vm4847, %v4839, %v4844
    %v4849 = vrsqrt.pop %v4838
    %v4850 = vmul.f32 %v4849, %v4838
    %v4851 = vmul.f32 %v4850, %v4849
    %v4852 = vmul.f32 0.5, %v4851
    %v4853 = vsub.f32 1.5, %v4852
    %v4854 = vmul.f32 %v4849, %v4853
    %vm4855 = vweird.f32 %v4838
    %vm4856 = vweird.f32 %v4849
    %vm4857 = vmor %vm4855, %vm4856
    %v4858 = vsel %vm4857, %v4849, %v4854
    %v4859 = vmul.f32 %v4825, %v4848
    %v4860 = vmul.f32 %v4826, %v4858
    %v4861 = vmul.f32 %v4859, %v3288
    %v4862 = vmul.f32 %v4860, %v3288
    %v4863 = vadd.f32 %v4861, %v3293
    %v4864 = vadd.f32 %v4862, %v3293
    %v4866 = vsel %vm150, %v4863, 0
    %v4869 = vsel %vm150, %v4864, 0
    %4871 = vmatpush.msra.mxu0 0.0
    %4872 = vmatpush.msra.mxu0 0.0
    %4873 = vmatpush.msra.mxu0 0.0
    %4874 = vmatpush.msra.mxu0 0.0
    %4875 = vmatpush.msra.mxu0 0.0
    %4876 = vmatpush.msra.mxu0 0.0
    %4877 = vmatpush.msra.mxu0 0.0
    %4878 = vmatpush.msra.mxu0 0.0
    %4879 = vmatpush.msra.mxu0 0.0
    %4880 = vmatpush.msra.mxu0 0.0
    %4881 = vmatpush.msra.mxu0 0.0
    %4882 = vmatpush.msra.mxu0 0.0
    %4883 = vmatpush.msra.mxu0 %v3301
    %4884 = vmatpush.msra.mxu0 %v3300
    %4885 = vmatpush.msra.mxu0 %v3299
    %4886 = vmatpush.msra.mxu0 %v3298
    %4887 = vmatmul.f32.gmra.mxu0 %v4866
    %v4888 = vpop.f32.mrf.mxu0
    %v4889 = vadd.f32 %v3305, %v4888
    %4890 = vmatmul.f32.gmra.mxu0 %v4869
    %v4891 = vpop.f32.mrf.mxu0
    %v4892 = vadd.f32 %v3305, %v4891
    %4893 = vdwg.mxu0
    %v4894 = vmax.f32 %v4889, 0.0
    %v4895 = vmax.f32 %v4892, 0.0
    %v4897 = vsel %vm3079, %v4894, 0
    %v4900 = vsel %vm3079, %v4895, 0
    %4902 = vmatpush.msra.mxu0 0.0
    %4903 = vmatpush.msra.mxu0 0.0
    %4904 = vmatpush.msra.mxu0 0.0
    %4905 = vmatpush.msra.mxu0 0.0
    %4906 = vmatpush.msra.mxu0 0.0
    %4907 = vmatpush.msra.mxu0 0.0
    %4908 = vmatpush.msra.mxu0 0.0
    %4909 = vmatpush.msra.mxu0 0.0
    %4910 = vmatpush.msra.mxu0 %v3346
    %4911 = vmatpush.msra.mxu0 %v3345
    %4912 = vmatpush.msra.mxu0 %v3344
    %4913 = vmatpush.msra.mxu0 %v3343
    %4914 = vmatpush.msra.mxu0 %v3342
    %4915 = vmatpush.msra.mxu0 %v3341
    %4916 = vmatpush.msra.mxu0 %v3340
    %4917 = vmatpush.msra.mxu0 %v3339
    %4918 = vmatmul.f32.gmra.mxu0 %v4897
    %v4919 = vpop.f32.mrf.mxu0
    %v4920 = vadd.f32 %v3350, %v4919
    %4921 = vmatmul.f32.gmra.mxu0 %v4900
    %v4922 = vpop.f32.mrf.mxu0
    %v4923 = vadd.f32 %v3350, %v4922
    %4924 = vdwg.mxu0
    %v4925 = vadd.f32 %v4920, %v4863
    %v4926 = vadd.f32 %v4923, %v4864
    %v4927 = vsel %vm150, %v4925, 0.0
    %4928 = vadd.xlane.f32.xlu0 %v4927
    %v4929 = vpop.xlane.xlu0 %4928
    %v4930 = vsel %vm150, %v4926, 0.0
    %4931 = vadd.xlane.f32.xlu0 %v4930
    %v4932 = vpop.xlane.xlu0 %4931
    %v4933 = vmul.f32 %v4929, %v584
    %v4934 = vmul.f32 %v4932, %v584
    %v4935 = vsub.f32 %v4925, %v4933
    %v4936 = vsub.f32 %v4926, %v4934
    %v4937 = vmul.f32 %v4935, %v4935
    %v4938 = vmul.f32 %v4936, %v4936
    %v4939 = vsel %vm150, %v4937, 0.0
    %4940 = vadd.xlane.f32.xlu0 %v4939
    %v4941 = vpop.xlane.xlu0 %4940
    %v4942 = vsel %vm150, %v4938, 0.0
    %4943 = vadd.xlane.f32.xlu0 %v4942
    %v4944 = vpop.xlane.xlu0 %4943
    %v4945 = vmul.f32 %v4941, %v584
    %v4946 = vmul.f32 %v4944, %v584
    %v4947 = vadd.f32 %v4945, 1e-06
    %v4948 = vadd.f32 %v4946, 1e-06
    %v4949 = vrsqrt.pop %v4947
    %v4950 = vmul.f32 %v4949, %v4947
    %v4951 = vmul.f32 %v4950, %v4949
    %v4952 = vmul.f32 0.5, %v4951
    %v4953 = vsub.f32 1.5, %v4952
    %v4954 = vmul.f32 %v4949, %v4953
    %vm4955 = vweird.f32 %v4947
    %vm4956 = vweird.f32 %v4949
    %vm4957 = vmor %vm4955, %vm4956
    %v4958 = vsel %vm4957, %v4949, %v4954
    %v4959 = vrsqrt.pop %v4948
    %v4960 = vmul.f32 %v4959, %v4948
    %v4961 = vmul.f32 %v4960, %v4959
    %v4962 = vmul.f32 0.5, %v4961
    %v4963 = vsub.f32 1.5, %v4962
    %v4964 = vmul.f32 %v4959, %v4963
    %vm4965 = vweird.f32 %v4948
    %vm4966 = vweird.f32 %v4959
    %vm4967 = vmor %vm4965, %vm4966
    %v4968 = vsel %vm4967, %v4959, %v4964
    %v4969 = vmul.f32 %v4935, %v4958
    %v4970 = vmul.f32 %v4936, %v4968
    %v4971 = vmul.f32 %v4969, %v3288
    %v4972 = vmul.f32 %v4970, %v3288
    %v4973 = vadd.f32 %v4971, %v3293
    %v4974 = vadd.f32 %v4972, %v3293
    %4977 = vrot.lane.b32.xlu0 %v4973, 32
    %v4978 = vpop.permute.xlu0 %4977
    %4979 = vrot.lane.b32.xlu0 %v4974, 32
    %v4980 = vpop.permute.xlu0 %4979
    %v4983 = vsel %vm150, %v4749, %v4978
    %v4984 = vsel %vm150, %v4750, %v4980
    %4985 = vst.msk [vmem:[%s20] sm:$0xff] %vm3079, %v4983
    %4986 = vst.msk [vmem:[%s20 + $0x8] sm:$0xff] %vm3079, %v4984
    // Predicated region
    $region98: #{global_branch.1} parent=1 // pred_check
      _
    $region99: #{global_branch.1} parent=1 // pred_check_branch
      %4988 = sbr.rel (0) target = $region101
    $region100: #{global_branch.1} parent=1 // pred_region
      _
    $region101: #{global_branch.1} parent=1 // pred_fallthru
      _
    // Predicated region
    $region102: #{global_branch.1} parent=1 // pred_check
      _
    $region103: #{global_branch.1} parent=1 // pred_check_branch
      %4990 = sbr.rel (0) target = $region105
    $region104: #{global_branch.1} parent=1 // pred_region
      _
    $region105: #{global_branch.1} parent=1 // pred_fallthru
      _
    %4991 = vsyncpa [#allocation3], 1
    %4992 = vsyncpa [#allocation5], 1
    %4993 = vsyncpa [#allocation8], 1

</llo_original>
